<compile_context>
chip_gen: v7x
topology: tpu7x:2x2x1
jax: 0.10.0
libtpu: 0.0.40
codegen_flags: <defaults>
</compile_context>

<pallas_src>
import functools

import jax
import jax.numpy as jnp
from jax import lax
from jax.experimental import pallas as pl
from jax.experimental.pallas import tpu as pltpu


# ----------------------------- Pallas kernel --------------------------------

def _pool_windows(x_ref, mode):
    """Reduce (K3, S_tile, C) -> (S_tile, C) over the leading window axis.

    The window axis is leading, so the reduction is a chain of elementwise
    jnp.maximum / adds on the VPU (no XLU cross-sublane reduce).  The ref is
    read in small chunks so vreg live ranges stay bounded even for K3 = 512.
    """
    k3 = x_ref.shape[0]
    # largest chunk <= 8 that divides k3 (k3 = k**3; for even k this is 8)
    chunk = max(c for c in range(1, min(k3, 8) + 1) if k3 % c == 0)
    nchunks = k3 // chunk

    def reduce_chunk(off):
        blk = x_ref[pl.ds(off, chunk)]                   # (chunk, S_tile, C)
        if mode == "avg":
            blk = blk.astype(jnp.float32)                # accumulate avg in f32
        acc = blk[0]
        for j in range(1, chunk):                        # static unroll -> VPU
            acc = jnp.maximum(acc, blk[j]) if mode == "max" else acc + blk[j]
        return acc

    acc = reduce_chunk(0)
    if nchunks > 1:
        def body(i, carry):
            off = pl.multiple_of(i * chunk, chunk)
            c = reduce_chunk(off)
            return jnp.maximum(carry, c) if mode == "max" else carry + c
        acc = lax.fori_loop(1, nchunks, body, acc)

    if mode == "avg":
        acc = acc * (1.0 / k3)
    return acc


def _spp_kernel(x1_ref, x2_ref, x3_ref, w_ref, b_ref, out_ref, *,
                mode, matmul_dtype):
    # x{i}_ref : (K_i^3, S_tile, C_i) pooling windows (window axis leading)
    # w_ref    : (Cin, Cout)  full 1x1x1 conv weight (Cin = C1+C2+C3)
    # b_ref    : (1, Cout)
    # out_ref  : (S_tile, Cout)
    p1 = _pool_windows(x1_ref, mode)                     # (S_tile, C1)
    p2 = _pool_windows(x2_ref, mode)                     # (S_tile, C2)
    p3 = _pool_windows(x3_ref, mode)                     # (S_tile, C3)

    # Fused bottleneck: concat along channels, single MXU dot with K = Cin.
    cat = jnp.concatenate([p1, p2, p3], axis=-1).astype(matmul_dtype)
    acc = jnp.dot(cat, w_ref[...], preferred_element_type=jnp.float32)
    out_ref[...] = (acc + b_ref[...].astype(jnp.float32)).astype(out_ref.dtype)


# ------------------------------ glue / wrapper -------------------------------

def _window_leading(x, k):
    """(N, C, D, H, W) -> (N, k^3, S, C) windows, window axis leading."""
    n, c, d, h, w = x.shape
    assert d % k == 0 and h % k == 0 and w % k == 0
    do, ho, wo = d // k, h // k, w // k
    x = x.reshape(n, c, do, k, ho, k, wo, k)
    x = x.transpose(0, 3, 5, 7, 2, 4, 6, 1)      # (N, k, k, k, Do, Ho, Wo, C)
    return x.reshape(n, k * k * k, do * ho * wo, c)


def _auto_s_tile(s, bytes_per_row, budget_bytes=12 << 20):
    """Largest S tile (multiple of 8, dividing S) whose double-buffered input
    blocks fit the VMEM budget.  Generation-safe: budget << v7x's 64 MiB."""
    if s % 8 != 0:
        return s                                  # full-dim block is always legal
    best = 8
    cand = 8
    while cand <= s:
        if s % cand == 0 and 2 * cand * bytes_per_row <= budget_bytes:
            best = cand
        cand += 8
    return best


def pyramid_pooling_3d(en1, en2, en3, weight, bias, levels, mode="max",
                       s_tile=None, matmul_dtype=None):
    """Forward pass of Pyramid_Pooling_3D.

    en1/en2/en3 : NCDHW float tensors.
    weight      : (Cout, Cin, 1, 1, 1) conv weight, Cin = C1 + C2 + C3.
    bias        : (Cout,)
    levels      : [l0, l1, l2] -> pool kernels (l2 on en1, l1 on en2, l0 on en3).
    matmul_dtype: operand dtype for the MXU dot (set jnp.bfloat16 on v6e/v7x).
    """
    assert len(levels) == 3
    assert mode in ("max", "avg")
    k1, k2, k3 = levels[2], levels[1], levels[0]

    n, c1, d1, h1, w1 = en1.shape
    _, c2, _, _, _ = en2.shape
    _, c3, _, _, _ = en3.shape
    do, ho, wo = d1 // k1, h1 // k1, w1 // k1
    s = do * ho * wo
    cout = weight.shape[0]
    cin = c1 + c2 + c3
    assert weight.shape[1] == cin

    if matmul_dtype is None:
        matmul_dtype = en1.dtype
    itemsize = jnp.dtype(en1.dtype).itemsize
    m_itemsize = jnp.dtype(matmul_dtype).itemsize

    # Layout glue (no arithmetic): windowed, window-axis-leading inputs.
    x1 = _window_leading(en1, k1)                 # (N, k1^3, S, C1)
    x2 = _window_leading(en2, k2)                 # (N, k2^3, S, C2)
    x3 = _window_leading(en3, k3)                 # (N, k3^3, S, C3)

    # Full 1x1x1 conv weight as (Cin, Cout) for a single fused dot.
    w2d = weight.reshape(cout, cin).T.astype(matmul_dtype)   # (Cin, Cout)
    b2d = bias.reshape(1, cout).astype(jnp.float32)

    # S tiling: bound per-step VMEM, give pipeline depth & megacore work.
    bytes_per_row = (k1 ** 3 * c1 + k2 ** 3 * c2 + k3 ** 3 * c3) * itemsize
    if s_tile is None:
        s_tile = _auto_s_tile(s, bytes_per_row)
    assert s % s_tile == 0, (s, s_tile)
    n_s_tiles = s // s_tile

    # Explicit VMEM limit (double-buffered blocks + weights + headroom).
    in_block = s_tile * bytes_per_row
    out_block = s_tile * cout * itemsize
    w_bytes = cin * cout * m_itemsize + cout * 4
    vmem_limit = min(max(2 * (in_block + out_block + w_bytes) + (4 << 20),
                         16 << 20), 100 << 20)

    flops = 2 * n * s * cin * cout + n * s * (k1 ** 3 * c1 + k2 ** 3 * c2 + k3 ** 3 * c3)
    bytes_accessed = (x1.size + x2.size + x3.size) * itemsize \
        + w2d.size * m_itemsize + b2d.size * 4 + n * s * cout * itemsize

    kernel = functools.partial(_spp_kernel, mode=mode,
                               matmul_dtype=jnp.dtype(matmul_dtype))

    out = pl.pallas_call(
        kernel,
        out_shape=jax.ShapeDtypeStruct((n, s, cout), en1.dtype),
        grid_spec=pltpu.PrefetchScalarGridSpec(
            num_scalar_prefetch=0,
            grid=(n, n_s_tiles),
            in_specs=[
                pl.BlockSpec((None, k1 ** 3, s_tile, c1), lambda i, j: (i, 0, j, 0)),
                pl.BlockSpec((None, k2 ** 3, s_tile, c2), lambda i, j: (i, 0, j, 0)),
                pl.BlockSpec((None, k3 ** 3, s_tile, c3), lambda i, j: (i, 0, j, 0)),
                pl.BlockSpec((cin, cout), lambda i, j: (0, 0)),
                pl.BlockSpec((1, cout), lambda i, j: (0, 0)),
            ],
            out_specs=pl.BlockSpec((None, s_tile, cout), lambda i, j: (i, j, 0)),
        ),
        compiler_params=pltpu.CompilerParams(
            dimension_semantics=("parallel", "parallel"),
            vmem_limit_bytes=int(vmem_limit)),
        cost_estimate=pl.CostEstimate(flops=int(flops), transcendentals=0,
                                      bytes_accessed=int(bytes_accessed)),
    )(x1, x2, x3, w2d, b2d)

    # (N, S, Cout) -> NCDHW (N, Cout, Do, Ho, Wo), matching PyTorch.
    return out.reshape(n, do, ho, wo, cout).transpose(0, 4, 1, 2, 3)


# ------------------------------ pure-JAX reference ---------------------------

def _reference(en1, en2, en3, weight, bias, levels, mode="max"):
    red = jnp.max if mode == "max" else jnp.mean

    def pool(x, k):
        n, c, d, h, w = x.shape
        x = x.reshape(n, c, d // k, k, h // k, k, w // k, k)
        return red(x, axis=(3, 5, 7))

    p1 = pool(en1, levels[2])
    p2 = pool(en2, levels[1])
    p3 = pool(en3, levels[0])
    cat = jnp.concatenate([p1, p2, p3], axis=1)             # (N, Cin, Do, Ho, Wo)
    w2d = weight.reshape(weight.shape[0], weight.shape[1])   # (Cout, Cin)
    out = jnp.einsum("ncdhw,oc->nodhw", cat, w2d,
                     preferred_element_type=jnp.float32)
    return out + bias[None, :, None, None, None]


# ----------------------------------- main ------------------------------------

if __name__ == "__main__":
    # Shapes consistent with the module's forward:
    #   levels = [2, 4, 8]  -> pool_1: 8 on en1, pool_2: 4 on en2, pool_3: 2 on en3
    #   all pooled outputs have spatial 4x4x4 so the channel concat is valid.
    levels = [2, 4, 8]
    N, C1, C2, C3 = 2, 16, 16, 16
    Cin, Cout = C1 + C2 + C3, 128         # Cout multiple of 128 -> lane-dense output

    key = jax.random.PRNGKey(0)
    k_e1, k_e2, k_e3, k_w, k_b = jax.random.split(key, 5)

    en1 = jax.random.normal(k_e1, (N, C1, 32, 32, 32), dtype=jnp.float32)
    en2 = jax.random.normal(k_e2, (N, C2, 16, 16, 16), dtype=jnp.float32)
    en3 = jax.random.normal(k_e3, (N, C3, 8, 8, 8), dtype=jnp.float32)

    # Deterministic synthetic Conv3d(Cin, Cout, kernel_size=1) parameters.
    weight = jax.random.normal(k_w, (Cout, Cin, 1, 1, 1), dtype=jnp.float32) * 0.05
    bias = jax.random.normal(k_b, (Cout,), dtype=jnp.float32) * 0.05

    for mode in ("max", "avg"):
        # s_tile=16 -> 4 S tiles x N=2 batches = 8 pipelined grid steps.
        out = pyramid_pooling_3d(en1, en2, en3, weight, bias, levels,
                                 mode=mode, s_tile=16)
        out = jax.block_until_ready(out)

        ref = _reference(en1, en2, en3, weight, bias, levels, mode=mode)
        assert out.shape == ref.shape == (N, Cout, 4, 4, 4), (out.shape, ref.shape)
        assert jnp.allclose(out, ref, rtol=2e-2, atol=2e-2), (
            mode, float(jnp.max(jnp.abs(out - ref))))

    print("KERNEL_OK")
</pallas_src>

<mosaic_0001>
module attributes {stable_mosaic.version = 11 : i64} {
  func.func @_spp_kernel(%arg0: i32, %arg1: i32, %arg2: memref<1x512x16x16xf32, #tpu.memory_space<vmem>>, %arg3: memref<1x64x16x16xf32, #tpu.memory_space<vmem>>, %arg4: memref<1x8x16x16xf32, #tpu.memory_space<vmem>>, %arg5: memref<48x128xf32, #tpu.memory_space<vmem>>, %arg6: memref<1x128xf32, #tpu.memory_space<vmem>>, %arg7: memref<1x16x128xf32, #tpu.memory_space<vmem>>) attributes {dimension_semantics = [#tpu.dimension_semantics<parallel>, #tpu.dimension_semantics<parallel>], iteration_bounds = array<i64: 2, 4>, scalar_prefetch = 0 : i64, scratch_operands = 0 : i64, tpu.core_type = #tpu.core_type<tc>, window_params = [{transform_indices = @transform_0, window_bounds = array<i64: 1, 512, 16, 16>}, {transform_indices = @transform_1, window_bounds = array<i64: 1, 64, 16, 16>}, {transform_indices = @transform_2, window_bounds = array<i64: 1, 8, 16, 16>}, {pipeline_mode = #tpu.pipeline_mode<synchronous>, transform_indices = @transform_3, window_bounds = array<i64: 48, 128>}, {pipeline_mode = #tpu.pipeline_mode<synchronous>, transform_indices = @transform_4, window_bounds = array<i64: 1, 128>}, {transform_indices = @transform_5, window_bounds = array<i64: 1, 16, 128>}]} {
    %c0 = arith.constant 0 : index
    %c0_0 = arith.constant 0 : index
    %c0_1 = arith.constant 0 : index
    %c0_2 = arith.constant 0 : index
    %0 = vector.load %arg2[%c0, %c0_0, %c0_1, %c0_2] : memref<1x512x16x16xf32, #tpu.memory_space<vmem>>, vector<1x8x16x16xf32>
    %1 = vector.shape_cast %0 : vector<1x8x16x16xf32> to vector<8x16x16xf32>
    %2 = vector.extract_strided_slice %1 {offsets = [0, 0, 0], sizes = [1, 16, 16], strides = [1, 1, 1]} : vector<8x16x16xf32> to vector<1x16x16xf32>
    %3 = vector.shape_cast %2 : vector<1x16x16xf32> to vector<16x16xf32>
    %4 = vector.extract_strided_slice %1 {offsets = [1, 0, 0], sizes = [1, 16, 16], strides = [1, 1, 1]} : vector<8x16x16xf32> to vector<1x16x16xf32>
    %5 = vector.shape_cast %4 : vector<1x16x16xf32> to vector<16x16xf32>
    %6 = arith.maximumf %3, %5 : vector<16x16xf32>
    %7 = vector.extract_strided_slice %1 {offsets = [2, 0, 0], sizes = [1, 16, 16], strides = [1, 1, 1]} : vector<8x16x16xf32> to vector<1x16x16xf32>
    %8 = vector.shape_cast %7 : vector<1x16x16xf32> to vector<16x16xf32>
    %9 = arith.maximumf %6, %8 : vector<16x16xf32>
    %10 = vector.extract_strided_slice %1 {offsets = [3, 0, 0], sizes = [1, 16, 16], strides = [1, 1, 1]} : vector<8x16x16xf32> to vector<1x16x16xf32>
    %11 = vector.shape_cast %10 : vector<1x16x16xf32> to vector<16x16xf32>
    %12 = arith.maximumf %9, %11 : vector<16x16xf32>
    %13 = vector.extract_strided_slice %1 {offsets = [4, 0, 0], sizes = [1, 16, 16], strides = [1, 1, 1]} : vector<8x16x16xf32> to vector<1x16x16xf32>
    %14 = vector.shape_cast %13 : vector<1x16x16xf32> to vector<16x16xf32>
    %15 = arith.maximumf %12, %14 : vector<16x16xf32>
    %16 = vector.extract_strided_slice %1 {offsets = [5, 0, 0], sizes = [1, 16, 16], strides = [1, 1, 1]} : vector<8x16x16xf32> to vector<1x16x16xf32>
    %17 = vector.shape_cast %16 : vector<1x16x16xf32> to vector<16x16xf32>
    %18 = arith.maximumf %15, %17 : vector<16x16xf32>
    %19 = vector.extract_strided_slice %1 {offsets = [6, 0, 0], sizes = [1, 16, 16], strides = [1, 1, 1]} : vector<8x16x16xf32> to vector<1x16x16xf32>
    %20 = vector.shape_cast %19 : vector<1x16x16xf32> to vector<16x16xf32>
    %21 = arith.maximumf %18, %20 : vector<16x16xf32>
    %22 = vector.extract_strided_slice %1 {offsets = [7, 0, 0], sizes = [1, 16, 16], strides = [1, 1, 1]} : vector<8x16x16xf32> to vector<1x16x16xf32>
    %23 = vector.shape_cast %22 : vector<1x16x16xf32> to vector<16x16xf32>
    %24 = arith.maximumf %21, %23 : vector<16x16xf32>
    %c1_i32 = arith.constant 1 : i32
    %c63_i32 = arith.constant 63 : i32
    %25 = arith.addi %c1_i32, %c63_i32 : i32
    %c1_i32_3 = arith.constant 1 : i32
    %26 = scf.for %arg8 = %c1_i32 to %25 step %c1_i32_3 iter_args(%arg9 = %24) -> (vector<16x16xf32>)  : i32 {
      %c8_i32 = arith.constant 8 : i32
      %88 = arith.muli %arg8, %c8_i32 : i32
      %89 = tpu.assume_multiple %88, 8 : i32
      %c0_23 = arith.constant 0 : index
      %90 = arith.index_cast %89 : i32 to index
      %c0_24 = arith.constant 0 : index
      %c0_25 = arith.constant 0 : index
      %91 = vector.load %arg2[%c0_23, %90, %c0_24, %c0_25] : memref<1x512x16x16xf32, #tpu.memory_space<vmem>>, vector<1x8x16x16xf32>
      %92 = vector.shape_cast %91 : vector<1x8x16x16xf32> to vector<8x16x16xf32>
      %93 = vector.extract_strided_slice %92 {offsets = [0, 0, 0], sizes = [1, 16, 16], strides = [1, 1, 1]} : vector<8x16x16xf32> to vector<1x16x16xf32>
      %94 = vector.shape_cast %93 : vector<1x16x16xf32> to vector<16x16xf32>
      %95 = vector.extract_strided_slice %92 {offsets = [1, 0, 0], sizes = [1, 16, 16], strides = [1, 1, 1]} : vector<8x16x16xf32> to vector<1x16x16xf32>
      %96 = vector.shape_cast %95 : vector<1x16x16xf32> to vector<16x16xf32>
      %97 = arith.maximumf %94, %96 : vector<16x16xf32>
      %98 = vector.extract_strided_slice %92 {offsets = [2, 0, 0], sizes = [1, 16, 16], strides = [1, 1, 1]} : vector<8x16x16xf32> to vector<1x16x16xf32>
      %99 = vector.shape_cast %98 : vector<1x16x16xf32> to vector<16x16xf32>
      %100 = arith.maximumf %97, %99 : vector<16x16xf32>
      %101 = vector.extract_strided_slice %92 {offsets = [3, 0, 0], sizes = [1, 16, 16], strides = [1, 1, 1]} : vector<8x16x16xf32> to vector<1x16x16xf32>
      %102 = vector.shape_cast %101 : vector<1x16x16xf32> to vector<16x16xf32>
      %103 = arith.maximumf %100, %102 : vector<16x16xf32>
      %104 = vector.extract_strided_slice %92 {offsets = [4, 0, 0], sizes = [1, 16, 16], strides = [1, 1, 1]} : vector<8x16x16xf32> to vector<1x16x16xf32>
      %105 = vector.shape_cast %104 : vector<1x16x16xf32> to vector<16x16xf32>
      %106 = arith.maximumf %103, %105 : vector<16x16xf32>
      %107 = vector.extract_strided_slice %92 {offsets = [5, 0, 0], sizes = [1, 16, 16], strides = [1, 1, 1]} : vector<8x16x16xf32> to vector<1x16x16xf32>
      %108 = vector.shape_cast %107 : vector<1x16x16xf32> to vector<16x16xf32>
      %109 = arith.maximumf %106, %108 : vector<16x16xf32>
      %110 = vector.extract_strided_slice %92 {offsets = [6, 0, 0], sizes = [1, 16, 16], strides = [1, 1, 1]} : vector<8x16x16xf32> to vector<1x16x16xf32>
      %111 = vector.shape_cast %110 : vector<1x16x16xf32> to vector<16x16xf32>
      %112 = arith.maximumf %109, %111 : vector<16x16xf32>
      %113 = vector.extract_strided_slice %92 {offsets = [7, 0, 0], sizes = [1, 16, 16], strides = [1, 1, 1]} : vector<8x16x16xf32> to vector<1x16x16xf32>
      %114 = vector.shape_cast %113 : vector<1x16x16xf32> to vector<16x16xf32>
      %115 = arith.maximumf %112, %114 : vector<16x16xf32>
      %116 = arith.maximumf %arg9, %115 : vector<16x16xf32>
      scf.yield %116 : vector<16x16xf32>
    }
    %c63_i32_4 = arith.constant 63 : i32
    %c0_5 = arith.constant 0 : index
    %c0_6 = arith.constant 0 : index
    %c0_7 = arith.constant 0 : index
    %c0_8 = arith.constant 0 : index
    %27 = vector.load %arg3[%c0_5, %c0_6, %c0_7, %c0_8] : memref<1x64x16x16xf32, #tpu.memory_space<vmem>>, vector<1x8x16x16xf32>
    %28 = vector.shape_cast %27 : vector<1x8x16x16xf32> to vector<8x16x16xf32>
    %29 = vector.extract_strided_slice %28 {offsets = [0, 0, 0], sizes = [1, 16, 16], strides = [1, 1, 1]} : vector<8x16x16xf32> to vector<1x16x16xf32>
    %30 = vector.shape_cast %29 : vector<1x16x16xf32> to vector<16x16xf32>
    %31 = vector.extract_strided_slice %28 {offsets = [1, 0, 0], sizes = [1, 16, 16], strides = [1, 1, 1]} : vector<8x16x16xf32> to vector<1x16x16xf32>
    %32 = vector.shape_cast %31 : vector<1x16x16xf32> to vector<16x16xf32>
    %33 = arith.maximumf %30, %32 : vector<16x16xf32>
    %34 = vector.extract_strided_slice %28 {offsets = [2, 0, 0], sizes = [1, 16, 16], strides = [1, 1, 1]} : vector<8x16x16xf32> to vector<1x16x16xf32>
    %35 = vector.shape_cast %34 : vector<1x16x16xf32> to vector<16x16xf32>
    %36 = arith.maximumf %33, %35 : vector<16x16xf32>
    %37 = vector.extract_strided_slice %28 {offsets = [3, 0, 0], sizes = [1, 16, 16], strides = [1, 1, 1]} : vector<8x16x16xf32> to vector<1x16x16xf32>
    %38 = vector.shape_cast %37 : vector<1x16x16xf32> to vector<16x16xf32>
    %39 = arith.maximumf %36, %38 : vector<16x16xf32>
    %40 = vector.extract_strided_slice %28 {offsets = [4, 0, 0], sizes = [1, 16, 16], strides = [1, 1, 1]} : vector<8x16x16xf32> to vector<1x16x16xf32>
    %41 = vector.shape_cast %40 : vector<1x16x16xf32> to vector<16x16xf32>
    %42 = arith.maximumf %39, %41 : vector<16x16xf32>
    %43 = vector.extract_strided_slice %28 {offsets = [5, 0, 0], sizes = [1, 16, 16], strides = [1, 1, 1]} : vector<8x16x16xf32> to vector<1x16x16xf32>
    %44 = vector.shape_cast %43 : vector<1x16x16xf32> to vector<16x16xf32>
    %45 = arith.maximumf %42, %44 : vector<16x16xf32>
    %46 = vector.extract_strided_slice %28 {offsets = [6, 0, 0], sizes = [1, 16, 16], strides = [1, 1, 1]} : vector<8x16x16xf32> to vector<1x16x16xf32>
    %47 = vector.shape_cast %46 : vector<1x16x16xf32> to vector<16x16xf32>
    %48 = arith.maximumf %45, %47 : vector<16x16xf32>
    %49 = vector.extract_strided_slice %28 {offsets = [7, 0, 0], sizes = [1, 16, 16], strides = [1, 1, 1]} : vector<8x16x16xf32> to vector<1x16x16xf32>
    %50 = vector.shape_cast %49 : vector<1x16x16xf32> to vector<16x16xf32>
    %51 = arith.maximumf %48, %50 : vector<16x16xf32>
    %c1_i32_9 = arith.constant 1 : i32
    %c7_i32 = arith.constant 7 : i32
    %52 = arith.addi %c1_i32_9, %c7_i32 : i32
    %c1_i32_10 = arith.constant 1 : i32
    %53 = scf.for %arg8 = %c1_i32_9 to %52 step %c1_i32_10 iter_args(%arg9 = %51) -> (vector<16x16xf32>)  : i32 {
      %c8_i32 = arith.constant 8 : i32
      %88 = arith.muli %arg8, %c8_i32 : i32
      %89 = tpu.assume_multiple %88, 8 : i32
      %c0_23 = arith.constant 0 : index
      %90 = arith.index_cast %89 : i32 to index
      %c0_24 = arith.constant 0 : index
      %c0_25 = arith.constant 0 : index
      %91 = vector.load %arg3[%c0_23, %90, %c0_24, %c0_25] : memref<1x64x16x16xf32, #tpu.memory_space<vmem>>, vector<1x8x16x16xf32>
      %92 = vector.shape_cast %91 : vector<1x8x16x16xf32> to vector<8x16x16xf32>
      %93 = vector.extract_strided_slice %92 {offsets = [0, 0, 0], sizes = [1, 16, 16], strides = [1, 1, 1]} : vector<8x16x16xf32> to vector<1x16x16xf32>
      %94 = vector.shape_cast %93 : vector<1x16x16xf32> to vector<16x16xf32>
      %95 = vector.extract_strided_slice %92 {offsets = [1, 0, 0], sizes = [1, 16, 16], strides = [1, 1, 1]} : vector<8x16x16xf32> to vector<1x16x16xf32>
      %96 = vector.shape_cast %95 : vector<1x16x16xf32> to vector<16x16xf32>
      %97 = arith.maximumf %94, %96 : vector<16x16xf32>
      %98 = vector.extract_strided_slice %92 {offsets = [2, 0, 0], sizes = [1, 16, 16], strides = [1, 1, 1]} : vector<8x16x16xf32> to vector<1x16x16xf32>
      %99 = vector.shape_cast %98 : vector<1x16x16xf32> to vector<16x16xf32>
      %100 = arith.maximumf %97, %99 : vector<16x16xf32>
      %101 = vector.extract_strided_slice %92 {offsets = [3, 0, 0], sizes = [1, 16, 16], strides = [1, 1, 1]} : vector<8x16x16xf32> to vector<1x16x16xf32>
      %102 = vector.shape_cast %101 : vector<1x16x16xf32> to vector<16x16xf32>
      %103 = arith.maximumf %100, %102 : vector<16x16xf32>
      %104 = vector.extract_strided_slice %92 {offsets = [4, 0, 0], sizes = [1, 16, 16], strides = [1, 1, 1]} : vector<8x16x16xf32> to vector<1x16x16xf32>
      %105 = vector.shape_cast %104 : vector<1x16x16xf32> to vector<16x16xf32>
      %106 = arith.maximumf %103, %105 : vector<16x16xf32>
      %107 = vector.extract_strided_slice %92 {offsets = [5, 0, 0], sizes = [1, 16, 16], strides = [1, 1, 1]} : vector<8x16x16xf32> to vector<1x16x16xf32>
      %108 = vector.shape_cast %107 : vector<1x16x16xf32> to vector<16x16xf32>
      %109 = arith.maximumf %106, %108 : vector<16x16xf32>
      %110 = vector.extract_strided_slice %92 {offsets = [6, 0, 0], sizes = [1, 16, 16], strides = [1, 1, 1]} : vector<8x16x16xf32> to vector<1x16x16xf32>
      %111 = vector.shape_cast %110 : vector<1x16x16xf32> to vector<16x16xf32>
      %112 = arith.maximumf %109, %111 : vector<16x16xf32>
      %113 = vector.extract_strided_slice %92 {offsets = [7, 0, 0], sizes = [1, 16, 16], strides = [1, 1, 1]} : vector<8x16x16xf32> to vector<1x16x16xf32>
      %114 = vector.shape_cast %113 : vector<1x16x16xf32> to vector<16x16xf32>
      %115 = arith.maximumf %112, %114 : vector<16x16xf32>
      %116 = arith.maximumf %arg9, %115 : vector<16x16xf32>
      scf.yield %116 : vector<16x16xf32>
    }
    %c7_i32_11 = arith.constant 7 : i32
    %c0_12 = arith.constant 0 : index
    %c0_13 = arith.constant 0 : index
    %c0_14 = arith.constant 0 : index
    %c0_15 = arith.constant 0 : index
    %54 = vector.load %arg4[%c0_12, %c0_13, %c0_14, %c0_15] : memref<1x8x16x16xf32, #tpu.memory_space<vmem>>, vector<1x8x16x16xf32>
    %55 = vector.shape_cast %54 : vector<1x8x16x16xf32> to vector<8x16x16xf32>
    %56 = vector.extract_strided_slice %55 {offsets = [0, 0, 0], sizes = [1, 16, 16], strides = [1, 1, 1]} : vector<8x16x16xf32> to vector<1x16x16xf32>
    %57 = vector.shape_cast %56 : vector<1x16x16xf32> to vector<16x16xf32>
    %58 = vector.extract_strided_slice %55 {offsets = [1, 0, 0], sizes = [1, 16, 16], strides = [1, 1, 1]} : vector<8x16x16xf32> to vector<1x16x16xf32>
    %59 = vector.shape_cast %58 : vector<1x16x16xf32> to vector<16x16xf32>
    %60 = arith.maximumf %57, %59 : vector<16x16xf32>
    %61 = vector.extract_strided_slice %55 {offsets = [2, 0, 0], sizes = [1, 16, 16], strides = [1, 1, 1]} : vector<8x16x16xf32> to vector<1x16x16xf32>
    %62 = vector.shape_cast %61 : vector<1x16x16xf32> to vector<16x16xf32>
    %63 = arith.maximumf %60, %62 : vector<16x16xf32>
    %64 = vector.extract_strided_slice %55 {offsets = [3, 0, 0], sizes = [1, 16, 16], strides = [1, 1, 1]} : vector<8x16x16xf32> to vector<1x16x16xf32>
    %65 = vector.shape_cast %64 : vector<1x16x16xf32> to vector<16x16xf32>
    %66 = arith.maximumf %63, %65 : vector<16x16xf32>
    %67 = vector.extract_strided_slice %55 {offsets = [4, 0, 0], sizes = [1, 16, 16], strides = [1, 1, 1]} : vector<8x16x16xf32> to vector<1x16x16xf32>
    %68 = vector.shape_cast %67 : vector<1x16x16xf32> to vector<16x16xf32>
    %69 = arith.maximumf %66, %68 : vector<16x16xf32>
    %70 = vector.extract_strided_slice %55 {offsets = [5, 0, 0], sizes = [1, 16, 16], strides = [1, 1, 1]} : vector<8x16x16xf32> to vector<1x16x16xf32>
    %71 = vector.shape_cast %70 : vector<1x16x16xf32> to vector<16x16xf32>
    %72 = arith.maximumf %69, %71 : vector<16x16xf32>
    %73 = vector.extract_strided_slice %55 {offsets = [6, 0, 0], sizes = [1, 16, 16], strides = [1, 1, 1]} : vector<8x16x16xf32> to vector<1x16x16xf32>
    %74 = vector.shape_cast %73 : vector<1x16x16xf32> to vector<16x16xf32>
    %75 = arith.maximumf %72, %74 : vector<16x16xf32>
    %76 = vector.extract_strided_slice %55 {offsets = [7, 0, 0], sizes = [1, 16, 16], strides = [1, 1, 1]} : vector<8x16x16xf32> to vector<1x16x16xf32>
    %77 = vector.shape_cast %76 : vector<1x16x16xf32> to vector<16x16xf32>
    %78 = arith.maximumf %75, %77 : vector<16x16xf32>
    %79 = tpu.concatenate %26, %53, %78 in 1 : vector<16x16xf32>, vector<16x16xf32>, vector<16x16xf32> -> vector<16x48xf32>
    %c0_16 = arith.constant 0 : index
    %c0_17 = arith.constant 0 : index
    %80 = vector.load %arg5[%c0_16, %c0_17] : memref<48x128xf32, #tpu.memory_space<vmem>>, vector<48x128xf32>
    %cst = arith.constant dense<0.000000e+00> : vector<16x128xf32>
    %81 = tpu.matmul %79, %80, %cst {dimension_numbers = #tpu.dot_dimension_numbers<[1], [0], [0], [1], [0, 0, 1, 1], [], []>} : vector<16x48xf32>, vector<48x128xf32>, vector<16x128xf32> -> vector<16x128xf32>
    %c0_18 = arith.constant 0 : index
    %c0_19 = arith.constant 0 : index
    %82 = vector.load %arg6[%c0_18, %c0_19] : memref<1x128xf32, #tpu.memory_space<vmem>>, vector<1x128xf32>
    %83 = vector.broadcast %82 : vector<1x128xf32> to vector<16x128xf32>
    %84 = arith.addf %81, %83 : vector<16x128xf32>
    %c0_20 = arith.constant 0 : index
    %c0_21 = arith.constant 0 : index
    %c0_22 = arith.constant 0 : index
    %85 = vector.load %arg7[%c0_20, %c0_21, %c0_22] : memref<1x16x128xf32, #tpu.memory_space<vmem>>, vector<1x16x128xf32>
    %86 = vector.shape_cast %85 : vector<1x16x128xf32> to vector<16x128xf32>
    %87 = vector.shape_cast %84 : vector<16x128xf32> to vector<1x16x128xf32>
    tpu.vector_store %arg7[%c0_20, %c0_21, %c0_22], %87 {strides = array<i32>} : memref<1x16x128xf32, #tpu.memory_space<vmem>>, vector<1x16x128xf32>,
    return
  }
  func.func @transform_0(%arg0: i32, %arg1: i32) -> (i32, i32, i32, i32) {
    %c0_i32 = arith.constant 0 : i32
    %c0_i32_0 = arith.constant 0 : i32
    %c0_i32_1 = arith.constant 0 : i32
    return %arg0, %c0_i32, %arg1, %c0_i32_0 : i32, i32, i32, i32
  }
  func.func @transform_1(%arg0: i32, %arg1: i32) -> (i32, i32, i32, i32) {
    %c0_i32 = arith.constant 0 : i32
    %c0_i32_0 = arith.constant 0 : i32
    %c0_i32_1 = arith.constant 0 : i32
    return %arg0, %c0_i32, %arg1, %c0_i32_0 : i32, i32, i32, i32
  }
  func.func @transform_2(%arg0: i32, %arg1: i32) -> (i32, i32, i32, i32) {
    %c0_i32 = arith.constant 0 : i32
    %c0_i32_0 = arith.constant 0 : i32
    %c0_i32_1 = arith.constant 0 : i32
    return %arg0, %c0_i32, %arg1, %c0_i32_0 : i32, i32, i32, i32
  }
  func.func @transform_3(%arg0: i32, %arg1: i32) -> (i32, i32) {
    %c0_i32 = arith.constant 0 : i32
    %c0_i32_0 = arith.constant 0 : i32
    %c0_i32_1 = arith.constant 0 : i32
    return %c0_i32, %c0_i32_0 : i32, i32
  }
  func.func @transform_4(%arg0: i32, %arg1: i32) -> (i32, i32) {
    %c0_i32 = arith.constant 0 : i32
    %c0_i32_0 = arith.constant 0 : i32
    %c0_i32_1 = arith.constant 0 : i32
    return %c0_i32, %c0_i32_0 : i32, i32
  }
  func.func @transform_5(%arg0: i32, %arg1: i32) -> (i32, i32, i32) {
    %c0_i32 = arith.constant 0 : i32
    %c0_i32_0 = arith.constant 0 : i32
    return %arg0, %arg1, %c0_i32 : i32, i32, i32
  }
}

</mosaic_0001>

<llo_original>
// kernel: tpu_custom_call.1
$region0: #{tpu_custom_call.1}
  #allocation0 [shape = 'u32[]', space=smem, size = 0x4, offset = 0x4, fixed_abs, tag = 'smem constant byte address 0x4 - core index']
  #allocation1 [shape = 'u32[144,128]{1,0:T(1,128)}', space=vmem, size = 0x12000, scoped, tag = 'internal scratch']
  #allocation12 [shape = 's32[]', space=sflag, size = 0x4, offset = 0, fixed_abs, tag = 'sflag constant byte address 0x0 - dummy sync flag']
  #allocation14 [shape = 's32[]', space=sflag, size = 0x4, offset = 0, fixed_abs, tag = 'sflag constant byte address 0x0 - dummy sync flag']
  %s0 = inlined_call_operand.vmem [shape: f32[2,512,64,16], index: 0, kind: input, shape index: {}]
  %s1 = inlined_call_operand.hbm [shape: f32[2,64,64,16], index: 1, kind: input, shape index: {}]
  %s2 = inlined_call_operand.hbm [shape: f32[2,8,64,16], index: 2, kind: input, shape index: {}]
  %s3 = inlined_call_operand.hbm [shape: f32[48,128], index: 3, kind: input, shape index: {}]
  %s4 = inlined_call_operand.hbm [shape: f32[1,128], index: 4, kind: input, shape index: {}]
  %s5 = inlined_call_operand.hbm [shape: f32[2,64,128], index: 5, kind: output, shape index: {}]
  %s6 = sld [smem:[#allocation0]]
  $region135: #{tpu_custom_call.1} parent=0
    _
  %s8 = ssub.s32 1, %s6
  %s9 = scalar_select 0, %s8, %s6
  $region1: #{tpu_custom_call.1} parent=0
    #allocation2 [shape = 'u8[8388608]{0}', space=vmem, size = 0x800000, scoped, tag = 'input window, operand 0']
    #allocation3 [shape = 'u8[1048576]{0}', space=vmem, size = 0x100000, scoped, tag = 'input window, operand 1']
    #allocation4 [shape = 's32[2]{0}', space=sflag, size = 0x8, scoped, tag = 'scoped memory for tpu_custom_call.1']
    #allocation5 [shape = 's32[2]{0}', space=sflag, size = 0x8, scoped, tag = 'scoped memory for tpu_custom_call.1']
    #allocation6 [shape = 'u8[131072]{0}', space=vmem, size = 0x20000, scoped, tag = 'input window, operand 2']
    #allocation7 [shape = 's32[2]{0}', space=sflag, size = 0x8, scoped, tag = 'scoped memory for tpu_custom_call.1']
    #allocation8 [shape = 'u8[24576]{0}', space=vmem, size = 0x6000, scoped, tag = 'input window, operand 3, single buffered']
    #allocation9 [shape = 'u8[512]{0}', space=vmem, size = 0x400, scoped, tag = 'input window, operand 4, single buffered']
    #allocation10 [shape = 's32[1]{0}', space=sflag, size = 0x4, scoped, tag = 'scoped memory for tpu_custom_call.1']
    #allocation11 [shape = 'u8[16384]{0}', space=vmem, size = 0x4000, scoped, tag = 'output window, operand 0']
    %10 = vsyncpa [#allocation4], 0
    %s11 = scalar_lea.sflag [#allocation4], 1
    %12 = vsyncpa %s11, 0
    %13 = vsyncpa [#allocation7], 0
    %s14 = scalar_lea.sflag [#allocation7], 1
    %15 = vsyncpa %s14, 0
    %16 = vsyncpa [#allocation10], 0
    %17 = vsyncpa [#allocation5], 0
    %s18 = scalar_lea.sflag [#allocation5], 1
    %19 = vsyncpa %s18, 0
    loop: start=0, step=1, limit=10
    $region2: #{tpu_custom_call.1} parent=1 // loop_pre_header
      _
    $region3: #{tpu_custom_call.1} parent=1 // loop_header
      %s21 = sphi 0, %s25
      %p22 = scmp.ge.s32.totalorder %s21, 10
      %s28 = sphi 0, %s40
      %s29 = sphi 0, %s36
      %s30 = sphi 0, %s28
      %s31 = sphi 0, %s29
      %s32 = sphi 0, %s30
      %s33 = sphi 0, %s31
      %s45 = sphi 0, %s47
      %s48 = sphi 0, %s45
      %s49 = sphi 0, %s48
      %s65 = sphi 0, %s49
      %s73 = sphi 0, %s75
      %s76 = sphi 0, %s73
      %s77 = sphi 0, %s76
      %s93 = sphi 0, %s77
      %s101 = sphi 0, %s103
      %s104 = sphi 0, %s101
      %s105 = sphi 0, %s104
      %s121 = sphi 0, %s105
      %s125 = sphi 0, %s125
      %s127 = sphi 0, %s125
      %s128 = sphi 0, %s127
      %s142 = sphi 0, %s128
      %s146 = sphi 0, %s146
      %s148 = sphi 0, %s146
      %s149 = sphi 0, %s148
      %s163 = sphi 0, %s149
      %s171 = sphi 0, %s173
      %s174 = sphi 0, %s171
      %s175 = sphi 0, %s174
      %s191 = sphi 0, %s175
    $region4: #{tpu_custom_call.1} parent=1 // loop_header_branch
      %24 = sbr.rel (%p22) target = $region8
    $region5: #{tpu_custom_call.1} parent=1 // loop_body
      %s26 = ssub.s32 %s21, 1
      %s27 = ssub.s32 %s21, 2
      %s34 = sadd.s32 1, %s29
      %p35 = scmp.ge.s32.totalorder %s34, 4
      %s36 = scalar_select %p35, 0, %s34
      %s37 = sadd.s32 1, %s28
      %s38 = scalar_select %p35, %s37, %s28
      %p39 = scmp.ge.s32.totalorder %s38, 2
      %s40 = scalar_select %p39, 0, %s38
      %s41 = ssub.s32 %s28, %s40
      %s42 = ssub.s32 %s29, %s36
      %s43 = sor.u32 %s41, %s42
      %p44 = scmp.eq.s32.totalorder %s43, 0
      %s46 = sadd.s32 %s45, 1
      %s47 = scalar_select %p44, %s45, %s46
      %p50 = pneg %p44
      %p51 = scmp.eq.s32.totalorder %s21, 7
      %p52 = por %p50, %p51
      %p53 = scmp.ne.s32.totalorder %s45, %s48
      %p54 = scmp.eq.s32.totalorder %s21, 0
      %p55 = por %p53, %p54
      %p56 = scmp.ne.s32.totalorder %s45, %s48
      %p57 = scmp.eq.s32.totalorder %s26, 7
      %p58 = por %p56, %p57
      %p59 = scmp.ne.s32.totalorder %s48, %s49
      %p60 = scmp.eq.s32.totalorder %s26, 0
      %p61 = por %p59, %p60
      %p62 = scmp.ne.s32.totalorder %s48, %s49
      %p63 = scmp.eq.s32.totalorder %s27, 7
      %p64 = por %p62, %p63
      %p66 = scmp.ne.s32.totalorder %s49, %s65
      %p67 = scmp.eq.s32.totalorder %s27, 0
      %p68 = por %p66, %p67
      %s69 = ssub.s32 %s28, %s40
      %s70 = ssub.s32 %s29, %s36
      %s71 = sor.u32 %s69, %s70
      %p72 = scmp.eq.s32.totalorder %s71, 0
      %s74 = sadd.s32 %s73, 1
      %s75 = scalar_select %p72, %s73, %s74
      %p78 = pneg %p72
      %p79 = scmp.eq.s32.totalorder %s21, 7
      %p80 = por %p78, %p79
      %p81 = scmp.ne.s32.totalorder %s73, %s76
      %p82 = scmp.eq.s32.totalorder %s21, 0
      %p83 = por %p81, %p82
      %p84 = scmp.ne.s32.totalorder %s73, %s76
      %p85 = scmp.eq.s32.totalorder %s26, 7
      %p86 = por %p84, %p85
      %p87 = scmp.ne.s32.totalorder %s76, %s77
      %p88 = scmp.eq.s32.totalorder %s26, 0
      %p89 = por %p87, %p88
      %p90 = scmp.ne.s32.totalorder %s76, %s77
      %p91 = scmp.eq.s32.totalorder %s27, 7
      %p92 = por %p90, %p91
      %p94 = scmp.ne.s32.totalorder %s77, %s93
      %p95 = scmp.eq.s32.totalorder %s27, 0
      %p96 = por %p94, %p95
      %s97 = ssub.s32 %s28, %s40
      %s98 = ssub.s32 %s29, %s36
      %s99 = sor.u32 %s97, %s98
      %p100 = scmp.eq.s32.totalorder %s99, 0
      %s102 = sadd.s32 %s101, 1
      %s103 = scalar_select %p100, %s101, %s102
      %p106 = pneg %p100
      %p107 = scmp.eq.s32.totalorder %s21, 7
      %p108 = por %p106, %p107
      %p109 = scmp.ne.s32.totalorder %s101, %s104
      %p110 = scmp.eq.s32.totalorder %s21, 0
      %p111 = por %p109, %p110
      %p112 = scmp.ne.s32.totalorder %s101, %s104
      %p113 = scmp.eq.s32.totalorder %s26, 7
      %p114 = por %p112, %p113
      %p115 = scmp.ne.s32.totalorder %s104, %s105
      %p116 = scmp.eq.s32.totalorder %s26, 0
      %p117 = por %p115, %p116
      %p118 = scmp.ne.s32.totalorder %s104, %s105
      %p119 = scmp.eq.s32.totalorder %s27, 7
      %p120 = por %p118, %p119
      %p122 = scmp.ne.s32.totalorder %s105, %s121
      %p123 = scmp.eq.s32.totalorder %s27, 0
      %p124 = por %p122, %p123
      %s126 = sadd.s32 %s125, 1
      %p129 = scmp.eq.s32.totalorder %s21, 7
      %p130 = scmp.ne.s32.totalorder %s125, %s127
      %p131 = scmp.eq.s32.totalorder %s21, 0
      %p132 = por %p130, %p131
      %p133 = scmp.ne.s32.totalorder %s125, %s127
      %p134 = scmp.eq.s32.totalorder %s26, 7
      %p135 = por %p133, %p134
      %p136 = scmp.ne.s32.totalorder %s127, %s128
      %p137 = scmp.eq.s32.totalorder %s26, 0
      %p138 = por %p136, %p137
      %p139 = scmp.ne.s32.totalorder %s127, %s128
      %p140 = scmp.eq.s32.totalorder %s27, 7
      %p141 = por %p139, %p140
      %p143 = scmp.ne.s32.totalorder %s128, %s142
      %p144 = scmp.eq.s32.totalorder %s27, 0
      %p145 = por %p143, %p144
      %s147 = sadd.s32 %s146, 1
      %p150 = scmp.eq.s32.totalorder %s21, 7
      %p151 = scmp.ne.s32.totalorder %s146, %s148
      %p152 = scmp.eq.s32.totalorder %s21, 0
      %p153 = por %p151, %p152
      %p154 = scmp.ne.s32.totalorder %s146, %s148
      %p155 = scmp.eq.s32.totalorder %s26, 7
      %p156 = por %p154, %p155
      %p157 = scmp.ne.s32.totalorder %s148, %s149
      %p158 = scmp.eq.s32.totalorder %s26, 0
      %p159 = por %p157, %p158
      %p160 = scmp.ne.s32.totalorder %s148, %s149
      %p161 = scmp.eq.s32.totalorder %s27, 7
      %p162 = por %p160, %p161
      %p164 = scmp.ne.s32.totalorder %s149, %s163
      %p165 = scmp.eq.s32.totalorder %s27, 0
      %p166 = por %p164, %p165
      %s167 = ssub.s32 %s28, %s40
      %s168 = ssub.s32 %s29, %s36
      %s169 = sor.u32 %s167, %s168
      %p170 = scmp.eq.s32.totalorder %s169, 0
      %s172 = sadd.s32 %s171, 1
      %s173 = scalar_select %p170, %s171, %s172
      %p176 = pneg %p170
      %p177 = scmp.eq.s32.totalorder %s21, 7
      %p178 = por %p176, %p177
      %p179 = scmp.ne.s32.totalorder %s171, %s174
      %p180 = scmp.eq.s32.totalorder %s21, 0
      %p181 = por %p179, %p180
      %p182 = scmp.ne.s32.totalorder %s171, %s174
      %p183 = scmp.eq.s32.totalorder %s26, 7
      %p184 = por %p182, %p183
      %p185 = scmp.ne.s32.totalorder %s174, %s175
      %p186 = scmp.eq.s32.totalorder %s26, 0
      %p187 = por %p185, %p186
      %p188 = scmp.ne.s32.totalorder %s174, %s175
      %p189 = scmp.eq.s32.totalorder %s27, 7
      %p190 = por %p188, %p189
      %p192 = scmp.ne.s32.totalorder %s175, %s191
      %p193 = scmp.eq.s32.totalorder %s27, 0
      %p194 = por %p192, %p193
      %p195 = scmp.le.s32.totalorder 1, %s21
      %p196 = scmp.lt.s32.totalorder %s21, 9
      %p197 = pnand %p195, %p196
      %p198 = pneg %p197
      // Predicated region
      $region9: #{tpu_custom_call.1} parent=5 // pred_check
        _
      $region10: #{tpu_custom_call.1} parent=5 // pred_check_branch
        %200 = sbr.rel (%p197) target = $region12
      $region11: #{tpu_custom_call.1} parent=5 // pred_region
        %s201 = ssub.s32 %s21, 1
        // Predicated region
        $region13: #{tpu_custom_call.1} parent=11 // pred_check
          %p202 = pneg %p138
        $region14: #{tpu_custom_call.1} parent=11 // pred_check_branch
          %204 = sbr.rel (%p202) target = $region16
        $region15: #{tpu_custom_call.1} parent=11 // pred_region
          %s206 = ssub.s32 768, 768
          %207 = vsyncadd [#allocation7], %s206
          %s208 = sshll.u32 [#allocation8], 4
          %s209 = int_to_ptr.vmem [resolvable:$true] %s208
          %214 = dma.hbm_to_vmem [thread:$0]  %s3, 768, %s209, [#allocation7], 128, 128, 8
        $region16: #{tpu_custom_call.1} parent=11 // pred_fallthru
          _
        // Predicated region
        $region17: #{tpu_custom_call.1} parent=11 // pred_check
          %p215 = pneg %p159
        $region18: #{tpu_custom_call.1} parent=11 // pred_check_branch
          %217 = sbr.rel (%p215) target = $region20
        $region19: #{tpu_custom_call.1} parent=11 // pred_region
          %s219 = ssub.s32 16, 16
          %220 = vsyncadd [#allocation10], %s219
          %s222 = sshll.u32 [#allocation9], 4
          %s223 = int_to_ptr.vmem [resolvable:$true] %s222
          %225 = dma.hbm_to_vmem [thread:$0]  %s4, 16, %s223, [#allocation10]
        $region20: #{tpu_custom_call.1} parent=11 // pred_fallthru
          _
      $region12: #{tpu_custom_call.1} parent=5 // pred_fallthru
        _
      %p226 = scmp.lt.s32.totalorder %s21, 8
      // Predicated region
      $region21: #{tpu_custom_call.1} parent=5 // pred_check
        %p227 = pneg %p226
      $region22: #{tpu_custom_call.1} parent=5 // pred_check_branch
        %229 = sbr.rel (%p227) target = $region24
      $region23: #{tpu_custom_call.1} parent=5 // pred_region
        // Predicated region
        $region25: #{tpu_custom_call.1} parent=23 // pred_check
          %p230 = pneg %p55
        $region26: #{tpu_custom_call.1} parent=23 // pred_check_branch
          %232 = sbr.rel (%p230) target = $region28
        $region27: #{tpu_custom_call.1} parent=23 // pred_region
          %s233 = sand.u32 %s45, 1
          %s234 = sand.u32 %s45, 1
          %s235 = smul.addr %s234, 8192
          %s236 = scalar_lea.vmem [#allocation2], %s235
          %s237 = smul.u32 2, %s29
          %s238 = smul.addr %s28, 4096
          %s239 = sadd.s32 %s237, %s238
          %s240 = smul.addr %s239, 8
          %s241 = scalar_lea.vmem %s0, %s240
          // Predicated region
          $region29: #{tpu_custom_call.1} parent=27 // pred_check
            _
          $region30: #{tpu_custom_call.1} parent=27 // pred_check_branch
            %243 = sbr.rel (0) target = $region32
          $region31: #{tpu_custom_call.1} parent=27 // pred_region
            // Predicated region
            $region33: #{tpu_custom_call.1} parent=31 // pred_check
              _
            $region34: #{tpu_custom_call.1} parent=31 // pred_check_branch
              %245 = sbr.rel (0) target = $region36
            $region35: #{tpu_custom_call.1} parent=31 // pred_region
              // Predicated region
              $region48: #{tpu_custom_call.1} parent=35 // pred_check
                _
              $region49: #{tpu_custom_call.1} parent=35 // pred_check_branch
                %1290 = sbr.rel (0) target = $region51
              $region50: #{tpu_custom_call.1} parent=35 // pred_region
                loop: start=0, step=1, limit=2
                $region52: #{tpu_custom_call.1} parent=50 // loop_pre_header
                  _
                $region53: #{tpu_custom_call.1} parent=50 // loop_header
                  %s1294 = sphi 0, %s1298
                  %p1295 = scmp.ge.s32.totalorder %s1294, 2
                  %s1299 = sphi 0, %s2333
                  %s1300 = sphi 0, %s2329
                  %s1301 = sphi %s241, %s2340
                  %s1302 = sphi %s236, %s2341
                $region54: #{tpu_custom_call.1} parent=50 // loop_header_branch
                  %1297 = sbr.rel (%p1295) target = $region58
                $region55: #{tpu_custom_call.1} parent=50 // loop_body
                  %v1303 = vld [vmem:[%s1301] sm:$0xff]
                  %1304 = vst [vmem:[%s1302] sm:$0xff] %v1303
                  %v1305 = vld [vmem:[%s1301 + $0x40] sm:$0xff]
                  %1306 = vst [vmem:[%s1302 + $0x10] sm:$0xff] %v1305
                  %v1307 = vld [vmem:[%s1301 + $0x80] sm:$0xff]
                  %1308 = vst [vmem:[%s1302 + $0x20] sm:$0xff] %v1307
                  %v1309 = vld [vmem:[%s1301 + $0xc0] sm:$0xff]
                  %1310 = vst [vmem:[%s1302 + $0x30] sm:$0xff] %v1309
                  %v1311 = vld [vmem:[%s1301 + $0x100] sm:$0xff]
                  %1312 = vst [vmem:[%s1302 + $0x40] sm:$0xff] %v1311
                  %v1313 = vld [vmem:[%s1301 + $0x140] sm:$0xff]
                  %1314 = vst [vmem:[%s1302 + $0x50] sm:$0xff] %v1313
                  %v1315 = vld [vmem:[%s1301 + $0x180] sm:$0xff]
                  %1316 = vst [vmem:[%s1302 + $0x60] sm:$0xff] %v1315
                  %v1317 = vld [vmem:[%s1301 + $0x1c0] sm:$0xff]
                  %1318 = vst [vmem:[%s1302 + $0x70] sm:$0xff] %v1317
                  %v1319 = vld [vmem:[%s1301 + $0x200] sm:$0xff]
                  %1320 = vst [vmem:[%s1302 + $0x80] sm:$0xff] %v1319
                  %v1321 = vld [vmem:[%s1301 + $0x240] sm:$0xff]
                  %1322 = vst [vmem:[%s1302 + $0x90] sm:$0xff] %v1321
                  %v1323 = vld [vmem:[%s1301 + $0x280] sm:$0xff]
                  %1324 = vst [vmem:[%s1302 + $0xa0] sm:$0xff] %v1323
                  %v1325 = vld [vmem:[%s1301 + $0x2c0] sm:$0xff]
                  %1326 = vst [vmem:[%s1302 + $0xb0] sm:$0xff] %v1325
                  %v1327 = vld [vmem:[%s1301 + $0x300] sm:$0xff]
                  %1328 = vst [vmem:[%s1302 + $0xc0] sm:$0xff] %v1327
                  %v1329 = vld [vmem:[%s1301 + $0x340] sm:$0xff]
                  %1330 = vst [vmem:[%s1302 + $0xd0] sm:$0xff] %v1329
                  %v1331 = vld [vmem:[%s1301 + $0x380] sm:$0xff]
                  %1332 = vst [vmem:[%s1302 + $0xe0] sm:$0xff] %v1331
                  %v1333 = vld [vmem:[%s1301 + $0x3c0] sm:$0xff]
                  %1334 = vst [vmem:[%s1302 + $0xf0] sm:$0xff] %v1333
                  %v1335 = vld [vmem:[%s1301 + $0x400] sm:$0xff]
                  %1336 = vst [vmem:[%s1302 + $0x100] sm:$0xff] %v1335
                  %v1337 = vld [vmem:[%s1301 + $0x440] sm:$0xff]
                  %1338 = vst [vmem:[%s1302 + $0x110] sm:$0xff] %v1337
                  %v1339 = vld [vmem:[%s1301 + $0x480] sm:$0xff]
                  %1340 = vst [vmem:[%s1302 + $0x120] sm:$0xff] %v1339
                  %v1341 = vld [vmem:[%s1301 + $0x4c0] sm:$0xff]
                  %1342 = vst [vmem:[%s1302 + $0x130] sm:$0xff] %v1341
                  %v1343 = vld [vmem:[%s1301 + $0x500] sm:$0xff]
                  %1344 = vst [vmem:[%s1302 + $0x140] sm:$0xff] %v1343
                  %v1345 = vld [vmem:[%s1301 + $0x540] sm:$0xff]
                  %1346 = vst [vmem:[%s1302 + $0x150] sm:$0xff] %v1345
                  %v1347 = vld [vmem:[%s1301 + $0x580] sm:$0xff]
                  %1348 = vst [vmem:[%s1302 + $0x160] sm:$0xff] %v1347
                  %v1349 = vld [vmem:[%s1301 + $0x5c0] sm:$0xff]
                  %1350 = vst [vmem:[%s1302 + $0x170] sm:$0xff] %v1349
                  %v1351 = vld [vmem:[%s1301 + $0x600] sm:$0xff]
                  %1352 = vst [vmem:[%s1302 + $0x180] sm:$0xff] %v1351
                  %v1353 = vld [vmem:[%s1301 + $0x640] sm:$0xff]
                  %1354 = vst [vmem:[%s1302 + $0x190] sm:$0xff] %v1353
                  %v1355 = vld [vmem:[%s1301 + $0x680] sm:$0xff]
                  %1356 = vst [vmem:[%s1302 + $0x1a0] sm:$0xff] %v1355
                  %v1357 = vld [vmem:[%s1301 + $0x6c0] sm:$0xff]
                  %1358 = vst [vmem:[%s1302 + $0x1b0] sm:$0xff] %v1357
                  %v1359 = vld [vmem:[%s1301 + $0x700] sm:$0xff]
                  %1360 = vst [vmem:[%s1302 + $0x1c0] sm:$0xff] %v1359
                  %v1361 = vld [vmem:[%s1301 + $0x740] sm:$0xff]
                  %1362 = vst [vmem:[%s1302 + $0x1d0] sm:$0xff] %v1361
                  %v1363 = vld [vmem:[%s1301 + $0x780] sm:$0xff]
                  %1364 = vst [vmem:[%s1302 + $0x1e0] sm:$0xff] %v1363
                  %v1365 = vld [vmem:[%s1301 + $0x7c0] sm:$0xff]
                  %1366 = vst [vmem:[%s1302 + $0x1f0] sm:$0xff] %v1365
                  %v1367 = vld [vmem:[%s1301 + $0x800] sm:$0xff]
                  %1368 = vst [vmem:[%s1302 + $0x200] sm:$0xff] %v1367
                  %v1369 = vld [vmem:[%s1301 + $0x840] sm:$0xff]
                  %1370 = vst [vmem:[%s1302 + $0x210] sm:$0xff] %v1369
                  %v1371 = vld [vmem:[%s1301 + $0x880] sm:$0xff]
                  %1372 = vst [vmem:[%s1302 + $0x220] sm:$0xff] %v1371
                  %v1373 = vld [vmem:[%s1301 + $0x8c0] sm:$0xff]
                  %1374 = vst [vmem:[%s1302 + $0x230] sm:$0xff] %v1373
                  %v1375 = vld [vmem:[%s1301 + $0x900] sm:$0xff]
                  %1376 = vst [vmem:[%s1302 + $0x240] sm:$0xff] %v1375
                  %v1377 = vld [vmem:[%s1301 + $0x940] sm:$0xff]
                  %1378 = vst [vmem:[%s1302 + $0x250] sm:$0xff] %v1377
                  %v1379 = vld [vmem:[%s1301 + $0x980] sm:$0xff]
                  %1380 = vst [vmem:[%s1302 + $0x260] sm:$0xff] %v1379
                  %v1381 = vld [vmem:[%s1301 + $0x9c0] sm:$0xff]
                  %1382 = vst [vmem:[%s1302 + $0x270] sm:$0xff] %v1381
                  %v1383 = vld [vmem:[%s1301 + $0xa00] sm:$0xff]
                  %1384 = vst [vmem:[%s1302 + $0x280] sm:$0xff] %v1383
                  %v1385 = vld [vmem:[%s1301 + $0xa40] sm:$0xff]
                  %1386 = vst [vmem:[%s1302 + $0x290] sm:$0xff] %v1385
                  %v1387 = vld [vmem:[%s1301 + $0xa80] sm:$0xff]
                  %1388 = vst [vmem:[%s1302 + $0x2a0] sm:$0xff] %v1387
                  %v1389 = vld [vmem:[%s1301 + $0xac0] sm:$0xff]
                  %1390 = vst [vmem:[%s1302 + $0x2b0] sm:$0xff] %v1389
                  %v1391 = vld [vmem:[%s1301 + $0xb00] sm:$0xff]
                  %1392 = vst [vmem:[%s1302 + $0x2c0] sm:$0xff] %v1391
                  %v1393 = vld [vmem:[%s1301 + $0xb40] sm:$0xff]
                  %1394 = vst [vmem:[%s1302 + $0x2d0] sm:$0xff] %v1393
                  %v1395 = vld [vmem:[%s1301 + $0xb80] sm:$0xff]
                  %1396 = vst [vmem:[%s1302 + $0x2e0] sm:$0xff] %v1395
                  %v1397 = vld [vmem:[%s1301 + $0xbc0] sm:$0xff]
                  %1398 = vst [vmem:[%s1302 + $0x2f0] sm:$0xff] %v1397
                  %v1399 = vld [vmem:[%s1301 + $0xc00] sm:$0xff]
                  %1400 = vst [vmem:[%s1302 + $0x300] sm:$0xff] %v1399
                  %v1401 = vld [vmem:[%s1301 + $0xc40] sm:$0xff]
                  %1402 = vst [vmem:[%s1302 + $0x310] sm:$0xff] %v1401
                  %v1403 = vld [vmem:[%s1301 + $0xc80] sm:$0xff]
                  %1404 = vst [vmem:[%s1302 + $0x320] sm:$0xff] %v1403
                  %v1405 = vld [vmem:[%s1301 + $0xcc0] sm:$0xff]
                  %1406 = vst [vmem:[%s1302 + $0x330] sm:$0xff] %v1405
                  %v1407 = vld [vmem:[%s1301 + $0xd00] sm:$0xff]
                  %1408 = vst [vmem:[%s1302 + $0x340] sm:$0xff] %v1407
                  %v1409 = vld [vmem:[%s1301 + $0xd40] sm:$0xff]
                  %1410 = vst [vmem:[%s1302 + $0x350] sm:$0xff] %v1409
                  %v1411 = vld [vmem:[%s1301 + $0xd80] sm:$0xff]
                  %1412 = vst [vmem:[%s1302 + $0x360] sm:$0xff] %v1411
                  %v1413 = vld [vmem:[%s1301 + $0xdc0] sm:$0xff]
                  %1414 = vst [vmem:[%s1302 + $0x370] sm:$0xff] %v1413
                  %v1415 = vld [vmem:[%s1301 + $0xe00] sm:$0xff]
                  %1416 = vst [vmem:[%s1302 + $0x380] sm:$0xff] %v1415
                  %v1417 = vld [vmem:[%s1301 + $0xe40] sm:$0xff]
                  %1418 = vst [vmem:[%s1302 + $0x390] sm:$0xff] %v1417
                  %v1419 = vld [vmem:[%s1301 + $0xe80] sm:$0xff]
                  %1420 = vst [vmem:[%s1302 + $0x3a0] sm:$0xff] %v1419
                  %v1421 = vld [vmem:[%s1301 + $0xec0] sm:$0xff]
                  %1422 = vst [vmem:[%s1302 + $0x3b0] sm:$0xff] %v1421
                  %v1423 = vld [vmem:[%s1301 + $0xf00] sm:$0xff]
                  %1424 = vst [vmem:[%s1302 + $0x3c0] sm:$0xff] %v1423
                  %v1425 = vld [vmem:[%s1301 + $0xf40] sm:$0xff]
                  %1426 = vst [vmem:[%s1302 + $0x3d0] sm:$0xff] %v1425
                  %v1427 = vld [vmem:[%s1301 + $0xf80] sm:$0xff]
                  %1428 = vst [vmem:[%s1302 + $0x3e0] sm:$0xff] %v1427
                  %v1429 = vld [vmem:[%s1301 + $0xfc0] sm:$0xff]
                  %1430 = vst [vmem:[%s1302 + $0x3f0] sm:$0xff] %v1429
                  %v1431 = vld [vmem:[%s1301 + $0x1000] sm:$0xff]
                  %1432 = vst [vmem:[%s1302 + $0x400] sm:$0xff] %v1431
                  %v1433 = vld [vmem:[%s1301 + $0x1040] sm:$0xff]
                  %1434 = vst [vmem:[%s1302 + $0x410] sm:$0xff] %v1433
                  %v1435 = vld [vmem:[%s1301 + $0x1080] sm:$0xff]
                  %1436 = vst [vmem:[%s1302 + $0x420] sm:$0xff] %v1435
                  %v1437 = vld [vmem:[%s1301 + $0x10c0] sm:$0xff]
                  %1438 = vst [vmem:[%s1302 + $0x430] sm:$0xff] %v1437
                  %v1439 = vld [vmem:[%s1301 + $0x1100] sm:$0xff]
                  %1440 = vst [vmem:[%s1302 + $0x440] sm:$0xff] %v1439
                  %v1441 = vld [vmem:[%s1301 + $0x1140] sm:$0xff]
                  %1442 = vst [vmem:[%s1302 + $0x450] sm:$0xff] %v1441
                  %v1443 = vld [vmem:[%s1301 + $0x1180] sm:$0xff]
                  %1444 = vst [vmem:[%s1302 + $0x460] sm:$0xff] %v1443
                  %v1445 = vld [vmem:[%s1301 + $0x11c0] sm:$0xff]
                  %1446 = vst [vmem:[%s1302 + $0x470] sm:$0xff] %v1445
                  %v1447 = vld [vmem:[%s1301 + $0x1200] sm:$0xff]
                  %1448 = vst [vmem:[%s1302 + $0x480] sm:$0xff] %v1447
                  %v1449 = vld [vmem:[%s1301 + $0x1240] sm:$0xff]
                  %1450 = vst [vmem:[%s1302 + $0x490] sm:$0xff] %v1449
                  %v1451 = vld [vmem:[%s1301 + $0x1280] sm:$0xff]
                  %1452 = vst [vmem:[%s1302 + $0x4a0] sm:$0xff] %v1451
                  %v1453 = vld [vmem:[%s1301 + $0x12c0] sm:$0xff]
                  %1454 = vst [vmem:[%s1302 + $0x4b0] sm:$0xff] %v1453
                  %v1455 = vld [vmem:[%s1301 + $0x1300] sm:$0xff]
                  %1456 = vst [vmem:[%s1302 + $0x4c0] sm:$0xff] %v1455
                  %v1457 = vld [vmem:[%s1301 + $0x1340] sm:$0xff]
                  %1458 = vst [vmem:[%s1302 + $0x4d0] sm:$0xff] %v1457
                  %v1459 = vld [vmem:[%s1301 + $0x1380] sm:$0xff]
                  %1460 = vst [vmem:[%s1302 + $0x4e0] sm:$0xff] %v1459
                  %v1461 = vld [vmem:[%s1301 + $0x13c0] sm:$0xff]
                  %1462 = vst [vmem:[%s1302 + $0x4f0] sm:$0xff] %v1461
                  %v1463 = vld [vmem:[%s1301 + $0x1400] sm:$0xff]
                  %1464 = vst [vmem:[%s1302 + $0x500] sm:$0xff] %v1463
                  %v1465 = vld [vmem:[%s1301 + $0x1440] sm:$0xff]
                  %1466 = vst [vmem:[%s1302 + $0x510] sm:$0xff] %v1465
                  %v1467 = vld [vmem:[%s1301 + $0x1480] sm:$0xff]
                  %1468 = vst [vmem:[%s1302 + $0x520] sm:$0xff] %v1467
                  %v1469 = vld [vmem:[%s1301 + $0x14c0] sm:$0xff]
                  %1470 = vst [vmem:[%s1302 + $0x530] sm:$0xff] %v1469
                  %v1471 = vld [vmem:[%s1301 + $0x1500] sm:$0xff]
                  %1472 = vst [vmem:[%s1302 + $0x540] sm:$0xff] %v1471
                  %v1473 = vld [vmem:[%s1301 + $0x1540] sm:$0xff]
                  %1474 = vst [vmem:[%s1302 + $0x550] sm:$0xff] %v1473
                  %v1475 = vld [vmem:[%s1301 + $0x1580] sm:$0xff]
                  %1476 = vst [vmem:[%s1302 + $0x560] sm:$0xff] %v1475
                  %v1477 = vld [vmem:[%s1301 + $0x15c0] sm:$0xff]
                  %1478 = vst [vmem:[%s1302 + $0x570] sm:$0xff] %v1477
                  %v1479 = vld [vmem:[%s1301 + $0x1600] sm:$0xff]
                  %1480 = vst [vmem:[%s1302 + $0x580] sm:$0xff] %v1479
                  %v1481 = vld [vmem:[%s1301 + $0x1640] sm:$0xff]
                  %1482 = vst [vmem:[%s1302 + $0x590] sm:$0xff] %v1481
                  %v1483 = vld [vmem:[%s1301 + $0x1680] sm:$0xff]
                  %1484 = vst [vmem:[%s1302 + $0x5a0] sm:$0xff] %v1483
                  %v1485 = vld [vmem:[%s1301 + $0x16c0] sm:$0xff]
                  %1486 = vst [vmem:[%s1302 + $0x5b0] sm:$0xff] %v1485
                  %v1487 = vld [vmem:[%s1301 + $0x1700] sm:$0xff]
                  %1488 = vst [vmem:[%s1302 + $0x5c0] sm:$0xff] %v1487
                  %v1489 = vld [vmem:[%s1301 + $0x1740] sm:$0xff]
                  %1490 = vst [vmem:[%s1302 + $0x5d0] sm:$0xff] %v1489
                  %v1491 = vld [vmem:[%s1301 + $0x1780] sm:$0xff]
                  %1492 = vst [vmem:[%s1302 + $0x5e0] sm:$0xff] %v1491
                  %v1493 = vld [vmem:[%s1301 + $0x17c0] sm:$0xff]
                  %1494 = vst [vmem:[%s1302 + $0x5f0] sm:$0xff] %v1493
                  %v1495 = vld [vmem:[%s1301 + $0x1800] sm:$0xff]
                  %1496 = vst [vmem:[%s1302 + $0x600] sm:$0xff] %v1495
                  %v1497 = vld [vmem:[%s1301 + $0x1840] sm:$0xff]
                  %1498 = vst [vmem:[%s1302 + $0x610] sm:$0xff] %v1497
                  %v1499 = vld [vmem:[%s1301 + $0x1880] sm:$0xff]
                  %1500 = vst [vmem:[%s1302 + $0x620] sm:$0xff] %v1499
                  %v1501 = vld [vmem:[%s1301 + $0x18c0] sm:$0xff]
                  %1502 = vst [vmem:[%s1302 + $0x630] sm:$0xff] %v1501
                  %v1503 = vld [vmem:[%s1301 + $0x1900] sm:$0xff]
                  %1504 = vst [vmem:[%s1302 + $0x640] sm:$0xff] %v1503
                  %v1505 = vld [vmem:[%s1301 + $0x1940] sm:$0xff]
                  %1506 = vst [vmem:[%s1302 + $0x650] sm:$0xff] %v1505
                  %v1507 = vld [vmem:[%s1301 + $0x1980] sm:$0xff]
                  %1508 = vst [vmem:[%s1302 + $0x660] sm:$0xff] %v1507
                  %v1509 = vld [vmem:[%s1301 + $0x19c0] sm:$0xff]
                  %1510 = vst [vmem:[%s1302 + $0x670] sm:$0xff] %v1509
                  %v1511 = vld [vmem:[%s1301 + $0x1a00] sm:$0xff]
                  %1512 = vst [vmem:[%s1302 + $0x680] sm:$0xff] %v1511
                  %v1513 = vld [vmem:[%s1301 + $0x1a40] sm:$0xff]
                  %1514 = vst [vmem:[%s1302 + $0x690] sm:$0xff] %v1513
                  %v1515 = vld [vmem:[%s1301 + $0x1a80] sm:$0xff]
                  %1516 = vst [vmem:[%s1302 + $0x6a0] sm:$0xff] %v1515
                  %v1517 = vld [vmem:[%s1301 + $0x1ac0] sm:$0xff]
                  %1518 = vst [vmem:[%s1302 + $0x6b0] sm:$0xff] %v1517
                  %v1519 = vld [vmem:[%s1301 + $0x1b00] sm:$0xff]
                  %1520 = vst [vmem:[%s1302 + $0x6c0] sm:$0xff] %v1519
                  %v1521 = vld [vmem:[%s1301 + $0x1b40] sm:$0xff]
                  %1522 = vst [vmem:[%s1302 + $0x6d0] sm:$0xff] %v1521
                  %v1523 = vld [vmem:[%s1301 + $0x1b80] sm:$0xff]
                  %1524 = vst [vmem:[%s1302 + $0x6e0] sm:$0xff] %v1523
                  %v1525 = vld [vmem:[%s1301 + $0x1bc0] sm:$0xff]
                  %1526 = vst [vmem:[%s1302 + $0x6f0] sm:$0xff] %v1525
                  %v1527 = vld [vmem:[%s1301 + $0x1c00] sm:$0xff]
                  %1528 = vst [vmem:[%s1302 + $0x700] sm:$0xff] %v1527
                  %v1529 = vld [vmem:[%s1301 + $0x1c40] sm:$0xff]
                  %1530 = vst [vmem:[%s1302 + $0x710] sm:$0xff] %v1529
                  %v1531 = vld [vmem:[%s1301 + $0x1c80] sm:$0xff]
                  %1532 = vst [vmem:[%s1302 + $0x720] sm:$0xff] %v1531
                  %v1533 = vld [vmem:[%s1301 + $0x1cc0] sm:$0xff]
                  %1534 = vst [vmem:[%s1302 + $0x730] sm:$0xff] %v1533
                  %v1535 = vld [vmem:[%s1301 + $0x1d00] sm:$0xff]
                  %1536 = vst [vmem:[%s1302 + $0x740] sm:$0xff] %v1535
                  %v1537 = vld [vmem:[%s1301 + $0x1d40] sm:$0xff]
                  %1538 = vst [vmem:[%s1302 + $0x750] sm:$0xff] %v1537
                  %v1539 = vld [vmem:[%s1301 + $0x1d80] sm:$0xff]
                  %1540 = vst [vmem:[%s1302 + $0x760] sm:$0xff] %v1539
                  %v1541 = vld [vmem:[%s1301 + $0x1dc0] sm:$0xff]
                  %1542 = vst [vmem:[%s1302 + $0x770] sm:$0xff] %v1541
                  %v1543 = vld [vmem:[%s1301 + $0x1e00] sm:$0xff]
                  %1544 = vst [vmem:[%s1302 + $0x780] sm:$0xff] %v1543
                  %v1545 = vld [vmem:[%s1301 + $0x1e40] sm:$0xff]
                  %1546 = vst [vmem:[%s1302 + $0x790] sm:$0xff] %v1545
                  %v1547 = vld [vmem:[%s1301 + $0x1e80] sm:$0xff]
                  %1548 = vst [vmem:[%s1302 + $0x7a0] sm:$0xff] %v1547
                  %v1549 = vld [vmem:[%s1301 + $0x1ec0] sm:$0xff]
                  %1550 = vst [vmem:[%s1302 + $0x7b0] sm:$0xff] %v1549
                  %v1551 = vld [vmem:[%s1301 + $0x1f00] sm:$0xff]
                  %1552 = vst [vmem:[%s1302 + $0x7c0] sm:$0xff] %v1551
                  %v1553 = vld [vmem:[%s1301 + $0x1f40] sm:$0xff]
                  %1554 = vst [vmem:[%s1302 + $0x7d0] sm:$0xff] %v1553
                  %v1555 = vld [vmem:[%s1301 + $0x1f80] sm:$0xff]
                  %1556 = vst [vmem:[%s1302 + $0x7e0] sm:$0xff] %v1555
                  %v1557 = vld [vmem:[%s1301 + $0x1fc0] sm:$0xff]
                  %1558 = vst [vmem:[%s1302 + $0x7f0] sm:$0xff] %v1557
                  %v1559 = vld [vmem:[%s1301 + $0x2000] sm:$0xff]
                  %1560 = vst [vmem:[%s1302 + $0x800] sm:$0xff] %v1559
                  %v1561 = vld [vmem:[%s1301 + $0x2040] sm:$0xff]
                  %1562 = vst [vmem:[%s1302 + $0x810] sm:$0xff] %v1561
                  %v1563 = vld [vmem:[%s1301 + $0x2080] sm:$0xff]
                  %1564 = vst [vmem:[%s1302 + $0x820] sm:$0xff] %v1563
                  %v1565 = vld [vmem:[%s1301 + $0x20c0] sm:$0xff]
                  %1566 = vst [vmem:[%s1302 + $0x830] sm:$0xff] %v1565
                  %v1567 = vld [vmem:[%s1301 + $0x2100] sm:$0xff]
                  %1568 = vst [vmem:[%s1302 + $0x840] sm:$0xff] %v1567
                  %v1569 = vld [vmem:[%s1301 + $0x2140] sm:$0xff]
                  %1570 = vst [vmem:[%s1302 + $0x850] sm:$0xff] %v1569
                  %v1571 = vld [vmem:[%s1301 + $0x2180] sm:$0xff]
                  %1572 = vst [vmem:[%s1302 + $0x860] sm:$0xff] %v1571
                  %v1573 = vld [vmem:[%s1301 + $0x21c0] sm:$0xff]
                  %1574 = vst [vmem:[%s1302 + $0x870] sm:$0xff] %v1573
                  %v1575 = vld [vmem:[%s1301 + $0x2200] sm:$0xff]
                  %1576 = vst [vmem:[%s1302 + $0x880] sm:$0xff] %v1575
                  %v1577 = vld [vmem:[%s1301 + $0x2240] sm:$0xff]
                  %1578 = vst [vmem:[%s1302 + $0x890] sm:$0xff] %v1577
                  %v1579 = vld [vmem:[%s1301 + $0x2280] sm:$0xff]
                  %1580 = vst [vmem:[%s1302 + $0x8a0] sm:$0xff] %v1579
                  %v1581 = vld [vmem:[%s1301 + $0x22c0] sm:$0xff]
                  %1582 = vst [vmem:[%s1302 + $0x8b0] sm:$0xff] %v1581
                  %v1583 = vld [vmem:[%s1301 + $0x2300] sm:$0xff]
                  %1584 = vst [vmem:[%s1302 + $0x8c0] sm:$0xff] %v1583
                  %v1585 = vld [vmem:[%s1301 + $0x2340] sm:$0xff]
                  %1586 = vst [vmem:[%s1302 + $0x8d0] sm:$0xff] %v1585
                  %v1587 = vld [vmem:[%s1301 + $0x2380] sm:$0xff]
                  %1588 = vst [vmem:[%s1302 + $0x8e0] sm:$0xff] %v1587
                  %v1589 = vld [vmem:[%s1301 + $0x23c0] sm:$0xff]
                  %1590 = vst [vmem:[%s1302 + $0x8f0] sm:$0xff] %v1589
                  %v1591 = vld [vmem:[%s1301 + $0x2400] sm:$0xff]
                  %1592 = vst [vmem:[%s1302 + $0x900] sm:$0xff] %v1591
                  %v1593 = vld [vmem:[%s1301 + $0x2440] sm:$0xff]
                  %1594 = vst [vmem:[%s1302 + $0x910] sm:$0xff] %v1593
                  %v1595 = vld [vmem:[%s1301 + $0x2480] sm:$0xff]
                  %1596 = vst [vmem:[%s1302 + $0x920] sm:$0xff] %v1595
                  %v1597 = vld [vmem:[%s1301 + $0x24c0] sm:$0xff]
                  %1598 = vst [vmem:[%s1302 + $0x930] sm:$0xff] %v1597
                  %v1599 = vld [vmem:[%s1301 + $0x2500] sm:$0xff]
                  %1600 = vst [vmem:[%s1302 + $0x940] sm:$0xff] %v1599
                  %v1601 = vld [vmem:[%s1301 + $0x2540] sm:$0xff]
                  %1602 = vst [vmem:[%s1302 + $0x950] sm:$0xff] %v1601
                  %v1603 = vld [vmem:[%s1301 + $0x2580] sm:$0xff]
                  %1604 = vst [vmem:[%s1302 + $0x960] sm:$0xff] %v1603
                  %v1605 = vld [vmem:[%s1301 + $0x25c0] sm:$0xff]
                  %1606 = vst [vmem:[%s1302 + $0x970] sm:$0xff] %v1605
                  %v1607 = vld [vmem:[%s1301 + $0x2600] sm:$0xff]
                  %1608 = vst [vmem:[%s1302 + $0x980] sm:$0xff] %v1607
                  %v1609 = vld [vmem:[%s1301 + $0x2640] sm:$0xff]
                  %1610 = vst [vmem:[%s1302 + $0x990] sm:$0xff] %v1609
                  %v1611 = vld [vmem:[%s1301 + $0x2680] sm:$0xff]
                  %1612 = vst [vmem:[%s1302 + $0x9a0] sm:$0xff] %v1611
                  %v1613 = vld [vmem:[%s1301 + $0x26c0] sm:$0xff]
                  %1614 = vst [vmem:[%s1302 + $0x9b0] sm:$0xff] %v1613
                  %v1615 = vld [vmem:[%s1301 + $0x2700] sm:$0xff]
                  %1616 = vst [vmem:[%s1302 + $0x9c0] sm:$0xff] %v1615
                  %v1617 = vld [vmem:[%s1301 + $0x2740] sm:$0xff]
                  %1618 = vst [vmem:[%s1302 + $0x9d0] sm:$0xff] %v1617
                  %v1619 = vld [vmem:[%s1301 + $0x2780] sm:$0xff]
                  %1620 = vst [vmem:[%s1302 + $0x9e0] sm:$0xff] %v1619
                  %v1621 = vld [vmem:[%s1301 + $0x27c0] sm:$0xff]
                  %1622 = vst [vmem:[%s1302 + $0x9f0] sm:$0xff] %v1621
                  %v1623 = vld [vmem:[%s1301 + $0x2800] sm:$0xff]
                  %1624 = vst [vmem:[%s1302 + $0xa00] sm:$0xff] %v1623
                  %v1625 = vld [vmem:[%s1301 + $0x2840] sm:$0xff]
                  %1626 = vst [vmem:[%s1302 + $0xa10] sm:$0xff] %v1625
                  %v1627 = vld [vmem:[%s1301 + $0x2880] sm:$0xff]
                  %1628 = vst [vmem:[%s1302 + $0xa20] sm:$0xff] %v1627
                  %v1629 = vld [vmem:[%s1301 + $0x28c0] sm:$0xff]
                  %1630 = vst [vmem:[%s1302 + $0xa30] sm:$0xff] %v1629
                  %v1631 = vld [vmem:[%s1301 + $0x2900] sm:$0xff]
                  %1632 = vst [vmem:[%s1302 + $0xa40] sm:$0xff] %v1631
                  %v1633 = vld [vmem:[%s1301 + $0x2940] sm:$0xff]
                  %1634 = vst [vmem:[%s1302 + $0xa50] sm:$0xff] %v1633
                  %v1635 = vld [vmem:[%s1301 + $0x2980] sm:$0xff]
                  %1636 = vst [vmem:[%s1302 + $0xa60] sm:$0xff] %v1635
                  %v1637 = vld [vmem:[%s1301 + $0x29c0] sm:$0xff]
                  %1638 = vst [vmem:[%s1302 + $0xa70] sm:$0xff] %v1637
                  %v1639 = vld [vmem:[%s1301 + $0x2a00] sm:$0xff]
                  %1640 = vst [vmem:[%s1302 + $0xa80] sm:$0xff] %v1639
                  %v1641 = vld [vmem:[%s1301 + $0x2a40] sm:$0xff]
                  %1642 = vst [vmem:[%s1302 + $0xa90] sm:$0xff] %v1641
                  %v1643 = vld [vmem:[%s1301 + $0x2a80] sm:$0xff]
                  %1644 = vst [vmem:[%s1302 + $0xaa0] sm:$0xff] %v1643
                  %v1645 = vld [vmem:[%s1301 + $0x2ac0] sm:$0xff]
                  %1646 = vst [vmem:[%s1302 + $0xab0] sm:$0xff] %v1645
                  %v1647 = vld [vmem:[%s1301 + $0x2b00] sm:$0xff]
                  %1648 = vst [vmem:[%s1302 + $0xac0] sm:$0xff] %v1647
                  %v1649 = vld [vmem:[%s1301 + $0x2b40] sm:$0xff]
                  %1650 = vst [vmem:[%s1302 + $0xad0] sm:$0xff] %v1649
                  %v1651 = vld [vmem:[%s1301 + $0x2b80] sm:$0xff]
                  %1652 = vst [vmem:[%s1302 + $0xae0] sm:$0xff] %v1651
                  %v1653 = vld [vmem:[%s1301 + $0x2bc0] sm:$0xff]
                  %1654 = vst [vmem:[%s1302 + $0xaf0] sm:$0xff] %v1653
                  %v1655 = vld [vmem:[%s1301 + $0x2c00] sm:$0xff]
                  %1656 = vst [vmem:[%s1302 + $0xb00] sm:$0xff] %v1655
                  %v1657 = vld [vmem:[%s1301 + $0x2c40] sm:$0xff]
                  %1658 = vst [vmem:[%s1302 + $0xb10] sm:$0xff] %v1657
                  %v1659 = vld [vmem:[%s1301 + $0x2c80] sm:$0xff]
                  %1660 = vst [vmem:[%s1302 + $0xb20] sm:$0xff] %v1659
                  %v1661 = vld [vmem:[%s1301 + $0x2cc0] sm:$0xff]
                  %1662 = vst [vmem:[%s1302 + $0xb30] sm:$0xff] %v1661
                  %v1663 = vld [vmem:[%s1301 + $0x2d00] sm:$0xff]
                  %1664 = vst [vmem:[%s1302 + $0xb40] sm:$0xff] %v1663
                  %v1665 = vld [vmem:[%s1301 + $0x2d40] sm:$0xff]
                  %1666 = vst [vmem:[%s1302 + $0xb50] sm:$0xff] %v1665
                  %v1667 = vld [vmem:[%s1301 + $0x2d80] sm:$0xff]
                  %1668 = vst [vmem:[%s1302 + $0xb60] sm:$0xff] %v1667
                  %v1669 = vld [vmem:[%s1301 + $0x2dc0] sm:$0xff]
                  %1670 = vst [vmem:[%s1302 + $0xb70] sm:$0xff] %v1669
                  %v1671 = vld [vmem:[%s1301 + $0x2e00] sm:$0xff]
                  %1672 = vst [vmem:[%s1302 + $0xb80] sm:$0xff] %v1671
                  %v1673 = vld [vmem:[%s1301 + $0x2e40] sm:$0xff]
                  %1674 = vst [vmem:[%s1302 + $0xb90] sm:$0xff] %v1673
                  %v1675 = vld [vmem:[%s1301 + $0x2e80] sm:$0xff]
                  %1676 = vst [vmem:[%s1302 + $0xba0] sm:$0xff] %v1675
                  %v1677 = vld [vmem:[%s1301 + $0x2ec0] sm:$0xff]
                  %1678 = vst [vmem:[%s1302 + $0xbb0] sm:$0xff] %v1677
                  %v1679 = vld [vmem:[%s1301 + $0x2f00] sm:$0xff]
                  %1680 = vst [vmem:[%s1302 + $0xbc0] sm:$0xff] %v1679
                  %v1681 = vld [vmem:[%s1301 + $0x2f40] sm:$0xff]
                  %1682 = vst [vmem:[%s1302 + $0xbd0] sm:$0xff] %v1681
                  %v1683 = vld [vmem:[%s1301 + $0x2f80] sm:$0xff]
                  %1684 = vst [vmem:[%s1302 + $0xbe0] sm:$0xff] %v1683
                  %v1685 = vld [vmem:[%s1301 + $0x2fc0] sm:$0xff]
                  %1686 = vst [vmem:[%s1302 + $0xbf0] sm:$0xff] %v1685
                  %v1687 = vld [vmem:[%s1301 + $0x3000] sm:$0xff]
                  %1688 = vst [vmem:[%s1302 + $0xc00] sm:$0xff] %v1687
                  %v1689 = vld [vmem:[%s1301 + $0x3040] sm:$0xff]
                  %1690 = vst [vmem:[%s1302 + $0xc10] sm:$0xff] %v1689
                  %v1691 = vld [vmem:[%s1301 + $0x3080] sm:$0xff]
                  %1692 = vst [vmem:[%s1302 + $0xc20] sm:$0xff] %v1691
                  %v1693 = vld [vmem:[%s1301 + $0x30c0] sm:$0xff]
                  %1694 = vst [vmem:[%s1302 + $0xc30] sm:$0xff] %v1693
                  %v1695 = vld [vmem:[%s1301 + $0x3100] sm:$0xff]
                  %1696 = vst [vmem:[%s1302 + $0xc40] sm:$0xff] %v1695
                  %v1697 = vld [vmem:[%s1301 + $0x3140] sm:$0xff]
                  %1698 = vst [vmem:[%s1302 + $0xc50] sm:$0xff] %v1697
                  %v1699 = vld [vmem:[%s1301 + $0x3180] sm:$0xff]
                  %1700 = vst [vmem:[%s1302 + $0xc60] sm:$0xff] %v1699
                  %v1701 = vld [vmem:[%s1301 + $0x31c0] sm:$0xff]
                  %1702 = vst [vmem:[%s1302 + $0xc70] sm:$0xff] %v1701
                  %v1703 = vld [vmem:[%s1301 + $0x3200] sm:$0xff]
                  %1704 = vst [vmem:[%s1302 + $0xc80] sm:$0xff] %v1703
                  %v1705 = vld [vmem:[%s1301 + $0x3240] sm:$0xff]
                  %1706 = vst [vmem:[%s1302 + $0xc90] sm:$0xff] %v1705
                  %v1707 = vld [vmem:[%s1301 + $0x3280] sm:$0xff]
                  %1708 = vst [vmem:[%s1302 + $0xca0] sm:$0xff] %v1707
                  %v1709 = vld [vmem:[%s1301 + $0x32c0] sm:$0xff]
                  %1710 = vst [vmem:[%s1302 + $0xcb0] sm:$0xff] %v1709
                  %v1711 = vld [vmem:[%s1301 + $0x3300] sm:$0xff]
                  %1712 = vst [vmem:[%s1302 + $0xcc0] sm:$0xff] %v1711
                  %v1713 = vld [vmem:[%s1301 + $0x3340] sm:$0xff]
                  %1714 = vst [vmem:[%s1302 + $0xcd0] sm:$0xff] %v1713
                  %v1715 = vld [vmem:[%s1301 + $0x3380] sm:$0xff]
                  %1716 = vst [vmem:[%s1302 + $0xce0] sm:$0xff] %v1715
                  %v1717 = vld [vmem:[%s1301 + $0x33c0] sm:$0xff]
                  %1718 = vst [vmem:[%s1302 + $0xcf0] sm:$0xff] %v1717
                  %v1719 = vld [vmem:[%s1301 + $0x3400] sm:$0xff]
                  %1720 = vst [vmem:[%s1302 + $0xd00] sm:$0xff] %v1719
                  %v1721 = vld [vmem:[%s1301 + $0x3440] sm:$0xff]
                  %1722 = vst [vmem:[%s1302 + $0xd10] sm:$0xff] %v1721
                  %v1723 = vld [vmem:[%s1301 + $0x3480] sm:$0xff]
                  %1724 = vst [vmem:[%s1302 + $0xd20] sm:$0xff] %v1723
                  %v1725 = vld [vmem:[%s1301 + $0x34c0] sm:$0xff]
                  %1726 = vst [vmem:[%s1302 + $0xd30] sm:$0xff] %v1725
                  %v1727 = vld [vmem:[%s1301 + $0x3500] sm:$0xff]
                  %1728 = vst [vmem:[%s1302 + $0xd40] sm:$0xff] %v1727
                  %v1729 = vld [vmem:[%s1301 + $0x3540] sm:$0xff]
                  %1730 = vst [vmem:[%s1302 + $0xd50] sm:$0xff] %v1729
                  %v1731 = vld [vmem:[%s1301 + $0x3580] sm:$0xff]
                  %1732 = vst [vmem:[%s1302 + $0xd60] sm:$0xff] %v1731
                  %v1733 = vld [vmem:[%s1301 + $0x35c0] sm:$0xff]
                  %1734 = vst [vmem:[%s1302 + $0xd70] sm:$0xff] %v1733
                  %v1735 = vld [vmem:[%s1301 + $0x3600] sm:$0xff]
                  %1736 = vst [vmem:[%s1302 + $0xd80] sm:$0xff] %v1735
                  %v1737 = vld [vmem:[%s1301 + $0x3640] sm:$0xff]
                  %1738 = vst [vmem:[%s1302 + $0xd90] sm:$0xff] %v1737
                  %v1739 = vld [vmem:[%s1301 + $0x3680] sm:$0xff]
                  %1740 = vst [vmem:[%s1302 + $0xda0] sm:$0xff] %v1739
                  %v1741 = vld [vmem:[%s1301 + $0x36c0] sm:$0xff]
                  %1742 = vst [vmem:[%s1302 + $0xdb0] sm:$0xff] %v1741
                  %v1743 = vld [vmem:[%s1301 + $0x3700] sm:$0xff]
                  %1744 = vst [vmem:[%s1302 + $0xdc0] sm:$0xff] %v1743
                  %v1745 = vld [vmem:[%s1301 + $0x3740] sm:$0xff]
                  %1746 = vst [vmem:[%s1302 + $0xdd0] sm:$0xff] %v1745
                  %v1747 = vld [vmem:[%s1301 + $0x3780] sm:$0xff]
                  %1748 = vst [vmem:[%s1302 + $0xde0] sm:$0xff] %v1747
                  %v1749 = vld [vmem:[%s1301 + $0x37c0] sm:$0xff]
                  %1750 = vst [vmem:[%s1302 + $0xdf0] sm:$0xff] %v1749
                  %v1751 = vld [vmem:[%s1301 + $0x3800] sm:$0xff]
                  %1752 = vst [vmem:[%s1302 + $0xe00] sm:$0xff] %v1751
                  %v1753 = vld [vmem:[%s1301 + $0x3840] sm:$0xff]
                  %1754 = vst [vmem:[%s1302 + $0xe10] sm:$0xff] %v1753
                  %v1755 = vld [vmem:[%s1301 + $0x3880] sm:$0xff]
                  %1756 = vst [vmem:[%s1302 + $0xe20] sm:$0xff] %v1755
                  %v1757 = vld [vmem:[%s1301 + $0x38c0] sm:$0xff]
                  %1758 = vst [vmem:[%s1302 + $0xe30] sm:$0xff] %v1757
                  %v1759 = vld [vmem:[%s1301 + $0x3900] sm:$0xff]
                  %1760 = vst [vmem:[%s1302 + $0xe40] sm:$0xff] %v1759
                  %v1761 = vld [vmem:[%s1301 + $0x3940] sm:$0xff]
                  %1762 = vst [vmem:[%s1302 + $0xe50] sm:$0xff] %v1761
                  %v1763 = vld [vmem:[%s1301 + $0x3980] sm:$0xff]
                  %1764 = vst [vmem:[%s1302 + $0xe60] sm:$0xff] %v1763
                  %v1765 = vld [vmem:[%s1301 + $0x39c0] sm:$0xff]
                  %1766 = vst [vmem:[%s1302 + $0xe70] sm:$0xff] %v1765
                  %v1767 = vld [vmem:[%s1301 + $0x3a00] sm:$0xff]
                  %1768 = vst [vmem:[%s1302 + $0xe80] sm:$0xff] %v1767
                  %v1769 = vld [vmem:[%s1301 + $0x3a40] sm:$0xff]
                  %1770 = vst [vmem:[%s1302 + $0xe90] sm:$0xff] %v1769
                  %v1771 = vld [vmem:[%s1301 + $0x3a80] sm:$0xff]
                  %1772 = vst [vmem:[%s1302 + $0xea0] sm:$0xff] %v1771
                  %v1773 = vld [vmem:[%s1301 + $0x3ac0] sm:$0xff]
                  %1774 = vst [vmem:[%s1302 + $0xeb0] sm:$0xff] %v1773
                  %v1775 = vld [vmem:[%s1301 + $0x3b00] sm:$0xff]
                  %1776 = vst [vmem:[%s1302 + $0xec0] sm:$0xff] %v1775
                  %v1777 = vld [vmem:[%s1301 + $0x3b40] sm:$0xff]
                  %1778 = vst [vmem:[%s1302 + $0xed0] sm:$0xff] %v1777
                  %v1779 = vld [vmem:[%s1301 + $0x3b80] sm:$0xff]
                  %1780 = vst [vmem:[%s1302 + $0xee0] sm:$0xff] %v1779
                  %v1781 = vld [vmem:[%s1301 + $0x3bc0] sm:$0xff]
                  %1782 = vst [vmem:[%s1302 + $0xef0] sm:$0xff] %v1781
                  %v1783 = vld [vmem:[%s1301 + $0x3c00] sm:$0xff]
                  %1784 = vst [vmem:[%s1302 + $0xf00] sm:$0xff] %v1783
                  %v1785 = vld [vmem:[%s1301 + $0x3c40] sm:$0xff]
                  %1786 = vst [vmem:[%s1302 + $0xf10] sm:$0xff] %v1785
                  %v1787 = vld [vmem:[%s1301 + $0x3c80] sm:$0xff]
                  %1788 = vst [vmem:[%s1302 + $0xf20] sm:$0xff] %v1787
                  %v1789 = vld [vmem:[%s1301 + $0x3cc0] sm:$0xff]
                  %1790 = vst [vmem:[%s1302 + $0xf30] sm:$0xff] %v1789
                  %v1791 = vld [vmem:[%s1301 + $0x3d00] sm:$0xff]
                  %1792 = vst [vmem:[%s1302 + $0xf40] sm:$0xff] %v1791
                  %v1793 = vld [vmem:[%s1301 + $0x3d40] sm:$0xff]
                  %1794 = vst [vmem:[%s1302 + $0xf50] sm:$0xff] %v1793
                  %v1795 = vld [vmem:[%s1301 + $0x3d80] sm:$0xff]
                  %1796 = vst [vmem:[%s1302 + $0xf60] sm:$0xff] %v1795
                  %v1797 = vld [vmem:[%s1301 + $0x3dc0] sm:$0xff]
                  %1798 = vst [vmem:[%s1302 + $0xf70] sm:$0xff] %v1797
                  %v1799 = vld [vmem:[%s1301 + $0x3e00] sm:$0xff]
                  %1800 = vst [vmem:[%s1302 + $0xf80] sm:$0xff] %v1799
                  %v1801 = vld [vmem:[%s1301 + $0x3e40] sm:$0xff]
                  %1802 = vst [vmem:[%s1302 + $0xf90] sm:$0xff] %v1801
                  %v1803 = vld [vmem:[%s1301 + $0x3e80] sm:$0xff]
                  %1804 = vst [vmem:[%s1302 + $0xfa0] sm:$0xff] %v1803
                  %v1805 = vld [vmem:[%s1301 + $0x3ec0] sm:$0xff]
                  %1806 = vst [vmem:[%s1302 + $0xfb0] sm:$0xff] %v1805
                  %v1807 = vld [vmem:[%s1301 + $0x3f00] sm:$0xff]
                  %1808 = vst [vmem:[%s1302 + $0xfc0] sm:$0xff] %v1807
                  %v1809 = vld [vmem:[%s1301 + $0x3f40] sm:$0xff]
                  %1810 = vst [vmem:[%s1302 + $0xfd0] sm:$0xff] %v1809
                  %v1811 = vld [vmem:[%s1301 + $0x3f80] sm:$0xff]
                  %1812 = vst [vmem:[%s1302 + $0xfe0] sm:$0xff] %v1811
                  %v1813 = vld [vmem:[%s1301 + $0x3fc0] sm:$0xff]
                  %1814 = vst [vmem:[%s1302 + $0xff0] sm:$0xff] %v1813
                  %v1815 = vld [vmem:[%s1301 + $0x4000] sm:$0xff]
                  %1816 = vst [vmem:[%s1302 + $0x1000] sm:$0xff] %v1815
                  %v1817 = vld [vmem:[%s1301 + $0x4040] sm:$0xff]
                  %1818 = vst [vmem:[%s1302 + $0x1010] sm:$0xff] %v1817
                  %v1819 = vld [vmem:[%s1301 + $0x4080] sm:$0xff]
                  %1820 = vst [vmem:[%s1302 + $0x1020] sm:$0xff] %v1819
                  %v1821 = vld [vmem:[%s1301 + $0x40c0] sm:$0xff]
                  %1822 = vst [vmem:[%s1302 + $0x1030] sm:$0xff] %v1821
                  %v1823 = vld [vmem:[%s1301 + $0x4100] sm:$0xff]
                  %1824 = vst [vmem:[%s1302 + $0x1040] sm:$0xff] %v1823
                  %v1825 = vld [vmem:[%s1301 + $0x4140] sm:$0xff]
                  %1826 = vst [vmem:[%s1302 + $0x1050] sm:$0xff] %v1825
                  %v1827 = vld [vmem:[%s1301 + $0x4180] sm:$0xff]
                  %1828 = vst [vmem:[%s1302 + $0x1060] sm:$0xff] %v1827
                  %v1829 = vld [vmem:[%s1301 + $0x41c0] sm:$0xff]
                  %1830 = vst [vmem:[%s1302 + $0x1070] sm:$0xff] %v1829
                  %v1831 = vld [vmem:[%s1301 + $0x4200] sm:$0xff]
                  %1832 = vst [vmem:[%s1302 + $0x1080] sm:$0xff] %v1831
                  %v1833 = vld [vmem:[%s1301 + $0x4240] sm:$0xff]
                  %1834 = vst [vmem:[%s1302 + $0x1090] sm:$0xff] %v1833
                  %v1835 = vld [vmem:[%s1301 + $0x4280] sm:$0xff]
                  %1836 = vst [vmem:[%s1302 + $0x10a0] sm:$0xff] %v1835
                  %v1837 = vld [vmem:[%s1301 + $0x42c0] sm:$0xff]
                  %1838 = vst [vmem:[%s1302 + $0x10b0] sm:$0xff] %v1837
                  %v1839 = vld [vmem:[%s1301 + $0x4300] sm:$0xff]
                  %1840 = vst [vmem:[%s1302 + $0x10c0] sm:$0xff] %v1839
                  %v1841 = vld [vmem:[%s1301 + $0x4340] sm:$0xff]
                  %1842 = vst [vmem:[%s1302 + $0x10d0] sm:$0xff] %v1841
                  %v1843 = vld [vmem:[%s1301 + $0x4380] sm:$0xff]
                  %1844 = vst [vmem:[%s1302 + $0x10e0] sm:$0xff] %v1843
                  %v1845 = vld [vmem:[%s1301 + $0x43c0] sm:$0xff]
                  %1846 = vst [vmem:[%s1302 + $0x10f0] sm:$0xff] %v1845
                  %v1847 = vld [vmem:[%s1301 + $0x4400] sm:$0xff]
                  %1848 = vst [vmem:[%s1302 + $0x1100] sm:$0xff] %v1847
                  %v1849 = vld [vmem:[%s1301 + $0x4440] sm:$0xff]
                  %1850 = vst [vmem:[%s1302 + $0x1110] sm:$0xff] %v1849
                  %v1851 = vld [vmem:[%s1301 + $0x4480] sm:$0xff]
                  %1852 = vst [vmem:[%s1302 + $0x1120] sm:$0xff] %v1851
                  %v1853 = vld [vmem:[%s1301 + $0x44c0] sm:$0xff]
                  %1854 = vst [vmem:[%s1302 + $0x1130] sm:$0xff] %v1853
                  %v1855 = vld [vmem:[%s1301 + $0x4500] sm:$0xff]
                  %1856 = vst [vmem:[%s1302 + $0x1140] sm:$0xff] %v1855
                  %v1857 = vld [vmem:[%s1301 + $0x4540] sm:$0xff]
                  %1858 = vst [vmem:[%s1302 + $0x1150] sm:$0xff] %v1857
                  %v1859 = vld [vmem:[%s1301 + $0x4580] sm:$0xff]
                  %1860 = vst [vmem:[%s1302 + $0x1160] sm:$0xff] %v1859
                  %v1861 = vld [vmem:[%s1301 + $0x45c0] sm:$0xff]
                  %1862 = vst [vmem:[%s1302 + $0x1170] sm:$0xff] %v1861
                  %v1863 = vld [vmem:[%s1301 + $0x4600] sm:$0xff]
                  %1864 = vst [vmem:[%s1302 + $0x1180] sm:$0xff] %v1863
                  %v1865 = vld [vmem:[%s1301 + $0x4640] sm:$0xff]
                  %1866 = vst [vmem:[%s1302 + $0x1190] sm:$0xff] %v1865
                  %v1867 = vld [vmem:[%s1301 + $0x4680] sm:$0xff]
                  %1868 = vst [vmem:[%s1302 + $0x11a0] sm:$0xff] %v1867
                  %v1869 = vld [vmem:[%s1301 + $0x46c0] sm:$0xff]
                  %1870 = vst [vmem:[%s1302 + $0x11b0] sm:$0xff] %v1869
                  %v1871 = vld [vmem:[%s1301 + $0x4700] sm:$0xff]
                  %1872 = vst [vmem:[%s1302 + $0x11c0] sm:$0xff] %v1871
                  %v1873 = vld [vmem:[%s1301 + $0x4740] sm:$0xff]
                  %1874 = vst [vmem:[%s1302 + $0x11d0] sm:$0xff] %v1873
                  %v1875 = vld [vmem:[%s1301 + $0x4780] sm:$0xff]
                  %1876 = vst [vmem:[%s1302 + $0x11e0] sm:$0xff] %v1875
                  %v1877 = vld [vmem:[%s1301 + $0x47c0] sm:$0xff]
                  %1878 = vst [vmem:[%s1302 + $0x11f0] sm:$0xff] %v1877
                  %v1879 = vld [vmem:[%s1301 + $0x4800] sm:$0xff]
                  %1880 = vst [vmem:[%s1302 + $0x1200] sm:$0xff] %v1879
                  %v1881 = vld [vmem:[%s1301 + $0x4840] sm:$0xff]
                  %1882 = vst [vmem:[%s1302 + $0x1210] sm:$0xff] %v1881
                  %v1883 = vld [vmem:[%s1301 + $0x4880] sm:$0xff]
                  %1884 = vst [vmem:[%s1302 + $0x1220] sm:$0xff] %v1883
                  %v1885 = vld [vmem:[%s1301 + $0x48c0] sm:$0xff]
                  %1886 = vst [vmem:[%s1302 + $0x1230] sm:$0xff] %v1885
                  %v1887 = vld [vmem:[%s1301 + $0x4900] sm:$0xff]
                  %1888 = vst [vmem:[%s1302 + $0x1240] sm:$0xff] %v1887
                  %v1889 = vld [vmem:[%s1301 + $0x4940] sm:$0xff]
                  %1890 = vst [vmem:[%s1302 + $0x1250] sm:$0xff] %v1889
                  %v1891 = vld [vmem:[%s1301 + $0x4980] sm:$0xff]
                  %1892 = vst [vmem:[%s1302 + $0x1260] sm:$0xff] %v1891
                  %v1893 = vld [vmem:[%s1301 + $0x49c0] sm:$0xff]
                  %1894 = vst [vmem:[%s1302 + $0x1270] sm:$0xff] %v1893
                  %v1895 = vld [vmem:[%s1301 + $0x4a00] sm:$0xff]
                  %1896 = vst [vmem:[%s1302 + $0x1280] sm:$0xff] %v1895
                  %v1897 = vld [vmem:[%s1301 + $0x4a40] sm:$0xff]
                  %1898 = vst [vmem:[%s1302 + $0x1290] sm:$0xff] %v1897
                  %v1899 = vld [vmem:[%s1301 + $0x4a80] sm:$0xff]
                  %1900 = vst [vmem:[%s1302 + $0x12a0] sm:$0xff] %v1899
                  %v1901 = vld [vmem:[%s1301 + $0x4ac0] sm:$0xff]
                  %1902 = vst [vmem:[%s1302 + $0x12b0] sm:$0xff] %v1901
                  %v1903 = vld [vmem:[%s1301 + $0x4b00] sm:$0xff]
                  %1904 = vst [vmem:[%s1302 + $0x12c0] sm:$0xff] %v1903
                  %v1905 = vld [vmem:[%s1301 + $0x4b40] sm:$0xff]
                  %1906 = vst [vmem:[%s1302 + $0x12d0] sm:$0xff] %v1905
                  %v1907 = vld [vmem:[%s1301 + $0x4b80] sm:$0xff]
                  %1908 = vst [vmem:[%s1302 + $0x12e0] sm:$0xff] %v1907
                  %v1909 = vld [vmem:[%s1301 + $0x4bc0] sm:$0xff]
                  %1910 = vst [vmem:[%s1302 + $0x12f0] sm:$0xff] %v1909
                  %v1911 = vld [vmem:[%s1301 + $0x4c00] sm:$0xff]
                  %1912 = vst [vmem:[%s1302 + $0x1300] sm:$0xff] %v1911
                  %v1913 = vld [vmem:[%s1301 + $0x4c40] sm:$0xff]
                  %1914 = vst [vmem:[%s1302 + $0x1310] sm:$0xff] %v1913
                  %v1915 = vld [vmem:[%s1301 + $0x4c80] sm:$0xff]
                  %1916 = vst [vmem:[%s1302 + $0x1320] sm:$0xff] %v1915
                  %v1917 = vld [vmem:[%s1301 + $0x4cc0] sm:$0xff]
                  %1918 = vst [vmem:[%s1302 + $0x1330] sm:$0xff] %v1917
                  %v1919 = vld [vmem:[%s1301 + $0x4d00] sm:$0xff]
                  %1920 = vst [vmem:[%s1302 + $0x1340] sm:$0xff] %v1919
                  %v1921 = vld [vmem:[%s1301 + $0x4d40] sm:$0xff]
                  %1922 = vst [vmem:[%s1302 + $0x1350] sm:$0xff] %v1921
                  %v1923 = vld [vmem:[%s1301 + $0x4d80] sm:$0xff]
                  %1924 = vst [vmem:[%s1302 + $0x1360] sm:$0xff] %v1923
                  %v1925 = vld [vmem:[%s1301 + $0x4dc0] sm:$0xff]
                  %1926 = vst [vmem:[%s1302 + $0x1370] sm:$0xff] %v1925
                  %v1927 = vld [vmem:[%s1301 + $0x4e00] sm:$0xff]
                  %1928 = vst [vmem:[%s1302 + $0x1380] sm:$0xff] %v1927
                  %v1929 = vld [vmem:[%s1301 + $0x4e40] sm:$0xff]
                  %1930 = vst [vmem:[%s1302 + $0x1390] sm:$0xff] %v1929
                  %v1931 = vld [vmem:[%s1301 + $0x4e80] sm:$0xff]
                  %1932 = vst [vmem:[%s1302 + $0x13a0] sm:$0xff] %v1931
                  %v1933 = vld [vmem:[%s1301 + $0x4ec0] sm:$0xff]
                  %1934 = vst [vmem:[%s1302 + $0x13b0] sm:$0xff] %v1933
                  %v1935 = vld [vmem:[%s1301 + $0x4f00] sm:$0xff]
                  %1936 = vst [vmem:[%s1302 + $0x13c0] sm:$0xff] %v1935
                  %v1937 = vld [vmem:[%s1301 + $0x4f40] sm:$0xff]
                  %1938 = vst [vmem:[%s1302 + $0x13d0] sm:$0xff] %v1937
                  %v1939 = vld [vmem:[%s1301 + $0x4f80] sm:$0xff]
                  %1940 = vst [vmem:[%s1302 + $0x13e0] sm:$0xff] %v1939
                  %v1941 = vld [vmem:[%s1301 + $0x4fc0] sm:$0xff]
                  %1942 = vst [vmem:[%s1302 + $0x13f0] sm:$0xff] %v1941
                  %v1943 = vld [vmem:[%s1301 + $0x5000] sm:$0xff]
                  %1944 = vst [vmem:[%s1302 + $0x1400] sm:$0xff] %v1943
                  %v1945 = vld [vmem:[%s1301 + $0x5040] sm:$0xff]
                  %1946 = vst [vmem:[%s1302 + $0x1410] sm:$0xff] %v1945
                  %v1947 = vld [vmem:[%s1301 + $0x5080] sm:$0xff]
                  %1948 = vst [vmem:[%s1302 + $0x1420] sm:$0xff] %v1947
                  %v1949 = vld [vmem:[%s1301 + $0x50c0] sm:$0xff]
                  %1950 = vst [vmem:[%s1302 + $0x1430] sm:$0xff] %v1949
                  %v1951 = vld [vmem:[%s1301 + $0x5100] sm:$0xff]
                  %1952 = vst [vmem:[%s1302 + $0x1440] sm:$0xff] %v1951
                  %v1953 = vld [vmem:[%s1301 + $0x5140] sm:$0xff]
                  %1954 = vst [vmem:[%s1302 + $0x1450] sm:$0xff] %v1953
                  %v1955 = vld [vmem:[%s1301 + $0x5180] sm:$0xff]
                  %1956 = vst [vmem:[%s1302 + $0x1460] sm:$0xff] %v1955
                  %v1957 = vld [vmem:[%s1301 + $0x51c0] sm:$0xff]
                  %1958 = vst [vmem:[%s1302 + $0x1470] sm:$0xff] %v1957
                  %v1959 = vld [vmem:[%s1301 + $0x5200] sm:$0xff]
                  %1960 = vst [vmem:[%s1302 + $0x1480] sm:$0xff] %v1959
                  %v1961 = vld [vmem:[%s1301 + $0x5240] sm:$0xff]
                  %1962 = vst [vmem:[%s1302 + $0x1490] sm:$0xff] %v1961
                  %v1963 = vld [vmem:[%s1301 + $0x5280] sm:$0xff]
                  %1964 = vst [vmem:[%s1302 + $0x14a0] sm:$0xff] %v1963
                  %v1965 = vld [vmem:[%s1301 + $0x52c0] sm:$0xff]
                  %1966 = vst [vmem:[%s1302 + $0x14b0] sm:$0xff] %v1965
                  %v1967 = vld [vmem:[%s1301 + $0x5300] sm:$0xff]
                  %1968 = vst [vmem:[%s1302 + $0x14c0] sm:$0xff] %v1967
                  %v1969 = vld [vmem:[%s1301 + $0x5340] sm:$0xff]
                  %1970 = vst [vmem:[%s1302 + $0x14d0] sm:$0xff] %v1969
                  %v1971 = vld [vmem:[%s1301 + $0x5380] sm:$0xff]
                  %1972 = vst [vmem:[%s1302 + $0x14e0] sm:$0xff] %v1971
                  %v1973 = vld [vmem:[%s1301 + $0x53c0] sm:$0xff]
                  %1974 = vst [vmem:[%s1302 + $0x14f0] sm:$0xff] %v1973
                  %v1975 = vld [vmem:[%s1301 + $0x5400] sm:$0xff]
                  %1976 = vst [vmem:[%s1302 + $0x1500] sm:$0xff] %v1975
                  %v1977 = vld [vmem:[%s1301 + $0x5440] sm:$0xff]
                  %1978 = vst [vmem:[%s1302 + $0x1510] sm:$0xff] %v1977
                  %v1979 = vld [vmem:[%s1301 + $0x5480] sm:$0xff]
                  %1980 = vst [vmem:[%s1302 + $0x1520] sm:$0xff] %v1979
                  %v1981 = vld [vmem:[%s1301 + $0x54c0] sm:$0xff]
                  %1982 = vst [vmem:[%s1302 + $0x1530] sm:$0xff] %v1981
                  %v1983 = vld [vmem:[%s1301 + $0x5500] sm:$0xff]
                  %1984 = vst [vmem:[%s1302 + $0x1540] sm:$0xff] %v1983
                  %v1985 = vld [vmem:[%s1301 + $0x5540] sm:$0xff]
                  %1986 = vst [vmem:[%s1302 + $0x1550] sm:$0xff] %v1985
                  %v1987 = vld [vmem:[%s1301 + $0x5580] sm:$0xff]
                  %1988 = vst [vmem:[%s1302 + $0x1560] sm:$0xff] %v1987
                  %v1989 = vld [vmem:[%s1301 + $0x55c0] sm:$0xff]
                  %1990 = vst [vmem:[%s1302 + $0x1570] sm:$0xff] %v1989
                  %v1991 = vld [vmem:[%s1301 + $0x5600] sm:$0xff]
                  %1992 = vst [vmem:[%s1302 + $0x1580] sm:$0xff] %v1991
                  %v1993 = vld [vmem:[%s1301 + $0x5640] sm:$0xff]
                  %1994 = vst [vmem:[%s1302 + $0x1590] sm:$0xff] %v1993
                  %v1995 = vld [vmem:[%s1301 + $0x5680] sm:$0xff]
                  %1996 = vst [vmem:[%s1302 + $0x15a0] sm:$0xff] %v1995
                  %v1997 = vld [vmem:[%s1301 + $0x56c0] sm:$0xff]
                  %1998 = vst [vmem:[%s1302 + $0x15b0] sm:$0xff] %v1997
                  %v1999 = vld [vmem:[%s1301 + $0x5700] sm:$0xff]
                  %2000 = vst [vmem:[%s1302 + $0x15c0] sm:$0xff] %v1999
                  %v2001 = vld [vmem:[%s1301 + $0x5740] sm:$0xff]
                  %2002 = vst [vmem:[%s1302 + $0x15d0] sm:$0xff] %v2001
                  %v2003 = vld [vmem:[%s1301 + $0x5780] sm:$0xff]
                  %2004 = vst [vmem:[%s1302 + $0x15e0] sm:$0xff] %v2003
                  %v2005 = vld [vmem:[%s1301 + $0x57c0] sm:$0xff]
                  %2006 = vst [vmem:[%s1302 + $0x15f0] sm:$0xff] %v2005
                  %v2007 = vld [vmem:[%s1301 + $0x5800] sm:$0xff]
                  %2008 = vst [vmem:[%s1302 + $0x1600] sm:$0xff] %v2007
                  %v2009 = vld [vmem:[%s1301 + $0x5840] sm:$0xff]
                  %2010 = vst [vmem:[%s1302 + $0x1610] sm:$0xff] %v2009
                  %v2011 = vld [vmem:[%s1301 + $0x5880] sm:$0xff]
                  %2012 = vst [vmem:[%s1302 + $0x1620] sm:$0xff] %v2011
                  %v2013 = vld [vmem:[%s1301 + $0x58c0] sm:$0xff]
                  %2014 = vst [vmem:[%s1302 + $0x1630] sm:$0xff] %v2013
                  %v2015 = vld [vmem:[%s1301 + $0x5900] sm:$0xff]
                  %2016 = vst [vmem:[%s1302 + $0x1640] sm:$0xff] %v2015
                  %v2017 = vld [vmem:[%s1301 + $0x5940] sm:$0xff]
                  %2018 = vst [vmem:[%s1302 + $0x1650] sm:$0xff] %v2017
                  %v2019 = vld [vmem:[%s1301 + $0x5980] sm:$0xff]
                  %2020 = vst [vmem:[%s1302 + $0x1660] sm:$0xff] %v2019
                  %v2021 = vld [vmem:[%s1301 + $0x59c0] sm:$0xff]
                  %2022 = vst [vmem:[%s1302 + $0x1670] sm:$0xff] %v2021
                  %v2023 = vld [vmem:[%s1301 + $0x5a00] sm:$0xff]
                  %2024 = vst [vmem:[%s1302 + $0x1680] sm:$0xff] %v2023
                  %v2025 = vld [vmem:[%s1301 + $0x5a40] sm:$0xff]
                  %2026 = vst [vmem:[%s1302 + $0x1690] sm:$0xff] %v2025
                  %v2027 = vld [vmem:[%s1301 + $0x5a80] sm:$0xff]
                  %2028 = vst [vmem:[%s1302 + $0x16a0] sm:$0xff] %v2027
                  %v2029 = vld [vmem:[%s1301 + $0x5ac0] sm:$0xff]
                  %2030 = vst [vmem:[%s1302 + $0x16b0] sm:$0xff] %v2029
                  %v2031 = vld [vmem:[%s1301 + $0x5b00] sm:$0xff]
                  %2032 = vst [vmem:[%s1302 + $0x16c0] sm:$0xff] %v2031
                  %v2033 = vld [vmem:[%s1301 + $0x5b40] sm:$0xff]
                  %2034 = vst [vmem:[%s1302 + $0x16d0] sm:$0xff] %v2033
                  %v2035 = vld [vmem:[%s1301 + $0x5b80] sm:$0xff]
                  %2036 = vst [vmem:[%s1302 + $0x16e0] sm:$0xff] %v2035
                  %v2037 = vld [vmem:[%s1301 + $0x5bc0] sm:$0xff]
                  %2038 = vst [vmem:[%s1302 + $0x16f0] sm:$0xff] %v2037
                  %v2039 = vld [vmem:[%s1301 + $0x5c00] sm:$0xff]
                  %2040 = vst [vmem:[%s1302 + $0x1700] sm:$0xff] %v2039
                  %v2041 = vld [vmem:[%s1301 + $0x5c40] sm:$0xff]
                  %2042 = vst [vmem:[%s1302 + $0x1710] sm:$0xff] %v2041
                  %v2043 = vld [vmem:[%s1301 + $0x5c80] sm:$0xff]
                  %2044 = vst [vmem:[%s1302 + $0x1720] sm:$0xff] %v2043
                  %v2045 = vld [vmem:[%s1301 + $0x5cc0] sm:$0xff]
                  %2046 = vst [vmem:[%s1302 + $0x1730] sm:$0xff] %v2045
                  %v2047 = vld [vmem:[%s1301 + $0x5d00] sm:$0xff]
                  %2048 = vst [vmem:[%s1302 + $0x1740] sm:$0xff] %v2047
                  %v2049 = vld [vmem:[%s1301 + $0x5d40] sm:$0xff]
                  %2050 = vst [vmem:[%s1302 + $0x1750] sm:$0xff] %v2049
                  %v2051 = vld [vmem:[%s1301 + $0x5d80] sm:$0xff]
                  %2052 = vst [vmem:[%s1302 + $0x1760] sm:$0xff] %v2051
                  %v2053 = vld [vmem:[%s1301 + $0x5dc0] sm:$0xff]
                  %2054 = vst [vmem:[%s1302 + $0x1770] sm:$0xff] %v2053
                  %v2055 = vld [vmem:[%s1301 + $0x5e00] sm:$0xff]
                  %2056 = vst [vmem:[%s1302 + $0x1780] sm:$0xff] %v2055
                  %v2057 = vld [vmem:[%s1301 + $0x5e40] sm:$0xff]
                  %2058 = vst [vmem:[%s1302 + $0x1790] sm:$0xff] %v2057
                  %v2059 = vld [vmem:[%s1301 + $0x5e80] sm:$0xff]
                  %2060 = vst [vmem:[%s1302 + $0x17a0] sm:$0xff] %v2059
                  %v2061 = vld [vmem:[%s1301 + $0x5ec0] sm:$0xff]
                  %2062 = vst [vmem:[%s1302 + $0x17b0] sm:$0xff] %v2061
                  %v2063 = vld [vmem:[%s1301 + $0x5f00] sm:$0xff]
                  %2064 = vst [vmem:[%s1302 + $0x17c0] sm:$0xff] %v2063
                  %v2065 = vld [vmem:[%s1301 + $0x5f40] sm:$0xff]
                  %2066 = vst [vmem:[%s1302 + $0x17d0] sm:$0xff] %v2065
                  %v2067 = vld [vmem:[%s1301 + $0x5f80] sm:$0xff]
                  %2068 = vst [vmem:[%s1302 + $0x17e0] sm:$0xff] %v2067
                  %v2069 = vld [vmem:[%s1301 + $0x5fc0] sm:$0xff]
                  %2070 = vst [vmem:[%s1302 + $0x17f0] sm:$0xff] %v2069
                  %v2071 = vld [vmem:[%s1301 + $0x6000] sm:$0xff]
                  %2072 = vst [vmem:[%s1302 + $0x1800] sm:$0xff] %v2071
                  %v2073 = vld [vmem:[%s1301 + $0x6040] sm:$0xff]
                  %2074 = vst [vmem:[%s1302 + $0x1810] sm:$0xff] %v2073
                  %v2075 = vld [vmem:[%s1301 + $0x6080] sm:$0xff]
                  %2076 = vst [vmem:[%s1302 + $0x1820] sm:$0xff] %v2075
                  %v2077 = vld [vmem:[%s1301 + $0x60c0] sm:$0xff]
                  %2078 = vst [vmem:[%s1302 + $0x1830] sm:$0xff] %v2077
                  %v2079 = vld [vmem:[%s1301 + $0x6100] sm:$0xff]
                  %2080 = vst [vmem:[%s1302 + $0x1840] sm:$0xff] %v2079
                  %v2081 = vld [vmem:[%s1301 + $0x6140] sm:$0xff]
                  %2082 = vst [vmem:[%s1302 + $0x1850] sm:$0xff] %v2081
                  %v2083 = vld [vmem:[%s1301 + $0x6180] sm:$0xff]
                  %2084 = vst [vmem:[%s1302 + $0x1860] sm:$0xff] %v2083
                  %v2085 = vld [vmem:[%s1301 + $0x61c0] sm:$0xff]
                  %2086 = vst [vmem:[%s1302 + $0x1870] sm:$0xff] %v2085
                  %v2087 = vld [vmem:[%s1301 + $0x6200] sm:$0xff]
                  %2088 = vst [vmem:[%s1302 + $0x1880] sm:$0xff] %v2087
                  %v2089 = vld [vmem:[%s1301 + $0x6240] sm:$0xff]
                  %2090 = vst [vmem:[%s1302 + $0x1890] sm:$0xff] %v2089
                  %v2091 = vld [vmem:[%s1301 + $0x6280] sm:$0xff]
                  %2092 = vst [vmem:[%s1302 + $0x18a0] sm:$0xff] %v2091
                  %v2093 = vld [vmem:[%s1301 + $0x62c0] sm:$0xff]
                  %2094 = vst [vmem:[%s1302 + $0x18b0] sm:$0xff] %v2093
                  %v2095 = vld [vmem:[%s1301 + $0x6300] sm:$0xff]
                  %2096 = vst [vmem:[%s1302 + $0x18c0] sm:$0xff] %v2095
                  %v2097 = vld [vmem:[%s1301 + $0x6340] sm:$0xff]
                  %2098 = vst [vmem:[%s1302 + $0x18d0] sm:$0xff] %v2097
                  %v2099 = vld [vmem:[%s1301 + $0x6380] sm:$0xff]
                  %2100 = vst [vmem:[%s1302 + $0x18e0] sm:$0xff] %v2099
                  %v2101 = vld [vmem:[%s1301 + $0x63c0] sm:$0xff]
                  %2102 = vst [vmem:[%s1302 + $0x18f0] sm:$0xff] %v2101
                  %v2103 = vld [vmem:[%s1301 + $0x6400] sm:$0xff]
                  %2104 = vst [vmem:[%s1302 + $0x1900] sm:$0xff] %v2103
                  %v2105 = vld [vmem:[%s1301 + $0x6440] sm:$0xff]
                  %2106 = vst [vmem:[%s1302 + $0x1910] sm:$0xff] %v2105
                  %v2107 = vld [vmem:[%s1301 + $0x6480] sm:$0xff]
                  %2108 = vst [vmem:[%s1302 + $0x1920] sm:$0xff] %v2107
                  %v2109 = vld [vmem:[%s1301 + $0x64c0] sm:$0xff]
                  %2110 = vst [vmem:[%s1302 + $0x1930] sm:$0xff] %v2109
                  %v2111 = vld [vmem:[%s1301 + $0x6500] sm:$0xff]
                  %2112 = vst [vmem:[%s1302 + $0x1940] sm:$0xff] %v2111
                  %v2113 = vld [vmem:[%s1301 + $0x6540] sm:$0xff]
                  %2114 = vst [vmem:[%s1302 + $0x1950] sm:$0xff] %v2113
                  %v2115 = vld [vmem:[%s1301 + $0x6580] sm:$0xff]
                  %2116 = vst [vmem:[%s1302 + $0x1960] sm:$0xff] %v2115
                  %v2117 = vld [vmem:[%s1301 + $0x65c0] sm:$0xff]
                  %2118 = vst [vmem:[%s1302 + $0x1970] sm:$0xff] %v2117
                  %v2119 = vld [vmem:[%s1301 + $0x6600] sm:$0xff]
                  %2120 = vst [vmem:[%s1302 + $0x1980] sm:$0xff] %v2119
                  %v2121 = vld [vmem:[%s1301 + $0x6640] sm:$0xff]
                  %2122 = vst [vmem:[%s1302 + $0x1990] sm:$0xff] %v2121
                  %v2123 = vld [vmem:[%s1301 + $0x6680] sm:$0xff]
                  %2124 = vst [vmem:[%s1302 + $0x19a0] sm:$0xff] %v2123
                  %v2125 = vld [vmem:[%s1301 + $0x66c0] sm:$0xff]
                  %2126 = vst [vmem:[%s1302 + $0x19b0] sm:$0xff] %v2125
                  %v2127 = vld [vmem:[%s1301 + $0x6700] sm:$0xff]
                  %2128 = vst [vmem:[%s1302 + $0x19c0] sm:$0xff] %v2127
                  %v2129 = vld [vmem:[%s1301 + $0x6740] sm:$0xff]
                  %2130 = vst [vmem:[%s1302 + $0x19d0] sm:$0xff] %v2129
                  %v2131 = vld [vmem:[%s1301 + $0x6780] sm:$0xff]
                  %2132 = vst [vmem:[%s1302 + $0x19e0] sm:$0xff] %v2131
                  %v2133 = vld [vmem:[%s1301 + $0x67c0] sm:$0xff]
                  %2134 = vst [vmem:[%s1302 + $0x19f0] sm:$0xff] %v2133
                  %v2135 = vld [vmem:[%s1301 + $0x6800] sm:$0xff]
                  %2136 = vst [vmem:[%s1302 + $0x1a00] sm:$0xff] %v2135
                  %v2137 = vld [vmem:[%s1301 + $0x6840] sm:$0xff]
                  %2138 = vst [vmem:[%s1302 + $0x1a10] sm:$0xff] %v2137
                  %v2139 = vld [vmem:[%s1301 + $0x6880] sm:$0xff]
                  %2140 = vst [vmem:[%s1302 + $0x1a20] sm:$0xff] %v2139
                  %v2141 = vld [vmem:[%s1301 + $0x68c0] sm:$0xff]
                  %2142 = vst [vmem:[%s1302 + $0x1a30] sm:$0xff] %v2141
                  %v2143 = vld [vmem:[%s1301 + $0x6900] sm:$0xff]
                  %2144 = vst [vmem:[%s1302 + $0x1a40] sm:$0xff] %v2143
                  %v2145 = vld [vmem:[%s1301 + $0x6940] sm:$0xff]
                  %2146 = vst [vmem:[%s1302 + $0x1a50] sm:$0xff] %v2145
                  %v2147 = vld [vmem:[%s1301 + $0x6980] sm:$0xff]
                  %2148 = vst [vmem:[%s1302 + $0x1a60] sm:$0xff] %v2147
                  %v2149 = vld [vmem:[%s1301 + $0x69c0] sm:$0xff]
                  %2150 = vst [vmem:[%s1302 + $0x1a70] sm:$0xff] %v2149
                  %v2151 = vld [vmem:[%s1301 + $0x6a00] sm:$0xff]
                  %2152 = vst [vmem:[%s1302 + $0x1a80] sm:$0xff] %v2151
                  %v2153 = vld [vmem:[%s1301 + $0x6a40] sm:$0xff]
                  %2154 = vst [vmem:[%s1302 + $0x1a90] sm:$0xff] %v2153
                  %v2155 = vld [vmem:[%s1301 + $0x6a80] sm:$0xff]
                  %2156 = vst [vmem:[%s1302 + $0x1aa0] sm:$0xff] %v2155
                  %v2157 = vld [vmem:[%s1301 + $0x6ac0] sm:$0xff]
                  %2158 = vst [vmem:[%s1302 + $0x1ab0] sm:$0xff] %v2157
                  %v2159 = vld [vmem:[%s1301 + $0x6b00] sm:$0xff]
                  %2160 = vst [vmem:[%s1302 + $0x1ac0] sm:$0xff] %v2159
                  %v2161 = vld [vmem:[%s1301 + $0x6b40] sm:$0xff]
                  %2162 = vst [vmem:[%s1302 + $0x1ad0] sm:$0xff] %v2161
                  %v2163 = vld [vmem:[%s1301 + $0x6b80] sm:$0xff]
                  %2164 = vst [vmem:[%s1302 + $0x1ae0] sm:$0xff] %v2163
                  %v2165 = vld [vmem:[%s1301 + $0x6bc0] sm:$0xff]
                  %2166 = vst [vmem:[%s1302 + $0x1af0] sm:$0xff] %v2165
                  %v2167 = vld [vmem:[%s1301 + $0x6c00] sm:$0xff]
                  %2168 = vst [vmem:[%s1302 + $0x1b00] sm:$0xff] %v2167
                  %v2169 = vld [vmem:[%s1301 + $0x6c40] sm:$0xff]
                  %2170 = vst [vmem:[%s1302 + $0x1b10] sm:$0xff] %v2169
                  %v2171 = vld [vmem:[%s1301 + $0x6c80] sm:$0xff]
                  %2172 = vst [vmem:[%s1302 + $0x1b20] sm:$0xff] %v2171
                  %v2173 = vld [vmem:[%s1301 + $0x6cc0] sm:$0xff]
                  %2174 = vst [vmem:[%s1302 + $0x1b30] sm:$0xff] %v2173
                  %v2175 = vld [vmem:[%s1301 + $0x6d00] sm:$0xff]
                  %2176 = vst [vmem:[%s1302 + $0x1b40] sm:$0xff] %v2175
                  %v2177 = vld [vmem:[%s1301 + $0x6d40] sm:$0xff]
                  %2178 = vst [vmem:[%s1302 + $0x1b50] sm:$0xff] %v2177
                  %v2179 = vld [vmem:[%s1301 + $0x6d80] sm:$0xff]
                  %2180 = vst [vmem:[%s1302 + $0x1b60] sm:$0xff] %v2179
                  %v2181 = vld [vmem:[%s1301 + $0x6dc0] sm:$0xff]
                  %2182 = vst [vmem:[%s1302 + $0x1b70] sm:$0xff] %v2181
                  %v2183 = vld [vmem:[%s1301 + $0x6e00] sm:$0xff]
                  %2184 = vst [vmem:[%s1302 + $0x1b80] sm:$0xff] %v2183
                  %v2185 = vld [vmem:[%s1301 + $0x6e40] sm:$0xff]
                  %2186 = vst [vmem:[%s1302 + $0x1b90] sm:$0xff] %v2185
                  %v2187 = vld [vmem:[%s1301 + $0x6e80] sm:$0xff]
                  %2188 = vst [vmem:[%s1302 + $0x1ba0] sm:$0xff] %v2187
                  %v2189 = vld [vmem:[%s1301 + $0x6ec0] sm:$0xff]
                  %2190 = vst [vmem:[%s1302 + $0x1bb0] sm:$0xff] %v2189
                  %v2191 = vld [vmem:[%s1301 + $0x6f00] sm:$0xff]
                  %2192 = vst [vmem:[%s1302 + $0x1bc0] sm:$0xff] %v2191
                  %v2193 = vld [vmem:[%s1301 + $0x6f40] sm:$0xff]
                  %2194 = vst [vmem:[%s1302 + $0x1bd0] sm:$0xff] %v2193
                  %v2195 = vld [vmem:[%s1301 + $0x6f80] sm:$0xff]
                  %2196 = vst [vmem:[%s1302 + $0x1be0] sm:$0xff] %v2195
                  %v2197 = vld [vmem:[%s1301 + $0x6fc0] sm:$0xff]
                  %2198 = vst [vmem:[%s1302 + $0x1bf0] sm:$0xff] %v2197
                  %v2199 = vld [vmem:[%s1301 + $0x7000] sm:$0xff]
                  %2200 = vst [vmem:[%s1302 + $0x1c00] sm:$0xff] %v2199
                  %v2201 = vld [vmem:[%s1301 + $0x7040] sm:$0xff]
                  %2202 = vst [vmem:[%s1302 + $0x1c10] sm:$0xff] %v2201
                  %v2203 = vld [vmem:[%s1301 + $0x7080] sm:$0xff]
                  %2204 = vst [vmem:[%s1302 + $0x1c20] sm:$0xff] %v2203
                  %v2205 = vld [vmem:[%s1301 + $0x70c0] sm:$0xff]
                  %2206 = vst [vmem:[%s1302 + $0x1c30] sm:$0xff] %v2205
                  %v2207 = vld [vmem:[%s1301 + $0x7100] sm:$0xff]
                  %2208 = vst [vmem:[%s1302 + $0x1c40] sm:$0xff] %v2207
                  %v2209 = vld [vmem:[%s1301 + $0x7140] sm:$0xff]
                  %2210 = vst [vmem:[%s1302 + $0x1c50] sm:$0xff] %v2209
                  %v2211 = vld [vmem:[%s1301 + $0x7180] sm:$0xff]
                  %2212 = vst [vmem:[%s1302 + $0x1c60] sm:$0xff] %v2211
                  %v2213 = vld [vmem:[%s1301 + $0x71c0] sm:$0xff]
                  %2214 = vst [vmem:[%s1302 + $0x1c70] sm:$0xff] %v2213
                  %v2215 = vld [vmem:[%s1301 + $0x7200] sm:$0xff]
                  %2216 = vst [vmem:[%s1302 + $0x1c80] sm:$0xff] %v2215
                  %v2217 = vld [vmem:[%s1301 + $0x7240] sm:$0xff]
                  %2218 = vst [vmem:[%s1302 + $0x1c90] sm:$0xff] %v2217
                  %v2219 = vld [vmem:[%s1301 + $0x7280] sm:$0xff]
                  %2220 = vst [vmem:[%s1302 + $0x1ca0] sm:$0xff] %v2219
                  %v2221 = vld [vmem:[%s1301 + $0x72c0] sm:$0xff]
                  %2222 = vst [vmem:[%s1302 + $0x1cb0] sm:$0xff] %v2221
                  %v2223 = vld [vmem:[%s1301 + $0x7300] sm:$0xff]
                  %2224 = vst [vmem:[%s1302 + $0x1cc0] sm:$0xff] %v2223
                  %v2225 = vld [vmem:[%s1301 + $0x7340] sm:$0xff]
                  %2226 = vst [vmem:[%s1302 + $0x1cd0] sm:$0xff] %v2225
                  %v2227 = vld [vmem:[%s1301 + $0x7380] sm:$0xff]
                  %2228 = vst [vmem:[%s1302 + $0x1ce0] sm:$0xff] %v2227
                  %v2229 = vld [vmem:[%s1301 + $0x73c0] sm:$0xff]
                  %2230 = vst [vmem:[%s1302 + $0x1cf0] sm:$0xff] %v2229
                  %v2231 = vld [vmem:[%s1301 + $0x7400] sm:$0xff]
                  %2232 = vst [vmem:[%s1302 + $0x1d00] sm:$0xff] %v2231
                  %v2233 = vld [vmem:[%s1301 + $0x7440] sm:$0xff]
                  %2234 = vst [vmem:[%s1302 + $0x1d10] sm:$0xff] %v2233
                  %v2235 = vld [vmem:[%s1301 + $0x7480] sm:$0xff]
                  %2236 = vst [vmem:[%s1302 + $0x1d20] sm:$0xff] %v2235
                  %v2237 = vld [vmem:[%s1301 + $0x74c0] sm:$0xff]
                  %2238 = vst [vmem:[%s1302 + $0x1d30] sm:$0xff] %v2237
                  %v2239 = vld [vmem:[%s1301 + $0x7500] sm:$0xff]
                  %2240 = vst [vmem:[%s1302 + $0x1d40] sm:$0xff] %v2239
                  %v2241 = vld [vmem:[%s1301 + $0x7540] sm:$0xff]
                  %2242 = vst [vmem:[%s1302 + $0x1d50] sm:$0xff] %v2241
                  %v2243 = vld [vmem:[%s1301 + $0x7580] sm:$0xff]
                  %2244 = vst [vmem:[%s1302 + $0x1d60] sm:$0xff] %v2243
                  %v2245 = vld [vmem:[%s1301 + $0x75c0] sm:$0xff]
                  %2246 = vst [vmem:[%s1302 + $0x1d70] sm:$0xff] %v2245
                  %v2247 = vld [vmem:[%s1301 + $0x7600] sm:$0xff]
                  %2248 = vst [vmem:[%s1302 + $0x1d80] sm:$0xff] %v2247
                  %v2249 = vld [vmem:[%s1301 + $0x7640] sm:$0xff]
                  %2250 = vst [vmem:[%s1302 + $0x1d90] sm:$0xff] %v2249
                  %v2251 = vld [vmem:[%s1301 + $0x7680] sm:$0xff]
                  %2252 = vst [vmem:[%s1302 + $0x1da0] sm:$0xff] %v2251
                  %v2253 = vld [vmem:[%s1301 + $0x76c0] sm:$0xff]
                  %2254 = vst [vmem:[%s1302 + $0x1db0] sm:$0xff] %v2253
                  %v2255 = vld [vmem:[%s1301 + $0x7700] sm:$0xff]
                  %2256 = vst [vmem:[%s1302 + $0x1dc0] sm:$0xff] %v2255
                  %v2257 = vld [vmem:[%s1301 + $0x7740] sm:$0xff]
                  %2258 = vst [vmem:[%s1302 + $0x1dd0] sm:$0xff] %v2257
                  %v2259 = vld [vmem:[%s1301 + $0x7780] sm:$0xff]
                  %2260 = vst [vmem:[%s1302 + $0x1de0] sm:$0xff] %v2259
                  %v2261 = vld [vmem:[%s1301 + $0x77c0] sm:$0xff]
                  %2262 = vst [vmem:[%s1302 + $0x1df0] sm:$0xff] %v2261
                  %v2263 = vld [vmem:[%s1301 + $0x7800] sm:$0xff]
                  %2264 = vst [vmem:[%s1302 + $0x1e00] sm:$0xff] %v2263
                  %v2265 = vld [vmem:[%s1301 + $0x7840] sm:$0xff]
                  %2266 = vst [vmem:[%s1302 + $0x1e10] sm:$0xff] %v2265
                  %v2267 = vld [vmem:[%s1301 + $0x7880] sm:$0xff]
                  %2268 = vst [vmem:[%s1302 + $0x1e20] sm:$0xff] %v2267
                  %v2269 = vld [vmem:[%s1301 + $0x78c0] sm:$0xff]
                  %2270 = vst [vmem:[%s1302 + $0x1e30] sm:$0xff] %v2269
                  %v2271 = vld [vmem:[%s1301 + $0x7900] sm:$0xff]
                  %2272 = vst [vmem:[%s1302 + $0x1e40] sm:$0xff] %v2271
                  %v2273 = vld [vmem:[%s1301 + $0x7940] sm:$0xff]
                  %2274 = vst [vmem:[%s1302 + $0x1e50] sm:$0xff] %v2273
                  %v2275 = vld [vmem:[%s1301 + $0x7980] sm:$0xff]
                  %2276 = vst [vmem:[%s1302 + $0x1e60] sm:$0xff] %v2275
                  %v2277 = vld [vmem:[%s1301 + $0x79c0] sm:$0xff]
                  %2278 = vst [vmem:[%s1302 + $0x1e70] sm:$0xff] %v2277
                  %v2279 = vld [vmem:[%s1301 + $0x7a00] sm:$0xff]
                  %2280 = vst [vmem:[%s1302 + $0x1e80] sm:$0xff] %v2279
                  %v2281 = vld [vmem:[%s1301 + $0x7a40] sm:$0xff]
                  %2282 = vst [vmem:[%s1302 + $0x1e90] sm:$0xff] %v2281
                  %v2283 = vld [vmem:[%s1301 + $0x7a80] sm:$0xff]
                  %2284 = vst [vmem:[%s1302 + $0x1ea0] sm:$0xff] %v2283
                  %v2285 = vld [vmem:[%s1301 + $0x7ac0] sm:$0xff]
                  %2286 = vst [vmem:[%s1302 + $0x1eb0] sm:$0xff] %v2285
                  %v2287 = vld [vmem:[%s1301 + $0x7b00] sm:$0xff]
                  %2288 = vst [vmem:[%s1302 + $0x1ec0] sm:$0xff] %v2287
                  %v2289 = vld [vmem:[%s1301 + $0x7b40] sm:$0xff]
                  %2290 = vst [vmem:[%s1302 + $0x1ed0] sm:$0xff] %v2289
                  %v2291 = vld [vmem:[%s1301 + $0x7b80] sm:$0xff]
                  %2292 = vst [vmem:[%s1302 + $0x1ee0] sm:$0xff] %v2291
                  %v2293 = vld [vmem:[%s1301 + $0x7bc0] sm:$0xff]
                  %2294 = vst [vmem:[%s1302 + $0x1ef0] sm:$0xff] %v2293
                  %v2295 = vld [vmem:[%s1301 + $0x7c00] sm:$0xff]
                  %2296 = vst [vmem:[%s1302 + $0x1f00] sm:$0xff] %v2295
                  %v2297 = vld [vmem:[%s1301 + $0x7c40] sm:$0xff]
                  %2298 = vst [vmem:[%s1302 + $0x1f10] sm:$0xff] %v2297
                  %v2299 = vld [vmem:[%s1301 + $0x7c80] sm:$0xff]
                  %2300 = vst [vmem:[%s1302 + $0x1f20] sm:$0xff] %v2299
                  %v2301 = vld [vmem:[%s1301 + $0x7cc0] sm:$0xff]
                  %2302 = vst [vmem:[%s1302 + $0x1f30] sm:$0xff] %v2301
                  %v2303 = vld [vmem:[%s1301 + $0x7d00] sm:$0xff]
                  %2304 = vst [vmem:[%s1302 + $0x1f40] sm:$0xff] %v2303
                  %v2305 = vld [vmem:[%s1301 + $0x7d40] sm:$0xff]
                  %2306 = vst [vmem:[%s1302 + $0x1f50] sm:$0xff] %v2305
                  %v2307 = vld [vmem:[%s1301 + $0x7d80] sm:$0xff]
                  %2308 = vst [vmem:[%s1302 + $0x1f60] sm:$0xff] %v2307
                  %v2309 = vld [vmem:[%s1301 + $0x7dc0] sm:$0xff]
                  %2310 = vst [vmem:[%s1302 + $0x1f70] sm:$0xff] %v2309
                  %v2311 = vld [vmem:[%s1301 + $0x7e00] sm:$0xff]
                  %2312 = vst [vmem:[%s1302 + $0x1f80] sm:$0xff] %v2311
                  %v2313 = vld [vmem:[%s1301 + $0x7e40] sm:$0xff]
                  %2314 = vst [vmem:[%s1302 + $0x1f90] sm:$0xff] %v2313
                  %v2315 = vld [vmem:[%s1301 + $0x7e80] sm:$0xff]
                  %2316 = vst [vmem:[%s1302 + $0x1fa0] sm:$0xff] %v2315
                  %v2317 = vld [vmem:[%s1301 + $0x7ec0] sm:$0xff]
                  %2318 = vst [vmem:[%s1302 + $0x1fb0] sm:$0xff] %v2317
                  %v2319 = vld [vmem:[%s1301 + $0x7f00] sm:$0xff]
                  %2320 = vst [vmem:[%s1302 + $0x1fc0] sm:$0xff] %v2319
                  %v2321 = vld [vmem:[%s1301 + $0x7f40] sm:$0xff]
                  %2322 = vst [vmem:[%s1302 + $0x1fd0] sm:$0xff] %v2321
                  %v2323 = vld [vmem:[%s1301 + $0x7f80] sm:$0xff]
                  %2324 = vst [vmem:[%s1302 + $0x1fe0] sm:$0xff] %v2323
                  %v2325 = vld [vmem:[%s1301 + $0x7fc0] sm:$0xff]
                  %2326 = vst [vmem:[%s1302 + $0x1ff0] sm:$0xff] %v2325
                  %s2327 = sadd.s32 1, %s1300
                  %p2328 = scmp.ge.s32.totalorder %s2327, 1
                  %s2329 = scalar_select %p2328, 0, %s2327
                  %s2330 = sadd.s32 1, %s1299
                  %s2331 = scalar_select %p2328, %s2330, %s1299
                  %p2332 = scmp.ge.s32.totalorder %s2331, 2
                  %s2333 = scalar_select %p2332, 0, %s2331
                  %s2334 = smul.u32 %s2333, 8
                  %s2335 = smul.u32 %s2329, 8
                  %s2336 = sadd.s32 %s2334, %s2335
                  %s2337 = smul.u32 %s2333, 8
                  %s2338 = smul.u32 %s2329, 8
                  %s2339 = sadd.s32 %s2337, %s2338
                  %s2340 = scalar_lea.vmem %s241, %s2336
                  %s2341 = scalar_lea.vmem %s236, %s2339 [#allocation2]
                $region56: #{tpu_custom_call.1} parent=50 // loop_footer
                  %s1298 = sadd.s32 1, %s1294
                $region57: #{tpu_custom_call.1} parent=50 // loop_footer_branch
                  %1293 = sbr.rel target = $region53
                $region58: #{tpu_custom_call.1} parent=50 // loop_exit
                  _
              $region51: #{tpu_custom_call.1} parent=35 // pred_fallthru
                _
              // Predicated region
              $region59: #{tpu_custom_call.1} parent=35 // pred_check
                _
              $region60: #{tpu_custom_call.1} parent=35 // pred_check_branch
                %2343 = sbr.rel target = $region62
              $region61: #{tpu_custom_call.1} parent=35 // pred_region
                %s2344 = scalar_lea.vmem %s241, 8
                %s2345 = scalar_lea.vmem %s236, 8 [#allocation2]
                loop: start=0, step=1, limit=2
                $region63: #{tpu_custom_call.1} parent=61 // loop_pre_header
                  _
                $region64: #{tpu_custom_call.1} parent=61 // loop_header
                  %s2349 = sphi 0, %s2353
                  %p2350 = scmp.ge.s32.totalorder %s2349, 2
                  %s2354 = sphi 0, %s3388
                  %s2355 = sphi 0, %s3384
                  %s2356 = sphi %s241, %s3395
                  %s2357 = sphi %s236, %s3396
                $region65: #{tpu_custom_call.1} parent=61 // loop_header_branch
                  %2352 = sbr.rel (%p2350) target = $region69
                $region66: #{tpu_custom_call.1} parent=61 // loop_body
                  %v2358 = vld [vmem:[%s2356] sm:$0xff]
                  %2359 = vst [vmem:[%s2357] sm:$0xff] %v2358
                  %v2360 = vld [vmem:[%s2356 + $0x40] sm:$0xff]
                  %2361 = vst [vmem:[%s2357 + $0x10] sm:$0xff] %v2360
                  %v2362 = vld [vmem:[%s2356 + $0x80] sm:$0xff]
                  %2363 = vst [vmem:[%s2357 + $0x20] sm:$0xff] %v2362
                  %v2364 = vld [vmem:[%s2356 + $0xc0] sm:$0xff]
                  %2365 = vst [vmem:[%s2357 + $0x30] sm:$0xff] %v2364
                  %v2366 = vld [vmem:[%s2356 + $0x100] sm:$0xff]
                  %2367 = vst [vmem:[%s2357 + $0x40] sm:$0xff] %v2366
                  %v2368 = vld [vmem:[%s2356 + $0x140] sm:$0xff]
                  %2369 = vst [vmem:[%s2357 + $0x50] sm:$0xff] %v2368
                  %v2370 = vld [vmem:[%s2356 + $0x180] sm:$0xff]
                  %2371 = vst [vmem:[%s2357 + $0x60] sm:$0xff] %v2370
                  %v2372 = vld [vmem:[%s2356 + $0x1c0] sm:$0xff]
                  %2373 = vst [vmem:[%s2357 + $0x70] sm:$0xff] %v2372
                  %v2374 = vld [vmem:[%s2356 + $0x200] sm:$0xff]
                  %2375 = vst [vmem:[%s2357 + $0x80] sm:$0xff] %v2374
                  %v2376 = vld [vmem:[%s2356 + $0x240] sm:$0xff]
                  %2377 = vst [vmem:[%s2357 + $0x90] sm:$0xff] %v2376
                  %v2378 = vld [vmem:[%s2356 + $0x280] sm:$0xff]
                  %2379 = vst [vmem:[%s2357 + $0xa0] sm:$0xff] %v2378
                  %v2380 = vld [vmem:[%s2356 + $0x2c0] sm:$0xff]
                  %2381 = vst [vmem:[%s2357 + $0xb0] sm:$0xff] %v2380
                  %v2382 = vld [vmem:[%s2356 + $0x300] sm:$0xff]
                  %2383 = vst [vmem:[%s2357 + $0xc0] sm:$0xff] %v2382
                  %v2384 = vld [vmem:[%s2356 + $0x340] sm:$0xff]
                  %2385 = vst [vmem:[%s2357 + $0xd0] sm:$0xff] %v2384
                  %v2386 = vld [vmem:[%s2356 + $0x380] sm:$0xff]
                  %2387 = vst [vmem:[%s2357 + $0xe0] sm:$0xff] %v2386
                  %v2388 = vld [vmem:[%s2356 + $0x3c0] sm:$0xff]
                  %2389 = vst [vmem:[%s2357 + $0xf0] sm:$0xff] %v2388
                  %v2390 = vld [vmem:[%s2356 + $0x400] sm:$0xff]
                  %2391 = vst [vmem:[%s2357 + $0x100] sm:$0xff] %v2390
                  %v2392 = vld [vmem:[%s2356 + $0x440] sm:$0xff]
                  %2393 = vst [vmem:[%s2357 + $0x110] sm:$0xff] %v2392
                  %v2394 = vld [vmem:[%s2356 + $0x480] sm:$0xff]
                  %2395 = vst [vmem:[%s2357 + $0x120] sm:$0xff] %v2394
                  %v2396 = vld [vmem:[%s2356 + $0x4c0] sm:$0xff]
                  %2397 = vst [vmem:[%s2357 + $0x130] sm:$0xff] %v2396
                  %v2398 = vld [vmem:[%s2356 + $0x500] sm:$0xff]
                  %2399 = vst [vmem:[%s2357 + $0x140] sm:$0xff] %v2398
                  %v2400 = vld [vmem:[%s2356 + $0x540] sm:$0xff]
                  %2401 = vst [vmem:[%s2357 + $0x150] sm:$0xff] %v2400
                  %v2402 = vld [vmem:[%s2356 + $0x580] sm:$0xff]
                  %2403 = vst [vmem:[%s2357 + $0x160] sm:$0xff] %v2402
                  %v2404 = vld [vmem:[%s2356 + $0x5c0] sm:$0xff]
                  %2405 = vst [vmem:[%s2357 + $0x170] sm:$0xff] %v2404
                  %v2406 = vld [vmem:[%s2356 + $0x600] sm:$0xff]
                  %2407 = vst [vmem:[%s2357 + $0x180] sm:$0xff] %v2406
                  %v2408 = vld [vmem:[%s2356 + $0x640] sm:$0xff]
                  %2409 = vst [vmem:[%s2357 + $0x190] sm:$0xff] %v2408
                  %v2410 = vld [vmem:[%s2356 + $0x680] sm:$0xff]
                  %2411 = vst [vmem:[%s2357 + $0x1a0] sm:$0xff] %v2410
                  %v2412 = vld [vmem:[%s2356 + $0x6c0] sm:$0xff]
                  %2413 = vst [vmem:[%s2357 + $0x1b0] sm:$0xff] %v2412
                  %v2414 = vld [vmem:[%s2356 + $0x700] sm:$0xff]
                  %2415 = vst [vmem:[%s2357 + $0x1c0] sm:$0xff] %v2414
                  %v2416 = vld [vmem:[%s2356 + $0x740] sm:$0xff]
                  %2417 = vst [vmem:[%s2357 + $0x1d0] sm:$0xff] %v2416
                  %v2418 = vld [vmem:[%s2356 + $0x780] sm:$0xff]
                  %2419 = vst [vmem:[%s2357 + $0x1e0] sm:$0xff] %v2418
                  %v2420 = vld [vmem:[%s2356 + $0x7c0] sm:$0xff]
                  %2421 = vst [vmem:[%s2357 + $0x1f0] sm:$0xff] %v2420
                  %v2422 = vld [vmem:[%s2356 + $0x800] sm:$0xff]
                  %2423 = vst [vmem:[%s2357 + $0x200] sm:$0xff] %v2422
                  %v2424 = vld [vmem:[%s2356 + $0x840] sm:$0xff]
                  %2425 = vst [vmem:[%s2357 + $0x210] sm:$0xff] %v2424
                  %v2426 = vld [vmem:[%s2356 + $0x880] sm:$0xff]
                  %2427 = vst [vmem:[%s2357 + $0x220] sm:$0xff] %v2426
                  %v2428 = vld [vmem:[%s2356 + $0x8c0] sm:$0xff]
                  %2429 = vst [vmem:[%s2357 + $0x230] sm:$0xff] %v2428
                  %v2430 = vld [vmem:[%s2356 + $0x900] sm:$0xff]
                  %2431 = vst [vmem:[%s2357 + $0x240] sm:$0xff] %v2430
                  %v2432 = vld [vmem:[%s2356 + $0x940] sm:$0xff]
                  %2433 = vst [vmem:[%s2357 + $0x250] sm:$0xff] %v2432
                  %v2434 = vld [vmem:[%s2356 + $0x980] sm:$0xff]
                  %2435 = vst [vmem:[%s2357 + $0x260] sm:$0xff] %v2434
                  %v2436 = vld [vmem:[%s2356 + $0x9c0] sm:$0xff]
                  %2437 = vst [vmem:[%s2357 + $0x270] sm:$0xff] %v2436
                  %v2438 = vld [vmem:[%s2356 + $0xa00] sm:$0xff]
                  %2439 = vst [vmem:[%s2357 + $0x280] sm:$0xff] %v2438
                  %v2440 = vld [vmem:[%s2356 + $0xa40] sm:$0xff]
                  %2441 = vst [vmem:[%s2357 + $0x290] sm:$0xff] %v2440
                  %v2442 = vld [vmem:[%s2356 + $0xa80] sm:$0xff]
                  %2443 = vst [vmem:[%s2357 + $0x2a0] sm:$0xff] %v2442
                  %v2444 = vld [vmem:[%s2356 + $0xac0] sm:$0xff]
                  %2445 = vst [vmem:[%s2357 + $0x2b0] sm:$0xff] %v2444
                  %v2446 = vld [vmem:[%s2356 + $0xb00] sm:$0xff]
                  %2447 = vst [vmem:[%s2357 + $0x2c0] sm:$0xff] %v2446
                  %v2448 = vld [vmem:[%s2356 + $0xb40] sm:$0xff]
                  %2449 = vst [vmem:[%s2357 + $0x2d0] sm:$0xff] %v2448
                  %v2450 = vld [vmem:[%s2356 + $0xb80] sm:$0xff]
                  %2451 = vst [vmem:[%s2357 + $0x2e0] sm:$0xff] %v2450
                  %v2452 = vld [vmem:[%s2356 + $0xbc0] sm:$0xff]
                  %2453 = vst [vmem:[%s2357 + $0x2f0] sm:$0xff] %v2452
                  %v2454 = vld [vmem:[%s2356 + $0xc00] sm:$0xff]
                  %2455 = vst [vmem:[%s2357 + $0x300] sm:$0xff] %v2454
                  %v2456 = vld [vmem:[%s2356 + $0xc40] sm:$0xff]
                  %2457 = vst [vmem:[%s2357 + $0x310] sm:$0xff] %v2456
                  %v2458 = vld [vmem:[%s2356 + $0xc80] sm:$0xff]
                  %2459 = vst [vmem:[%s2357 + $0x320] sm:$0xff] %v2458
                  %v2460 = vld [vmem:[%s2356 + $0xcc0] sm:$0xff]
                  %2461 = vst [vmem:[%s2357 + $0x330] sm:$0xff] %v2460
                  %v2462 = vld [vmem:[%s2356 + $0xd00] sm:$0xff]
                  %2463 = vst [vmem:[%s2357 + $0x340] sm:$0xff] %v2462
                  %v2464 = vld [vmem:[%s2356 + $0xd40] sm:$0xff]
                  %2465 = vst [vmem:[%s2357 + $0x350] sm:$0xff] %v2464
                  %v2466 = vld [vmem:[%s2356 + $0xd80] sm:$0xff]
                  %2467 = vst [vmem:[%s2357 + $0x360] sm:$0xff] %v2466
                  %v2468 = vld [vmem:[%s2356 + $0xdc0] sm:$0xff]
                  %2469 = vst [vmem:[%s2357 + $0x370] sm:$0xff] %v2468
                  %v2470 = vld [vmem:[%s2356 + $0xe00] sm:$0xff]
                  %2471 = vst [vmem:[%s2357 + $0x380] sm:$0xff] %v2470
                  %v2472 = vld [vmem:[%s2356 + $0xe40] sm:$0xff]
                  %2473 = vst [vmem:[%s2357 + $0x390] sm:$0xff] %v2472
                  %v2474 = vld [vmem:[%s2356 + $0xe80] sm:$0xff]
                  %2475 = vst [vmem:[%s2357 + $0x3a0] sm:$0xff] %v2474
                  %v2476 = vld [vmem:[%s2356 + $0xec0] sm:$0xff]
                  %2477 = vst [vmem:[%s2357 + $0x3b0] sm:$0xff] %v2476
                  %v2478 = vld [vmem:[%s2356 + $0xf00] sm:$0xff]
                  %2479 = vst [vmem:[%s2357 + $0x3c0] sm:$0xff] %v2478
                  %v2480 = vld [vmem:[%s2356 + $0xf40] sm:$0xff]
                  %2481 = vst [vmem:[%s2357 + $0x3d0] sm:$0xff] %v2480
                  %v2482 = vld [vmem:[%s2356 + $0xf80] sm:$0xff]
                  %2483 = vst [vmem:[%s2357 + $0x3e0] sm:$0xff] %v2482
                  %v2484 = vld [vmem:[%s2356 + $0xfc0] sm:$0xff]
                  %2485 = vst [vmem:[%s2357 + $0x3f0] sm:$0xff] %v2484
                  %v2486 = vld [vmem:[%s2356 + $0x1000] sm:$0xff]
                  %2487 = vst [vmem:[%s2357 + $0x400] sm:$0xff] %v2486
                  %v2488 = vld [vmem:[%s2356 + $0x1040] sm:$0xff]
                  %2489 = vst [vmem:[%s2357 + $0x410] sm:$0xff] %v2488
                  %v2490 = vld [vmem:[%s2356 + $0x1080] sm:$0xff]
                  %2491 = vst [vmem:[%s2357 + $0x420] sm:$0xff] %v2490
                  %v2492 = vld [vmem:[%s2356 + $0x10c0] sm:$0xff]
                  %2493 = vst [vmem:[%s2357 + $0x430] sm:$0xff] %v2492
                  %v2494 = vld [vmem:[%s2356 + $0x1100] sm:$0xff]
                  %2495 = vst [vmem:[%s2357 + $0x440] sm:$0xff] %v2494
                  %v2496 = vld [vmem:[%s2356 + $0x1140] sm:$0xff]
                  %2497 = vst [vmem:[%s2357 + $0x450] sm:$0xff] %v2496
                  %v2498 = vld [vmem:[%s2356 + $0x1180] sm:$0xff]
                  %2499 = vst [vmem:[%s2357 + $0x460] sm:$0xff] %v2498
                  %v2500 = vld [vmem:[%s2356 + $0x11c0] sm:$0xff]
                  %2501 = vst [vmem:[%s2357 + $0x470] sm:$0xff] %v2500
                  %v2502 = vld [vmem:[%s2356 + $0x1200] sm:$0xff]
                  %2503 = vst [vmem:[%s2357 + $0x480] sm:$0xff] %v2502
                  %v2504 = vld [vmem:[%s2356 + $0x1240] sm:$0xff]
                  %2505 = vst [vmem:[%s2357 + $0x490] sm:$0xff] %v2504
                  %v2506 = vld [vmem:[%s2356 + $0x1280] sm:$0xff]
                  %2507 = vst [vmem:[%s2357 + $0x4a0] sm:$0xff] %v2506
                  %v2508 = vld [vmem:[%s2356 + $0x12c0] sm:$0xff]
                  %2509 = vst [vmem:[%s2357 + $0x4b0] sm:$0xff] %v2508
                  %v2510 = vld [vmem:[%s2356 + $0x1300] sm:$0xff]
                  %2511 = vst [vmem:[%s2357 + $0x4c0] sm:$0xff] %v2510
                  %v2512 = vld [vmem:[%s2356 + $0x1340] sm:$0xff]
                  %2513 = vst [vmem:[%s2357 + $0x4d0] sm:$0xff] %v2512
                  %v2514 = vld [vmem:[%s2356 + $0x1380] sm:$0xff]
                  %2515 = vst [vmem:[%s2357 + $0x4e0] sm:$0xff] %v2514
                  %v2516 = vld [vmem:[%s2356 + $0x13c0] sm:$0xff]
                  %2517 = vst [vmem:[%s2357 + $0x4f0] sm:$0xff] %v2516
                  %v2518 = vld [vmem:[%s2356 + $0x1400] sm:$0xff]
                  %2519 = vst [vmem:[%s2357 + $0x500] sm:$0xff] %v2518
                  %v2520 = vld [vmem:[%s2356 + $0x1440] sm:$0xff]
                  %2521 = vst [vmem:[%s2357 + $0x510] sm:$0xff] %v2520
                  %v2522 = vld [vmem:[%s2356 + $0x1480] sm:$0xff]
                  %2523 = vst [vmem:[%s2357 + $0x520] sm:$0xff] %v2522
                  %v2524 = vld [vmem:[%s2356 + $0x14c0] sm:$0xff]
                  %2525 = vst [vmem:[%s2357 + $0x530] sm:$0xff] %v2524
                  %v2526 = vld [vmem:[%s2356 + $0x1500] sm:$0xff]
                  %2527 = vst [vmem:[%s2357 + $0x540] sm:$0xff] %v2526
                  %v2528 = vld [vmem:[%s2356 + $0x1540] sm:$0xff]
                  %2529 = vst [vmem:[%s2357 + $0x550] sm:$0xff] %v2528
                  %v2530 = vld [vmem:[%s2356 + $0x1580] sm:$0xff]
                  %2531 = vst [vmem:[%s2357 + $0x560] sm:$0xff] %v2530
                  %v2532 = vld [vmem:[%s2356 + $0x15c0] sm:$0xff]
                  %2533 = vst [vmem:[%s2357 + $0x570] sm:$0xff] %v2532
                  %v2534 = vld [vmem:[%s2356 + $0x1600] sm:$0xff]
                  %2535 = vst [vmem:[%s2357 + $0x580] sm:$0xff] %v2534
                  %v2536 = vld [vmem:[%s2356 + $0x1640] sm:$0xff]
                  %2537 = vst [vmem:[%s2357 + $0x590] sm:$0xff] %v2536
                  %v2538 = vld [vmem:[%s2356 + $0x1680] sm:$0xff]
                  %2539 = vst [vmem:[%s2357 + $0x5a0] sm:$0xff] %v2538
                  %v2540 = vld [vmem:[%s2356 + $0x16c0] sm:$0xff]
                  %2541 = vst [vmem:[%s2357 + $0x5b0] sm:$0xff] %v2540
                  %v2542 = vld [vmem:[%s2356 + $0x1700] sm:$0xff]
                  %2543 = vst [vmem:[%s2357 + $0x5c0] sm:$0xff] %v2542
                  %v2544 = vld [vmem:[%s2356 + $0x1740] sm:$0xff]
                  %2545 = vst [vmem:[%s2357 + $0x5d0] sm:$0xff] %v2544
                  %v2546 = vld [vmem:[%s2356 + $0x1780] sm:$0xff]
                  %2547 = vst [vmem:[%s2357 + $0x5e0] sm:$0xff] %v2546
                  %v2548 = vld [vmem:[%s2356 + $0x17c0] sm:$0xff]
                  %2549 = vst [vmem:[%s2357 + $0x5f0] sm:$0xff] %v2548
                  %v2550 = vld [vmem:[%s2356 + $0x1800] sm:$0xff]
                  %2551 = vst [vmem:[%s2357 + $0x600] sm:$0xff] %v2550
                  %v2552 = vld [vmem:[%s2356 + $0x1840] sm:$0xff]
                  %2553 = vst [vmem:[%s2357 + $0x610] sm:$0xff] %v2552
                  %v2554 = vld [vmem:[%s2356 + $0x1880] sm:$0xff]
                  %2555 = vst [vmem:[%s2357 + $0x620] sm:$0xff] %v2554
                  %v2556 = vld [vmem:[%s2356 + $0x18c0] sm:$0xff]
                  %2557 = vst [vmem:[%s2357 + $0x630] sm:$0xff] %v2556
                  %v2558 = vld [vmem:[%s2356 + $0x1900] sm:$0xff]
                  %2559 = vst [vmem:[%s2357 + $0x640] sm:$0xff] %v2558
                  %v2560 = vld [vmem:[%s2356 + $0x1940] sm:$0xff]
                  %2561 = vst [vmem:[%s2357 + $0x650] sm:$0xff] %v2560
                  %v2562 = vld [vmem:[%s2356 + $0x1980] sm:$0xff]
                  %2563 = vst [vmem:[%s2357 + $0x660] sm:$0xff] %v2562
                  %v2564 = vld [vmem:[%s2356 + $0x19c0] sm:$0xff]
                  %2565 = vst [vmem:[%s2357 + $0x670] sm:$0xff] %v2564
                  %v2566 = vld [vmem:[%s2356 + $0x1a00] sm:$0xff]
                  %2567 = vst [vmem:[%s2357 + $0x680] sm:$0xff] %v2566
                  %v2568 = vld [vmem:[%s2356 + $0x1a40] sm:$0xff]
                  %2569 = vst [vmem:[%s2357 + $0x690] sm:$0xff] %v2568
                  %v2570 = vld [vmem:[%s2356 + $0x1a80] sm:$0xff]
                  %2571 = vst [vmem:[%s2357 + $0x6a0] sm:$0xff] %v2570
                  %v2572 = vld [vmem:[%s2356 + $0x1ac0] sm:$0xff]
                  %2573 = vst [vmem:[%s2357 + $0x6b0] sm:$0xff] %v2572
                  %v2574 = vld [vmem:[%s2356 + $0x1b00] sm:$0xff]
                  %2575 = vst [vmem:[%s2357 + $0x6c0] sm:$0xff] %v2574
                  %v2576 = vld [vmem:[%s2356 + $0x1b40] sm:$0xff]
                  %2577 = vst [vmem:[%s2357 + $0x6d0] sm:$0xff] %v2576
                  %v2578 = vld [vmem:[%s2356 + $0x1b80] sm:$0xff]
                  %2579 = vst [vmem:[%s2357 + $0x6e0] sm:$0xff] %v2578
                  %v2580 = vld [vmem:[%s2356 + $0x1bc0] sm:$0xff]
                  %2581 = vst [vmem:[%s2357 + $0x6f0] sm:$0xff] %v2580
                  %v2582 = vld [vmem:[%s2356 + $0x1c00] sm:$0xff]
                  %2583 = vst [vmem:[%s2357 + $0x700] sm:$0xff] %v2582
                  %v2584 = vld [vmem:[%s2356 + $0x1c40] sm:$0xff]
                  %2585 = vst [vmem:[%s2357 + $0x710] sm:$0xff] %v2584
                  %v2586 = vld [vmem:[%s2356 + $0x1c80] sm:$0xff]
                  %2587 = vst [vmem:[%s2357 + $0x720] sm:$0xff] %v2586
                  %v2588 = vld [vmem:[%s2356 + $0x1cc0] sm:$0xff]
                  %2589 = vst [vmem:[%s2357 + $0x730] sm:$0xff] %v2588
                  %v2590 = vld [vmem:[%s2356 + $0x1d00] sm:$0xff]
                  %2591 = vst [vmem:[%s2357 + $0x740] sm:$0xff] %v2590
                  %v2592 = vld [vmem:[%s2356 + $0x1d40] sm:$0xff]
                  %2593 = vst [vmem:[%s2357 + $0x750] sm:$0xff] %v2592
                  %v2594 = vld [vmem:[%s2356 + $0x1d80] sm:$0xff]
                  %2595 = vst [vmem:[%s2357 + $0x760] sm:$0xff] %v2594
                  %v2596 = vld [vmem:[%s2356 + $0x1dc0] sm:$0xff]
                  %2597 = vst [vmem:[%s2357 + $0x770] sm:$0xff] %v2596
                  %v2598 = vld [vmem:[%s2356 + $0x1e00] sm:$0xff]
                  %2599 = vst [vmem:[%s2357 + $0x780] sm:$0xff] %v2598
                  %v2600 = vld [vmem:[%s2356 + $0x1e40] sm:$0xff]
                  %2601 = vst [vmem:[%s2357 + $0x790] sm:$0xff] %v2600
                  %v2602 = vld [vmem:[%s2356 + $0x1e80] sm:$0xff]
                  %2603 = vst [vmem:[%s2357 + $0x7a0] sm:$0xff] %v2602
                  %v2604 = vld [vmem:[%s2356 + $0x1ec0] sm:$0xff]
                  %2605 = vst [vmem:[%s2357 + $0x7b0] sm:$0xff] %v2604
                  %v2606 = vld [vmem:[%s2356 + $0x1f00] sm:$0xff]
                  %2607 = vst [vmem:[%s2357 + $0x7c0] sm:$0xff] %v2606
                  %v2608 = vld [vmem:[%s2356 + $0x1f40] sm:$0xff]
                  %2609 = vst [vmem:[%s2357 + $0x7d0] sm:$0xff] %v2608
                  %v2610 = vld [vmem:[%s2356 + $0x1f80] sm:$0xff]
                  %2611 = vst [vmem:[%s2357 + $0x7e0] sm:$0xff] %v2610
                  %v2612 = vld [vmem:[%s2356 + $0x1fc0] sm:$0xff]
                  %2613 = vst [vmem:[%s2357 + $0x7f0] sm:$0xff] %v2612
                  %v2614 = vld [vmem:[%s2356 + $0x2000] sm:$0xff]
                  %2615 = vst [vmem:[%s2357 + $0x800] sm:$0xff] %v2614
                  %v2616 = vld [vmem:[%s2356 + $0x2040] sm:$0xff]
                  %2617 = vst [vmem:[%s2357 + $0x810] sm:$0xff] %v2616
                  %v2618 = vld [vmem:[%s2356 + $0x2080] sm:$0xff]
                  %2619 = vst [vmem:[%s2357 + $0x820] sm:$0xff] %v2618
                  %v2620 = vld [vmem:[%s2356 + $0x20c0] sm:$0xff]
                  %2621 = vst [vmem:[%s2357 + $0x830] sm:$0xff] %v2620
                  %v2622 = vld [vmem:[%s2356 + $0x2100] sm:$0xff]
                  %2623 = vst [vmem:[%s2357 + $0x840] sm:$0xff] %v2622
                  %v2624 = vld [vmem:[%s2356 + $0x2140] sm:$0xff]
                  %2625 = vst [vmem:[%s2357 + $0x850] sm:$0xff] %v2624
                  %v2626 = vld [vmem:[%s2356 + $0x2180] sm:$0xff]
                  %2627 = vst [vmem:[%s2357 + $0x860] sm:$0xff] %v2626
                  %v2628 = vld [vmem:[%s2356 + $0x21c0] sm:$0xff]
                  %2629 = vst [vmem:[%s2357 + $0x870] sm:$0xff] %v2628
                  %v2630 = vld [vmem:[%s2356 + $0x2200] sm:$0xff]
                  %2631 = vst [vmem:[%s2357 + $0x880] sm:$0xff] %v2630
                  %v2632 = vld [vmem:[%s2356 + $0x2240] sm:$0xff]
                  %2633 = vst [vmem:[%s2357 + $0x890] sm:$0xff] %v2632
                  %v2634 = vld [vmem:[%s2356 + $0x2280] sm:$0xff]
                  %2635 = vst [vmem:[%s2357 + $0x8a0] sm:$0xff] %v2634
                  %v2636 = vld [vmem:[%s2356 + $0x22c0] sm:$0xff]
                  %2637 = vst [vmem:[%s2357 + $0x8b0] sm:$0xff] %v2636
                  %v2638 = vld [vmem:[%s2356 + $0x2300] sm:$0xff]
                  %2639 = vst [vmem:[%s2357 + $0x8c0] sm:$0xff] %v2638
                  %v2640 = vld [vmem:[%s2356 + $0x2340] sm:$0xff]
                  %2641 = vst [vmem:[%s2357 + $0x8d0] sm:$0xff] %v2640
                  %v2642 = vld [vmem:[%s2356 + $0x2380] sm:$0xff]
                  %2643 = vst [vmem:[%s2357 + $0x8e0] sm:$0xff] %v2642
                  %v2644 = vld [vmem:[%s2356 + $0x23c0] sm:$0xff]
                  %2645 = vst [vmem:[%s2357 + $0x8f0] sm:$0xff] %v2644
                  %v2646 = vld [vmem:[%s2356 + $0x2400] sm:$0xff]
                  %2647 = vst [vmem:[%s2357 + $0x900] sm:$0xff] %v2646
                  %v2648 = vld [vmem:[%s2356 + $0x2440] sm:$0xff]
                  %2649 = vst [vmem:[%s2357 + $0x910] sm:$0xff] %v2648
                  %v2650 = vld [vmem:[%s2356 + $0x2480] sm:$0xff]
                  %2651 = vst [vmem:[%s2357 + $0x920] sm:$0xff] %v2650
                  %v2652 = vld [vmem:[%s2356 + $0x24c0] sm:$0xff]
                  %2653 = vst [vmem:[%s2357 + $0x930] sm:$0xff] %v2652
                  %v2654 = vld [vmem:[%s2356 + $0x2500] sm:$0xff]
                  %2655 = vst [vmem:[%s2357 + $0x940] sm:$0xff] %v2654
                  %v2656 = vld [vmem:[%s2356 + $0x2540] sm:$0xff]
                  %2657 = vst [vmem:[%s2357 + $0x950] sm:$0xff] %v2656
                  %v2658 = vld [vmem:[%s2356 + $0x2580] sm:$0xff]
                  %2659 = vst [vmem:[%s2357 + $0x960] sm:$0xff] %v2658
                  %v2660 = vld [vmem:[%s2356 + $0x25c0] sm:$0xff]
                  %2661 = vst [vmem:[%s2357 + $0x970] sm:$0xff] %v2660
                  %v2662 = vld [vmem:[%s2356 + $0x2600] sm:$0xff]
                  %2663 = vst [vmem:[%s2357 + $0x980] sm:$0xff] %v2662
                  %v2664 = vld [vmem:[%s2356 + $0x2640] sm:$0xff]
                  %2665 = vst [vmem:[%s2357 + $0x990] sm:$0xff] %v2664
                  %v2666 = vld [vmem:[%s2356 + $0x2680] sm:$0xff]
                  %2667 = vst [vmem:[%s2357 + $0x9a0] sm:$0xff] %v2666
                  %v2668 = vld [vmem:[%s2356 + $0x26c0] sm:$0xff]
                  %2669 = vst [vmem:[%s2357 + $0x9b0] sm:$0xff] %v2668
                  %v2670 = vld [vmem:[%s2356 + $0x2700] sm:$0xff]
                  %2671 = vst [vmem:[%s2357 + $0x9c0] sm:$0xff] %v2670
                  %v2672 = vld [vmem:[%s2356 + $0x2740] sm:$0xff]
                  %2673 = vst [vmem:[%s2357 + $0x9d0] sm:$0xff] %v2672
                  %v2674 = vld [vmem:[%s2356 + $0x2780] sm:$0xff]
                  %2675 = vst [vmem:[%s2357 + $0x9e0] sm:$0xff] %v2674
                  %v2676 = vld [vmem:[%s2356 + $0x27c0] sm:$0xff]
                  %2677 = vst [vmem:[%s2357 + $0x9f0] sm:$0xff] %v2676
                  %v2678 = vld [vmem:[%s2356 + $0x2800] sm:$0xff]
                  %2679 = vst [vmem:[%s2357 + $0xa00] sm:$0xff] %v2678
                  %v2680 = vld [vmem:[%s2356 + $0x2840] sm:$0xff]
                  %2681 = vst [vmem:[%s2357 + $0xa10] sm:$0xff] %v2680
                  %v2682 = vld [vmem:[%s2356 + $0x2880] sm:$0xff]
                  %2683 = vst [vmem:[%s2357 + $0xa20] sm:$0xff] %v2682
                  %v2684 = vld [vmem:[%s2356 + $0x28c0] sm:$0xff]
                  %2685 = vst [vmem:[%s2357 + $0xa30] sm:$0xff] %v2684
                  %v2686 = vld [vmem:[%s2356 + $0x2900] sm:$0xff]
                  %2687 = vst [vmem:[%s2357 + $0xa40] sm:$0xff] %v2686
                  %v2688 = vld [vmem:[%s2356 + $0x2940] sm:$0xff]
                  %2689 = vst [vmem:[%s2357 + $0xa50] sm:$0xff] %v2688
                  %v2690 = vld [vmem:[%s2356 + $0x2980] sm:$0xff]
                  %2691 = vst [vmem:[%s2357 + $0xa60] sm:$0xff] %v2690
                  %v2692 = vld [vmem:[%s2356 + $0x29c0] sm:$0xff]
                  %2693 = vst [vmem:[%s2357 + $0xa70] sm:$0xff] %v2692
                  %v2694 = vld [vmem:[%s2356 + $0x2a00] sm:$0xff]
                  %2695 = vst [vmem:[%s2357 + $0xa80] sm:$0xff] %v2694
                  %v2696 = vld [vmem:[%s2356 + $0x2a40] sm:$0xff]
                  %2697 = vst [vmem:[%s2357 + $0xa90] sm:$0xff] %v2696
                  %v2698 = vld [vmem:[%s2356 + $0x2a80] sm:$0xff]
                  %2699 = vst [vmem:[%s2357 + $0xaa0] sm:$0xff] %v2698
                  %v2700 = vld [vmem:[%s2356 + $0x2ac0] sm:$0xff]
                  %2701 = vst [vmem:[%s2357 + $0xab0] sm:$0xff] %v2700
                  %v2702 = vld [vmem:[%s2356 + $0x2b00] sm:$0xff]
                  %2703 = vst [vmem:[%s2357 + $0xac0] sm:$0xff] %v2702
                  %v2704 = vld [vmem:[%s2356 + $0x2b40] sm:$0xff]
                  %2705 = vst [vmem:[%s2357 + $0xad0] sm:$0xff] %v2704
                  %v2706 = vld [vmem:[%s2356 + $0x2b80] sm:$0xff]
                  %2707 = vst [vmem:[%s2357 + $0xae0] sm:$0xff] %v2706
                  %v2708 = vld [vmem:[%s2356 + $0x2bc0] sm:$0xff]
                  %2709 = vst [vmem:[%s2357 + $0xaf0] sm:$0xff] %v2708
                  %v2710 = vld [vmem:[%s2356 + $0x2c00] sm:$0xff]
                  %2711 = vst [vmem:[%s2357 + $0xb00] sm:$0xff] %v2710
                  %v2712 = vld [vmem:[%s2356 + $0x2c40] sm:$0xff]
                  %2713 = vst [vmem:[%s2357 + $0xb10] sm:$0xff] %v2712
                  %v2714 = vld [vmem:[%s2356 + $0x2c80] sm:$0xff]
                  %2715 = vst [vmem:[%s2357 + $0xb20] sm:$0xff] %v2714
                  %v2716 = vld [vmem:[%s2356 + $0x2cc0] sm:$0xff]
                  %2717 = vst [vmem:[%s2357 + $0xb30] sm:$0xff] %v2716
                  %v2718 = vld [vmem:[%s2356 + $0x2d00] sm:$0xff]
                  %2719 = vst [vmem:[%s2357 + $0xb40] sm:$0xff] %v2718
                  %v2720 = vld [vmem:[%s2356 + $0x2d40] sm:$0xff]
                  %2721 = vst [vmem:[%s2357 + $0xb50] sm:$0xff] %v2720
                  %v2722 = vld [vmem:[%s2356 + $0x2d80] sm:$0xff]
                  %2723 = vst [vmem:[%s2357 + $0xb60] sm:$0xff] %v2722
                  %v2724 = vld [vmem:[%s2356 + $0x2dc0] sm:$0xff]
                  %2725 = vst [vmem:[%s2357 + $0xb70] sm:$0xff] %v2724
                  %v2726 = vld [vmem:[%s2356 + $0x2e00] sm:$0xff]
                  %2727 = vst [vmem:[%s2357 + $0xb80] sm:$0xff] %v2726
                  %v2728 = vld [vmem:[%s2356 + $0x2e40] sm:$0xff]
                  %2729 = vst [vmem:[%s2357 + $0xb90] sm:$0xff] %v2728
                  %v2730 = vld [vmem:[%s2356 + $0x2e80] sm:$0xff]
                  %2731 = vst [vmem:[%s2357 + $0xba0] sm:$0xff] %v2730
                  %v2732 = vld [vmem:[%s2356 + $0x2ec0] sm:$0xff]
                  %2733 = vst [vmem:[%s2357 + $0xbb0] sm:$0xff] %v2732
                  %v2734 = vld [vmem:[%s2356 + $0x2f00] sm:$0xff]
                  %2735 = vst [vmem:[%s2357 + $0xbc0] sm:$0xff] %v2734
                  %v2736 = vld [vmem:[%s2356 + $0x2f40] sm:$0xff]
                  %2737 = vst [vmem:[%s2357 + $0xbd0] sm:$0xff] %v2736
                  %v2738 = vld [vmem:[%s2356 + $0x2f80] sm:$0xff]
                  %2739 = vst [vmem:[%s2357 + $0xbe0] sm:$0xff] %v2738
                  %v2740 = vld [vmem:[%s2356 + $0x2fc0] sm:$0xff]
                  %2741 = vst [vmem:[%s2357 + $0xbf0] sm:$0xff] %v2740
                  %v2742 = vld [vmem:[%s2356 + $0x3000] sm:$0xff]
                  %2743 = vst [vmem:[%s2357 + $0xc00] sm:$0xff] %v2742
                  %v2744 = vld [vmem:[%s2356 + $0x3040] sm:$0xff]
                  %2745 = vst [vmem:[%s2357 + $0xc10] sm:$0xff] %v2744
                  %v2746 = vld [vmem:[%s2356 + $0x3080] sm:$0xff]
                  %2747 = vst [vmem:[%s2357 + $0xc20] sm:$0xff] %v2746
                  %v2748 = vld [vmem:[%s2356 + $0x30c0] sm:$0xff]
                  %2749 = vst [vmem:[%s2357 + $0xc30] sm:$0xff] %v2748
                  %v2750 = vld [vmem:[%s2356 + $0x3100] sm:$0xff]
                  %2751 = vst [vmem:[%s2357 + $0xc40] sm:$0xff] %v2750
                  %v2752 = vld [vmem:[%s2356 + $0x3140] sm:$0xff]
                  %2753 = vst [vmem:[%s2357 + $0xc50] sm:$0xff] %v2752
                  %v2754 = vld [vmem:[%s2356 + $0x3180] sm:$0xff]
                  %2755 = vst [vmem:[%s2357 + $0xc60] sm:$0xff] %v2754
                  %v2756 = vld [vmem:[%s2356 + $0x31c0] sm:$0xff]
                  %2757 = vst [vmem:[%s2357 + $0xc70] sm:$0xff] %v2756
                  %v2758 = vld [vmem:[%s2356 + $0x3200] sm:$0xff]
                  %2759 = vst [vmem:[%s2357 + $0xc80] sm:$0xff] %v2758
                  %v2760 = vld [vmem:[%s2356 + $0x3240] sm:$0xff]
                  %2761 = vst [vmem:[%s2357 + $0xc90] sm:$0xff] %v2760
                  %v2762 = vld [vmem:[%s2356 + $0x3280] sm:$0xff]
                  %2763 = vst [vmem:[%s2357 + $0xca0] sm:$0xff] %v2762
                  %v2764 = vld [vmem:[%s2356 + $0x32c0] sm:$0xff]
                  %2765 = vst [vmem:[%s2357 + $0xcb0] sm:$0xff] %v2764
                  %v2766 = vld [vmem:[%s2356 + $0x3300] sm:$0xff]
                  %2767 = vst [vmem:[%s2357 + $0xcc0] sm:$0xff] %v2766
                  %v2768 = vld [vmem:[%s2356 + $0x3340] sm:$0xff]
                  %2769 = vst [vmem:[%s2357 + $0xcd0] sm:$0xff] %v2768
                  %v2770 = vld [vmem:[%s2356 + $0x3380] sm:$0xff]
                  %2771 = vst [vmem:[%s2357 + $0xce0] sm:$0xff] %v2770
                  %v2772 = vld [vmem:[%s2356 + $0x33c0] sm:$0xff]
                  %2773 = vst [vmem:[%s2357 + $0xcf0] sm:$0xff] %v2772
                  %v2774 = vld [vmem:[%s2356 + $0x3400] sm:$0xff]
                  %2775 = vst [vmem:[%s2357 + $0xd00] sm:$0xff] %v2774
                  %v2776 = vld [vmem:[%s2356 + $0x3440] sm:$0xff]
                  %2777 = vst [vmem:[%s2357 + $0xd10] sm:$0xff] %v2776
                  %v2778 = vld [vmem:[%s2356 + $0x3480] sm:$0xff]
                  %2779 = vst [vmem:[%s2357 + $0xd20] sm:$0xff] %v2778
                  %v2780 = vld [vmem:[%s2356 + $0x34c0] sm:$0xff]
                  %2781 = vst [vmem:[%s2357 + $0xd30] sm:$0xff] %v2780
                  %v2782 = vld [vmem:[%s2356 + $0x3500] sm:$0xff]
                  %2783 = vst [vmem:[%s2357 + $0xd40] sm:$0xff] %v2782
                  %v2784 = vld [vmem:[%s2356 + $0x3540] sm:$0xff]
                  %2785 = vst [vmem:[%s2357 + $0xd50] sm:$0xff] %v2784
                  %v2786 = vld [vmem:[%s2356 + $0x3580] sm:$0xff]
                  %2787 = vst [vmem:[%s2357 + $0xd60] sm:$0xff] %v2786
                  %v2788 = vld [vmem:[%s2356 + $0x35c0] sm:$0xff]
                  %2789 = vst [vmem:[%s2357 + $0xd70] sm:$0xff] %v2788
                  %v2790 = vld [vmem:[%s2356 + $0x3600] sm:$0xff]
                  %2791 = vst [vmem:[%s2357 + $0xd80] sm:$0xff] %v2790
                  %v2792 = vld [vmem:[%s2356 + $0x3640] sm:$0xff]
                  %2793 = vst [vmem:[%s2357 + $0xd90] sm:$0xff] %v2792
                  %v2794 = vld [vmem:[%s2356 + $0x3680] sm:$0xff]
                  %2795 = vst [vmem:[%s2357 + $0xda0] sm:$0xff] %v2794
                  %v2796 = vld [vmem:[%s2356 + $0x36c0] sm:$0xff]
                  %2797 = vst [vmem:[%s2357 + $0xdb0] sm:$0xff] %v2796
                  %v2798 = vld [vmem:[%s2356 + $0x3700] sm:$0xff]
                  %2799 = vst [vmem:[%s2357 + $0xdc0] sm:$0xff] %v2798
                  %v2800 = vld [vmem:[%s2356 + $0x3740] sm:$0xff]
                  %2801 = vst [vmem:[%s2357 + $0xdd0] sm:$0xff] %v2800
                  %v2802 = vld [vmem:[%s2356 + $0x3780] sm:$0xff]
                  %2803 = vst [vmem:[%s2357 + $0xde0] sm:$0xff] %v2802
                  %v2804 = vld [vmem:[%s2356 + $0x37c0] sm:$0xff]
                  %2805 = vst [vmem:[%s2357 + $0xdf0] sm:$0xff] %v2804
                  %v2806 = vld [vmem:[%s2356 + $0x3800] sm:$0xff]
                  %2807 = vst [vmem:[%s2357 + $0xe00] sm:$0xff] %v2806
                  %v2808 = vld [vmem:[%s2356 + $0x3840] sm:$0xff]
                  %2809 = vst [vmem:[%s2357 + $0xe10] sm:$0xff] %v2808
                  %v2810 = vld [vmem:[%s2356 + $0x3880] sm:$0xff]
                  %2811 = vst [vmem:[%s2357 + $0xe20] sm:$0xff] %v2810
                  %v2812 = vld [vmem:[%s2356 + $0x38c0] sm:$0xff]
                  %2813 = vst [vmem:[%s2357 + $0xe30] sm:$0xff] %v2812
                  %v2814 = vld [vmem:[%s2356 + $0x3900] sm:$0xff]
                  %2815 = vst [vmem:[%s2357 + $0xe40] sm:$0xff] %v2814
                  %v2816 = vld [vmem:[%s2356 + $0x3940] sm:$0xff]
                  %2817 = vst [vmem:[%s2357 + $0xe50] sm:$0xff] %v2816
                  %v2818 = vld [vmem:[%s2356 + $0x3980] sm:$0xff]
                  %2819 = vst [vmem:[%s2357 + $0xe60] sm:$0xff] %v2818
                  %v2820 = vld [vmem:[%s2356 + $0x39c0] sm:$0xff]
                  %2821 = vst [vmem:[%s2357 + $0xe70] sm:$0xff] %v2820
                  %v2822 = vld [vmem:[%s2356 + $0x3a00] sm:$0xff]
                  %2823 = vst [vmem:[%s2357 + $0xe80] sm:$0xff] %v2822
                  %v2824 = vld [vmem:[%s2356 + $0x3a40] sm:$0xff]
                  %2825 = vst [vmem:[%s2357 + $0xe90] sm:$0xff] %v2824
                  %v2826 = vld [vmem:[%s2356 + $0x3a80] sm:$0xff]
                  %2827 = vst [vmem:[%s2357 + $0xea0] sm:$0xff] %v2826
                  %v2828 = vld [vmem:[%s2356 + $0x3ac0] sm:$0xff]
                  %2829 = vst [vmem:[%s2357 + $0xeb0] sm:$0xff] %v2828
                  %v2830 = vld [vmem:[%s2356 + $0x3b00] sm:$0xff]
                  %2831 = vst [vmem:[%s2357 + $0xec0] sm:$0xff] %v2830
                  %v2832 = vld [vmem:[%s2356 + $0x3b40] sm:$0xff]
                  %2833 = vst [vmem:[%s2357 + $0xed0] sm:$0xff] %v2832
                  %v2834 = vld [vmem:[%s2356 + $0x3b80] sm:$0xff]
                  %2835 = vst [vmem:[%s2357 + $0xee0] sm:$0xff] %v2834
                  %v2836 = vld [vmem:[%s2356 + $0x3bc0] sm:$0xff]
                  %2837 = vst [vmem:[%s2357 + $0xef0] sm:$0xff] %v2836
                  %v2838 = vld [vmem:[%s2356 + $0x3c00] sm:$0xff]
                  %2839 = vst [vmem:[%s2357 + $0xf00] sm:$0xff] %v2838
                  %v2840 = vld [vmem:[%s2356 + $0x3c40] sm:$0xff]
                  %2841 = vst [vmem:[%s2357 + $0xf10] sm:$0xff] %v2840
                  %v2842 = vld [vmem:[%s2356 + $0x3c80] sm:$0xff]
                  %2843 = vst [vmem:[%s2357 + $0xf20] sm:$0xff] %v2842
                  %v2844 = vld [vmem:[%s2356 + $0x3cc0] sm:$0xff]
                  %2845 = vst [vmem:[%s2357 + $0xf30] sm:$0xff] %v2844
                  %v2846 = vld [vmem:[%s2356 + $0x3d00] sm:$0xff]
                  %2847 = vst [vmem:[%s2357 + $0xf40] sm:$0xff] %v2846
                  %v2848 = vld [vmem:[%s2356 + $0x3d40] sm:$0xff]
                  %2849 = vst [vmem:[%s2357 + $0xf50] sm:$0xff] %v2848
                  %v2850 = vld [vmem:[%s2356 + $0x3d80] sm:$0xff]
                  %2851 = vst [vmem:[%s2357 + $0xf60] sm:$0xff] %v2850
                  %v2852 = vld [vmem:[%s2356 + $0x3dc0] sm:$0xff]
                  %2853 = vst [vmem:[%s2357 + $0xf70] sm:$0xff] %v2852
                  %v2854 = vld [vmem:[%s2356 + $0x3e00] sm:$0xff]
                  %2855 = vst [vmem:[%s2357 + $0xf80] sm:$0xff] %v2854
                  %v2856 = vld [vmem:[%s2356 + $0x3e40] sm:$0xff]
                  %2857 = vst [vmem:[%s2357 + $0xf90] sm:$0xff] %v2856
                  %v2858 = vld [vmem:[%s2356 + $0x3e80] sm:$0xff]
                  %2859 = vst [vmem:[%s2357 + $0xfa0] sm:$0xff] %v2858
                  %v2860 = vld [vmem:[%s2356 + $0x3ec0] sm:$0xff]
                  %2861 = vst [vmem:[%s2357 + $0xfb0] sm:$0xff] %v2860
                  %v2862 = vld [vmem:[%s2356 + $0x3f00] sm:$0xff]
                  %2863 = vst [vmem:[%s2357 + $0xfc0] sm:$0xff] %v2862
                  %v2864 = vld [vmem:[%s2356 + $0x3f40] sm:$0xff]
                  %2865 = vst [vmem:[%s2357 + $0xfd0] sm:$0xff] %v2864
                  %v2866 = vld [vmem:[%s2356 + $0x3f80] sm:$0xff]
                  %2867 = vst [vmem:[%s2357 + $0xfe0] sm:$0xff] %v2866
                  %v2868 = vld [vmem:[%s2356 + $0x3fc0] sm:$0xff]
                  %2869 = vst [vmem:[%s2357 + $0xff0] sm:$0xff] %v2868
                  %v2870 = vld [vmem:[%s2356 + $0x4000] sm:$0xff]
                  %2871 = vst [vmem:[%s2357 + $0x1000] sm:$0xff] %v2870
                  %v2872 = vld [vmem:[%s2356 + $0x4040] sm:$0xff]
                  %2873 = vst [vmem:[%s2357 + $0x1010] sm:$0xff] %v2872
                  %v2874 = vld [vmem:[%s2356 + $0x4080] sm:$0xff]
                  %2875 = vst [vmem:[%s2357 + $0x1020] sm:$0xff] %v2874
                  %v2876 = vld [vmem:[%s2356 + $0x40c0] sm:$0xff]
                  %2877 = vst [vmem:[%s2357 + $0x1030] sm:$0xff] %v2876
                  %v2878 = vld [vmem:[%s2356 + $0x4100] sm:$0xff]
                  %2879 = vst [vmem:[%s2357 + $0x1040] sm:$0xff] %v2878
                  %v2880 = vld [vmem:[%s2356 + $0x4140] sm:$0xff]
                  %2881 = vst [vmem:[%s2357 + $0x1050] sm:$0xff] %v2880
                  %v2882 = vld [vmem:[%s2356 + $0x4180] sm:$0xff]
                  %2883 = vst [vmem:[%s2357 + $0x1060] sm:$0xff] %v2882
                  %v2884 = vld [vmem:[%s2356 + $0x41c0] sm:$0xff]
                  %2885 = vst [vmem:[%s2357 + $0x1070] sm:$0xff] %v2884
                  %v2886 = vld [vmem:[%s2356 + $0x4200] sm:$0xff]
                  %2887 = vst [vmem:[%s2357 + $0x1080] sm:$0xff] %v2886
                  %v2888 = vld [vmem:[%s2356 + $0x4240] sm:$0xff]
                  %2889 = vst [vmem:[%s2357 + $0x1090] sm:$0xff] %v2888
                  %v2890 = vld [vmem:[%s2356 + $0x4280] sm:$0xff]
                  %2891 = vst [vmem:[%s2357 + $0x10a0] sm:$0xff] %v2890
                  %v2892 = vld [vmem:[%s2356 + $0x42c0] sm:$0xff]
                  %2893 = vst [vmem:[%s2357 + $0x10b0] sm:$0xff] %v2892
                  %v2894 = vld [vmem:[%s2356 + $0x4300] sm:$0xff]
                  %2895 = vst [vmem:[%s2357 + $0x10c0] sm:$0xff] %v2894
                  %v2896 = vld [vmem:[%s2356 + $0x4340] sm:$0xff]
                  %2897 = vst [vmem:[%s2357 + $0x10d0] sm:$0xff] %v2896
                  %v2898 = vld [vmem:[%s2356 + $0x4380] sm:$0xff]
                  %2899 = vst [vmem:[%s2357 + $0x10e0] sm:$0xff] %v2898
                  %v2900 = vld [vmem:[%s2356 + $0x43c0] sm:$0xff]
                  %2901 = vst [vmem:[%s2357 + $0x10f0] sm:$0xff] %v2900
                  %v2902 = vld [vmem:[%s2356 + $0x4400] sm:$0xff]
                  %2903 = vst [vmem:[%s2357 + $0x1100] sm:$0xff] %v2902
                  %v2904 = vld [vmem:[%s2356 + $0x4440] sm:$0xff]
                  %2905 = vst [vmem:[%s2357 + $0x1110] sm:$0xff] %v2904
                  %v2906 = vld [vmem:[%s2356 + $0x4480] sm:$0xff]
                  %2907 = vst [vmem:[%s2357 + $0x1120] sm:$0xff] %v2906
                  %v2908 = vld [vmem:[%s2356 + $0x44c0] sm:$0xff]
                  %2909 = vst [vmem:[%s2357 + $0x1130] sm:$0xff] %v2908
                  %v2910 = vld [vmem:[%s2356 + $0x4500] sm:$0xff]
                  %2911 = vst [vmem:[%s2357 + $0x1140] sm:$0xff] %v2910
                  %v2912 = vld [vmem:[%s2356 + $0x4540] sm:$0xff]
                  %2913 = vst [vmem:[%s2357 + $0x1150] sm:$0xff] %v2912
                  %v2914 = vld [vmem:[%s2356 + $0x4580] sm:$0xff]
                  %2915 = vst [vmem:[%s2357 + $0x1160] sm:$0xff] %v2914
                  %v2916 = vld [vmem:[%s2356 + $0x45c0] sm:$0xff]
                  %2917 = vst [vmem:[%s2357 + $0x1170] sm:$0xff] %v2916
                  %v2918 = vld [vmem:[%s2356 + $0x4600] sm:$0xff]
                  %2919 = vst [vmem:[%s2357 + $0x1180] sm:$0xff] %v2918
                  %v2920 = vld [vmem:[%s2356 + $0x4640] sm:$0xff]
                  %2921 = vst [vmem:[%s2357 + $0x1190] sm:$0xff] %v2920
                  %v2922 = vld [vmem:[%s2356 + $0x4680] sm:$0xff]
                  %2923 = vst [vmem:[%s2357 + $0x11a0] sm:$0xff] %v2922
                  %v2924 = vld [vmem:[%s2356 + $0x46c0] sm:$0xff]
                  %2925 = vst [vmem:[%s2357 + $0x11b0] sm:$0xff] %v2924
                  %v2926 = vld [vmem:[%s2356 + $0x4700] sm:$0xff]
                  %2927 = vst [vmem:[%s2357 + $0x11c0] sm:$0xff] %v2926
                  %v2928 = vld [vmem:[%s2356 + $0x4740] sm:$0xff]
                  %2929 = vst [vmem:[%s2357 + $0x11d0] sm:$0xff] %v2928
                  %v2930 = vld [vmem:[%s2356 + $0x4780] sm:$0xff]
                  %2931 = vst [vmem:[%s2357 + $0x11e0] sm:$0xff] %v2930
                  %v2932 = vld [vmem:[%s2356 + $0x47c0] sm:$0xff]
                  %2933 = vst [vmem:[%s2357 + $0x11f0] sm:$0xff] %v2932
                  %v2934 = vld [vmem:[%s2356 + $0x4800] sm:$0xff]
                  %2935 = vst [vmem:[%s2357 + $0x1200] sm:$0xff] %v2934
                  %v2936 = vld [vmem:[%s2356 + $0x4840] sm:$0xff]
                  %2937 = vst [vmem:[%s2357 + $0x1210] sm:$0xff] %v2936
                  %v2938 = vld [vmem:[%s2356 + $0x4880] sm:$0xff]
                  %2939 = vst [vmem:[%s2357 + $0x1220] sm:$0xff] %v2938
                  %v2940 = vld [vmem:[%s2356 + $0x48c0] sm:$0xff]
                  %2941 = vst [vmem:[%s2357 + $0x1230] sm:$0xff] %v2940
                  %v2942 = vld [vmem:[%s2356 + $0x4900] sm:$0xff]
                  %2943 = vst [vmem:[%s2357 + $0x1240] sm:$0xff] %v2942
                  %v2944 = vld [vmem:[%s2356 + $0x4940] sm:$0xff]
                  %2945 = vst [vmem:[%s2357 + $0x1250] sm:$0xff] %v2944
                  %v2946 = vld [vmem:[%s2356 + $0x4980] sm:$0xff]
                  %2947 = vst [vmem:[%s2357 + $0x1260] sm:$0xff] %v2946
                  %v2948 = vld [vmem:[%s2356 + $0x49c0] sm:$0xff]
                  %2949 = vst [vmem:[%s2357 + $0x1270] sm:$0xff] %v2948
                  %v2950 = vld [vmem:[%s2356 + $0x4a00] sm:$0xff]
                  %2951 = vst [vmem:[%s2357 + $0x1280] sm:$0xff] %v2950
                  %v2952 = vld [vmem:[%s2356 + $0x4a40] sm:$0xff]
                  %2953 = vst [vmem:[%s2357 + $0x1290] sm:$0xff] %v2952
                  %v2954 = vld [vmem:[%s2356 + $0x4a80] sm:$0xff]
                  %2955 = vst [vmem:[%s2357 + $0x12a0] sm:$0xff] %v2954
                  %v2956 = vld [vmem:[%s2356 + $0x4ac0] sm:$0xff]
                  %2957 = vst [vmem:[%s2357 + $0x12b0] sm:$0xff] %v2956
                  %v2958 = vld [vmem:[%s2356 + $0x4b00] sm:$0xff]
                  %2959 = vst [vmem:[%s2357 + $0x12c0] sm:$0xff] %v2958
                  %v2960 = vld [vmem:[%s2356 + $0x4b40] sm:$0xff]
                  %2961 = vst [vmem:[%s2357 + $0x12d0] sm:$0xff] %v2960
                  %v2962 = vld [vmem:[%s2356 + $0x4b80] sm:$0xff]
                  %2963 = vst [vmem:[%s2357 + $0x12e0] sm:$0xff] %v2962
                  %v2964 = vld [vmem:[%s2356 + $0x4bc0] sm:$0xff]
                  %2965 = vst [vmem:[%s2357 + $0x12f0] sm:$0xff] %v2964
                  %v2966 = vld [vmem:[%s2356 + $0x4c00] sm:$0xff]
                  %2967 = vst [vmem:[%s2357 + $0x1300] sm:$0xff] %v2966
                  %v2968 = vld [vmem:[%s2356 + $0x4c40] sm:$0xff]
                  %2969 = vst [vmem:[%s2357 + $0x1310] sm:$0xff] %v2968
                  %v2970 = vld [vmem:[%s2356 + $0x4c80] sm:$0xff]
                  %2971 = vst [vmem:[%s2357 + $0x1320] sm:$0xff] %v2970
                  %v2972 = vld [vmem:[%s2356 + $0x4cc0] sm:$0xff]
                  %2973 = vst [vmem:[%s2357 + $0x1330] sm:$0xff] %v2972
                  %v2974 = vld [vmem:[%s2356 + $0x4d00] sm:$0xff]
                  %2975 = vst [vmem:[%s2357 + $0x1340] sm:$0xff] %v2974
                  %v2976 = vld [vmem:[%s2356 + $0x4d40] sm:$0xff]
                  %2977 = vst [vmem:[%s2357 + $0x1350] sm:$0xff] %v2976
                  %v2978 = vld [vmem:[%s2356 + $0x4d80] sm:$0xff]
                  %2979 = vst [vmem:[%s2357 + $0x1360] sm:$0xff] %v2978
                  %v2980 = vld [vmem:[%s2356 + $0x4dc0] sm:$0xff]
                  %2981 = vst [vmem:[%s2357 + $0x1370] sm:$0xff] %v2980
                  %v2982 = vld [vmem:[%s2356 + $0x4e00] sm:$0xff]
                  %2983 = vst [vmem:[%s2357 + $0x1380] sm:$0xff] %v2982
                  %v2984 = vld [vmem:[%s2356 + $0x4e40] sm:$0xff]
                  %2985 = vst [vmem:[%s2357 + $0x1390] sm:$0xff] %v2984
                  %v2986 = vld [vmem:[%s2356 + $0x4e80] sm:$0xff]
                  %2987 = vst [vmem:[%s2357 + $0x13a0] sm:$0xff] %v2986
                  %v2988 = vld [vmem:[%s2356 + $0x4ec0] sm:$0xff]
                  %2989 = vst [vmem:[%s2357 + $0x13b0] sm:$0xff] %v2988
                  %v2990 = vld [vmem:[%s2356 + $0x4f00] sm:$0xff]
                  %2991 = vst [vmem:[%s2357 + $0x13c0] sm:$0xff] %v2990
                  %v2992 = vld [vmem:[%s2356 + $0x4f40] sm:$0xff]
                  %2993 = vst [vmem:[%s2357 + $0x13d0] sm:$0xff] %v2992
                  %v2994 = vld [vmem:[%s2356 + $0x4f80] sm:$0xff]
                  %2995 = vst [vmem:[%s2357 + $0x13e0] sm:$0xff] %v2994
                  %v2996 = vld [vmem:[%s2356 + $0x4fc0] sm:$0xff]
                  %2997 = vst [vmem:[%s2357 + $0x13f0] sm:$0xff] %v2996
                  %v2998 = vld [vmem:[%s2356 + $0x5000] sm:$0xff]
                  %2999 = vst [vmem:[%s2357 + $0x1400] sm:$0xff] %v2998
                  %v3000 = vld [vmem:[%s2356 + $0x5040] sm:$0xff]
                  %3001 = vst [vmem:[%s2357 + $0x1410] sm:$0xff] %v3000
                  %v3002 = vld [vmem:[%s2356 + $0x5080] sm:$0xff]
                  %3003 = vst [vmem:[%s2357 + $0x1420] sm:$0xff] %v3002
                  %v3004 = vld [vmem:[%s2356 + $0x50c0] sm:$0xff]
                  %3005 = vst [vmem:[%s2357 + $0x1430] sm:$0xff] %v3004
                  %v3006 = vld [vmem:[%s2356 + $0x5100] sm:$0xff]
                  %3007 = vst [vmem:[%s2357 + $0x1440] sm:$0xff] %v3006
                  %v3008 = vld [vmem:[%s2356 + $0x5140] sm:$0xff]
                  %3009 = vst [vmem:[%s2357 + $0x1450] sm:$0xff] %v3008
                  %v3010 = vld [vmem:[%s2356 + $0x5180] sm:$0xff]
                  %3011 = vst [vmem:[%s2357 + $0x1460] sm:$0xff] %v3010
                  %v3012 = vld [vmem:[%s2356 + $0x51c0] sm:$0xff]
                  %3013 = vst [vmem:[%s2357 + $0x1470] sm:$0xff] %v3012
                  %v3014 = vld [vmem:[%s2356 + $0x5200] sm:$0xff]
                  %3015 = vst [vmem:[%s2357 + $0x1480] sm:$0xff] %v3014
                  %v3016 = vld [vmem:[%s2356 + $0x5240] sm:$0xff]
                  %3017 = vst [vmem:[%s2357 + $0x1490] sm:$0xff] %v3016
                  %v3018 = vld [vmem:[%s2356 + $0x5280] sm:$0xff]
                  %3019 = vst [vmem:[%s2357 + $0x14a0] sm:$0xff] %v3018
                  %v3020 = vld [vmem:[%s2356 + $0x52c0] sm:$0xff]
                  %3021 = vst [vmem:[%s2357 + $0x14b0] sm:$0xff] %v3020
                  %v3022 = vld [vmem:[%s2356 + $0x5300] sm:$0xff]
                  %3023 = vst [vmem:[%s2357 + $0x14c0] sm:$0xff] %v3022
                  %v3024 = vld [vmem:[%s2356 + $0x5340] sm:$0xff]
                  %3025 = vst [vmem:[%s2357 + $0x14d0] sm:$0xff] %v3024
                  %v3026 = vld [vmem:[%s2356 + $0x5380] sm:$0xff]
                  %3027 = vst [vmem:[%s2357 + $0x14e0] sm:$0xff] %v3026
                  %v3028 = vld [vmem:[%s2356 + $0x53c0] sm:$0xff]
                  %3029 = vst [vmem:[%s2357 + $0x14f0] sm:$0xff] %v3028
                  %v3030 = vld [vmem:[%s2356 + $0x5400] sm:$0xff]
                  %3031 = vst [vmem:[%s2357 + $0x1500] sm:$0xff] %v3030
                  %v3032 = vld [vmem:[%s2356 + $0x5440] sm:$0xff]
                  %3033 = vst [vmem:[%s2357 + $0x1510] sm:$0xff] %v3032
                  %v3034 = vld [vmem:[%s2356 + $0x5480] sm:$0xff]
                  %3035 = vst [vmem:[%s2357 + $0x1520] sm:$0xff] %v3034
                  %v3036 = vld [vmem:[%s2356 + $0x54c0] sm:$0xff]
                  %3037 = vst [vmem:[%s2357 + $0x1530] sm:$0xff] %v3036
                  %v3038 = vld [vmem:[%s2356 + $0x5500] sm:$0xff]
                  %3039 = vst [vmem:[%s2357 + $0x1540] sm:$0xff] %v3038
                  %v3040 = vld [vmem:[%s2356 + $0x5540] sm:$0xff]
                  %3041 = vst [vmem:[%s2357 + $0x1550] sm:$0xff] %v3040
                  %v3042 = vld [vmem:[%s2356 + $0x5580] sm:$0xff]
                  %3043 = vst [vmem:[%s2357 + $0x1560] sm:$0xff] %v3042
                  %v3044 = vld [vmem:[%s2356 + $0x55c0] sm:$0xff]
                  %3045 = vst [vmem:[%s2357 + $0x1570] sm:$0xff] %v3044
                  %v3046 = vld [vmem:[%s2356 + $0x5600] sm:$0xff]
                  %3047 = vst [vmem:[%s2357 + $0x1580] sm:$0xff] %v3046
                  %v3048 = vld [vmem:[%s2356 + $0x5640] sm:$0xff]
                  %3049 = vst [vmem:[%s2357 + $0x1590] sm:$0xff] %v3048
                  %v3050 = vld [vmem:[%s2356 + $0x5680] sm:$0xff]
                  %3051 = vst [vmem:[%s2357 + $0x15a0] sm:$0xff] %v3050
                  %v3052 = vld [vmem:[%s2356 + $0x56c0] sm:$0xff]
                  %3053 = vst [vmem:[%s2357 + $0x15b0] sm:$0xff] %v3052
                  %v3054 = vld [vmem:[%s2356 + $0x5700] sm:$0xff]
                  %3055 = vst [vmem:[%s2357 + $0x15c0] sm:$0xff] %v3054
                  %v3056 = vld [vmem:[%s2356 + $0x5740] sm:$0xff]
                  %3057 = vst [vmem:[%s2357 + $0x15d0] sm:$0xff] %v3056
                  %v3058 = vld [vmem:[%s2356 + $0x5780] sm:$0xff]
                  %3059 = vst [vmem:[%s2357 + $0x15e0] sm:$0xff] %v3058
                  %v3060 = vld [vmem:[%s2356 + $0x57c0] sm:$0xff]
                  %3061 = vst [vmem:[%s2357 + $0x15f0] sm:$0xff] %v3060
                  %v3062 = vld [vmem:[%s2356 + $0x5800] sm:$0xff]
                  %3063 = vst [vmem:[%s2357 + $0x1600] sm:$0xff] %v3062
                  %v3064 = vld [vmem:[%s2356 + $0x5840] sm:$0xff]
                  %3065 = vst [vmem:[%s2357 + $0x1610] sm:$0xff] %v3064
                  %v3066 = vld [vmem:[%s2356 + $0x5880] sm:$0xff]
                  %3067 = vst [vmem:[%s2357 + $0x1620] sm:$0xff] %v3066
                  %v3068 = vld [vmem:[%s2356 + $0x58c0] sm:$0xff]
                  %3069 = vst [vmem:[%s2357 + $0x1630] sm:$0xff] %v3068
                  %v3070 = vld [vmem:[%s2356 + $0x5900] sm:$0xff]
                  %3071 = vst [vmem:[%s2357 + $0x1640] sm:$0xff] %v3070
                  %v3072 = vld [vmem:[%s2356 + $0x5940] sm:$0xff]
                  %3073 = vst [vmem:[%s2357 + $0x1650] sm:$0xff] %v3072
                  %v3074 = vld [vmem:[%s2356 + $0x5980] sm:$0xff]
                  %3075 = vst [vmem:[%s2357 + $0x1660] sm:$0xff] %v3074
                  %v3076 = vld [vmem:[%s2356 + $0x59c0] sm:$0xff]
                  %3077 = vst [vmem:[%s2357 + $0x1670] sm:$0xff] %v3076
                  %v3078 = vld [vmem:[%s2356 + $0x5a00] sm:$0xff]
                  %3079 = vst [vmem:[%s2357 + $0x1680] sm:$0xff] %v3078
                  %v3080 = vld [vmem:[%s2356 + $0x5a40] sm:$0xff]
                  %3081 = vst [vmem:[%s2357 + $0x1690] sm:$0xff] %v3080
                  %v3082 = vld [vmem:[%s2356 + $0x5a80] sm:$0xff]
                  %3083 = vst [vmem:[%s2357 + $0x16a0] sm:$0xff] %v3082
                  %v3084 = vld [vmem:[%s2356 + $0x5ac0] sm:$0xff]
                  %3085 = vst [vmem:[%s2357 + $0x16b0] sm:$0xff] %v3084
                  %v3086 = vld [vmem:[%s2356 + $0x5b00] sm:$0xff]
                  %3087 = vst [vmem:[%s2357 + $0x16c0] sm:$0xff] %v3086
                  %v3088 = vld [vmem:[%s2356 + $0x5b40] sm:$0xff]
                  %3089 = vst [vmem:[%s2357 + $0x16d0] sm:$0xff] %v3088
                  %v3090 = vld [vmem:[%s2356 + $0x5b80] sm:$0xff]
                  %3091 = vst [vmem:[%s2357 + $0x16e0] sm:$0xff] %v3090
                  %v3092 = vld [vmem:[%s2356 + $0x5bc0] sm:$0xff]
                  %3093 = vst [vmem:[%s2357 + $0x16f0] sm:$0xff] %v3092
                  %v3094 = vld [vmem:[%s2356 + $0x5c00] sm:$0xff]
                  %3095 = vst [vmem:[%s2357 + $0x1700] sm:$0xff] %v3094
                  %v3096 = vld [vmem:[%s2356 + $0x5c40] sm:$0xff]
                  %3097 = vst [vmem:[%s2357 + $0x1710] sm:$0xff] %v3096
                  %v3098 = vld [vmem:[%s2356 + $0x5c80] sm:$0xff]
                  %3099 = vst [vmem:[%s2357 + $0x1720] sm:$0xff] %v3098
                  %v3100 = vld [vmem:[%s2356 + $0x5cc0] sm:$0xff]
                  %3101 = vst [vmem:[%s2357 + $0x1730] sm:$0xff] %v3100
                  %v3102 = vld [vmem:[%s2356 + $0x5d00] sm:$0xff]
                  %3103 = vst [vmem:[%s2357 + $0x1740] sm:$0xff] %v3102
                  %v3104 = vld [vmem:[%s2356 + $0x5d40] sm:$0xff]
                  %3105 = vst [vmem:[%s2357 + $0x1750] sm:$0xff] %v3104
                  %v3106 = vld [vmem:[%s2356 + $0x5d80] sm:$0xff]
                  %3107 = vst [vmem:[%s2357 + $0x1760] sm:$0xff] %v3106
                  %v3108 = vld [vmem:[%s2356 + $0x5dc0] sm:$0xff]
                  %3109 = vst [vmem:[%s2357 + $0x1770] sm:$0xff] %v3108
                  %v3110 = vld [vmem:[%s2356 + $0x5e00] sm:$0xff]
                  %3111 = vst [vmem:[%s2357 + $0x1780] sm:$0xff] %v3110
                  %v3112 = vld [vmem:[%s2356 + $0x5e40] sm:$0xff]
                  %3113 = vst [vmem:[%s2357 + $0x1790] sm:$0xff] %v3112
                  %v3114 = vld [vmem:[%s2356 + $0x5e80] sm:$0xff]
                  %3115 = vst [vmem:[%s2357 + $0x17a0] sm:$0xff] %v3114
                  %v3116 = vld [vmem:[%s2356 + $0x5ec0] sm:$0xff]
                  %3117 = vst [vmem:[%s2357 + $0x17b0] sm:$0xff] %v3116
                  %v3118 = vld [vmem:[%s2356 + $0x5f00] sm:$0xff]
                  %3119 = vst [vmem:[%s2357 + $0x17c0] sm:$0xff] %v3118
                  %v3120 = vld [vmem:[%s2356 + $0x5f40] sm:$0xff]
                  %3121 = vst [vmem:[%s2357 + $0x17d0] sm:$0xff] %v3120
                  %v3122 = vld [vmem:[%s2356 + $0x5f80] sm:$0xff]
                  %3123 = vst [vmem:[%s2357 + $0x17e0] sm:$0xff] %v3122
                  %v3124 = vld [vmem:[%s2356 + $0x5fc0] sm:$0xff]
                  %3125 = vst [vmem:[%s2357 + $0x17f0] sm:$0xff] %v3124
                  %v3126 = vld [vmem:[%s2356 + $0x6000] sm:$0xff]
                  %3127 = vst [vmem:[%s2357 + $0x1800] sm:$0xff] %v3126
                  %v3128 = vld [vmem:[%s2356 + $0x6040] sm:$0xff]
                  %3129 = vst [vmem:[%s2357 + $0x1810] sm:$0xff] %v3128
                  %v3130 = vld [vmem:[%s2356 + $0x6080] sm:$0xff]
                  %3131 = vst [vmem:[%s2357 + $0x1820] sm:$0xff] %v3130
                  %v3132 = vld [vmem:[%s2356 + $0x60c0] sm:$0xff]
                  %3133 = vst [vmem:[%s2357 + $0x1830] sm:$0xff] %v3132
                  %v3134 = vld [vmem:[%s2356 + $0x6100] sm:$0xff]
                  %3135 = vst [vmem:[%s2357 + $0x1840] sm:$0xff] %v3134
                  %v3136 = vld [vmem:[%s2356 + $0x6140] sm:$0xff]
                  %3137 = vst [vmem:[%s2357 + $0x1850] sm:$0xff] %v3136
                  %v3138 = vld [vmem:[%s2356 + $0x6180] sm:$0xff]
                  %3139 = vst [vmem:[%s2357 + $0x1860] sm:$0xff] %v3138
                  %v3140 = vld [vmem:[%s2356 + $0x61c0] sm:$0xff]
                  %3141 = vst [vmem:[%s2357 + $0x1870] sm:$0xff] %v3140
                  %v3142 = vld [vmem:[%s2356 + $0x6200] sm:$0xff]
                  %3143 = vst [vmem:[%s2357 + $0x1880] sm:$0xff] %v3142
                  %v3144 = vld [vmem:[%s2356 + $0x6240] sm:$0xff]
                  %3145 = vst [vmem:[%s2357 + $0x1890] sm:$0xff] %v3144
                  %v3146 = vld [vmem:[%s2356 + $0x6280] sm:$0xff]
                  %3147 = vst [vmem:[%s2357 + $0x18a0] sm:$0xff] %v3146
                  %v3148 = vld [vmem:[%s2356 + $0x62c0] sm:$0xff]
                  %3149 = vst [vmem:[%s2357 + $0x18b0] sm:$0xff] %v3148
                  %v3150 = vld [vmem:[%s2356 + $0x6300] sm:$0xff]
                  %3151 = vst [vmem:[%s2357 + $0x18c0] sm:$0xff] %v3150
                  %v3152 = vld [vmem:[%s2356 + $0x6340] sm:$0xff]
                  %3153 = vst [vmem:[%s2357 + $0x18d0] sm:$0xff] %v3152
                  %v3154 = vld [vmem:[%s2356 + $0x6380] sm:$0xff]
                  %3155 = vst [vmem:[%s2357 + $0x18e0] sm:$0xff] %v3154
                  %v3156 = vld [vmem:[%s2356 + $0x63c0] sm:$0xff]
                  %3157 = vst [vmem:[%s2357 + $0x18f0] sm:$0xff] %v3156
                  %v3158 = vld [vmem:[%s2356 + $0x6400] sm:$0xff]
                  %3159 = vst [vmem:[%s2357 + $0x1900] sm:$0xff] %v3158
                  %v3160 = vld [vmem:[%s2356 + $0x6440] sm:$0xff]
                  %3161 = vst [vmem:[%s2357 + $0x1910] sm:$0xff] %v3160
                  %v3162 = vld [vmem:[%s2356 + $0x6480] sm:$0xff]
                  %3163 = vst [vmem:[%s2357 + $0x1920] sm:$0xff] %v3162
                  %v3164 = vld [vmem:[%s2356 + $0x64c0] sm:$0xff]
                  %3165 = vst [vmem:[%s2357 + $0x1930] sm:$0xff] %v3164
                  %v3166 = vld [vmem:[%s2356 + $0x6500] sm:$0xff]
                  %3167 = vst [vmem:[%s2357 + $0x1940] sm:$0xff] %v3166
                  %v3168 = vld [vmem:[%s2356 + $0x6540] sm:$0xff]
                  %3169 = vst [vmem:[%s2357 + $0x1950] sm:$0xff] %v3168
                  %v3170 = vld [vmem:[%s2356 + $0x6580] sm:$0xff]
                  %3171 = vst [vmem:[%s2357 + $0x1960] sm:$0xff] %v3170
                  %v3172 = vld [vmem:[%s2356 + $0x65c0] sm:$0xff]
                  %3173 = vst [vmem:[%s2357 + $0x1970] sm:$0xff] %v3172
                  %v3174 = vld [vmem:[%s2356 + $0x6600] sm:$0xff]
                  %3175 = vst [vmem:[%s2357 + $0x1980] sm:$0xff] %v3174
                  %v3176 = vld [vmem:[%s2356 + $0x6640] sm:$0xff]
                  %3177 = vst [vmem:[%s2357 + $0x1990] sm:$0xff] %v3176
                  %v3178 = vld [vmem:[%s2356 + $0x6680] sm:$0xff]
                  %3179 = vst [vmem:[%s2357 + $0x19a0] sm:$0xff] %v3178
                  %v3180 = vld [vmem:[%s2356 + $0x66c0] sm:$0xff]
                  %3181 = vst [vmem:[%s2357 + $0x19b0] sm:$0xff] %v3180
                  %v3182 = vld [vmem:[%s2356 + $0x6700] sm:$0xff]
                  %3183 = vst [vmem:[%s2357 + $0x19c0] sm:$0xff] %v3182
                  %v3184 = vld [vmem:[%s2356 + $0x6740] sm:$0xff]
                  %3185 = vst [vmem:[%s2357 + $0x19d0] sm:$0xff] %v3184
                  %v3186 = vld [vmem:[%s2356 + $0x6780] sm:$0xff]
                  %3187 = vst [vmem:[%s2357 + $0x19e0] sm:$0xff] %v3186
                  %v3188 = vld [vmem:[%s2356 + $0x67c0] sm:$0xff]
                  %3189 = vst [vmem:[%s2357 + $0x19f0] sm:$0xff] %v3188
                  %v3190 = vld [vmem:[%s2356 + $0x6800] sm:$0xff]
                  %3191 = vst [vmem:[%s2357 + $0x1a00] sm:$0xff] %v3190
                  %v3192 = vld [vmem:[%s2356 + $0x6840] sm:$0xff]
                  %3193 = vst [vmem:[%s2357 + $0x1a10] sm:$0xff] %v3192
                  %v3194 = vld [vmem:[%s2356 + $0x6880] sm:$0xff]
                  %3195 = vst [vmem:[%s2357 + $0x1a20] sm:$0xff] %v3194
                  %v3196 = vld [vmem:[%s2356 + $0x68c0] sm:$0xff]
                  %3197 = vst [vmem:[%s2357 + $0x1a30] sm:$0xff] %v3196
                  %v3198 = vld [vmem:[%s2356 + $0x6900] sm:$0xff]
                  %3199 = vst [vmem:[%s2357 + $0x1a40] sm:$0xff] %v3198
                  %v3200 = vld [vmem:[%s2356 + $0x6940] sm:$0xff]
                  %3201 = vst [vmem:[%s2357 + $0x1a50] sm:$0xff] %v3200
                  %v3202 = vld [vmem:[%s2356 + $0x6980] sm:$0xff]
                  %3203 = vst [vmem:[%s2357 + $0x1a60] sm:$0xff] %v3202
                  %v3204 = vld [vmem:[%s2356 + $0x69c0] sm:$0xff]
                  %3205 = vst [vmem:[%s2357 + $0x1a70] sm:$0xff] %v3204
                  %v3206 = vld [vmem:[%s2356 + $0x6a00] sm:$0xff]
                  %3207 = vst [vmem:[%s2357 + $0x1a80] sm:$0xff] %v3206
                  %v3208 = vld [vmem:[%s2356 + $0x6a40] sm:$0xff]
                  %3209 = vst [vmem:[%s2357 + $0x1a90] sm:$0xff] %v3208
                  %v3210 = vld [vmem:[%s2356 + $0x6a80] sm:$0xff]
                  %3211 = vst [vmem:[%s2357 + $0x1aa0] sm:$0xff] %v3210
                  %v3212 = vld [vmem:[%s2356 + $0x6ac0] sm:$0xff]
                  %3213 = vst [vmem:[%s2357 + $0x1ab0] sm:$0xff] %v3212
                  %v3214 = vld [vmem:[%s2356 + $0x6b00] sm:$0xff]
                  %3215 = vst [vmem:[%s2357 + $0x1ac0] sm:$0xff] %v3214
                  %v3216 = vld [vmem:[%s2356 + $0x6b40] sm:$0xff]
                  %3217 = vst [vmem:[%s2357 + $0x1ad0] sm:$0xff] %v3216
                  %v3218 = vld [vmem:[%s2356 + $0x6b80] sm:$0xff]
                  %3219 = vst [vmem:[%s2357 + $0x1ae0] sm:$0xff] %v3218
                  %v3220 = vld [vmem:[%s2356 + $0x6bc0] sm:$0xff]
                  %3221 = vst [vmem:[%s2357 + $0x1af0] sm:$0xff] %v3220
                  %v3222 = vld [vmem:[%s2356 + $0x6c00] sm:$0xff]
                  %3223 = vst [vmem:[%s2357 + $0x1b00] sm:$0xff] %v3222
                  %v3224 = vld [vmem:[%s2356 + $0x6c40] sm:$0xff]
                  %3225 = vst [vmem:[%s2357 + $0x1b10] sm:$0xff] %v3224
                  %v3226 = vld [vmem:[%s2356 + $0x6c80] sm:$0xff]
                  %3227 = vst [vmem:[%s2357 + $0x1b20] sm:$0xff] %v3226
                  %v3228 = vld [vmem:[%s2356 + $0x6cc0] sm:$0xff]
                  %3229 = vst [vmem:[%s2357 + $0x1b30] sm:$0xff] %v3228
                  %v3230 = vld [vmem:[%s2356 + $0x6d00] sm:$0xff]
                  %3231 = vst [vmem:[%s2357 + $0x1b40] sm:$0xff] %v3230
                  %v3232 = vld [vmem:[%s2356 + $0x6d40] sm:$0xff]
                  %3233 = vst [vmem:[%s2357 + $0x1b50] sm:$0xff] %v3232
                  %v3234 = vld [vmem:[%s2356 + $0x6d80] sm:$0xff]
                  %3235 = vst [vmem:[%s2357 + $0x1b60] sm:$0xff] %v3234
                  %v3236 = vld [vmem:[%s2356 + $0x6dc0] sm:$0xff]
                  %3237 = vst [vmem:[%s2357 + $0x1b70] sm:$0xff] %v3236
                  %v3238 = vld [vmem:[%s2356 + $0x6e00] sm:$0xff]
                  %3239 = vst [vmem:[%s2357 + $0x1b80] sm:$0xff] %v3238
                  %v3240 = vld [vmem:[%s2356 + $0x6e40] sm:$0xff]
                  %3241 = vst [vmem:[%s2357 + $0x1b90] sm:$0xff] %v3240
                  %v3242 = vld [vmem:[%s2356 + $0x6e80] sm:$0xff]
                  %3243 = vst [vmem:[%s2357 + $0x1ba0] sm:$0xff] %v3242
                  %v3244 = vld [vmem:[%s2356 + $0x6ec0] sm:$0xff]
                  %3245 = vst [vmem:[%s2357 + $0x1bb0] sm:$0xff] %v3244
                  %v3246 = vld [vmem:[%s2356 + $0x6f00] sm:$0xff]
                  %3247 = vst [vmem:[%s2357 + $0x1bc0] sm:$0xff] %v3246
                  %v3248 = vld [vmem:[%s2356 + $0x6f40] sm:$0xff]
                  %3249 = vst [vmem:[%s2357 + $0x1bd0] sm:$0xff] %v3248
                  %v3250 = vld [vmem:[%s2356 + $0x6f80] sm:$0xff]
                  %3251 = vst [vmem:[%s2357 + $0x1be0] sm:$0xff] %v3250
                  %v3252 = vld [vmem:[%s2356 + $0x6fc0] sm:$0xff]
                  %3253 = vst [vmem:[%s2357 + $0x1bf0] sm:$0xff] %v3252
                  %v3254 = vld [vmem:[%s2356 + $0x7000] sm:$0xff]
                  %3255 = vst [vmem:[%s2357 + $0x1c00] sm:$0xff] %v3254
                  %v3256 = vld [vmem:[%s2356 + $0x7040] sm:$0xff]
                  %3257 = vst [vmem:[%s2357 + $0x1c10] sm:$0xff] %v3256
                  %v3258 = vld [vmem:[%s2356 + $0x7080] sm:$0xff]
                  %3259 = vst [vmem:[%s2357 + $0x1c20] sm:$0xff] %v3258
                  %v3260 = vld [vmem:[%s2356 + $0x70c0] sm:$0xff]
                  %3261 = vst [vmem:[%s2357 + $0x1c30] sm:$0xff] %v3260
                  %v3262 = vld [vmem:[%s2356 + $0x7100] sm:$0xff]
                  %3263 = vst [vmem:[%s2357 + $0x1c40] sm:$0xff] %v3262
                  %v3264 = vld [vmem:[%s2356 + $0x7140] sm:$0xff]
                  %3265 = vst [vmem:[%s2357 + $0x1c50] sm:$0xff] %v3264
                  %v3266 = vld [vmem:[%s2356 + $0x7180] sm:$0xff]
                  %3267 = vst [vmem:[%s2357 + $0x1c60] sm:$0xff] %v3266
                  %v3268 = vld [vmem:[%s2356 + $0x71c0] sm:$0xff]
                  %3269 = vst [vmem:[%s2357 + $0x1c70] sm:$0xff] %v3268
                  %v3270 = vld [vmem:[%s2356 + $0x7200] sm:$0xff]
                  %3271 = vst [vmem:[%s2357 + $0x1c80] sm:$0xff] %v3270
                  %v3272 = vld [vmem:[%s2356 + $0x7240] sm:$0xff]
                  %3273 = vst [vmem:[%s2357 + $0x1c90] sm:$0xff] %v3272
                  %v3274 = vld [vmem:[%s2356 + $0x7280] sm:$0xff]
                  %3275 = vst [vmem:[%s2357 + $0x1ca0] sm:$0xff] %v3274
                  %v3276 = vld [vmem:[%s2356 + $0x72c0] sm:$0xff]
                  %3277 = vst [vmem:[%s2357 + $0x1cb0] sm:$0xff] %v3276
                  %v3278 = vld [vmem:[%s2356 + $0x7300] sm:$0xff]
                  %3279 = vst [vmem:[%s2357 + $0x1cc0] sm:$0xff] %v3278
                  %v3280 = vld [vmem:[%s2356 + $0x7340] sm:$0xff]
                  %3281 = vst [vmem:[%s2357 + $0x1cd0] sm:$0xff] %v3280
                  %v3282 = vld [vmem:[%s2356 + $0x7380] sm:$0xff]
                  %3283 = vst [vmem:[%s2357 + $0x1ce0] sm:$0xff] %v3282
                  %v3284 = vld [vmem:[%s2356 + $0x73c0] sm:$0xff]
                  %3285 = vst [vmem:[%s2357 + $0x1cf0] sm:$0xff] %v3284
                  %v3286 = vld [vmem:[%s2356 + $0x7400] sm:$0xff]
                  %3287 = vst [vmem:[%s2357 + $0x1d00] sm:$0xff] %v3286
                  %v3288 = vld [vmem:[%s2356 + $0x7440] sm:$0xff]
                  %3289 = vst [vmem:[%s2357 + $0x1d10] sm:$0xff] %v3288
                  %v3290 = vld [vmem:[%s2356 + $0x7480] sm:$0xff]
                  %3291 = vst [vmem:[%s2357 + $0x1d20] sm:$0xff] %v3290
                  %v3292 = vld [vmem:[%s2356 + $0x74c0] sm:$0xff]
                  %3293 = vst [vmem:[%s2357 + $0x1d30] sm:$0xff] %v3292
                  %v3294 = vld [vmem:[%s2356 + $0x7500] sm:$0xff]
                  %3295 = vst [vmem:[%s2357 + $0x1d40] sm:$0xff] %v3294
                  %v3296 = vld [vmem:[%s2356 + $0x7540] sm:$0xff]
                  %3297 = vst [vmem:[%s2357 + $0x1d50] sm:$0xff] %v3296
                  %v3298 = vld [vmem:[%s2356 + $0x7580] sm:$0xff]
                  %3299 = vst [vmem:[%s2357 + $0x1d60] sm:$0xff] %v3298
                  %v3300 = vld [vmem:[%s2356 + $0x75c0] sm:$0xff]
                  %3301 = vst [vmem:[%s2357 + $0x1d70] sm:$0xff] %v3300
                  %v3302 = vld [vmem:[%s2356 + $0x7600] sm:$0xff]
                  %3303 = vst [vmem:[%s2357 + $0x1d80] sm:$0xff] %v3302
                  %v3304 = vld [vmem:[%s2356 + $0x7640] sm:$0xff]
                  %3305 = vst [vmem:[%s2357 + $0x1d90] sm:$0xff] %v3304
                  %v3306 = vld [vmem:[%s2356 + $0x7680] sm:$0xff]
                  %3307 = vst [vmem:[%s2357 + $0x1da0] sm:$0xff] %v3306
                  %v3308 = vld [vmem:[%s2356 + $0x76c0] sm:$0xff]
                  %3309 = vst [vmem:[%s2357 + $0x1db0] sm:$0xff] %v3308
                  %v3310 = vld [vmem:[%s2356 + $0x7700] sm:$0xff]
                  %3311 = vst [vmem:[%s2357 + $0x1dc0] sm:$0xff] %v3310
                  %v3312 = vld [vmem:[%s2356 + $0x7740] sm:$0xff]
                  %3313 = vst [vmem:[%s2357 + $0x1dd0] sm:$0xff] %v3312
                  %v3314 = vld [vmem:[%s2356 + $0x7780] sm:$0xff]
                  %3315 = vst [vmem:[%s2357 + $0x1de0] sm:$0xff] %v3314
                  %v3316 = vld [vmem:[%s2356 + $0x77c0] sm:$0xff]
                  %3317 = vst [vmem:[%s2357 + $0x1df0] sm:$0xff] %v3316
                  %v3318 = vld [vmem:[%s2356 + $0x7800] sm:$0xff]
                  %3319 = vst [vmem:[%s2357 + $0x1e00] sm:$0xff] %v3318
                  %v3320 = vld [vmem:[%s2356 + $0x7840] sm:$0xff]
                  %3321 = vst [vmem:[%s2357 + $0x1e10] sm:$0xff] %v3320
                  %v3322 = vld [vmem:[%s2356 + $0x7880] sm:$0xff]
                  %3323 = vst [vmem:[%s2357 + $0x1e20] sm:$0xff] %v3322
                  %v3324 = vld [vmem:[%s2356 + $0x78c0] sm:$0xff]
                  %3325 = vst [vmem:[%s2357 + $0x1e30] sm:$0xff] %v3324
                  %v3326 = vld [vmem:[%s2356 + $0x7900] sm:$0xff]
                  %3327 = vst [vmem:[%s2357 + $0x1e40] sm:$0xff] %v3326
                  %v3328 = vld [vmem:[%s2356 + $0x7940] sm:$0xff]
                  %3329 = vst [vmem:[%s2357 + $0x1e50] sm:$0xff] %v3328
                  %v3330 = vld [vmem:[%s2356 + $0x7980] sm:$0xff]
                  %3331 = vst [vmem:[%s2357 + $0x1e60] sm:$0xff] %v3330
                  %v3332 = vld [vmem:[%s2356 + $0x79c0] sm:$0xff]
                  %3333 = vst [vmem:[%s2357 + $0x1e70] sm:$0xff] %v3332
                  %v3334 = vld [vmem:[%s2356 + $0x7a00] sm:$0xff]
                  %3335 = vst [vmem:[%s2357 + $0x1e80] sm:$0xff] %v3334
                  %v3336 = vld [vmem:[%s2356 + $0x7a40] sm:$0xff]
                  %3337 = vst [vmem:[%s2357 + $0x1e90] sm:$0xff] %v3336
                  %v3338 = vld [vmem:[%s2356 + $0x7a80] sm:$0xff]
                  %3339 = vst [vmem:[%s2357 + $0x1ea0] sm:$0xff] %v3338
                  %v3340 = vld [vmem:[%s2356 + $0x7ac0] sm:$0xff]
                  %3341 = vst [vmem:[%s2357 + $0x1eb0] sm:$0xff] %v3340
                  %v3342 = vld [vmem:[%s2356 + $0x7b00] sm:$0xff]
                  %3343 = vst [vmem:[%s2357 + $0x1ec0] sm:$0xff] %v3342
                  %v3344 = vld [vmem:[%s2356 + $0x7b40] sm:$0xff]
                  %3345 = vst [vmem:[%s2357 + $0x1ed0] sm:$0xff] %v3344
                  %v3346 = vld [vmem:[%s2356 + $0x7b80] sm:$0xff]
                  %3347 = vst [vmem:[%s2357 + $0x1ee0] sm:$0xff] %v3346
                  %v3348 = vld [vmem:[%s2356 + $0x7bc0] sm:$0xff]
                  %3349 = vst [vmem:[%s2357 + $0x1ef0] sm:$0xff] %v3348
                  %v3350 = vld [vmem:[%s2356 + $0x7c00] sm:$0xff]
                  %3351 = vst [vmem:[%s2357 + $0x1f00] sm:$0xff] %v3350
                  %v3352 = vld [vmem:[%s2356 + $0x7c40] sm:$0xff]
                  %3353 = vst [vmem:[%s2357 + $0x1f10] sm:$0xff] %v3352
                  %v3354 = vld [vmem:[%s2356 + $0x7c80] sm:$0xff]
                  %3355 = vst [vmem:[%s2357 + $0x1f20] sm:$0xff] %v3354
                  %v3356 = vld [vmem:[%s2356 + $0x7cc0] sm:$0xff]
                  %3357 = vst [vmem:[%s2357 + $0x1f30] sm:$0xff] %v3356
                  %v3358 = vld [vmem:[%s2356 + $0x7d00] sm:$0xff]
                  %3359 = vst [vmem:[%s2357 + $0x1f40] sm:$0xff] %v3358
                  %v3360 = vld [vmem:[%s2356 + $0x7d40] sm:$0xff]
                  %3361 = vst [vmem:[%s2357 + $0x1f50] sm:$0xff] %v3360
                  %v3362 = vld [vmem:[%s2356 + $0x7d80] sm:$0xff]
                  %3363 = vst [vmem:[%s2357 + $0x1f60] sm:$0xff] %v3362
                  %v3364 = vld [vmem:[%s2356 + $0x7dc0] sm:$0xff]
                  %3365 = vst [vmem:[%s2357 + $0x1f70] sm:$0xff] %v3364
                  %v3366 = vld [vmem:[%s2356 + $0x7e00] sm:$0xff]
                  %3367 = vst [vmem:[%s2357 + $0x1f80] sm:$0xff] %v3366
                  %v3368 = vld [vmem:[%s2356 + $0x7e40] sm:$0xff]
                  %3369 = vst [vmem:[%s2357 + $0x1f90] sm:$0xff] %v3368
                  %v3370 = vld [vmem:[%s2356 + $0x7e80] sm:$0xff]
                  %3371 = vst [vmem:[%s2357 + $0x1fa0] sm:$0xff] %v3370
                  %v3372 = vld [vmem:[%s2356 + $0x7ec0] sm:$0xff]
                  %3373 = vst [vmem:[%s2357 + $0x1fb0] sm:$0xff] %v3372
                  %v3374 = vld [vmem:[%s2356 + $0x7f00] sm:$0xff]
                  %3375 = vst [vmem:[%s2357 + $0x1fc0] sm:$0xff] %v3374
                  %v3376 = vld [vmem:[%s2356 + $0x7f40] sm:$0xff]
                  %3377 = vst [vmem:[%s2357 + $0x1fd0] sm:$0xff] %v3376
                  %v3378 = vld [vmem:[%s2356 + $0x7f80] sm:$0xff]
                  %3379 = vst [vmem:[%s2357 + $0x1fe0] sm:$0xff] %v3378
                  %v3380 = vld [vmem:[%s2356 + $0x7fc0] sm:$0xff]
                  %3381 = vst [vmem:[%s2357 + $0x1ff0] sm:$0xff] %v3380
                  %s3382 = sadd.s32 1, %s2355
                  %p3383 = scmp.ge.s32.totalorder %s3382, 1
                  %s3384 = scalar_select %p3383, 0, %s3382
                  %s3385 = sadd.s32 1, %s2354
                  %s3386 = scalar_select %p3383, %s3385, %s2354
                  %p3387 = scmp.ge.s32.totalorder %s3386, 2
                  %s3388 = scalar_select %p3387, 0, %s3386
                  %s3389 = smul.u32 %s3388, 8
                  %s3390 = smul.u32 %s3384, 8
                  %s3391 = sadd.s32 %s3389, %s3390
                  %s3392 = smul.u32 %s3388, 8
                  %s3393 = smul.u32 %s3384, 8
                  %s3394 = sadd.s32 %s3392, %s3393
                  %s3395 = scalar_lea.vmem %s241, %s3391
                  %s3396 = scalar_lea.vmem %s236, %s3394 [#allocation2]
                $region67: #{tpu_custom_call.1} parent=61 // loop_footer
                  %s2353 = sadd.s32 1, %s2349
                $region68: #{tpu_custom_call.1} parent=61 // loop_footer_branch
                  %2348 = sbr.rel target = $region64
                $region69: #{tpu_custom_call.1} parent=61 // loop_exit
                  _
                loop: start=0, step=1, limit=2
                $region70: #{tpu_custom_call.1} parent=61 // loop_pre_header
                  _
                $region71: #{tpu_custom_call.1} parent=61 // loop_header
                  %s3399 = sphi 0, %s3403
                  %p3400 = scmp.ge.s32.totalorder %s3399, 2
                  %s3404 = sphi 0, %s4433
                  %s3405 = sphi %s2344, %s4436
                  %s3406 = sphi %s2345, %s4437
                $region72: #{tpu_custom_call.1} parent=61 // loop_header_branch
                  %3402 = sbr.rel (%p3400) target = $region76
                $region73: #{tpu_custom_call.1} parent=61 // loop_body
                  %v3407 = vld [vmem:[%s3405] sm:$0x0]
                  %3408 = vst [vmem:[%s3406] sm:$0x0] %v3407
                  %v3409 = vld [vmem:[%s3405 + $0x40] sm:$0x0]
                  %3410 = vst [vmem:[%s3406 + $0x10] sm:$0x0] %v3409
                  %v3411 = vld [vmem:[%s3405 + $0x80] sm:$0x0]
                  %3412 = vst [vmem:[%s3406 + $0x20] sm:$0x0] %v3411
                  %v3413 = vld [vmem:[%s3405 + $0xc0] sm:$0x0]
                  %3414 = vst [vmem:[%s3406 + $0x30] sm:$0x0] %v3413
                  %v3415 = vld [vmem:[%s3405 + $0x100] sm:$0x0]
                  %3416 = vst [vmem:[%s3406 + $0x40] sm:$0x0] %v3415
                  %v3417 = vld [vmem:[%s3405 + $0x140] sm:$0x0]
                  %3418 = vst [vmem:[%s3406 + $0x50] sm:$0x0] %v3417
                  %v3419 = vld [vmem:[%s3405 + $0x180] sm:$0x0]
                  %3420 = vst [vmem:[%s3406 + $0x60] sm:$0x0] %v3419
                  %v3421 = vld [vmem:[%s3405 + $0x1c0] sm:$0x0]
                  %3422 = vst [vmem:[%s3406 + $0x70] sm:$0x0] %v3421
                  %v3423 = vld [vmem:[%s3405 + $0x200] sm:$0x0]
                  %3424 = vst [vmem:[%s3406 + $0x80] sm:$0x0] %v3423
                  %v3425 = vld [vmem:[%s3405 + $0x240] sm:$0x0]
                  %3426 = vst [vmem:[%s3406 + $0x90] sm:$0x0] %v3425
                  %v3427 = vld [vmem:[%s3405 + $0x280] sm:$0x0]
                  %3428 = vst [vmem:[%s3406 + $0xa0] sm:$0x0] %v3427
                  %v3429 = vld [vmem:[%s3405 + $0x2c0] sm:$0x0]
                  %3430 = vst [vmem:[%s3406 + $0xb0] sm:$0x0] %v3429
                  %v3431 = vld [vmem:[%s3405 + $0x300] sm:$0x0]
                  %3432 = vst [vmem:[%s3406 + $0xc0] sm:$0x0] %v3431
                  %v3433 = vld [vmem:[%s3405 + $0x340] sm:$0x0]
                  %3434 = vst [vmem:[%s3406 + $0xd0] sm:$0x0] %v3433
                  %v3435 = vld [vmem:[%s3405 + $0x380] sm:$0x0]
                  %3436 = vst [vmem:[%s3406 + $0xe0] sm:$0x0] %v3435
                  %v3437 = vld [vmem:[%s3405 + $0x3c0] sm:$0x0]
                  %3438 = vst [vmem:[%s3406 + $0xf0] sm:$0x0] %v3437
                  %v3439 = vld [vmem:[%s3405 + $0x400] sm:$0x0]
                  %3440 = vst [vmem:[%s3406 + $0x100] sm:$0x0] %v3439
                  %v3441 = vld [vmem:[%s3405 + $0x440] sm:$0x0]
                  %3442 = vst [vmem:[%s3406 + $0x110] sm:$0x0] %v3441
                  %v3443 = vld [vmem:[%s3405 + $0x480] sm:$0x0]
                  %3444 = vst [vmem:[%s3406 + $0x120] sm:$0x0] %v3443
                  %v3445 = vld [vmem:[%s3405 + $0x4c0] sm:$0x0]
                  %3446 = vst [vmem:[%s3406 + $0x130] sm:$0x0] %v3445
                  %v3447 = vld [vmem:[%s3405 + $0x500] sm:$0x0]
                  %3448 = vst [vmem:[%s3406 + $0x140] sm:$0x0] %v3447
                  %v3449 = vld [vmem:[%s3405 + $0x540] sm:$0x0]
                  %3450 = vst [vmem:[%s3406 + $0x150] sm:$0x0] %v3449
                  %v3451 = vld [vmem:[%s3405 + $0x580] sm:$0x0]
                  %3452 = vst [vmem:[%s3406 + $0x160] sm:$0x0] %v3451
                  %v3453 = vld [vmem:[%s3405 + $0x5c0] sm:$0x0]
                  %3454 = vst [vmem:[%s3406 + $0x170] sm:$0x0] %v3453
                  %v3455 = vld [vmem:[%s3405 + $0x600] sm:$0x0]
                  %3456 = vst [vmem:[%s3406 + $0x180] sm:$0x0] %v3455
                  %v3457 = vld [vmem:[%s3405 + $0x640] sm:$0x0]
                  %3458 = vst [vmem:[%s3406 + $0x190] sm:$0x0] %v3457
                  %v3459 = vld [vmem:[%s3405 + $0x680] sm:$0x0]
                  %3460 = vst [vmem:[%s3406 + $0x1a0] sm:$0x0] %v3459
                  %v3461 = vld [vmem:[%s3405 + $0x6c0] sm:$0x0]
                  %3462 = vst [vmem:[%s3406 + $0x1b0] sm:$0x0] %v3461
                  %v3463 = vld [vmem:[%s3405 + $0x700] sm:$0x0]
                  %3464 = vst [vmem:[%s3406 + $0x1c0] sm:$0x0] %v3463
                  %v3465 = vld [vmem:[%s3405 + $0x740] sm:$0x0]
                  %3466 = vst [vmem:[%s3406 + $0x1d0] sm:$0x0] %v3465
                  %v3467 = vld [vmem:[%s3405 + $0x780] sm:$0x0]
                  %3468 = vst [vmem:[%s3406 + $0x1e0] sm:$0x0] %v3467
                  %v3469 = vld [vmem:[%s3405 + $0x7c0] sm:$0x0]
                  %3470 = vst [vmem:[%s3406 + $0x1f0] sm:$0x0] %v3469
                  %v3471 = vld [vmem:[%s3405 + $0x800] sm:$0x0]
                  %3472 = vst [vmem:[%s3406 + $0x200] sm:$0x0] %v3471
                  %v3473 = vld [vmem:[%s3405 + $0x840] sm:$0x0]
                  %3474 = vst [vmem:[%s3406 + $0x210] sm:$0x0] %v3473
                  %v3475 = vld [vmem:[%s3405 + $0x880] sm:$0x0]
                  %3476 = vst [vmem:[%s3406 + $0x220] sm:$0x0] %v3475
                  %v3477 = vld [vmem:[%s3405 + $0x8c0] sm:$0x0]
                  %3478 = vst [vmem:[%s3406 + $0x230] sm:$0x0] %v3477
                  %v3479 = vld [vmem:[%s3405 + $0x900] sm:$0x0]
                  %3480 = vst [vmem:[%s3406 + $0x240] sm:$0x0] %v3479
                  %v3481 = vld [vmem:[%s3405 + $0x940] sm:$0x0]
                  %3482 = vst [vmem:[%s3406 + $0x250] sm:$0x0] %v3481
                  %v3483 = vld [vmem:[%s3405 + $0x980] sm:$0x0]
                  %3484 = vst [vmem:[%s3406 + $0x260] sm:$0x0] %v3483
                  %v3485 = vld [vmem:[%s3405 + $0x9c0] sm:$0x0]
                  %3486 = vst [vmem:[%s3406 + $0x270] sm:$0x0] %v3485
                  %v3487 = vld [vmem:[%s3405 + $0xa00] sm:$0x0]
                  %3488 = vst [vmem:[%s3406 + $0x280] sm:$0x0] %v3487
                  %v3489 = vld [vmem:[%s3405 + $0xa40] sm:$0x0]
                  %3490 = vst [vmem:[%s3406 + $0x290] sm:$0x0] %v3489
                  %v3491 = vld [vmem:[%s3405 + $0xa80] sm:$0x0]
                  %3492 = vst [vmem:[%s3406 + $0x2a0] sm:$0x0] %v3491
                  %v3493 = vld [vmem:[%s3405 + $0xac0] sm:$0x0]
                  %3494 = vst [vmem:[%s3406 + $0x2b0] sm:$0x0] %v3493
                  %v3495 = vld [vmem:[%s3405 + $0xb00] sm:$0x0]
                  %3496 = vst [vmem:[%s3406 + $0x2c0] sm:$0x0] %v3495
                  %v3497 = vld [vmem:[%s3405 + $0xb40] sm:$0x0]
                  %3498 = vst [vmem:[%s3406 + $0x2d0] sm:$0x0] %v3497
                  %v3499 = vld [vmem:[%s3405 + $0xb80] sm:$0x0]
                  %3500 = vst [vmem:[%s3406 + $0x2e0] sm:$0x0] %v3499
                  %v3501 = vld [vmem:[%s3405 + $0xbc0] sm:$0x0]
                  %3502 = vst [vmem:[%s3406 + $0x2f0] sm:$0x0] %v3501
                  %v3503 = vld [vmem:[%s3405 + $0xc00] sm:$0x0]
                  %3504 = vst [vmem:[%s3406 + $0x300] sm:$0x0] %v3503
                  %v3505 = vld [vmem:[%s3405 + $0xc40] sm:$0x0]
                  %3506 = vst [vmem:[%s3406 + $0x310] sm:$0x0] %v3505
                  %v3507 = vld [vmem:[%s3405 + $0xc80] sm:$0x0]
                  %3508 = vst [vmem:[%s3406 + $0x320] sm:$0x0] %v3507
                  %v3509 = vld [vmem:[%s3405 + $0xcc0] sm:$0x0]
                  %3510 = vst [vmem:[%s3406 + $0x330] sm:$0x0] %v3509
                  %v3511 = vld [vmem:[%s3405 + $0xd00] sm:$0x0]
                  %3512 = vst [vmem:[%s3406 + $0x340] sm:$0x0] %v3511
                  %v3513 = vld [vmem:[%s3405 + $0xd40] sm:$0x0]
                  %3514 = vst [vmem:[%s3406 + $0x350] sm:$0x0] %v3513
                  %v3515 = vld [vmem:[%s3405 + $0xd80] sm:$0x0]
                  %3516 = vst [vmem:[%s3406 + $0x360] sm:$0x0] %v3515
                  %v3517 = vld [vmem:[%s3405 + $0xdc0] sm:$0x0]
                  %3518 = vst [vmem:[%s3406 + $0x370] sm:$0x0] %v3517
                  %v3519 = vld [vmem:[%s3405 + $0xe00] sm:$0x0]
                  %3520 = vst [vmem:[%s3406 + $0x380] sm:$0x0] %v3519
                  %v3521 = vld [vmem:[%s3405 + $0xe40] sm:$0x0]
                  %3522 = vst [vmem:[%s3406 + $0x390] sm:$0x0] %v3521
                  %v3523 = vld [vmem:[%s3405 + $0xe80] sm:$0x0]
                  %3524 = vst [vmem:[%s3406 + $0x3a0] sm:$0x0] %v3523
                  %v3525 = vld [vmem:[%s3405 + $0xec0] sm:$0x0]
                  %3526 = vst [vmem:[%s3406 + $0x3b0] sm:$0x0] %v3525
                  %v3527 = vld [vmem:[%s3405 + $0xf00] sm:$0x0]
                  %3528 = vst [vmem:[%s3406 + $0x3c0] sm:$0x0] %v3527
                  %v3529 = vld [vmem:[%s3405 + $0xf40] sm:$0x0]
                  %3530 = vst [vmem:[%s3406 + $0x3d0] sm:$0x0] %v3529
                  %v3531 = vld [vmem:[%s3405 + $0xf80] sm:$0x0]
                  %3532 = vst [vmem:[%s3406 + $0x3e0] sm:$0x0] %v3531
                  %v3533 = vld [vmem:[%s3405 + $0xfc0] sm:$0x0]
                  %3534 = vst [vmem:[%s3406 + $0x3f0] sm:$0x0] %v3533
                  %v3535 = vld [vmem:[%s3405 + $0x1000] sm:$0x0]
                  %3536 = vst [vmem:[%s3406 + $0x400] sm:$0x0] %v3535
                  %v3537 = vld [vmem:[%s3405 + $0x1040] sm:$0x0]
                  %3538 = vst [vmem:[%s3406 + $0x410] sm:$0x0] %v3537
                  %v3539 = vld [vmem:[%s3405 + $0x1080] sm:$0x0]
                  %3540 = vst [vmem:[%s3406 + $0x420] sm:$0x0] %v3539
                  %v3541 = vld [vmem:[%s3405 + $0x10c0] sm:$0x0]
                  %3542 = vst [vmem:[%s3406 + $0x430] sm:$0x0] %v3541
                  %v3543 = vld [vmem:[%s3405 + $0x1100] sm:$0x0]
                  %3544 = vst [vmem:[%s3406 + $0x440] sm:$0x0] %v3543
                  %v3545 = vld [vmem:[%s3405 + $0x1140] sm:$0x0]
                  %3546 = vst [vmem:[%s3406 + $0x450] sm:$0x0] %v3545
                  %v3547 = vld [vmem:[%s3405 + $0x1180] sm:$0x0]
                  %3548 = vst [vmem:[%s3406 + $0x460] sm:$0x0] %v3547
                  %v3549 = vld [vmem:[%s3405 + $0x11c0] sm:$0x0]
                  %3550 = vst [vmem:[%s3406 + $0x470] sm:$0x0] %v3549
                  %v3551 = vld [vmem:[%s3405 + $0x1200] sm:$0x0]
                  %3552 = vst [vmem:[%s3406 + $0x480] sm:$0x0] %v3551
                  %v3553 = vld [vmem:[%s3405 + $0x1240] sm:$0x0]
                  %3554 = vst [vmem:[%s3406 + $0x490] sm:$0x0] %v3553
                  %v3555 = vld [vmem:[%s3405 + $0x1280] sm:$0x0]
                  %3556 = vst [vmem:[%s3406 + $0x4a0] sm:$0x0] %v3555
                  %v3557 = vld [vmem:[%s3405 + $0x12c0] sm:$0x0]
                  %3558 = vst [vmem:[%s3406 + $0x4b0] sm:$0x0] %v3557
                  %v3559 = vld [vmem:[%s3405 + $0x1300] sm:$0x0]
                  %3560 = vst [vmem:[%s3406 + $0x4c0] sm:$0x0] %v3559
                  %v3561 = vld [vmem:[%s3405 + $0x1340] sm:$0x0]
                  %3562 = vst [vmem:[%s3406 + $0x4d0] sm:$0x0] %v3561
                  %v3563 = vld [vmem:[%s3405 + $0x1380] sm:$0x0]
                  %3564 = vst [vmem:[%s3406 + $0x4e0] sm:$0x0] %v3563
                  %v3565 = vld [vmem:[%s3405 + $0x13c0] sm:$0x0]
                  %3566 = vst [vmem:[%s3406 + $0x4f0] sm:$0x0] %v3565
                  %v3567 = vld [vmem:[%s3405 + $0x1400] sm:$0x0]
                  %3568 = vst [vmem:[%s3406 + $0x500] sm:$0x0] %v3567
                  %v3569 = vld [vmem:[%s3405 + $0x1440] sm:$0x0]
                  %3570 = vst [vmem:[%s3406 + $0x510] sm:$0x0] %v3569
                  %v3571 = vld [vmem:[%s3405 + $0x1480] sm:$0x0]
                  %3572 = vst [vmem:[%s3406 + $0x520] sm:$0x0] %v3571
                  %v3573 = vld [vmem:[%s3405 + $0x14c0] sm:$0x0]
                  %3574 = vst [vmem:[%s3406 + $0x530] sm:$0x0] %v3573
                  %v3575 = vld [vmem:[%s3405 + $0x1500] sm:$0x0]
                  %3576 = vst [vmem:[%s3406 + $0x540] sm:$0x0] %v3575
                  %v3577 = vld [vmem:[%s3405 + $0x1540] sm:$0x0]
                  %3578 = vst [vmem:[%s3406 + $0x550] sm:$0x0] %v3577
                  %v3579 = vld [vmem:[%s3405 + $0x1580] sm:$0x0]
                  %3580 = vst [vmem:[%s3406 + $0x560] sm:$0x0] %v3579
                  %v3581 = vld [vmem:[%s3405 + $0x15c0] sm:$0x0]
                  %3582 = vst [vmem:[%s3406 + $0x570] sm:$0x0] %v3581
                  %v3583 = vld [vmem:[%s3405 + $0x1600] sm:$0x0]
                  %3584 = vst [vmem:[%s3406 + $0x580] sm:$0x0] %v3583
                  %v3585 = vld [vmem:[%s3405 + $0x1640] sm:$0x0]
                  %3586 = vst [vmem:[%s3406 + $0x590] sm:$0x0] %v3585
                  %v3587 = vld [vmem:[%s3405 + $0x1680] sm:$0x0]
                  %3588 = vst [vmem:[%s3406 + $0x5a0] sm:$0x0] %v3587
                  %v3589 = vld [vmem:[%s3405 + $0x16c0] sm:$0x0]
                  %3590 = vst [vmem:[%s3406 + $0x5b0] sm:$0x0] %v3589
                  %v3591 = vld [vmem:[%s3405 + $0x1700] sm:$0x0]
                  %3592 = vst [vmem:[%s3406 + $0x5c0] sm:$0x0] %v3591
                  %v3593 = vld [vmem:[%s3405 + $0x1740] sm:$0x0]
                  %3594 = vst [vmem:[%s3406 + $0x5d0] sm:$0x0] %v3593
                  %v3595 = vld [vmem:[%s3405 + $0x1780] sm:$0x0]
                  %3596 = vst [vmem:[%s3406 + $0x5e0] sm:$0x0] %v3595
                  %v3597 = vld [vmem:[%s3405 + $0x17c0] sm:$0x0]
                  %3598 = vst [vmem:[%s3406 + $0x5f0] sm:$0x0] %v3597
                  %v3599 = vld [vmem:[%s3405 + $0x1800] sm:$0x0]
                  %3600 = vst [vmem:[%s3406 + $0x600] sm:$0x0] %v3599
                  %v3601 = vld [vmem:[%s3405 + $0x1840] sm:$0x0]
                  %3602 = vst [vmem:[%s3406 + $0x610] sm:$0x0] %v3601
                  %v3603 = vld [vmem:[%s3405 + $0x1880] sm:$0x0]
                  %3604 = vst [vmem:[%s3406 + $0x620] sm:$0x0] %v3603
                  %v3605 = vld [vmem:[%s3405 + $0x18c0] sm:$0x0]
                  %3606 = vst [vmem:[%s3406 + $0x630] sm:$0x0] %v3605
                  %v3607 = vld [vmem:[%s3405 + $0x1900] sm:$0x0]
                  %3608 = vst [vmem:[%s3406 + $0x640] sm:$0x0] %v3607
                  %v3609 = vld [vmem:[%s3405 + $0x1940] sm:$0x0]
                  %3610 = vst [vmem:[%s3406 + $0x650] sm:$0x0] %v3609
                  %v3611 = vld [vmem:[%s3405 + $0x1980] sm:$0x0]
                  %3612 = vst [vmem:[%s3406 + $0x660] sm:$0x0] %v3611
                  %v3613 = vld [vmem:[%s3405 + $0x19c0] sm:$0x0]
                  %3614 = vst [vmem:[%s3406 + $0x670] sm:$0x0] %v3613
                  %v3615 = vld [vmem:[%s3405 + $0x1a00] sm:$0x0]
                  %3616 = vst [vmem:[%s3406 + $0x680] sm:$0x0] %v3615
                  %v3617 = vld [vmem:[%s3405 + $0x1a40] sm:$0x0]
                  %3618 = vst [vmem:[%s3406 + $0x690] sm:$0x0] %v3617
                  %v3619 = vld [vmem:[%s3405 + $0x1a80] sm:$0x0]
                  %3620 = vst [vmem:[%s3406 + $0x6a0] sm:$0x0] %v3619
                  %v3621 = vld [vmem:[%s3405 + $0x1ac0] sm:$0x0]
                  %3622 = vst [vmem:[%s3406 + $0x6b0] sm:$0x0] %v3621
                  %v3623 = vld [vmem:[%s3405 + $0x1b00] sm:$0x0]
                  %3624 = vst [vmem:[%s3406 + $0x6c0] sm:$0x0] %v3623
                  %v3625 = vld [vmem:[%s3405 + $0x1b40] sm:$0x0]
                  %3626 = vst [vmem:[%s3406 + $0x6d0] sm:$0x0] %v3625
                  %v3627 = vld [vmem:[%s3405 + $0x1b80] sm:$0x0]
                  %3628 = vst [vmem:[%s3406 + $0x6e0] sm:$0x0] %v3627
                  %v3629 = vld [vmem:[%s3405 + $0x1bc0] sm:$0x0]
                  %3630 = vst [vmem:[%s3406 + $0x6f0] sm:$0x0] %v3629
                  %v3631 = vld [vmem:[%s3405 + $0x1c00] sm:$0x0]
                  %3632 = vst [vmem:[%s3406 + $0x700] sm:$0x0] %v3631
                  %v3633 = vld [vmem:[%s3405 + $0x1c40] sm:$0x0]
                  %3634 = vst [vmem:[%s3406 + $0x710] sm:$0x0] %v3633
                  %v3635 = vld [vmem:[%s3405 + $0x1c80] sm:$0x0]
                  %3636 = vst [vmem:[%s3406 + $0x720] sm:$0x0] %v3635
                  %v3637 = vld [vmem:[%s3405 + $0x1cc0] sm:$0x0]
                  %3638 = vst [vmem:[%s3406 + $0x730] sm:$0x0] %v3637
                  %v3639 = vld [vmem:[%s3405 + $0x1d00] sm:$0x0]
                  %3640 = vst [vmem:[%s3406 + $0x740] sm:$0x0] %v3639
                  %v3641 = vld [vmem:[%s3405 + $0x1d40] sm:$0x0]
                  %3642 = vst [vmem:[%s3406 + $0x750] sm:$0x0] %v3641
                  %v3643 = vld [vmem:[%s3405 + $0x1d80] sm:$0x0]
                  %3644 = vst [vmem:[%s3406 + $0x760] sm:$0x0] %v3643
                  %v3645 = vld [vmem:[%s3405 + $0x1dc0] sm:$0x0]
                  %3646 = vst [vmem:[%s3406 + $0x770] sm:$0x0] %v3645
                  %v3647 = vld [vmem:[%s3405 + $0x1e00] sm:$0x0]
                  %3648 = vst [vmem:[%s3406 + $0x780] sm:$0x0] %v3647
                  %v3649 = vld [vmem:[%s3405 + $0x1e40] sm:$0x0]
                  %3650 = vst [vmem:[%s3406 + $0x790] sm:$0x0] %v3649
                  %v3651 = vld [vmem:[%s3405 + $0x1e80] sm:$0x0]
                  %3652 = vst [vmem:[%s3406 + $0x7a0] sm:$0x0] %v3651
                  %v3653 = vld [vmem:[%s3405 + $0x1ec0] sm:$0x0]
                  %3654 = vst [vmem:[%s3406 + $0x7b0] sm:$0x0] %v3653
                  %v3655 = vld [vmem:[%s3405 + $0x1f00] sm:$0x0]
                  %3656 = vst [vmem:[%s3406 + $0x7c0] sm:$0x0] %v3655
                  %v3657 = vld [vmem:[%s3405 + $0x1f40] sm:$0x0]
                  %3658 = vst [vmem:[%s3406 + $0x7d0] sm:$0x0] %v3657
                  %v3659 = vld [vmem:[%s3405 + $0x1f80] sm:$0x0]
                  %3660 = vst [vmem:[%s3406 + $0x7e0] sm:$0x0] %v3659
                  %v3661 = vld [vmem:[%s3405 + $0x1fc0] sm:$0x0]
                  %3662 = vst [vmem:[%s3406 + $0x7f0] sm:$0x0] %v3661
                  %v3663 = vld [vmem:[%s3405 + $0x2000] sm:$0x0]
                  %3664 = vst [vmem:[%s3406 + $0x800] sm:$0x0] %v3663
                  %v3665 = vld [vmem:[%s3405 + $0x2040] sm:$0x0]
                  %3666 = vst [vmem:[%s3406 + $0x810] sm:$0x0] %v3665
                  %v3667 = vld [vmem:[%s3405 + $0x2080] sm:$0x0]
                  %3668 = vst [vmem:[%s3406 + $0x820] sm:$0x0] %v3667
                  %v3669 = vld [vmem:[%s3405 + $0x20c0] sm:$0x0]
                  %3670 = vst [vmem:[%s3406 + $0x830] sm:$0x0] %v3669
                  %v3671 = vld [vmem:[%s3405 + $0x2100] sm:$0x0]
                  %3672 = vst [vmem:[%s3406 + $0x840] sm:$0x0] %v3671
                  %v3673 = vld [vmem:[%s3405 + $0x2140] sm:$0x0]
                  %3674 = vst [vmem:[%s3406 + $0x850] sm:$0x0] %v3673
                  %v3675 = vld [vmem:[%s3405 + $0x2180] sm:$0x0]
                  %3676 = vst [vmem:[%s3406 + $0x860] sm:$0x0] %v3675
                  %v3677 = vld [vmem:[%s3405 + $0x21c0] sm:$0x0]
                  %3678 = vst [vmem:[%s3406 + $0x870] sm:$0x0] %v3677
                  %v3679 = vld [vmem:[%s3405 + $0x2200] sm:$0x0]
                  %3680 = vst [vmem:[%s3406 + $0x880] sm:$0x0] %v3679
                  %v3681 = vld [vmem:[%s3405 + $0x2240] sm:$0x0]
                  %3682 = vst [vmem:[%s3406 + $0x890] sm:$0x0] %v3681
                  %v3683 = vld [vmem:[%s3405 + $0x2280] sm:$0x0]
                  %3684 = vst [vmem:[%s3406 + $0x8a0] sm:$0x0] %v3683
                  %v3685 = vld [vmem:[%s3405 + $0x22c0] sm:$0x0]
                  %3686 = vst [vmem:[%s3406 + $0x8b0] sm:$0x0] %v3685
                  %v3687 = vld [vmem:[%s3405 + $0x2300] sm:$0x0]
                  %3688 = vst [vmem:[%s3406 + $0x8c0] sm:$0x0] %v3687
                  %v3689 = vld [vmem:[%s3405 + $0x2340] sm:$0x0]
                  %3690 = vst [vmem:[%s3406 + $0x8d0] sm:$0x0] %v3689
                  %v3691 = vld [vmem:[%s3405 + $0x2380] sm:$0x0]
                  %3692 = vst [vmem:[%s3406 + $0x8e0] sm:$0x0] %v3691
                  %v3693 = vld [vmem:[%s3405 + $0x23c0] sm:$0x0]
                  %3694 = vst [vmem:[%s3406 + $0x8f0] sm:$0x0] %v3693
                  %v3695 = vld [vmem:[%s3405 + $0x2400] sm:$0x0]
                  %3696 = vst [vmem:[%s3406 + $0x900] sm:$0x0] %v3695
                  %v3697 = vld [vmem:[%s3405 + $0x2440] sm:$0x0]
                  %3698 = vst [vmem:[%s3406 + $0x910] sm:$0x0] %v3697
                  %v3699 = vld [vmem:[%s3405 + $0x2480] sm:$0x0]
                  %3700 = vst [vmem:[%s3406 + $0x920] sm:$0x0] %v3699
                  %v3701 = vld [vmem:[%s3405 + $0x24c0] sm:$0x0]
                  %3702 = vst [vmem:[%s3406 + $0x930] sm:$0x0] %v3701
                  %v3703 = vld [vmem:[%s3405 + $0x2500] sm:$0x0]
                  %3704 = vst [vmem:[%s3406 + $0x940] sm:$0x0] %v3703
                  %v3705 = vld [vmem:[%s3405 + $0x2540] sm:$0x0]
                  %3706 = vst [vmem:[%s3406 + $0x950] sm:$0x0] %v3705
                  %v3707 = vld [vmem:[%s3405 + $0x2580] sm:$0x0]
                  %3708 = vst [vmem:[%s3406 + $0x960] sm:$0x0] %v3707
                  %v3709 = vld [vmem:[%s3405 + $0x25c0] sm:$0x0]
                  %3710 = vst [vmem:[%s3406 + $0x970] sm:$0x0] %v3709
                  %v3711 = vld [vmem:[%s3405 + $0x2600] sm:$0x0]
                  %3712 = vst [vmem:[%s3406 + $0x980] sm:$0x0] %v3711
                  %v3713 = vld [vmem:[%s3405 + $0x2640] sm:$0x0]
                  %3714 = vst [vmem:[%s3406 + $0x990] sm:$0x0] %v3713
                  %v3715 = vld [vmem:[%s3405 + $0x2680] sm:$0x0]
                  %3716 = vst [vmem:[%s3406 + $0x9a0] sm:$0x0] %v3715
                  %v3717 = vld [vmem:[%s3405 + $0x26c0] sm:$0x0]
                  %3718 = vst [vmem:[%s3406 + $0x9b0] sm:$0x0] %v3717
                  %v3719 = vld [vmem:[%s3405 + $0x2700] sm:$0x0]
                  %3720 = vst [vmem:[%s3406 + $0x9c0] sm:$0x0] %v3719
                  %v3721 = vld [vmem:[%s3405 + $0x2740] sm:$0x0]
                  %3722 = vst [vmem:[%s3406 + $0x9d0] sm:$0x0] %v3721
                  %v3723 = vld [vmem:[%s3405 + $0x2780] sm:$0x0]
                  %3724 = vst [vmem:[%s3406 + $0x9e0] sm:$0x0] %v3723
                  %v3725 = vld [vmem:[%s3405 + $0x27c0] sm:$0x0]
                  %3726 = vst [vmem:[%s3406 + $0x9f0] sm:$0x0] %v3725
                  %v3727 = vld [vmem:[%s3405 + $0x2800] sm:$0x0]
                  %3728 = vst [vmem:[%s3406 + $0xa00] sm:$0x0] %v3727
                  %v3729 = vld [vmem:[%s3405 + $0x2840] sm:$0x0]
                  %3730 = vst [vmem:[%s3406 + $0xa10] sm:$0x0] %v3729
                  %v3731 = vld [vmem:[%s3405 + $0x2880] sm:$0x0]
                  %3732 = vst [vmem:[%s3406 + $0xa20] sm:$0x0] %v3731
                  %v3733 = vld [vmem:[%s3405 + $0x28c0] sm:$0x0]
                  %3734 = vst [vmem:[%s3406 + $0xa30] sm:$0x0] %v3733
                  %v3735 = vld [vmem:[%s3405 + $0x2900] sm:$0x0]
                  %3736 = vst [vmem:[%s3406 + $0xa40] sm:$0x0] %v3735
                  %v3737 = vld [vmem:[%s3405 + $0x2940] sm:$0x0]
                  %3738 = vst [vmem:[%s3406 + $0xa50] sm:$0x0] %v3737
                  %v3739 = vld [vmem:[%s3405 + $0x2980] sm:$0x0]
                  %3740 = vst [vmem:[%s3406 + $0xa60] sm:$0x0] %v3739
                  %v3741 = vld [vmem:[%s3405 + $0x29c0] sm:$0x0]
                  %3742 = vst [vmem:[%s3406 + $0xa70] sm:$0x0] %v3741
                  %v3743 = vld [vmem:[%s3405 + $0x2a00] sm:$0x0]
                  %3744 = vst [vmem:[%s3406 + $0xa80] sm:$0x0] %v3743
                  %v3745 = vld [vmem:[%s3405 + $0x2a40] sm:$0x0]
                  %3746 = vst [vmem:[%s3406 + $0xa90] sm:$0x0] %v3745
                  %v3747 = vld [vmem:[%s3405 + $0x2a80] sm:$0x0]
                  %3748 = vst [vmem:[%s3406 + $0xaa0] sm:$0x0] %v3747
                  %v3749 = vld [vmem:[%s3405 + $0x2ac0] sm:$0x0]
                  %3750 = vst [vmem:[%s3406 + $0xab0] sm:$0x0] %v3749
                  %v3751 = vld [vmem:[%s3405 + $0x2b00] sm:$0x0]
                  %3752 = vst [vmem:[%s3406 + $0xac0] sm:$0x0] %v3751
                  %v3753 = vld [vmem:[%s3405 + $0x2b40] sm:$0x0]
                  %3754 = vst [vmem:[%s3406 + $0xad0] sm:$0x0] %v3753
                  %v3755 = vld [vmem:[%s3405 + $0x2b80] sm:$0x0]
                  %3756 = vst [vmem:[%s3406 + $0xae0] sm:$0x0] %v3755
                  %v3757 = vld [vmem:[%s3405 + $0x2bc0] sm:$0x0]
                  %3758 = vst [vmem:[%s3406 + $0xaf0] sm:$0x0] %v3757
                  %v3759 = vld [vmem:[%s3405 + $0x2c00] sm:$0x0]
                  %3760 = vst [vmem:[%s3406 + $0xb00] sm:$0x0] %v3759
                  %v3761 = vld [vmem:[%s3405 + $0x2c40] sm:$0x0]
                  %3762 = vst [vmem:[%s3406 + $0xb10] sm:$0x0] %v3761
                  %v3763 = vld [vmem:[%s3405 + $0x2c80] sm:$0x0]
                  %3764 = vst [vmem:[%s3406 + $0xb20] sm:$0x0] %v3763
                  %v3765 = vld [vmem:[%s3405 + $0x2cc0] sm:$0x0]
                  %3766 = vst [vmem:[%s3406 + $0xb30] sm:$0x0] %v3765
                  %v3767 = vld [vmem:[%s3405 + $0x2d00] sm:$0x0]
                  %3768 = vst [vmem:[%s3406 + $0xb40] sm:$0x0] %v3767
                  %v3769 = vld [vmem:[%s3405 + $0x2d40] sm:$0x0]
                  %3770 = vst [vmem:[%s3406 + $0xb50] sm:$0x0] %v3769
                  %v3771 = vld [vmem:[%s3405 + $0x2d80] sm:$0x0]
                  %3772 = vst [vmem:[%s3406 + $0xb60] sm:$0x0] %v3771
                  %v3773 = vld [vmem:[%s3405 + $0x2dc0] sm:$0x0]
                  %3774 = vst [vmem:[%s3406 + $0xb70] sm:$0x0] %v3773
                  %v3775 = vld [vmem:[%s3405 + $0x2e00] sm:$0x0]
                  %3776 = vst [vmem:[%s3406 + $0xb80] sm:$0x0] %v3775
                  %v3777 = vld [vmem:[%s3405 + $0x2e40] sm:$0x0]
                  %3778 = vst [vmem:[%s3406 + $0xb90] sm:$0x0] %v3777
                  %v3779 = vld [vmem:[%s3405 + $0x2e80] sm:$0x0]
                  %3780 = vst [vmem:[%s3406 + $0xba0] sm:$0x0] %v3779
                  %v3781 = vld [vmem:[%s3405 + $0x2ec0] sm:$0x0]
                  %3782 = vst [vmem:[%s3406 + $0xbb0] sm:$0x0] %v3781
                  %v3783 = vld [vmem:[%s3405 + $0x2f00] sm:$0x0]
                  %3784 = vst [vmem:[%s3406 + $0xbc0] sm:$0x0] %v3783
                  %v3785 = vld [vmem:[%s3405 + $0x2f40] sm:$0x0]
                  %3786 = vst [vmem:[%s3406 + $0xbd0] sm:$0x0] %v3785
                  %v3787 = vld [vmem:[%s3405 + $0x2f80] sm:$0x0]
                  %3788 = vst [vmem:[%s3406 + $0xbe0] sm:$0x0] %v3787
                  %v3789 = vld [vmem:[%s3405 + $0x2fc0] sm:$0x0]
                  %3790 = vst [vmem:[%s3406 + $0xbf0] sm:$0x0] %v3789
                  %v3791 = vld [vmem:[%s3405 + $0x3000] sm:$0x0]
                  %3792 = vst [vmem:[%s3406 + $0xc00] sm:$0x0] %v3791
                  %v3793 = vld [vmem:[%s3405 + $0x3040] sm:$0x0]
                  %3794 = vst [vmem:[%s3406 + $0xc10] sm:$0x0] %v3793
                  %v3795 = vld [vmem:[%s3405 + $0x3080] sm:$0x0]
                  %3796 = vst [vmem:[%s3406 + $0xc20] sm:$0x0] %v3795
                  %v3797 = vld [vmem:[%s3405 + $0x30c0] sm:$0x0]
                  %3798 = vst [vmem:[%s3406 + $0xc30] sm:$0x0] %v3797
                  %v3799 = vld [vmem:[%s3405 + $0x3100] sm:$0x0]
                  %3800 = vst [vmem:[%s3406 + $0xc40] sm:$0x0] %v3799
                  %v3801 = vld [vmem:[%s3405 + $0x3140] sm:$0x0]
                  %3802 = vst [vmem:[%s3406 + $0xc50] sm:$0x0] %v3801
                  %v3803 = vld [vmem:[%s3405 + $0x3180] sm:$0x0]
                  %3804 = vst [vmem:[%s3406 + $0xc60] sm:$0x0] %v3803
                  %v3805 = vld [vmem:[%s3405 + $0x31c0] sm:$0x0]
                  %3806 = vst [vmem:[%s3406 + $0xc70] sm:$0x0] %v3805
                  %v3807 = vld [vmem:[%s3405 + $0x3200] sm:$0x0]
                  %3808 = vst [vmem:[%s3406 + $0xc80] sm:$0x0] %v3807
                  %v3809 = vld [vmem:[%s3405 + $0x3240] sm:$0x0]
                  %3810 = vst [vmem:[%s3406 + $0xc90] sm:$0x0] %v3809
                  %v3811 = vld [vmem:[%s3405 + $0x3280] sm:$0x0]
                  %3812 = vst [vmem:[%s3406 + $0xca0] sm:$0x0] %v3811
                  %v3813 = vld [vmem:[%s3405 + $0x32c0] sm:$0x0]
                  %3814 = vst [vmem:[%s3406 + $0xcb0] sm:$0x0] %v3813
                  %v3815 = vld [vmem:[%s3405 + $0x3300] sm:$0x0]
                  %3816 = vst [vmem:[%s3406 + $0xcc0] sm:$0x0] %v3815
                  %v3817 = vld [vmem:[%s3405 + $0x3340] sm:$0x0]
                  %3818 = vst [vmem:[%s3406 + $0xcd0] sm:$0x0] %v3817
                  %v3819 = vld [vmem:[%s3405 + $0x3380] sm:$0x0]
                  %3820 = vst [vmem:[%s3406 + $0xce0] sm:$0x0] %v3819
                  %v3821 = vld [vmem:[%s3405 + $0x33c0] sm:$0x0]
                  %3822 = vst [vmem:[%s3406 + $0xcf0] sm:$0x0] %v3821
                  %v3823 = vld [vmem:[%s3405 + $0x3400] sm:$0x0]
                  %3824 = vst [vmem:[%s3406 + $0xd00] sm:$0x0] %v3823
                  %v3825 = vld [vmem:[%s3405 + $0x3440] sm:$0x0]
                  %3826 = vst [vmem:[%s3406 + $0xd10] sm:$0x0] %v3825
                  %v3827 = vld [vmem:[%s3405 + $0x3480] sm:$0x0]
                  %3828 = vst [vmem:[%s3406 + $0xd20] sm:$0x0] %v3827
                  %v3829 = vld [vmem:[%s3405 + $0x34c0] sm:$0x0]
                  %3830 = vst [vmem:[%s3406 + $0xd30] sm:$0x0] %v3829
                  %v3831 = vld [vmem:[%s3405 + $0x3500] sm:$0x0]
                  %3832 = vst [vmem:[%s3406 + $0xd40] sm:$0x0] %v3831
                  %v3833 = vld [vmem:[%s3405 + $0x3540] sm:$0x0]
                  %3834 = vst [vmem:[%s3406 + $0xd50] sm:$0x0] %v3833
                  %v3835 = vld [vmem:[%s3405 + $0x3580] sm:$0x0]
                  %3836 = vst [vmem:[%s3406 + $0xd60] sm:$0x0] %v3835
                  %v3837 = vld [vmem:[%s3405 + $0x35c0] sm:$0x0]
                  %3838 = vst [vmem:[%s3406 + $0xd70] sm:$0x0] %v3837
                  %v3839 = vld [vmem:[%s3405 + $0x3600] sm:$0x0]
                  %3840 = vst [vmem:[%s3406 + $0xd80] sm:$0x0] %v3839
                  %v3841 = vld [vmem:[%s3405 + $0x3640] sm:$0x0]
                  %3842 = vst [vmem:[%s3406 + $0xd90] sm:$0x0] %v3841
                  %v3843 = vld [vmem:[%s3405 + $0x3680] sm:$0x0]
                  %3844 = vst [vmem:[%s3406 + $0xda0] sm:$0x0] %v3843
                  %v3845 = vld [vmem:[%s3405 + $0x36c0] sm:$0x0]
                  %3846 = vst [vmem:[%s3406 + $0xdb0] sm:$0x0] %v3845
                  %v3847 = vld [vmem:[%s3405 + $0x3700] sm:$0x0]
                  %3848 = vst [vmem:[%s3406 + $0xdc0] sm:$0x0] %v3847
                  %v3849 = vld [vmem:[%s3405 + $0x3740] sm:$0x0]
                  %3850 = vst [vmem:[%s3406 + $0xdd0] sm:$0x0] %v3849
                  %v3851 = vld [vmem:[%s3405 + $0x3780] sm:$0x0]
                  %3852 = vst [vmem:[%s3406 + $0xde0] sm:$0x0] %v3851
                  %v3853 = vld [vmem:[%s3405 + $0x37c0] sm:$0x0]
                  %3854 = vst [vmem:[%s3406 + $0xdf0] sm:$0x0] %v3853
                  %v3855 = vld [vmem:[%s3405 + $0x3800] sm:$0x0]
                  %3856 = vst [vmem:[%s3406 + $0xe00] sm:$0x0] %v3855
                  %v3857 = vld [vmem:[%s3405 + $0x3840] sm:$0x0]
                  %3858 = vst [vmem:[%s3406 + $0xe10] sm:$0x0] %v3857
                  %v3859 = vld [vmem:[%s3405 + $0x3880] sm:$0x0]
                  %3860 = vst [vmem:[%s3406 + $0xe20] sm:$0x0] %v3859
                  %v3861 = vld [vmem:[%s3405 + $0x38c0] sm:$0x0]
                  %3862 = vst [vmem:[%s3406 + $0xe30] sm:$0x0] %v3861
                  %v3863 = vld [vmem:[%s3405 + $0x3900] sm:$0x0]
                  %3864 = vst [vmem:[%s3406 + $0xe40] sm:$0x0] %v3863
                  %v3865 = vld [vmem:[%s3405 + $0x3940] sm:$0x0]
                  %3866 = vst [vmem:[%s3406 + $0xe50] sm:$0x0] %v3865
                  %v3867 = vld [vmem:[%s3405 + $0x3980] sm:$0x0]
                  %3868 = vst [vmem:[%s3406 + $0xe60] sm:$0x0] %v3867
                  %v3869 = vld [vmem:[%s3405 + $0x39c0] sm:$0x0]
                  %3870 = vst [vmem:[%s3406 + $0xe70] sm:$0x0] %v3869
                  %v3871 = vld [vmem:[%s3405 + $0x3a00] sm:$0x0]
                  %3872 = vst [vmem:[%s3406 + $0xe80] sm:$0x0] %v3871
                  %v3873 = vld [vmem:[%s3405 + $0x3a40] sm:$0x0]
                  %3874 = vst [vmem:[%s3406 + $0xe90] sm:$0x0] %v3873
                  %v3875 = vld [vmem:[%s3405 + $0x3a80] sm:$0x0]
                  %3876 = vst [vmem:[%s3406 + $0xea0] sm:$0x0] %v3875
                  %v3877 = vld [vmem:[%s3405 + $0x3ac0] sm:$0x0]
                  %3878 = vst [vmem:[%s3406 + $0xeb0] sm:$0x0] %v3877
                  %v3879 = vld [vmem:[%s3405 + $0x3b00] sm:$0x0]
                  %3880 = vst [vmem:[%s3406 + $0xec0] sm:$0x0] %v3879
                  %v3881 = vld [vmem:[%s3405 + $0x3b40] sm:$0x0]
                  %3882 = vst [vmem:[%s3406 + $0xed0] sm:$0x0] %v3881
                  %v3883 = vld [vmem:[%s3405 + $0x3b80] sm:$0x0]
                  %3884 = vst [vmem:[%s3406 + $0xee0] sm:$0x0] %v3883
                  %v3885 = vld [vmem:[%s3405 + $0x3bc0] sm:$0x0]
                  %3886 = vst [vmem:[%s3406 + $0xef0] sm:$0x0] %v3885
                  %v3887 = vld [vmem:[%s3405 + $0x3c00] sm:$0x0]
                  %3888 = vst [vmem:[%s3406 + $0xf00] sm:$0x0] %v3887
                  %v3889 = vld [vmem:[%s3405 + $0x3c40] sm:$0x0]
                  %3890 = vst [vmem:[%s3406 + $0xf10] sm:$0x0] %v3889
                  %v3891 = vld [vmem:[%s3405 + $0x3c80] sm:$0x0]
                  %3892 = vst [vmem:[%s3406 + $0xf20] sm:$0x0] %v3891
                  %v3893 = vld [vmem:[%s3405 + $0x3cc0] sm:$0x0]
                  %3894 = vst [vmem:[%s3406 + $0xf30] sm:$0x0] %v3893
                  %v3895 = vld [vmem:[%s3405 + $0x3d00] sm:$0x0]
                  %3896 = vst [vmem:[%s3406 + $0xf40] sm:$0x0] %v3895
                  %v3897 = vld [vmem:[%s3405 + $0x3d40] sm:$0x0]
                  %3898 = vst [vmem:[%s3406 + $0xf50] sm:$0x0] %v3897
                  %v3899 = vld [vmem:[%s3405 + $0x3d80] sm:$0x0]
                  %3900 = vst [vmem:[%s3406 + $0xf60] sm:$0x0] %v3899
                  %v3901 = vld [vmem:[%s3405 + $0x3dc0] sm:$0x0]
                  %3902 = vst [vmem:[%s3406 + $0xf70] sm:$0x0] %v3901
                  %v3903 = vld [vmem:[%s3405 + $0x3e00] sm:$0x0]
                  %3904 = vst [vmem:[%s3406 + $0xf80] sm:$0x0] %v3903
                  %v3905 = vld [vmem:[%s3405 + $0x3e40] sm:$0x0]
                  %3906 = vst [vmem:[%s3406 + $0xf90] sm:$0x0] %v3905
                  %v3907 = vld [vmem:[%s3405 + $0x3e80] sm:$0x0]
                  %3908 = vst [vmem:[%s3406 + $0xfa0] sm:$0x0] %v3907
                  %v3909 = vld [vmem:[%s3405 + $0x3ec0] sm:$0x0]
                  %3910 = vst [vmem:[%s3406 + $0xfb0] sm:$0x0] %v3909
                  %v3911 = vld [vmem:[%s3405 + $0x3f00] sm:$0x0]
                  %3912 = vst [vmem:[%s3406 + $0xfc0] sm:$0x0] %v3911
                  %v3913 = vld [vmem:[%s3405 + $0x3f40] sm:$0x0]
                  %3914 = vst [vmem:[%s3406 + $0xfd0] sm:$0x0] %v3913
                  %v3915 = vld [vmem:[%s3405 + $0x3f80] sm:$0x0]
                  %3916 = vst [vmem:[%s3406 + $0xfe0] sm:$0x0] %v3915
                  %v3917 = vld [vmem:[%s3405 + $0x3fc0] sm:$0x0]
                  %3918 = vst [vmem:[%s3406 + $0xff0] sm:$0x0] %v3917
                  %v3919 = vld [vmem:[%s3405 + $0x4000] sm:$0x0]
                  %3920 = vst [vmem:[%s3406 + $0x1000] sm:$0x0] %v3919
                  %v3921 = vld [vmem:[%s3405 + $0x4040] sm:$0x0]
                  %3922 = vst [vmem:[%s3406 + $0x1010] sm:$0x0] %v3921
                  %v3923 = vld [vmem:[%s3405 + $0x4080] sm:$0x0]
                  %3924 = vst [vmem:[%s3406 + $0x1020] sm:$0x0] %v3923
                  %v3925 = vld [vmem:[%s3405 + $0x40c0] sm:$0x0]
                  %3926 = vst [vmem:[%s3406 + $0x1030] sm:$0x0] %v3925
                  %v3927 = vld [vmem:[%s3405 + $0x4100] sm:$0x0]
                  %3928 = vst [vmem:[%s3406 + $0x1040] sm:$0x0] %v3927
                  %v3929 = vld [vmem:[%s3405 + $0x4140] sm:$0x0]
                  %3930 = vst [vmem:[%s3406 + $0x1050] sm:$0x0] %v3929
                  %v3931 = vld [vmem:[%s3405 + $0x4180] sm:$0x0]
                  %3932 = vst [vmem:[%s3406 + $0x1060] sm:$0x0] %v3931
                  %v3933 = vld [vmem:[%s3405 + $0x41c0] sm:$0x0]
                  %3934 = vst [vmem:[%s3406 + $0x1070] sm:$0x0] %v3933
                  %v3935 = vld [vmem:[%s3405 + $0x4200] sm:$0x0]
                  %3936 = vst [vmem:[%s3406 + $0x1080] sm:$0x0] %v3935
                  %v3937 = vld [vmem:[%s3405 + $0x4240] sm:$0x0]
                  %3938 = vst [vmem:[%s3406 + $0x1090] sm:$0x0] %v3937
                  %v3939 = vld [vmem:[%s3405 + $0x4280] sm:$0x0]
                  %3940 = vst [vmem:[%s3406 + $0x10a0] sm:$0x0] %v3939
                  %v3941 = vld [vmem:[%s3405 + $0x42c0] sm:$0x0]
                  %3942 = vst [vmem:[%s3406 + $0x10b0] sm:$0x0] %v3941
                  %v3943 = vld [vmem:[%s3405 + $0x4300] sm:$0x0]
                  %3944 = vst [vmem:[%s3406 + $0x10c0] sm:$0x0] %v3943
                  %v3945 = vld [vmem:[%s3405 + $0x4340] sm:$0x0]
                  %3946 = vst [vmem:[%s3406 + $0x10d0] sm:$0x0] %v3945
                  %v3947 = vld [vmem:[%s3405 + $0x4380] sm:$0x0]
                  %3948 = vst [vmem:[%s3406 + $0x10e0] sm:$0x0] %v3947
                  %v3949 = vld [vmem:[%s3405 + $0x43c0] sm:$0x0]
                  %3950 = vst [vmem:[%s3406 + $0x10f0] sm:$0x0] %v3949
                  %v3951 = vld [vmem:[%s3405 + $0x4400] sm:$0x0]
                  %3952 = vst [vmem:[%s3406 + $0x1100] sm:$0x0] %v3951
                  %v3953 = vld [vmem:[%s3405 + $0x4440] sm:$0x0]
                  %3954 = vst [vmem:[%s3406 + $0x1110] sm:$0x0] %v3953
                  %v3955 = vld [vmem:[%s3405 + $0x4480] sm:$0x0]
                  %3956 = vst [vmem:[%s3406 + $0x1120] sm:$0x0] %v3955
                  %v3957 = vld [vmem:[%s3405 + $0x44c0] sm:$0x0]
                  %3958 = vst [vmem:[%s3406 + $0x1130] sm:$0x0] %v3957
                  %v3959 = vld [vmem:[%s3405 + $0x4500] sm:$0x0]
                  %3960 = vst [vmem:[%s3406 + $0x1140] sm:$0x0] %v3959
                  %v3961 = vld [vmem:[%s3405 + $0x4540] sm:$0x0]
                  %3962 = vst [vmem:[%s3406 + $0x1150] sm:$0x0] %v3961
                  %v3963 = vld [vmem:[%s3405 + $0x4580] sm:$0x0]
                  %3964 = vst [vmem:[%s3406 + $0x1160] sm:$0x0] %v3963
                  %v3965 = vld [vmem:[%s3405 + $0x45c0] sm:$0x0]
                  %3966 = vst [vmem:[%s3406 + $0x1170] sm:$0x0] %v3965
                  %v3967 = vld [vmem:[%s3405 + $0x4600] sm:$0x0]
                  %3968 = vst [vmem:[%s3406 + $0x1180] sm:$0x0] %v3967
                  %v3969 = vld [vmem:[%s3405 + $0x4640] sm:$0x0]
                  %3970 = vst [vmem:[%s3406 + $0x1190] sm:$0x0] %v3969
                  %v3971 = vld [vmem:[%s3405 + $0x4680] sm:$0x0]
                  %3972 = vst [vmem:[%s3406 + $0x11a0] sm:$0x0] %v3971
                  %v3973 = vld [vmem:[%s3405 + $0x46c0] sm:$0x0]
                  %3974 = vst [vmem:[%s3406 + $0x11b0] sm:$0x0] %v3973
                  %v3975 = vld [vmem:[%s3405 + $0x4700] sm:$0x0]
                  %3976 = vst [vmem:[%s3406 + $0x11c0] sm:$0x0] %v3975
                  %v3977 = vld [vmem:[%s3405 + $0x4740] sm:$0x0]
                  %3978 = vst [vmem:[%s3406 + $0x11d0] sm:$0x0] %v3977
                  %v3979 = vld [vmem:[%s3405 + $0x4780] sm:$0x0]
                  %3980 = vst [vmem:[%s3406 + $0x11e0] sm:$0x0] %v3979
                  %v3981 = vld [vmem:[%s3405 + $0x47c0] sm:$0x0]
                  %3982 = vst [vmem:[%s3406 + $0x11f0] sm:$0x0] %v3981
                  %v3983 = vld [vmem:[%s3405 + $0x4800] sm:$0x0]
                  %3984 = vst [vmem:[%s3406 + $0x1200] sm:$0x0] %v3983
                  %v3985 = vld [vmem:[%s3405 + $0x4840] sm:$0x0]
                  %3986 = vst [vmem:[%s3406 + $0x1210] sm:$0x0] %v3985
                  %v3987 = vld [vmem:[%s3405 + $0x4880] sm:$0x0]
                  %3988 = vst [vmem:[%s3406 + $0x1220] sm:$0x0] %v3987
                  %v3989 = vld [vmem:[%s3405 + $0x48c0] sm:$0x0]
                  %3990 = vst [vmem:[%s3406 + $0x1230] sm:$0x0] %v3989
                  %v3991 = vld [vmem:[%s3405 + $0x4900] sm:$0x0]
                  %3992 = vst [vmem:[%s3406 + $0x1240] sm:$0x0] %v3991
                  %v3993 = vld [vmem:[%s3405 + $0x4940] sm:$0x0]
                  %3994 = vst [vmem:[%s3406 + $0x1250] sm:$0x0] %v3993
                  %v3995 = vld [vmem:[%s3405 + $0x4980] sm:$0x0]
                  %3996 = vst [vmem:[%s3406 + $0x1260] sm:$0x0] %v3995
                  %v3997 = vld [vmem:[%s3405 + $0x49c0] sm:$0x0]
                  %3998 = vst [vmem:[%s3406 + $0x1270] sm:$0x0] %v3997
                  %v3999 = vld [vmem:[%s3405 + $0x4a00] sm:$0x0]
                  %4000 = vst [vmem:[%s3406 + $0x1280] sm:$0x0] %v3999
                  %v4001 = vld [vmem:[%s3405 + $0x4a40] sm:$0x0]
                  %4002 = vst [vmem:[%s3406 + $0x1290] sm:$0x0] %v4001
                  %v4003 = vld [vmem:[%s3405 + $0x4a80] sm:$0x0]
                  %4004 = vst [vmem:[%s3406 + $0x12a0] sm:$0x0] %v4003
                  %v4005 = vld [vmem:[%s3405 + $0x4ac0] sm:$0x0]
                  %4006 = vst [vmem:[%s3406 + $0x12b0] sm:$0x0] %v4005
                  %v4007 = vld [vmem:[%s3405 + $0x4b00] sm:$0x0]
                  %4008 = vst [vmem:[%s3406 + $0x12c0] sm:$0x0] %v4007
                  %v4009 = vld [vmem:[%s3405 + $0x4b40] sm:$0x0]
                  %4010 = vst [vmem:[%s3406 + $0x12d0] sm:$0x0] %v4009
                  %v4011 = vld [vmem:[%s3405 + $0x4b80] sm:$0x0]
                  %4012 = vst [vmem:[%s3406 + $0x12e0] sm:$0x0] %v4011
                  %v4013 = vld [vmem:[%s3405 + $0x4bc0] sm:$0x0]
                  %4014 = vst [vmem:[%s3406 + $0x12f0] sm:$0x0] %v4013
                  %v4015 = vld [vmem:[%s3405 + $0x4c00] sm:$0x0]
                  %4016 = vst [vmem:[%s3406 + $0x1300] sm:$0x0] %v4015
                  %v4017 = vld [vmem:[%s3405 + $0x4c40] sm:$0x0]
                  %4018 = vst [vmem:[%s3406 + $0x1310] sm:$0x0] %v4017
                  %v4019 = vld [vmem:[%s3405 + $0x4c80] sm:$0x0]
                  %4020 = vst [vmem:[%s3406 + $0x1320] sm:$0x0] %v4019
                  %v4021 = vld [vmem:[%s3405 + $0x4cc0] sm:$0x0]
                  %4022 = vst [vmem:[%s3406 + $0x1330] sm:$0x0] %v4021
                  %v4023 = vld [vmem:[%s3405 + $0x4d00] sm:$0x0]
                  %4024 = vst [vmem:[%s3406 + $0x1340] sm:$0x0] %v4023
                  %v4025 = vld [vmem:[%s3405 + $0x4d40] sm:$0x0]
                  %4026 = vst [vmem:[%s3406 + $0x1350] sm:$0x0] %v4025
                  %v4027 = vld [vmem:[%s3405 + $0x4d80] sm:$0x0]
                  %4028 = vst [vmem:[%s3406 + $0x1360] sm:$0x0] %v4027
                  %v4029 = vld [vmem:[%s3405 + $0x4dc0] sm:$0x0]
                  %4030 = vst [vmem:[%s3406 + $0x1370] sm:$0x0] %v4029
                  %v4031 = vld [vmem:[%s3405 + $0x4e00] sm:$0x0]
                  %4032 = vst [vmem:[%s3406 + $0x1380] sm:$0x0] %v4031
                  %v4033 = vld [vmem:[%s3405 + $0x4e40] sm:$0x0]
                  %4034 = vst [vmem:[%s3406 + $0x1390] sm:$0x0] %v4033
                  %v4035 = vld [vmem:[%s3405 + $0x4e80] sm:$0x0]
                  %4036 = vst [vmem:[%s3406 + $0x13a0] sm:$0x0] %v4035
                  %v4037 = vld [vmem:[%s3405 + $0x4ec0] sm:$0x0]
                  %4038 = vst [vmem:[%s3406 + $0x13b0] sm:$0x0] %v4037
                  %v4039 = vld [vmem:[%s3405 + $0x4f00] sm:$0x0]
                  %4040 = vst [vmem:[%s3406 + $0x13c0] sm:$0x0] %v4039
                  %v4041 = vld [vmem:[%s3405 + $0x4f40] sm:$0x0]
                  %4042 = vst [vmem:[%s3406 + $0x13d0] sm:$0x0] %v4041
                  %v4043 = vld [vmem:[%s3405 + $0x4f80] sm:$0x0]
                  %4044 = vst [vmem:[%s3406 + $0x13e0] sm:$0x0] %v4043
                  %v4045 = vld [vmem:[%s3405 + $0x4fc0] sm:$0x0]
                  %4046 = vst [vmem:[%s3406 + $0x13f0] sm:$0x0] %v4045
                  %v4047 = vld [vmem:[%s3405 + $0x5000] sm:$0x0]
                  %4048 = vst [vmem:[%s3406 + $0x1400] sm:$0x0] %v4047
                  %v4049 = vld [vmem:[%s3405 + $0x5040] sm:$0x0]
                  %4050 = vst [vmem:[%s3406 + $0x1410] sm:$0x0] %v4049
                  %v4051 = vld [vmem:[%s3405 + $0x5080] sm:$0x0]
                  %4052 = vst [vmem:[%s3406 + $0x1420] sm:$0x0] %v4051
                  %v4053 = vld [vmem:[%s3405 + $0x50c0] sm:$0x0]
                  %4054 = vst [vmem:[%s3406 + $0x1430] sm:$0x0] %v4053
                  %v4055 = vld [vmem:[%s3405 + $0x5100] sm:$0x0]
                  %4056 = vst [vmem:[%s3406 + $0x1440] sm:$0x0] %v4055
                  %v4057 = vld [vmem:[%s3405 + $0x5140] sm:$0x0]
                  %4058 = vst [vmem:[%s3406 + $0x1450] sm:$0x0] %v4057
                  %v4059 = vld [vmem:[%s3405 + $0x5180] sm:$0x0]
                  %4060 = vst [vmem:[%s3406 + $0x1460] sm:$0x0] %v4059
                  %v4061 = vld [vmem:[%s3405 + $0x51c0] sm:$0x0]
                  %4062 = vst [vmem:[%s3406 + $0x1470] sm:$0x0] %v4061
                  %v4063 = vld [vmem:[%s3405 + $0x5200] sm:$0x0]
                  %4064 = vst [vmem:[%s3406 + $0x1480] sm:$0x0] %v4063
                  %v4065 = vld [vmem:[%s3405 + $0x5240] sm:$0x0]
                  %4066 = vst [vmem:[%s3406 + $0x1490] sm:$0x0] %v4065
                  %v4067 = vld [vmem:[%s3405 + $0x5280] sm:$0x0]
                  %4068 = vst [vmem:[%s3406 + $0x14a0] sm:$0x0] %v4067
                  %v4069 = vld [vmem:[%s3405 + $0x52c0] sm:$0x0]
                  %4070 = vst [vmem:[%s3406 + $0x14b0] sm:$0x0] %v4069
                  %v4071 = vld [vmem:[%s3405 + $0x5300] sm:$0x0]
                  %4072 = vst [vmem:[%s3406 + $0x14c0] sm:$0x0] %v4071
                  %v4073 = vld [vmem:[%s3405 + $0x5340] sm:$0x0]
                  %4074 = vst [vmem:[%s3406 + $0x14d0] sm:$0x0] %v4073
                  %v4075 = vld [vmem:[%s3405 + $0x5380] sm:$0x0]
                  %4076 = vst [vmem:[%s3406 + $0x14e0] sm:$0x0] %v4075
                  %v4077 = vld [vmem:[%s3405 + $0x53c0] sm:$0x0]
                  %4078 = vst [vmem:[%s3406 + $0x14f0] sm:$0x0] %v4077
                  %v4079 = vld [vmem:[%s3405 + $0x5400] sm:$0x0]
                  %4080 = vst [vmem:[%s3406 + $0x1500] sm:$0x0] %v4079
                  %v4081 = vld [vmem:[%s3405 + $0x5440] sm:$0x0]
                  %4082 = vst [vmem:[%s3406 + $0x1510] sm:$0x0] %v4081
                  %v4083 = vld [vmem:[%s3405 + $0x5480] sm:$0x0]
                  %4084 = vst [vmem:[%s3406 + $0x1520] sm:$0x0] %v4083
                  %v4085 = vld [vmem:[%s3405 + $0x54c0] sm:$0x0]
                  %4086 = vst [vmem:[%s3406 + $0x1530] sm:$0x0] %v4085
                  %v4087 = vld [vmem:[%s3405 + $0x5500] sm:$0x0]
                  %4088 = vst [vmem:[%s3406 + $0x1540] sm:$0x0] %v4087
                  %v4089 = vld [vmem:[%s3405 + $0x5540] sm:$0x0]
                  %4090 = vst [vmem:[%s3406 + $0x1550] sm:$0x0] %v4089
                  %v4091 = vld [vmem:[%s3405 + $0x5580] sm:$0x0]
                  %4092 = vst [vmem:[%s3406 + $0x1560] sm:$0x0] %v4091
                  %v4093 = vld [vmem:[%s3405 + $0x55c0] sm:$0x0]
                  %4094 = vst [vmem:[%s3406 + $0x1570] sm:$0x0] %v4093
                  %v4095 = vld [vmem:[%s3405 + $0x5600] sm:$0x0]
                  %4096 = vst [vmem:[%s3406 + $0x1580] sm:$0x0] %v4095
                  %v4097 = vld [vmem:[%s3405 + $0x5640] sm:$0x0]
                  %4098 = vst [vmem:[%s3406 + $0x1590] sm:$0x0] %v4097
                  %v4099 = vld [vmem:[%s3405 + $0x5680] sm:$0x0]
                  %4100 = vst [vmem:[%s3406 + $0x15a0] sm:$0x0] %v4099
                  %v4101 = vld [vmem:[%s3405 + $0x56c0] sm:$0x0]
                  %4102 = vst [vmem:[%s3406 + $0x15b0] sm:$0x0] %v4101
                  %v4103 = vld [vmem:[%s3405 + $0x5700] sm:$0x0]
                  %4104 = vst [vmem:[%s3406 + $0x15c0] sm:$0x0] %v4103
                  %v4105 = vld [vmem:[%s3405 + $0x5740] sm:$0x0]
                  %4106 = vst [vmem:[%s3406 + $0x15d0] sm:$0x0] %v4105
                  %v4107 = vld [vmem:[%s3405 + $0x5780] sm:$0x0]
                  %4108 = vst [vmem:[%s3406 + $0x15e0] sm:$0x0] %v4107
                  %v4109 = vld [vmem:[%s3405 + $0x57c0] sm:$0x0]
                  %4110 = vst [vmem:[%s3406 + $0x15f0] sm:$0x0] %v4109
                  %v4111 = vld [vmem:[%s3405 + $0x5800] sm:$0x0]
                  %4112 = vst [vmem:[%s3406 + $0x1600] sm:$0x0] %v4111
                  %v4113 = vld [vmem:[%s3405 + $0x5840] sm:$0x0]
                  %4114 = vst [vmem:[%s3406 + $0x1610] sm:$0x0] %v4113
                  %v4115 = vld [vmem:[%s3405 + $0x5880] sm:$0x0]
                  %4116 = vst [vmem:[%s3406 + $0x1620] sm:$0x0] %v4115
                  %v4117 = vld [vmem:[%s3405 + $0x58c0] sm:$0x0]
                  %4118 = vst [vmem:[%s3406 + $0x1630] sm:$0x0] %v4117
                  %v4119 = vld [vmem:[%s3405 + $0x5900] sm:$0x0]
                  %4120 = vst [vmem:[%s3406 + $0x1640] sm:$0x0] %v4119
                  %v4121 = vld [vmem:[%s3405 + $0x5940] sm:$0x0]
                  %4122 = vst [vmem:[%s3406 + $0x1650] sm:$0x0] %v4121
                  %v4123 = vld [vmem:[%s3405 + $0x5980] sm:$0x0]
                  %4124 = vst [vmem:[%s3406 + $0x1660] sm:$0x0] %v4123
                  %v4125 = vld [vmem:[%s3405 + $0x59c0] sm:$0x0]
                  %4126 = vst [vmem:[%s3406 + $0x1670] sm:$0x0] %v4125
                  %v4127 = vld [vmem:[%s3405 + $0x5a00] sm:$0x0]
                  %4128 = vst [vmem:[%s3406 + $0x1680] sm:$0x0] %v4127
                  %v4129 = vld [vmem:[%s3405 + $0x5a40] sm:$0x0]
                  %4130 = vst [vmem:[%s3406 + $0x1690] sm:$0x0] %v4129
                  %v4131 = vld [vmem:[%s3405 + $0x5a80] sm:$0x0]
                  %4132 = vst [vmem:[%s3406 + $0x16a0] sm:$0x0] %v4131
                  %v4133 = vld [vmem:[%s3405 + $0x5ac0] sm:$0x0]
                  %4134 = vst [vmem:[%s3406 + $0x16b0] sm:$0x0] %v4133
                  %v4135 = vld [vmem:[%s3405 + $0x5b00] sm:$0x0]
                  %4136 = vst [vmem:[%s3406 + $0x16c0] sm:$0x0] %v4135
                  %v4137 = vld [vmem:[%s3405 + $0x5b40] sm:$0x0]
                  %4138 = vst [vmem:[%s3406 + $0x16d0] sm:$0x0] %v4137
                  %v4139 = vld [vmem:[%s3405 + $0x5b80] sm:$0x0]
                  %4140 = vst [vmem:[%s3406 + $0x16e0] sm:$0x0] %v4139
                  %v4141 = vld [vmem:[%s3405 + $0x5bc0] sm:$0x0]
                  %4142 = vst [vmem:[%s3406 + $0x16f0] sm:$0x0] %v4141
                  %v4143 = vld [vmem:[%s3405 + $0x5c00] sm:$0x0]
                  %4144 = vst [vmem:[%s3406 + $0x1700] sm:$0x0] %v4143
                  %v4145 = vld [vmem:[%s3405 + $0x5c40] sm:$0x0]
                  %4146 = vst [vmem:[%s3406 + $0x1710] sm:$0x0] %v4145
                  %v4147 = vld [vmem:[%s3405 + $0x5c80] sm:$0x0]
                  %4148 = vst [vmem:[%s3406 + $0x1720] sm:$0x0] %v4147
                  %v4149 = vld [vmem:[%s3405 + $0x5cc0] sm:$0x0]
                  %4150 = vst [vmem:[%s3406 + $0x1730] sm:$0x0] %v4149
                  %v4151 = vld [vmem:[%s3405 + $0x5d00] sm:$0x0]
                  %4152 = vst [vmem:[%s3406 + $0x1740] sm:$0x0] %v4151
                  %v4153 = vld [vmem:[%s3405 + $0x5d40] sm:$0x0]
                  %4154 = vst [vmem:[%s3406 + $0x1750] sm:$0x0] %v4153
                  %v4155 = vld [vmem:[%s3405 + $0x5d80] sm:$0x0]
                  %4156 = vst [vmem:[%s3406 + $0x1760] sm:$0x0] %v4155
                  %v4157 = vld [vmem:[%s3405 + $0x5dc0] sm:$0x0]
                  %4158 = vst [vmem:[%s3406 + $0x1770] sm:$0x0] %v4157
                  %v4159 = vld [vmem:[%s3405 + $0x5e00] sm:$0x0]
                  %4160 = vst [vmem:[%s3406 + $0x1780] sm:$0x0] %v4159
                  %v4161 = vld [vmem:[%s3405 + $0x5e40] sm:$0x0]
                  %4162 = vst [vmem:[%s3406 + $0x1790] sm:$0x0] %v4161
                  %v4163 = vld [vmem:[%s3405 + $0x5e80] sm:$0x0]
                  %4164 = vst [vmem:[%s3406 + $0x17a0] sm:$0x0] %v4163
                  %v4165 = vld [vmem:[%s3405 + $0x5ec0] sm:$0x0]
                  %4166 = vst [vmem:[%s3406 + $0x17b0] sm:$0x0] %v4165
                  %v4167 = vld [vmem:[%s3405 + $0x5f00] sm:$0x0]
                  %4168 = vst [vmem:[%s3406 + $0x17c0] sm:$0x0] %v4167
                  %v4169 = vld [vmem:[%s3405 + $0x5f40] sm:$0x0]
                  %4170 = vst [vmem:[%s3406 + $0x17d0] sm:$0x0] %v4169
                  %v4171 = vld [vmem:[%s3405 + $0x5f80] sm:$0x0]
                  %4172 = vst [vmem:[%s3406 + $0x17e0] sm:$0x0] %v4171
                  %v4173 = vld [vmem:[%s3405 + $0x5fc0] sm:$0x0]
                  %4174 = vst [vmem:[%s3406 + $0x17f0] sm:$0x0] %v4173
                  %v4175 = vld [vmem:[%s3405 + $0x6000] sm:$0x0]
                  %4176 = vst [vmem:[%s3406 + $0x1800] sm:$0x0] %v4175
                  %v4177 = vld [vmem:[%s3405 + $0x6040] sm:$0x0]
                  %4178 = vst [vmem:[%s3406 + $0x1810] sm:$0x0] %v4177
                  %v4179 = vld [vmem:[%s3405 + $0x6080] sm:$0x0]
                  %4180 = vst [vmem:[%s3406 + $0x1820] sm:$0x0] %v4179
                  %v4181 = vld [vmem:[%s3405 + $0x60c0] sm:$0x0]
                  %4182 = vst [vmem:[%s3406 + $0x1830] sm:$0x0] %v4181
                  %v4183 = vld [vmem:[%s3405 + $0x6100] sm:$0x0]
                  %4184 = vst [vmem:[%s3406 + $0x1840] sm:$0x0] %v4183
                  %v4185 = vld [vmem:[%s3405 + $0x6140] sm:$0x0]
                  %4186 = vst [vmem:[%s3406 + $0x1850] sm:$0x0] %v4185
                  %v4187 = vld [vmem:[%s3405 + $0x6180] sm:$0x0]
                  %4188 = vst [vmem:[%s3406 + $0x1860] sm:$0x0] %v4187
                  %v4189 = vld [vmem:[%s3405 + $0x61c0] sm:$0x0]
                  %4190 = vst [vmem:[%s3406 + $0x1870] sm:$0x0] %v4189
                  %v4191 = vld [vmem:[%s3405 + $0x6200] sm:$0x0]
                  %4192 = vst [vmem:[%s3406 + $0x1880] sm:$0x0] %v4191
                  %v4193 = vld [vmem:[%s3405 + $0x6240] sm:$0x0]
                  %4194 = vst [vmem:[%s3406 + $0x1890] sm:$0x0] %v4193
                  %v4195 = vld [vmem:[%s3405 + $0x6280] sm:$0x0]
                  %4196 = vst [vmem:[%s3406 + $0x18a0] sm:$0x0] %v4195
                  %v4197 = vld [vmem:[%s3405 + $0x62c0] sm:$0x0]
                  %4198 = vst [vmem:[%s3406 + $0x18b0] sm:$0x0] %v4197
                  %v4199 = vld [vmem:[%s3405 + $0x6300] sm:$0x0]
                  %4200 = vst [vmem:[%s3406 + $0x18c0] sm:$0x0] %v4199
                  %v4201 = vld [vmem:[%s3405 + $0x6340] sm:$0x0]
                  %4202 = vst [vmem:[%s3406 + $0x18d0] sm:$0x0] %v4201
                  %v4203 = vld [vmem:[%s3405 + $0x6380] sm:$0x0]
                  %4204 = vst [vmem:[%s3406 + $0x18e0] sm:$0x0] %v4203
                  %v4205 = vld [vmem:[%s3405 + $0x63c0] sm:$0x0]
                  %4206 = vst [vmem:[%s3406 + $0x18f0] sm:$0x0] %v4205
                  %v4207 = vld [vmem:[%s3405 + $0x6400] sm:$0x0]
                  %4208 = vst [vmem:[%s3406 + $0x1900] sm:$0x0] %v4207
                  %v4209 = vld [vmem:[%s3405 + $0x6440] sm:$0x0]
                  %4210 = vst [vmem:[%s3406 + $0x1910] sm:$0x0] %v4209
                  %v4211 = vld [vmem:[%s3405 + $0x6480] sm:$0x0]
                  %4212 = vst [vmem:[%s3406 + $0x1920] sm:$0x0] %v4211
                  %v4213 = vld [vmem:[%s3405 + $0x64c0] sm:$0x0]
                  %4214 = vst [vmem:[%s3406 + $0x1930] sm:$0x0] %v4213
                  %v4215 = vld [vmem:[%s3405 + $0x6500] sm:$0x0]
                  %4216 = vst [vmem:[%s3406 + $0x1940] sm:$0x0] %v4215
                  %v4217 = vld [vmem:[%s3405 + $0x6540] sm:$0x0]
                  %4218 = vst [vmem:[%s3406 + $0x1950] sm:$0x0] %v4217
                  %v4219 = vld [vmem:[%s3405 + $0x6580] sm:$0x0]
                  %4220 = vst [vmem:[%s3406 + $0x1960] sm:$0x0] %v4219
                  %v4221 = vld [vmem:[%s3405 + $0x65c0] sm:$0x0]
                  %4222 = vst [vmem:[%s3406 + $0x1970] sm:$0x0] %v4221
                  %v4223 = vld [vmem:[%s3405 + $0x6600] sm:$0x0]
                  %4224 = vst [vmem:[%s3406 + $0x1980] sm:$0x0] %v4223
                  %v4225 = vld [vmem:[%s3405 + $0x6640] sm:$0x0]
                  %4226 = vst [vmem:[%s3406 + $0x1990] sm:$0x0] %v4225
                  %v4227 = vld [vmem:[%s3405 + $0x6680] sm:$0x0]
                  %4228 = vst [vmem:[%s3406 + $0x19a0] sm:$0x0] %v4227
                  %v4229 = vld [vmem:[%s3405 + $0x66c0] sm:$0x0]
                  %4230 = vst [vmem:[%s3406 + $0x19b0] sm:$0x0] %v4229
                  %v4231 = vld [vmem:[%s3405 + $0x6700] sm:$0x0]
                  %4232 = vst [vmem:[%s3406 + $0x19c0] sm:$0x0] %v4231
                  %v4233 = vld [vmem:[%s3405 + $0x6740] sm:$0x0]
                  %4234 = vst [vmem:[%s3406 + $0x19d0] sm:$0x0] %v4233
                  %v4235 = vld [vmem:[%s3405 + $0x6780] sm:$0x0]
                  %4236 = vst [vmem:[%s3406 + $0x19e0] sm:$0x0] %v4235
                  %v4237 = vld [vmem:[%s3405 + $0x67c0] sm:$0x0]
                  %4238 = vst [vmem:[%s3406 + $0x19f0] sm:$0x0] %v4237
                  %v4239 = vld [vmem:[%s3405 + $0x6800] sm:$0x0]
                  %4240 = vst [vmem:[%s3406 + $0x1a00] sm:$0x0] %v4239
                  %v4241 = vld [vmem:[%s3405 + $0x6840] sm:$0x0]
                  %4242 = vst [vmem:[%s3406 + $0x1a10] sm:$0x0] %v4241
                  %v4243 = vld [vmem:[%s3405 + $0x6880] sm:$0x0]
                  %4244 = vst [vmem:[%s3406 + $0x1a20] sm:$0x0] %v4243
                  %v4245 = vld [vmem:[%s3405 + $0x68c0] sm:$0x0]
                  %4246 = vst [vmem:[%s3406 + $0x1a30] sm:$0x0] %v4245
                  %v4247 = vld [vmem:[%s3405 + $0x6900] sm:$0x0]
                  %4248 = vst [vmem:[%s3406 + $0x1a40] sm:$0x0] %v4247
                  %v4249 = vld [vmem:[%s3405 + $0x6940] sm:$0x0]
                  %4250 = vst [vmem:[%s3406 + $0x1a50] sm:$0x0] %v4249
                  %v4251 = vld [vmem:[%s3405 + $0x6980] sm:$0x0]
                  %4252 = vst [vmem:[%s3406 + $0x1a60] sm:$0x0] %v4251
                  %v4253 = vld [vmem:[%s3405 + $0x69c0] sm:$0x0]
                  %4254 = vst [vmem:[%s3406 + $0x1a70] sm:$0x0] %v4253
                  %v4255 = vld [vmem:[%s3405 + $0x6a00] sm:$0x0]
                  %4256 = vst [vmem:[%s3406 + $0x1a80] sm:$0x0] %v4255
                  %v4257 = vld [vmem:[%s3405 + $0x6a40] sm:$0x0]
                  %4258 = vst [vmem:[%s3406 + $0x1a90] sm:$0x0] %v4257
                  %v4259 = vld [vmem:[%s3405 + $0x6a80] sm:$0x0]
                  %4260 = vst [vmem:[%s3406 + $0x1aa0] sm:$0x0] %v4259
                  %v4261 = vld [vmem:[%s3405 + $0x6ac0] sm:$0x0]
                  %4262 = vst [vmem:[%s3406 + $0x1ab0] sm:$0x0] %v4261
                  %v4263 = vld [vmem:[%s3405 + $0x6b00] sm:$0x0]
                  %4264 = vst [vmem:[%s3406 + $0x1ac0] sm:$0x0] %v4263
                  %v4265 = vld [vmem:[%s3405 + $0x6b40] sm:$0x0]
                  %4266 = vst [vmem:[%s3406 + $0x1ad0] sm:$0x0] %v4265
                  %v4267 = vld [vmem:[%s3405 + $0x6b80] sm:$0x0]
                  %4268 = vst [vmem:[%s3406 + $0x1ae0] sm:$0x0] %v4267
                  %v4269 = vld [vmem:[%s3405 + $0x6bc0] sm:$0x0]
                  %4270 = vst [vmem:[%s3406 + $0x1af0] sm:$0x0] %v4269
                  %v4271 = vld [vmem:[%s3405 + $0x6c00] sm:$0x0]
                  %4272 = vst [vmem:[%s3406 + $0x1b00] sm:$0x0] %v4271
                  %v4273 = vld [vmem:[%s3405 + $0x6c40] sm:$0x0]
                  %4274 = vst [vmem:[%s3406 + $0x1b10] sm:$0x0] %v4273
                  %v4275 = vld [vmem:[%s3405 + $0x6c80] sm:$0x0]
                  %4276 = vst [vmem:[%s3406 + $0x1b20] sm:$0x0] %v4275
                  %v4277 = vld [vmem:[%s3405 + $0x6cc0] sm:$0x0]
                  %4278 = vst [vmem:[%s3406 + $0x1b30] sm:$0x0] %v4277
                  %v4279 = vld [vmem:[%s3405 + $0x6d00] sm:$0x0]
                  %4280 = vst [vmem:[%s3406 + $0x1b40] sm:$0x0] %v4279
                  %v4281 = vld [vmem:[%s3405 + $0x6d40] sm:$0x0]
                  %4282 = vst [vmem:[%s3406 + $0x1b50] sm:$0x0] %v4281
                  %v4283 = vld [vmem:[%s3405 + $0x6d80] sm:$0x0]
                  %4284 = vst [vmem:[%s3406 + $0x1b60] sm:$0x0] %v4283
                  %v4285 = vld [vmem:[%s3405 + $0x6dc0] sm:$0x0]
                  %4286 = vst [vmem:[%s3406 + $0x1b70] sm:$0x0] %v4285
                  %v4287 = vld [vmem:[%s3405 + $0x6e00] sm:$0x0]
                  %4288 = vst [vmem:[%s3406 + $0x1b80] sm:$0x0] %v4287
                  %v4289 = vld [vmem:[%s3405 + $0x6e40] sm:$0x0]
                  %4290 = vst [vmem:[%s3406 + $0x1b90] sm:$0x0] %v4289
                  %v4291 = vld [vmem:[%s3405 + $0x6e80] sm:$0x0]
                  %4292 = vst [vmem:[%s3406 + $0x1ba0] sm:$0x0] %v4291
                  %v4293 = vld [vmem:[%s3405 + $0x6ec0] sm:$0x0]
                  %4294 = vst [vmem:[%s3406 + $0x1bb0] sm:$0x0] %v4293
                  %v4295 = vld [vmem:[%s3405 + $0x6f00] sm:$0x0]
                  %4296 = vst [vmem:[%s3406 + $0x1bc0] sm:$0x0] %v4295
                  %v4297 = vld [vmem:[%s3405 + $0x6f40] sm:$0x0]
                  %4298 = vst [vmem:[%s3406 + $0x1bd0] sm:$0x0] %v4297
                  %v4299 = vld [vmem:[%s3405 + $0x6f80] sm:$0x0]
                  %4300 = vst [vmem:[%s3406 + $0x1be0] sm:$0x0] %v4299
                  %v4301 = vld [vmem:[%s3405 + $0x6fc0] sm:$0x0]
                  %4302 = vst [vmem:[%s3406 + $0x1bf0] sm:$0x0] %v4301
                  %v4303 = vld [vmem:[%s3405 + $0x7000] sm:$0x0]
                  %4304 = vst [vmem:[%s3406 + $0x1c00] sm:$0x0] %v4303
                  %v4305 = vld [vmem:[%s3405 + $0x7040] sm:$0x0]
                  %4306 = vst [vmem:[%s3406 + $0x1c10] sm:$0x0] %v4305
                  %v4307 = vld [vmem:[%s3405 + $0x7080] sm:$0x0]
                  %4308 = vst [vmem:[%s3406 + $0x1c20] sm:$0x0] %v4307
                  %v4309 = vld [vmem:[%s3405 + $0x70c0] sm:$0x0]
                  %4310 = vst [vmem:[%s3406 + $0x1c30] sm:$0x0] %v4309
                  %v4311 = vld [vmem:[%s3405 + $0x7100] sm:$0x0]
                  %4312 = vst [vmem:[%s3406 + $0x1c40] sm:$0x0] %v4311
                  %v4313 = vld [vmem:[%s3405 + $0x7140] sm:$0x0]
                  %4314 = vst [vmem:[%s3406 + $0x1c50] sm:$0x0] %v4313
                  %v4315 = vld [vmem:[%s3405 + $0x7180] sm:$0x0]
                  %4316 = vst [vmem:[%s3406 + $0x1c60] sm:$0x0] %v4315
                  %v4317 = vld [vmem:[%s3405 + $0x71c0] sm:$0x0]
                  %4318 = vst [vmem:[%s3406 + $0x1c70] sm:$0x0] %v4317
                  %v4319 = vld [vmem:[%s3405 + $0x7200] sm:$0x0]
                  %4320 = vst [vmem:[%s3406 + $0x1c80] sm:$0x0] %v4319
                  %v4321 = vld [vmem:[%s3405 + $0x7240] sm:$0x0]
                  %4322 = vst [vmem:[%s3406 + $0x1c90] sm:$0x0] %v4321
                  %v4323 = vld [vmem:[%s3405 + $0x7280] sm:$0x0]
                  %4324 = vst [vmem:[%s3406 + $0x1ca0] sm:$0x0] %v4323
                  %v4325 = vld [vmem:[%s3405 + $0x72c0] sm:$0x0]
                  %4326 = vst [vmem:[%s3406 + $0x1cb0] sm:$0x0] %v4325
                  %v4327 = vld [vmem:[%s3405 + $0x7300] sm:$0x0]
                  %4328 = vst [vmem:[%s3406 + $0x1cc0] sm:$0x0] %v4327
                  %v4329 = vld [vmem:[%s3405 + $0x7340] sm:$0x0]
                  %4330 = vst [vmem:[%s3406 + $0x1cd0] sm:$0x0] %v4329
                  %v4331 = vld [vmem:[%s3405 + $0x7380] sm:$0x0]
                  %4332 = vst [vmem:[%s3406 + $0x1ce0] sm:$0x0] %v4331
                  %v4333 = vld [vmem:[%s3405 + $0x73c0] sm:$0x0]
                  %4334 = vst [vmem:[%s3406 + $0x1cf0] sm:$0x0] %v4333
                  %v4335 = vld [vmem:[%s3405 + $0x7400] sm:$0x0]
                  %4336 = vst [vmem:[%s3406 + $0x1d00] sm:$0x0] %v4335
                  %v4337 = vld [vmem:[%s3405 + $0x7440] sm:$0x0]
                  %4338 = vst [vmem:[%s3406 + $0x1d10] sm:$0x0] %v4337
                  %v4339 = vld [vmem:[%s3405 + $0x7480] sm:$0x0]
                  %4340 = vst [vmem:[%s3406 + $0x1d20] sm:$0x0] %v4339
                  %v4341 = vld [vmem:[%s3405 + $0x74c0] sm:$0x0]
                  %4342 = vst [vmem:[%s3406 + $0x1d30] sm:$0x0] %v4341
                  %v4343 = vld [vmem:[%s3405 + $0x7500] sm:$0x0]
                  %4344 = vst [vmem:[%s3406 + $0x1d40] sm:$0x0] %v4343
                  %v4345 = vld [vmem:[%s3405 + $0x7540] sm:$0x0]
                  %4346 = vst [vmem:[%s3406 + $0x1d50] sm:$0x0] %v4345
                  %v4347 = vld [vmem:[%s3405 + $0x7580] sm:$0x0]
                  %4348 = vst [vmem:[%s3406 + $0x1d60] sm:$0x0] %v4347
                  %v4349 = vld [vmem:[%s3405 + $0x75c0] sm:$0x0]
                  %4350 = vst [vmem:[%s3406 + $0x1d70] sm:$0x0] %v4349
                  %v4351 = vld [vmem:[%s3405 + $0x7600] sm:$0x0]
                  %4352 = vst [vmem:[%s3406 + $0x1d80] sm:$0x0] %v4351
                  %v4353 = vld [vmem:[%s3405 + $0x7640] sm:$0x0]
                  %4354 = vst [vmem:[%s3406 + $0x1d90] sm:$0x0] %v4353
                  %v4355 = vld [vmem:[%s3405 + $0x7680] sm:$0x0]
                  %4356 = vst [vmem:[%s3406 + $0x1da0] sm:$0x0] %v4355
                  %v4357 = vld [vmem:[%s3405 + $0x76c0] sm:$0x0]
                  %4358 = vst [vmem:[%s3406 + $0x1db0] sm:$0x0] %v4357
                  %v4359 = vld [vmem:[%s3405 + $0x7700] sm:$0x0]
                  %4360 = vst [vmem:[%s3406 + $0x1dc0] sm:$0x0] %v4359
                  %v4361 = vld [vmem:[%s3405 + $0x7740] sm:$0x0]
                  %4362 = vst [vmem:[%s3406 + $0x1dd0] sm:$0x0] %v4361
                  %v4363 = vld [vmem:[%s3405 + $0x7780] sm:$0x0]
                  %4364 = vst [vmem:[%s3406 + $0x1de0] sm:$0x0] %v4363
                  %v4365 = vld [vmem:[%s3405 + $0x77c0] sm:$0x0]
                  %4366 = vst [vmem:[%s3406 + $0x1df0] sm:$0x0] %v4365
                  %v4367 = vld [vmem:[%s3405 + $0x7800] sm:$0x0]
                  %4368 = vst [vmem:[%s3406 + $0x1e00] sm:$0x0] %v4367
                  %v4369 = vld [vmem:[%s3405 + $0x7840] sm:$0x0]
                  %4370 = vst [vmem:[%s3406 + $0x1e10] sm:$0x0] %v4369
                  %v4371 = vld [vmem:[%s3405 + $0x7880] sm:$0x0]
                  %4372 = vst [vmem:[%s3406 + $0x1e20] sm:$0x0] %v4371
                  %v4373 = vld [vmem:[%s3405 + $0x78c0] sm:$0x0]
                  %4374 = vst [vmem:[%s3406 + $0x1e30] sm:$0x0] %v4373
                  %v4375 = vld [vmem:[%s3405 + $0x7900] sm:$0x0]
                  %4376 = vst [vmem:[%s3406 + $0x1e40] sm:$0x0] %v4375
                  %v4377 = vld [vmem:[%s3405 + $0x7940] sm:$0x0]
                  %4378 = vst [vmem:[%s3406 + $0x1e50] sm:$0x0] %v4377
                  %v4379 = vld [vmem:[%s3405 + $0x7980] sm:$0x0]
                  %4380 = vst [vmem:[%s3406 + $0x1e60] sm:$0x0] %v4379
                  %v4381 = vld [vmem:[%s3405 + $0x79c0] sm:$0x0]
                  %4382 = vst [vmem:[%s3406 + $0x1e70] sm:$0x0] %v4381
                  %v4383 = vld [vmem:[%s3405 + $0x7a00] sm:$0x0]
                  %4384 = vst [vmem:[%s3406 + $0x1e80] sm:$0x0] %v4383
                  %v4385 = vld [vmem:[%s3405 + $0x7a40] sm:$0x0]
                  %4386 = vst [vmem:[%s3406 + $0x1e90] sm:$0x0] %v4385
                  %v4387 = vld [vmem:[%s3405 + $0x7a80] sm:$0x0]
                  %4388 = vst [vmem:[%s3406 + $0x1ea0] sm:$0x0] %v4387
                  %v4389 = vld [vmem:[%s3405 + $0x7ac0] sm:$0x0]
                  %4390 = vst [vmem:[%s3406 + $0x1eb0] sm:$0x0] %v4389
                  %v4391 = vld [vmem:[%s3405 + $0x7b00] sm:$0x0]
                  %4392 = vst [vmem:[%s3406 + $0x1ec0] sm:$0x0] %v4391
                  %v4393 = vld [vmem:[%s3405 + $0x7b40] sm:$0x0]
                  %4394 = vst [vmem:[%s3406 + $0x1ed0] sm:$0x0] %v4393
                  %v4395 = vld [vmem:[%s3405 + $0x7b80] sm:$0x0]
                  %4396 = vst [vmem:[%s3406 + $0x1ee0] sm:$0x0] %v4395
                  %v4397 = vld [vmem:[%s3405 + $0x7bc0] sm:$0x0]
                  %4398 = vst [vmem:[%s3406 + $0x1ef0] sm:$0x0] %v4397
                  %v4399 = vld [vmem:[%s3405 + $0x7c00] sm:$0x0]
                  %4400 = vst [vmem:[%s3406 + $0x1f00] sm:$0x0] %v4399
                  %v4401 = vld [vmem:[%s3405 + $0x7c40] sm:$0x0]
                  %4402 = vst [vmem:[%s3406 + $0x1f10] sm:$0x0] %v4401
                  %v4403 = vld [vmem:[%s3405 + $0x7c80] sm:$0x0]
                  %4404 = vst [vmem:[%s3406 + $0x1f20] sm:$0x0] %v4403
                  %v4405 = vld [vmem:[%s3405 + $0x7cc0] sm:$0x0]
                  %4406 = vst [vmem:[%s3406 + $0x1f30] sm:$0x0] %v4405
                  %v4407 = vld [vmem:[%s3405 + $0x7d00] sm:$0x0]
                  %4408 = vst [vmem:[%s3406 + $0x1f40] sm:$0x0] %v4407
                  %v4409 = vld [vmem:[%s3405 + $0x7d40] sm:$0x0]
                  %4410 = vst [vmem:[%s3406 + $0x1f50] sm:$0x0] %v4409
                  %v4411 = vld [vmem:[%s3405 + $0x7d80] sm:$0x0]
                  %4412 = vst [vmem:[%s3406 + $0x1f60] sm:$0x0] %v4411
                  %v4413 = vld [vmem:[%s3405 + $0x7dc0] sm:$0x0]
                  %4414 = vst [vmem:[%s3406 + $0x1f70] sm:$0x0] %v4413
                  %v4415 = vld [vmem:[%s3405 + $0x7e00] sm:$0x0]
                  %4416 = vst [vmem:[%s3406 + $0x1f80] sm:$0x0] %v4415
                  %v4417 = vld [vmem:[%s3405 + $0x7e40] sm:$0x0]
                  %4418 = vst [vmem:[%s3406 + $0x1f90] sm:$0x0] %v4417
                  %v4419 = vld [vmem:[%s3405 + $0x7e80] sm:$0x0]
                  %4420 = vst [vmem:[%s3406 + $0x1fa0] sm:$0x0] %v4419
                  %v4421 = vld [vmem:[%s3405 + $0x7ec0] sm:$0x0]
                  %4422 = vst [vmem:[%s3406 + $0x1fb0] sm:$0x0] %v4421
                  %v4423 = vld [vmem:[%s3405 + $0x7f00] sm:$0x0]
                  %4424 = vst [vmem:[%s3406 + $0x1fc0] sm:$0x0] %v4423
                  %v4425 = vld [vmem:[%s3405 + $0x7f40] sm:$0x0]
                  %4426 = vst [vmem:[%s3406 + $0x1fd0] sm:$0x0] %v4425
                  %v4427 = vld [vmem:[%s3405 + $0x7f80] sm:$0x0]
                  %4428 = vst [vmem:[%s3406 + $0x1fe0] sm:$0x0] %v4427
                  %v4429 = vld [vmem:[%s3405 + $0x7fc0] sm:$0x0]
                  %4430 = vst [vmem:[%s3406 + $0x1ff0] sm:$0x0] %v4429
                  %s4431 = sadd.s32 1, %s3404
                  %p4432 = scmp.ge.s32.totalorder %s4431, 2
                  %s4433 = scalar_select %p4432, 0, %s4431
                  %s4434 = smul.u32 %s4433, 8
                  %s4435 = smul.u32 %s4433, 8
                  %s4436 = scalar_lea.vmem %s2344, %s4434
                  %s4437 = scalar_lea.vmem %s2345, %s4435 [#allocation2]
                $region74: #{tpu_custom_call.1} parent=61 // loop_footer
                  %s3403 = sadd.s32 1, %s3399
                $region75: #{tpu_custom_call.1} parent=61 // loop_footer_branch
                  %3398 = sbr.rel target = $region71
                $region76: #{tpu_custom_call.1} parent=61 // loop_exit
                  _
              $region62: #{tpu_custom_call.1} parent=35 // pred_fallthru
                _
            $region36: #{tpu_custom_call.1} parent=31 // pred_fallthru
              _
            // Predicated region
            $region37: #{tpu_custom_call.1} parent=31 // pred_check
              _
            $region38: #{tpu_custom_call.1} parent=31 // pred_check_branch
              %247 = sbr.rel target = $region40
            $region39: #{tpu_custom_call.1} parent=31 // pred_region
              loop: start=0, step=1, limit=2
              $region41: #{tpu_custom_call.1} parent=39 // loop_pre_header
                _
              $region42: #{tpu_custom_call.1} parent=39 // loop_header
                %s250 = sphi 0, %s254
                %p251 = scmp.ge.s32.totalorder %s250, 2
                %s255 = sphi 0, %s1284
                %s256 = sphi %s241, %s1287
                %s257 = sphi %s236, %s1288
              $region43: #{tpu_custom_call.1} parent=39 // loop_header_branch
                %253 = sbr.rel (%p251) target = $region47
              $region44: #{tpu_custom_call.1} parent=39 // loop_body
                %v258 = vld [vmem:[%s256] sm:$0xff]
                %259 = vst [vmem:[%s257] sm:$0xff] %v258
                %v260 = vld [vmem:[%s256 + $0x40] sm:$0xff]
                %261 = vst [vmem:[%s257 + $0x10] sm:$0xff] %v260
                %v262 = vld [vmem:[%s256 + $0x80] sm:$0xff]
                %263 = vst [vmem:[%s257 + $0x20] sm:$0xff] %v262
                %v264 = vld [vmem:[%s256 + $0xc0] sm:$0xff]
                %265 = vst [vmem:[%s257 + $0x30] sm:$0xff] %v264
                %v266 = vld [vmem:[%s256 + $0x100] sm:$0xff]
                %267 = vst [vmem:[%s257 + $0x40] sm:$0xff] %v266
                %v268 = vld [vmem:[%s256 + $0x140] sm:$0xff]
                %269 = vst [vmem:[%s257 + $0x50] sm:$0xff] %v268
                %v270 = vld [vmem:[%s256 + $0x180] sm:$0xff]
                %271 = vst [vmem:[%s257 + $0x60] sm:$0xff] %v270
                %v272 = vld [vmem:[%s256 + $0x1c0] sm:$0xff]
                %273 = vst [vmem:[%s257 + $0x70] sm:$0xff] %v272
                %v274 = vld [vmem:[%s256 + $0x200] sm:$0xff]
                %275 = vst [vmem:[%s257 + $0x80] sm:$0xff] %v274
                %v276 = vld [vmem:[%s256 + $0x240] sm:$0xff]
                %277 = vst [vmem:[%s257 + $0x90] sm:$0xff] %v276
                %v278 = vld [vmem:[%s256 + $0x280] sm:$0xff]
                %279 = vst [vmem:[%s257 + $0xa0] sm:$0xff] %v278
                %v280 = vld [vmem:[%s256 + $0x2c0] sm:$0xff]
                %281 = vst [vmem:[%s257 + $0xb0] sm:$0xff] %v280
                %v282 = vld [vmem:[%s256 + $0x300] sm:$0xff]
                %283 = vst [vmem:[%s257 + $0xc0] sm:$0xff] %v282
                %v284 = vld [vmem:[%s256 + $0x340] sm:$0xff]
                %285 = vst [vmem:[%s257 + $0xd0] sm:$0xff] %v284
                %v286 = vld [vmem:[%s256 + $0x380] sm:$0xff]
                %287 = vst [vmem:[%s257 + $0xe0] sm:$0xff] %v286
                %v288 = vld [vmem:[%s256 + $0x3c0] sm:$0xff]
                %289 = vst [vmem:[%s257 + $0xf0] sm:$0xff] %v288
                %v290 = vld [vmem:[%s256 + $0x400] sm:$0xff]
                %291 = vst [vmem:[%s257 + $0x100] sm:$0xff] %v290
                %v292 = vld [vmem:[%s256 + $0x440] sm:$0xff]
                %293 = vst [vmem:[%s257 + $0x110] sm:$0xff] %v292
                %v294 = vld [vmem:[%s256 + $0x480] sm:$0xff]
                %295 = vst [vmem:[%s257 + $0x120] sm:$0xff] %v294
                %v296 = vld [vmem:[%s256 + $0x4c0] sm:$0xff]
                %297 = vst [vmem:[%s257 + $0x130] sm:$0xff] %v296
                %v298 = vld [vmem:[%s256 + $0x500] sm:$0xff]
                %299 = vst [vmem:[%s257 + $0x140] sm:$0xff] %v298
                %v300 = vld [vmem:[%s256 + $0x540] sm:$0xff]
                %301 = vst [vmem:[%s257 + $0x150] sm:$0xff] %v300
                %v302 = vld [vmem:[%s256 + $0x580] sm:$0xff]
                %303 = vst [vmem:[%s257 + $0x160] sm:$0xff] %v302
                %v304 = vld [vmem:[%s256 + $0x5c0] sm:$0xff]
                %305 = vst [vmem:[%s257 + $0x170] sm:$0xff] %v304
                %v306 = vld [vmem:[%s256 + $0x600] sm:$0xff]
                %307 = vst [vmem:[%s257 + $0x180] sm:$0xff] %v306
                %v308 = vld [vmem:[%s256 + $0x640] sm:$0xff]
                %309 = vst [vmem:[%s257 + $0x190] sm:$0xff] %v308
                %v310 = vld [vmem:[%s256 + $0x680] sm:$0xff]
                %311 = vst [vmem:[%s257 + $0x1a0] sm:$0xff] %v310
                %v312 = vld [vmem:[%s256 + $0x6c0] sm:$0xff]
                %313 = vst [vmem:[%s257 + $0x1b0] sm:$0xff] %v312
                %v314 = vld [vmem:[%s256 + $0x700] sm:$0xff]
                %315 = vst [vmem:[%s257 + $0x1c0] sm:$0xff] %v314
                %v316 = vld [vmem:[%s256 + $0x740] sm:$0xff]
                %317 = vst [vmem:[%s257 + $0x1d0] sm:$0xff] %v316
                %v318 = vld [vmem:[%s256 + $0x780] sm:$0xff]
                %319 = vst [vmem:[%s257 + $0x1e0] sm:$0xff] %v318
                %v320 = vld [vmem:[%s256 + $0x7c0] sm:$0xff]
                %321 = vst [vmem:[%s257 + $0x1f0] sm:$0xff] %v320
                %v322 = vld [vmem:[%s256 + $0x800] sm:$0xff]
                %323 = vst [vmem:[%s257 + $0x200] sm:$0xff] %v322
                %v324 = vld [vmem:[%s256 + $0x840] sm:$0xff]
                %325 = vst [vmem:[%s257 + $0x210] sm:$0xff] %v324
                %v326 = vld [vmem:[%s256 + $0x880] sm:$0xff]
                %327 = vst [vmem:[%s257 + $0x220] sm:$0xff] %v326
                %v328 = vld [vmem:[%s256 + $0x8c0] sm:$0xff]
                %329 = vst [vmem:[%s257 + $0x230] sm:$0xff] %v328
                %v330 = vld [vmem:[%s256 + $0x900] sm:$0xff]
                %331 = vst [vmem:[%s257 + $0x240] sm:$0xff] %v330
                %v332 = vld [vmem:[%s256 + $0x940] sm:$0xff]
                %333 = vst [vmem:[%s257 + $0x250] sm:$0xff] %v332
                %v334 = vld [vmem:[%s256 + $0x980] sm:$0xff]
                %335 = vst [vmem:[%s257 + $0x260] sm:$0xff] %v334
                %v336 = vld [vmem:[%s256 + $0x9c0] sm:$0xff]
                %337 = vst [vmem:[%s257 + $0x270] sm:$0xff] %v336
                %v338 = vld [vmem:[%s256 + $0xa00] sm:$0xff]
                %339 = vst [vmem:[%s257 + $0x280] sm:$0xff] %v338
                %v340 = vld [vmem:[%s256 + $0xa40] sm:$0xff]
                %341 = vst [vmem:[%s257 + $0x290] sm:$0xff] %v340
                %v342 = vld [vmem:[%s256 + $0xa80] sm:$0xff]
                %343 = vst [vmem:[%s257 + $0x2a0] sm:$0xff] %v342
                %v344 = vld [vmem:[%s256 + $0xac0] sm:$0xff]
                %345 = vst [vmem:[%s257 + $0x2b0] sm:$0xff] %v344
                %v346 = vld [vmem:[%s256 + $0xb00] sm:$0xff]
                %347 = vst [vmem:[%s257 + $0x2c0] sm:$0xff] %v346
                %v348 = vld [vmem:[%s256 + $0xb40] sm:$0xff]
                %349 = vst [vmem:[%s257 + $0x2d0] sm:$0xff] %v348
                %v350 = vld [vmem:[%s256 + $0xb80] sm:$0xff]
                %351 = vst [vmem:[%s257 + $0x2e0] sm:$0xff] %v350
                %v352 = vld [vmem:[%s256 + $0xbc0] sm:$0xff]
                %353 = vst [vmem:[%s257 + $0x2f0] sm:$0xff] %v352
                %v354 = vld [vmem:[%s256 + $0xc00] sm:$0xff]
                %355 = vst [vmem:[%s257 + $0x300] sm:$0xff] %v354
                %v356 = vld [vmem:[%s256 + $0xc40] sm:$0xff]
                %357 = vst [vmem:[%s257 + $0x310] sm:$0xff] %v356
                %v358 = vld [vmem:[%s256 + $0xc80] sm:$0xff]
                %359 = vst [vmem:[%s257 + $0x320] sm:$0xff] %v358
                %v360 = vld [vmem:[%s256 + $0xcc0] sm:$0xff]
                %361 = vst [vmem:[%s257 + $0x330] sm:$0xff] %v360
                %v362 = vld [vmem:[%s256 + $0xd00] sm:$0xff]
                %363 = vst [vmem:[%s257 + $0x340] sm:$0xff] %v362
                %v364 = vld [vmem:[%s256 + $0xd40] sm:$0xff]
                %365 = vst [vmem:[%s257 + $0x350] sm:$0xff] %v364
                %v366 = vld [vmem:[%s256 + $0xd80] sm:$0xff]
                %367 = vst [vmem:[%s257 + $0x360] sm:$0xff] %v366
                %v368 = vld [vmem:[%s256 + $0xdc0] sm:$0xff]
                %369 = vst [vmem:[%s257 + $0x370] sm:$0xff] %v368
                %v370 = vld [vmem:[%s256 + $0xe00] sm:$0xff]
                %371 = vst [vmem:[%s257 + $0x380] sm:$0xff] %v370
                %v372 = vld [vmem:[%s256 + $0xe40] sm:$0xff]
                %373 = vst [vmem:[%s257 + $0x390] sm:$0xff] %v372
                %v374 = vld [vmem:[%s256 + $0xe80] sm:$0xff]
                %375 = vst [vmem:[%s257 + $0x3a0] sm:$0xff] %v374
                %v376 = vld [vmem:[%s256 + $0xec0] sm:$0xff]
                %377 = vst [vmem:[%s257 + $0x3b0] sm:$0xff] %v376
                %v378 = vld [vmem:[%s256 + $0xf00] sm:$0xff]
                %379 = vst [vmem:[%s257 + $0x3c0] sm:$0xff] %v378
                %v380 = vld [vmem:[%s256 + $0xf40] sm:$0xff]
                %381 = vst [vmem:[%s257 + $0x3d0] sm:$0xff] %v380
                %v382 = vld [vmem:[%s256 + $0xf80] sm:$0xff]
                %383 = vst [vmem:[%s257 + $0x3e0] sm:$0xff] %v382
                %v384 = vld [vmem:[%s256 + $0xfc0] sm:$0xff]
                %385 = vst [vmem:[%s257 + $0x3f0] sm:$0xff] %v384
                %v386 = vld [vmem:[%s256 + $0x1000] sm:$0xff]
                %387 = vst [vmem:[%s257 + $0x400] sm:$0xff] %v386
                %v388 = vld [vmem:[%s256 + $0x1040] sm:$0xff]
                %389 = vst [vmem:[%s257 + $0x410] sm:$0xff] %v388
                %v390 = vld [vmem:[%s256 + $0x1080] sm:$0xff]
                %391 = vst [vmem:[%s257 + $0x420] sm:$0xff] %v390
                %v392 = vld [vmem:[%s256 + $0x10c0] sm:$0xff]
                %393 = vst [vmem:[%s257 + $0x430] sm:$0xff] %v392
                %v394 = vld [vmem:[%s256 + $0x1100] sm:$0xff]
                %395 = vst [vmem:[%s257 + $0x440] sm:$0xff] %v394
                %v396 = vld [vmem:[%s256 + $0x1140] sm:$0xff]
                %397 = vst [vmem:[%s257 + $0x450] sm:$0xff] %v396
                %v398 = vld [vmem:[%s256 + $0x1180] sm:$0xff]
                %399 = vst [vmem:[%s257 + $0x460] sm:$0xff] %v398
                %v400 = vld [vmem:[%s256 + $0x11c0] sm:$0xff]
                %401 = vst [vmem:[%s257 + $0x470] sm:$0xff] %v400
                %v402 = vld [vmem:[%s256 + $0x1200] sm:$0xff]
                %403 = vst [vmem:[%s257 + $0x480] sm:$0xff] %v402
                %v404 = vld [vmem:[%s256 + $0x1240] sm:$0xff]
                %405 = vst [vmem:[%s257 + $0x490] sm:$0xff] %v404
                %v406 = vld [vmem:[%s256 + $0x1280] sm:$0xff]
                %407 = vst [vmem:[%s257 + $0x4a0] sm:$0xff] %v406
                %v408 = vld [vmem:[%s256 + $0x12c0] sm:$0xff]
                %409 = vst [vmem:[%s257 + $0x4b0] sm:$0xff] %v408
                %v410 = vld [vmem:[%s256 + $0x1300] sm:$0xff]
                %411 = vst [vmem:[%s257 + $0x4c0] sm:$0xff] %v410
                %v412 = vld [vmem:[%s256 + $0x1340] sm:$0xff]
                %413 = vst [vmem:[%s257 + $0x4d0] sm:$0xff] %v412
                %v414 = vld [vmem:[%s256 + $0x1380] sm:$0xff]
                %415 = vst [vmem:[%s257 + $0x4e0] sm:$0xff] %v414
                %v416 = vld [vmem:[%s256 + $0x13c0] sm:$0xff]
                %417 = vst [vmem:[%s257 + $0x4f0] sm:$0xff] %v416
                %v418 = vld [vmem:[%s256 + $0x1400] sm:$0xff]
                %419 = vst [vmem:[%s257 + $0x500] sm:$0xff] %v418
                %v420 = vld [vmem:[%s256 + $0x1440] sm:$0xff]
                %421 = vst [vmem:[%s257 + $0x510] sm:$0xff] %v420
                %v422 = vld [vmem:[%s256 + $0x1480] sm:$0xff]
                %423 = vst [vmem:[%s257 + $0x520] sm:$0xff] %v422
                %v424 = vld [vmem:[%s256 + $0x14c0] sm:$0xff]
                %425 = vst [vmem:[%s257 + $0x530] sm:$0xff] %v424
                %v426 = vld [vmem:[%s256 + $0x1500] sm:$0xff]
                %427 = vst [vmem:[%s257 + $0x540] sm:$0xff] %v426
                %v428 = vld [vmem:[%s256 + $0x1540] sm:$0xff]
                %429 = vst [vmem:[%s257 + $0x550] sm:$0xff] %v428
                %v430 = vld [vmem:[%s256 + $0x1580] sm:$0xff]
                %431 = vst [vmem:[%s257 + $0x560] sm:$0xff] %v430
                %v432 = vld [vmem:[%s256 + $0x15c0] sm:$0xff]
                %433 = vst [vmem:[%s257 + $0x570] sm:$0xff] %v432
                %v434 = vld [vmem:[%s256 + $0x1600] sm:$0xff]
                %435 = vst [vmem:[%s257 + $0x580] sm:$0xff] %v434
                %v436 = vld [vmem:[%s256 + $0x1640] sm:$0xff]
                %437 = vst [vmem:[%s257 + $0x590] sm:$0xff] %v436
                %v438 = vld [vmem:[%s256 + $0x1680] sm:$0xff]
                %439 = vst [vmem:[%s257 + $0x5a0] sm:$0xff] %v438
                %v440 = vld [vmem:[%s256 + $0x16c0] sm:$0xff]
                %441 = vst [vmem:[%s257 + $0x5b0] sm:$0xff] %v440
                %v442 = vld [vmem:[%s256 + $0x1700] sm:$0xff]
                %443 = vst [vmem:[%s257 + $0x5c0] sm:$0xff] %v442
                %v444 = vld [vmem:[%s256 + $0x1740] sm:$0xff]
                %445 = vst [vmem:[%s257 + $0x5d0] sm:$0xff] %v444
                %v446 = vld [vmem:[%s256 + $0x1780] sm:$0xff]
                %447 = vst [vmem:[%s257 + $0x5e0] sm:$0xff] %v446
                %v448 = vld [vmem:[%s256 + $0x17c0] sm:$0xff]
                %449 = vst [vmem:[%s257 + $0x5f0] sm:$0xff] %v448
                %v450 = vld [vmem:[%s256 + $0x1800] sm:$0xff]
                %451 = vst [vmem:[%s257 + $0x600] sm:$0xff] %v450
                %v452 = vld [vmem:[%s256 + $0x1840] sm:$0xff]
                %453 = vst [vmem:[%s257 + $0x610] sm:$0xff] %v452
                %v454 = vld [vmem:[%s256 + $0x1880] sm:$0xff]
                %455 = vst [vmem:[%s257 + $0x620] sm:$0xff] %v454
                %v456 = vld [vmem:[%s256 + $0x18c0] sm:$0xff]
                %457 = vst [vmem:[%s257 + $0x630] sm:$0xff] %v456
                %v458 = vld [vmem:[%s256 + $0x1900] sm:$0xff]
                %459 = vst [vmem:[%s257 + $0x640] sm:$0xff] %v458
                %v460 = vld [vmem:[%s256 + $0x1940] sm:$0xff]
                %461 = vst [vmem:[%s257 + $0x650] sm:$0xff] %v460
                %v462 = vld [vmem:[%s256 + $0x1980] sm:$0xff]
                %463 = vst [vmem:[%s257 + $0x660] sm:$0xff] %v462
                %v464 = vld [vmem:[%s256 + $0x19c0] sm:$0xff]
                %465 = vst [vmem:[%s257 + $0x670] sm:$0xff] %v464
                %v466 = vld [vmem:[%s256 + $0x1a00] sm:$0xff]
                %467 = vst [vmem:[%s257 + $0x680] sm:$0xff] %v466
                %v468 = vld [vmem:[%s256 + $0x1a40] sm:$0xff]
                %469 = vst [vmem:[%s257 + $0x690] sm:$0xff] %v468
                %v470 = vld [vmem:[%s256 + $0x1a80] sm:$0xff]
                %471 = vst [vmem:[%s257 + $0x6a0] sm:$0xff] %v470
                %v472 = vld [vmem:[%s256 + $0x1ac0] sm:$0xff]
                %473 = vst [vmem:[%s257 + $0x6b0] sm:$0xff] %v472
                %v474 = vld [vmem:[%s256 + $0x1b00] sm:$0xff]
                %475 = vst [vmem:[%s257 + $0x6c0] sm:$0xff] %v474
                %v476 = vld [vmem:[%s256 + $0x1b40] sm:$0xff]
                %477 = vst [vmem:[%s257 + $0x6d0] sm:$0xff] %v476
                %v478 = vld [vmem:[%s256 + $0x1b80] sm:$0xff]
                %479 = vst [vmem:[%s257 + $0x6e0] sm:$0xff] %v478
                %v480 = vld [vmem:[%s256 + $0x1bc0] sm:$0xff]
                %481 = vst [vmem:[%s257 + $0x6f0] sm:$0xff] %v480
                %v482 = vld [vmem:[%s256 + $0x1c00] sm:$0xff]
                %483 = vst [vmem:[%s257 + $0x700] sm:$0xff] %v482
                %v484 = vld [vmem:[%s256 + $0x1c40] sm:$0xff]
                %485 = vst [vmem:[%s257 + $0x710] sm:$0xff] %v484
                %v486 = vld [vmem:[%s256 + $0x1c80] sm:$0xff]
                %487 = vst [vmem:[%s257 + $0x720] sm:$0xff] %v486
                %v488 = vld [vmem:[%s256 + $0x1cc0] sm:$0xff]
                %489 = vst [vmem:[%s257 + $0x730] sm:$0xff] %v488
                %v490 = vld [vmem:[%s256 + $0x1d00] sm:$0xff]
                %491 = vst [vmem:[%s257 + $0x740] sm:$0xff] %v490
                %v492 = vld [vmem:[%s256 + $0x1d40] sm:$0xff]
                %493 = vst [vmem:[%s257 + $0x750] sm:$0xff] %v492
                %v494 = vld [vmem:[%s256 + $0x1d80] sm:$0xff]
                %495 = vst [vmem:[%s257 + $0x760] sm:$0xff] %v494
                %v496 = vld [vmem:[%s256 + $0x1dc0] sm:$0xff]
                %497 = vst [vmem:[%s257 + $0x770] sm:$0xff] %v496
                %v498 = vld [vmem:[%s256 + $0x1e00] sm:$0xff]
                %499 = vst [vmem:[%s257 + $0x780] sm:$0xff] %v498
                %v500 = vld [vmem:[%s256 + $0x1e40] sm:$0xff]
                %501 = vst [vmem:[%s257 + $0x790] sm:$0xff] %v500
                %v502 = vld [vmem:[%s256 + $0x1e80] sm:$0xff]
                %503 = vst [vmem:[%s257 + $0x7a0] sm:$0xff] %v502
                %v504 = vld [vmem:[%s256 + $0x1ec0] sm:$0xff]
                %505 = vst [vmem:[%s257 + $0x7b0] sm:$0xff] %v504
                %v506 = vld [vmem:[%s256 + $0x1f00] sm:$0xff]
                %507 = vst [vmem:[%s257 + $0x7c0] sm:$0xff] %v506
                %v508 = vld [vmem:[%s256 + $0x1f40] sm:$0xff]
                %509 = vst [vmem:[%s257 + $0x7d0] sm:$0xff] %v508
                %v510 = vld [vmem:[%s256 + $0x1f80] sm:$0xff]
                %511 = vst [vmem:[%s257 + $0x7e0] sm:$0xff] %v510
                %v512 = vld [vmem:[%s256 + $0x1fc0] sm:$0xff]
                %513 = vst [vmem:[%s257 + $0x7f0] sm:$0xff] %v512
                %v514 = vld [vmem:[%s256 + $0x2000] sm:$0xff]
                %515 = vst [vmem:[%s257 + $0x800] sm:$0xff] %v514
                %v516 = vld [vmem:[%s256 + $0x2040] sm:$0xff]
                %517 = vst [vmem:[%s257 + $0x810] sm:$0xff] %v516
                %v518 = vld [vmem:[%s256 + $0x2080] sm:$0xff]
                %519 = vst [vmem:[%s257 + $0x820] sm:$0xff] %v518
                %v520 = vld [vmem:[%s256 + $0x20c0] sm:$0xff]
                %521 = vst [vmem:[%s257 + $0x830] sm:$0xff] %v520
                %v522 = vld [vmem:[%s256 + $0x2100] sm:$0xff]
                %523 = vst [vmem:[%s257 + $0x840] sm:$0xff] %v522
                %v524 = vld [vmem:[%s256 + $0x2140] sm:$0xff]
                %525 = vst [vmem:[%s257 + $0x850] sm:$0xff] %v524
                %v526 = vld [vmem:[%s256 + $0x2180] sm:$0xff]
                %527 = vst [vmem:[%s257 + $0x860] sm:$0xff] %v526
                %v528 = vld [vmem:[%s256 + $0x21c0] sm:$0xff]
                %529 = vst [vmem:[%s257 + $0x870] sm:$0xff] %v528
                %v530 = vld [vmem:[%s256 + $0x2200] sm:$0xff]
                %531 = vst [vmem:[%s257 + $0x880] sm:$0xff] %v530
                %v532 = vld [vmem:[%s256 + $0x2240] sm:$0xff]
                %533 = vst [vmem:[%s257 + $0x890] sm:$0xff] %v532
                %v534 = vld [vmem:[%s256 + $0x2280] sm:$0xff]
                %535 = vst [vmem:[%s257 + $0x8a0] sm:$0xff] %v534
                %v536 = vld [vmem:[%s256 + $0x22c0] sm:$0xff]
                %537 = vst [vmem:[%s257 + $0x8b0] sm:$0xff] %v536
                %v538 = vld [vmem:[%s256 + $0x2300] sm:$0xff]
                %539 = vst [vmem:[%s257 + $0x8c0] sm:$0xff] %v538
                %v540 = vld [vmem:[%s256 + $0x2340] sm:$0xff]
                %541 = vst [vmem:[%s257 + $0x8d0] sm:$0xff] %v540
                %v542 = vld [vmem:[%s256 + $0x2380] sm:$0xff]
                %543 = vst [vmem:[%s257 + $0x8e0] sm:$0xff] %v542
                %v544 = vld [vmem:[%s256 + $0x23c0] sm:$0xff]
                %545 = vst [vmem:[%s257 + $0x8f0] sm:$0xff] %v544
                %v546 = vld [vmem:[%s256 + $0x2400] sm:$0xff]
                %547 = vst [vmem:[%s257 + $0x900] sm:$0xff] %v546
                %v548 = vld [vmem:[%s256 + $0x2440] sm:$0xff]
                %549 = vst [vmem:[%s257 + $0x910] sm:$0xff] %v548
                %v550 = vld [vmem:[%s256 + $0x2480] sm:$0xff]
                %551 = vst [vmem:[%s257 + $0x920] sm:$0xff] %v550
                %v552 = vld [vmem:[%s256 + $0x24c0] sm:$0xff]
                %553 = vst [vmem:[%s257 + $0x930] sm:$0xff] %v552
                %v554 = vld [vmem:[%s256 + $0x2500] sm:$0xff]
                %555 = vst [vmem:[%s257 + $0x940] sm:$0xff] %v554
                %v556 = vld [vmem:[%s256 + $0x2540] sm:$0xff]
                %557 = vst [vmem:[%s257 + $0x950] sm:$0xff] %v556
                %v558 = vld [vmem:[%s256 + $0x2580] sm:$0xff]
                %559 = vst [vmem:[%s257 + $0x960] sm:$0xff] %v558
                %v560 = vld [vmem:[%s256 + $0x25c0] sm:$0xff]
                %561 = vst [vmem:[%s257 + $0x970] sm:$0xff] %v560
                %v562 = vld [vmem:[%s256 + $0x2600] sm:$0xff]
                %563 = vst [vmem:[%s257 + $0x980] sm:$0xff] %v562
                %v564 = vld [vmem:[%s256 + $0x2640] sm:$0xff]
                %565 = vst [vmem:[%s257 + $0x990] sm:$0xff] %v564
                %v566 = vld [vmem:[%s256 + $0x2680] sm:$0xff]
                %567 = vst [vmem:[%s257 + $0x9a0] sm:$0xff] %v566
                %v568 = vld [vmem:[%s256 + $0x26c0] sm:$0xff]
                %569 = vst [vmem:[%s257 + $0x9b0] sm:$0xff] %v568
                %v570 = vld [vmem:[%s256 + $0x2700] sm:$0xff]
                %571 = vst [vmem:[%s257 + $0x9c0] sm:$0xff] %v570
                %v572 = vld [vmem:[%s256 + $0x2740] sm:$0xff]
                %573 = vst [vmem:[%s257 + $0x9d0] sm:$0xff] %v572
                %v574 = vld [vmem:[%s256 + $0x2780] sm:$0xff]
                %575 = vst [vmem:[%s257 + $0x9e0] sm:$0xff] %v574
                %v576 = vld [vmem:[%s256 + $0x27c0] sm:$0xff]
                %577 = vst [vmem:[%s257 + $0x9f0] sm:$0xff] %v576
                %v578 = vld [vmem:[%s256 + $0x2800] sm:$0xff]
                %579 = vst [vmem:[%s257 + $0xa00] sm:$0xff] %v578
                %v580 = vld [vmem:[%s256 + $0x2840] sm:$0xff]
                %581 = vst [vmem:[%s257 + $0xa10] sm:$0xff] %v580
                %v582 = vld [vmem:[%s256 + $0x2880] sm:$0xff]
                %583 = vst [vmem:[%s257 + $0xa20] sm:$0xff] %v582
                %v584 = vld [vmem:[%s256 + $0x28c0] sm:$0xff]
                %585 = vst [vmem:[%s257 + $0xa30] sm:$0xff] %v584
                %v586 = vld [vmem:[%s256 + $0x2900] sm:$0xff]
                %587 = vst [vmem:[%s257 + $0xa40] sm:$0xff] %v586
                %v588 = vld [vmem:[%s256 + $0x2940] sm:$0xff]
                %589 = vst [vmem:[%s257 + $0xa50] sm:$0xff] %v588
                %v590 = vld [vmem:[%s256 + $0x2980] sm:$0xff]
                %591 = vst [vmem:[%s257 + $0xa60] sm:$0xff] %v590
                %v592 = vld [vmem:[%s256 + $0x29c0] sm:$0xff]
                %593 = vst [vmem:[%s257 + $0xa70] sm:$0xff] %v592
                %v594 = vld [vmem:[%s256 + $0x2a00] sm:$0xff]
                %595 = vst [vmem:[%s257 + $0xa80] sm:$0xff] %v594
                %v596 = vld [vmem:[%s256 + $0x2a40] sm:$0xff]
                %597 = vst [vmem:[%s257 + $0xa90] sm:$0xff] %v596
                %v598 = vld [vmem:[%s256 + $0x2a80] sm:$0xff]
                %599 = vst [vmem:[%s257 + $0xaa0] sm:$0xff] %v598
                %v600 = vld [vmem:[%s256 + $0x2ac0] sm:$0xff]
                %601 = vst [vmem:[%s257 + $0xab0] sm:$0xff] %v600
                %v602 = vld [vmem:[%s256 + $0x2b00] sm:$0xff]
                %603 = vst [vmem:[%s257 + $0xac0] sm:$0xff] %v602
                %v604 = vld [vmem:[%s256 + $0x2b40] sm:$0xff]
                %605 = vst [vmem:[%s257 + $0xad0] sm:$0xff] %v604
                %v606 = vld [vmem:[%s256 + $0x2b80] sm:$0xff]
                %607 = vst [vmem:[%s257 + $0xae0] sm:$0xff] %v606
                %v608 = vld [vmem:[%s256 + $0x2bc0] sm:$0xff]
                %609 = vst [vmem:[%s257 + $0xaf0] sm:$0xff] %v608
                %v610 = vld [vmem:[%s256 + $0x2c00] sm:$0xff]
                %611 = vst [vmem:[%s257 + $0xb00] sm:$0xff] %v610
                %v612 = vld [vmem:[%s256 + $0x2c40] sm:$0xff]
                %613 = vst [vmem:[%s257 + $0xb10] sm:$0xff] %v612
                %v614 = vld [vmem:[%s256 + $0x2c80] sm:$0xff]
                %615 = vst [vmem:[%s257 + $0xb20] sm:$0xff] %v614
                %v616 = vld [vmem:[%s256 + $0x2cc0] sm:$0xff]
                %617 = vst [vmem:[%s257 + $0xb30] sm:$0xff] %v616
                %v618 = vld [vmem:[%s256 + $0x2d00] sm:$0xff]
                %619 = vst [vmem:[%s257 + $0xb40] sm:$0xff] %v618
                %v620 = vld [vmem:[%s256 + $0x2d40] sm:$0xff]
                %621 = vst [vmem:[%s257 + $0xb50] sm:$0xff] %v620
                %v622 = vld [vmem:[%s256 + $0x2d80] sm:$0xff]
                %623 = vst [vmem:[%s257 + $0xb60] sm:$0xff] %v622
                %v624 = vld [vmem:[%s256 + $0x2dc0] sm:$0xff]
                %625 = vst [vmem:[%s257 + $0xb70] sm:$0xff] %v624
                %v626 = vld [vmem:[%s256 + $0x2e00] sm:$0xff]
                %627 = vst [vmem:[%s257 + $0xb80] sm:$0xff] %v626
                %v628 = vld [vmem:[%s256 + $0x2e40] sm:$0xff]
                %629 = vst [vmem:[%s257 + $0xb90] sm:$0xff] %v628
                %v630 = vld [vmem:[%s256 + $0x2e80] sm:$0xff]
                %631 = vst [vmem:[%s257 + $0xba0] sm:$0xff] %v630
                %v632 = vld [vmem:[%s256 + $0x2ec0] sm:$0xff]
                %633 = vst [vmem:[%s257 + $0xbb0] sm:$0xff] %v632
                %v634 = vld [vmem:[%s256 + $0x2f00] sm:$0xff]
                %635 = vst [vmem:[%s257 + $0xbc0] sm:$0xff] %v634
                %v636 = vld [vmem:[%s256 + $0x2f40] sm:$0xff]
                %637 = vst [vmem:[%s257 + $0xbd0] sm:$0xff] %v636
                %v638 = vld [vmem:[%s256 + $0x2f80] sm:$0xff]
                %639 = vst [vmem:[%s257 + $0xbe0] sm:$0xff] %v638
                %v640 = vld [vmem:[%s256 + $0x2fc0] sm:$0xff]
                %641 = vst [vmem:[%s257 + $0xbf0] sm:$0xff] %v640
                %v642 = vld [vmem:[%s256 + $0x3000] sm:$0xff]
                %643 = vst [vmem:[%s257 + $0xc00] sm:$0xff] %v642
                %v644 = vld [vmem:[%s256 + $0x3040] sm:$0xff]
                %645 = vst [vmem:[%s257 + $0xc10] sm:$0xff] %v644
                %v646 = vld [vmem:[%s256 + $0x3080] sm:$0xff]
                %647 = vst [vmem:[%s257 + $0xc20] sm:$0xff] %v646
                %v648 = vld [vmem:[%s256 + $0x30c0] sm:$0xff]
                %649 = vst [vmem:[%s257 + $0xc30] sm:$0xff] %v648
                %v650 = vld [vmem:[%s256 + $0x3100] sm:$0xff]
                %651 = vst [vmem:[%s257 + $0xc40] sm:$0xff] %v650
                %v652 = vld [vmem:[%s256 + $0x3140] sm:$0xff]
                %653 = vst [vmem:[%s257 + $0xc50] sm:$0xff] %v652
                %v654 = vld [vmem:[%s256 + $0x3180] sm:$0xff]
                %655 = vst [vmem:[%s257 + $0xc60] sm:$0xff] %v654
                %v656 = vld [vmem:[%s256 + $0x31c0] sm:$0xff]
                %657 = vst [vmem:[%s257 + $0xc70] sm:$0xff] %v656
                %v658 = vld [vmem:[%s256 + $0x3200] sm:$0xff]
                %659 = vst [vmem:[%s257 + $0xc80] sm:$0xff] %v658
                %v660 = vld [vmem:[%s256 + $0x3240] sm:$0xff]
                %661 = vst [vmem:[%s257 + $0xc90] sm:$0xff] %v660
                %v662 = vld [vmem:[%s256 + $0x3280] sm:$0xff]
                %663 = vst [vmem:[%s257 + $0xca0] sm:$0xff] %v662
                %v664 = vld [vmem:[%s256 + $0x32c0] sm:$0xff]
                %665 = vst [vmem:[%s257 + $0xcb0] sm:$0xff] %v664
                %v666 = vld [vmem:[%s256 + $0x3300] sm:$0xff]
                %667 = vst [vmem:[%s257 + $0xcc0] sm:$0xff] %v666
                %v668 = vld [vmem:[%s256 + $0x3340] sm:$0xff]
                %669 = vst [vmem:[%s257 + $0xcd0] sm:$0xff] %v668
                %v670 = vld [vmem:[%s256 + $0x3380] sm:$0xff]
                %671 = vst [vmem:[%s257 + $0xce0] sm:$0xff] %v670
                %v672 = vld [vmem:[%s256 + $0x33c0] sm:$0xff]
                %673 = vst [vmem:[%s257 + $0xcf0] sm:$0xff] %v672
                %v674 = vld [vmem:[%s256 + $0x3400] sm:$0xff]
                %675 = vst [vmem:[%s257 + $0xd00] sm:$0xff] %v674
                %v676 = vld [vmem:[%s256 + $0x3440] sm:$0xff]
                %677 = vst [vmem:[%s257 + $0xd10] sm:$0xff] %v676
                %v678 = vld [vmem:[%s256 + $0x3480] sm:$0xff]
                %679 = vst [vmem:[%s257 + $0xd20] sm:$0xff] %v678
                %v680 = vld [vmem:[%s256 + $0x34c0] sm:$0xff]
                %681 = vst [vmem:[%s257 + $0xd30] sm:$0xff] %v680
                %v682 = vld [vmem:[%s256 + $0x3500] sm:$0xff]
                %683 = vst [vmem:[%s257 + $0xd40] sm:$0xff] %v682
                %v684 = vld [vmem:[%s256 + $0x3540] sm:$0xff]
                %685 = vst [vmem:[%s257 + $0xd50] sm:$0xff] %v684
                %v686 = vld [vmem:[%s256 + $0x3580] sm:$0xff]
                %687 = vst [vmem:[%s257 + $0xd60] sm:$0xff] %v686
                %v688 = vld [vmem:[%s256 + $0x35c0] sm:$0xff]
                %689 = vst [vmem:[%s257 + $0xd70] sm:$0xff] %v688
                %v690 = vld [vmem:[%s256 + $0x3600] sm:$0xff]
                %691 = vst [vmem:[%s257 + $0xd80] sm:$0xff] %v690
                %v692 = vld [vmem:[%s256 + $0x3640] sm:$0xff]
                %693 = vst [vmem:[%s257 + $0xd90] sm:$0xff] %v692
                %v694 = vld [vmem:[%s256 + $0x3680] sm:$0xff]
                %695 = vst [vmem:[%s257 + $0xda0] sm:$0xff] %v694
                %v696 = vld [vmem:[%s256 + $0x36c0] sm:$0xff]
                %697 = vst [vmem:[%s257 + $0xdb0] sm:$0xff] %v696
                %v698 = vld [vmem:[%s256 + $0x3700] sm:$0xff]
                %699 = vst [vmem:[%s257 + $0xdc0] sm:$0xff] %v698
                %v700 = vld [vmem:[%s256 + $0x3740] sm:$0xff]
                %701 = vst [vmem:[%s257 + $0xdd0] sm:$0xff] %v700
                %v702 = vld [vmem:[%s256 + $0x3780] sm:$0xff]
                %703 = vst [vmem:[%s257 + $0xde0] sm:$0xff] %v702
                %v704 = vld [vmem:[%s256 + $0x37c0] sm:$0xff]
                %705 = vst [vmem:[%s257 + $0xdf0] sm:$0xff] %v704
                %v706 = vld [vmem:[%s256 + $0x3800] sm:$0xff]
                %707 = vst [vmem:[%s257 + $0xe00] sm:$0xff] %v706
                %v708 = vld [vmem:[%s256 + $0x3840] sm:$0xff]
                %709 = vst [vmem:[%s257 + $0xe10] sm:$0xff] %v708
                %v710 = vld [vmem:[%s256 + $0x3880] sm:$0xff]
                %711 = vst [vmem:[%s257 + $0xe20] sm:$0xff] %v710
                %v712 = vld [vmem:[%s256 + $0x38c0] sm:$0xff]
                %713 = vst [vmem:[%s257 + $0xe30] sm:$0xff] %v712
                %v714 = vld [vmem:[%s256 + $0x3900] sm:$0xff]
                %715 = vst [vmem:[%s257 + $0xe40] sm:$0xff] %v714
                %v716 = vld [vmem:[%s256 + $0x3940] sm:$0xff]
                %717 = vst [vmem:[%s257 + $0xe50] sm:$0xff] %v716
                %v718 = vld [vmem:[%s256 + $0x3980] sm:$0xff]
                %719 = vst [vmem:[%s257 + $0xe60] sm:$0xff] %v718
                %v720 = vld [vmem:[%s256 + $0x39c0] sm:$0xff]
                %721 = vst [vmem:[%s257 + $0xe70] sm:$0xff] %v720
                %v722 = vld [vmem:[%s256 + $0x3a00] sm:$0xff]
                %723 = vst [vmem:[%s257 + $0xe80] sm:$0xff] %v722
                %v724 = vld [vmem:[%s256 + $0x3a40] sm:$0xff]
                %725 = vst [vmem:[%s257 + $0xe90] sm:$0xff] %v724
                %v726 = vld [vmem:[%s256 + $0x3a80] sm:$0xff]
                %727 = vst [vmem:[%s257 + $0xea0] sm:$0xff] %v726
                %v728 = vld [vmem:[%s256 + $0x3ac0] sm:$0xff]
                %729 = vst [vmem:[%s257 + $0xeb0] sm:$0xff] %v728
                %v730 = vld [vmem:[%s256 + $0x3b00] sm:$0xff]
                %731 = vst [vmem:[%s257 + $0xec0] sm:$0xff] %v730
                %v732 = vld [vmem:[%s256 + $0x3b40] sm:$0xff]
                %733 = vst [vmem:[%s257 + $0xed0] sm:$0xff] %v732
                %v734 = vld [vmem:[%s256 + $0x3b80] sm:$0xff]
                %735 = vst [vmem:[%s257 + $0xee0] sm:$0xff] %v734
                %v736 = vld [vmem:[%s256 + $0x3bc0] sm:$0xff]
                %737 = vst [vmem:[%s257 + $0xef0] sm:$0xff] %v736
                %v738 = vld [vmem:[%s256 + $0x3c00] sm:$0xff]
                %739 = vst [vmem:[%s257 + $0xf00] sm:$0xff] %v738
                %v740 = vld [vmem:[%s256 + $0x3c40] sm:$0xff]
                %741 = vst [vmem:[%s257 + $0xf10] sm:$0xff] %v740
                %v742 = vld [vmem:[%s256 + $0x3c80] sm:$0xff]
                %743 = vst [vmem:[%s257 + $0xf20] sm:$0xff] %v742
                %v744 = vld [vmem:[%s256 + $0x3cc0] sm:$0xff]
                %745 = vst [vmem:[%s257 + $0xf30] sm:$0xff] %v744
                %v746 = vld [vmem:[%s256 + $0x3d00] sm:$0xff]
                %747 = vst [vmem:[%s257 + $0xf40] sm:$0xff] %v746
                %v748 = vld [vmem:[%s256 + $0x3d40] sm:$0xff]
                %749 = vst [vmem:[%s257 + $0xf50] sm:$0xff] %v748
                %v750 = vld [vmem:[%s256 + $0x3d80] sm:$0xff]
                %751 = vst [vmem:[%s257 + $0xf60] sm:$0xff] %v750
                %v752 = vld [vmem:[%s256 + $0x3dc0] sm:$0xff]
                %753 = vst [vmem:[%s257 + $0xf70] sm:$0xff] %v752
                %v754 = vld [vmem:[%s256 + $0x3e00] sm:$0xff]
                %755 = vst [vmem:[%s257 + $0xf80] sm:$0xff] %v754
                %v756 = vld [vmem:[%s256 + $0x3e40] sm:$0xff]
                %757 = vst [vmem:[%s257 + $0xf90] sm:$0xff] %v756
                %v758 = vld [vmem:[%s256 + $0x3e80] sm:$0xff]
                %759 = vst [vmem:[%s257 + $0xfa0] sm:$0xff] %v758
                %v760 = vld [vmem:[%s256 + $0x3ec0] sm:$0xff]
                %761 = vst [vmem:[%s257 + $0xfb0] sm:$0xff] %v760
                %v762 = vld [vmem:[%s256 + $0x3f00] sm:$0xff]
                %763 = vst [vmem:[%s257 + $0xfc0] sm:$0xff] %v762
                %v764 = vld [vmem:[%s256 + $0x3f40] sm:$0xff]
                %765 = vst [vmem:[%s257 + $0xfd0] sm:$0xff] %v764
                %v766 = vld [vmem:[%s256 + $0x3f80] sm:$0xff]
                %767 = vst [vmem:[%s257 + $0xfe0] sm:$0xff] %v766
                %v768 = vld [vmem:[%s256 + $0x3fc0] sm:$0xff]
                %769 = vst [vmem:[%s257 + $0xff0] sm:$0xff] %v768
                %v770 = vld [vmem:[%s256 + $0x4000] sm:$0xff]
                %771 = vst [vmem:[%s257 + $0x1000] sm:$0xff] %v770
                %v772 = vld [vmem:[%s256 + $0x4040] sm:$0xff]
                %773 = vst [vmem:[%s257 + $0x1010] sm:$0xff] %v772
                %v774 = vld [vmem:[%s256 + $0x4080] sm:$0xff]
                %775 = vst [vmem:[%s257 + $0x1020] sm:$0xff] %v774
                %v776 = vld [vmem:[%s256 + $0x40c0] sm:$0xff]
                %777 = vst [vmem:[%s257 + $0x1030] sm:$0xff] %v776
                %v778 = vld [vmem:[%s256 + $0x4100] sm:$0xff]
                %779 = vst [vmem:[%s257 + $0x1040] sm:$0xff] %v778
                %v780 = vld [vmem:[%s256 + $0x4140] sm:$0xff]
                %781 = vst [vmem:[%s257 + $0x1050] sm:$0xff] %v780
                %v782 = vld [vmem:[%s256 + $0x4180] sm:$0xff]
                %783 = vst [vmem:[%s257 + $0x1060] sm:$0xff] %v782
                %v784 = vld [vmem:[%s256 + $0x41c0] sm:$0xff]
                %785 = vst [vmem:[%s257 + $0x1070] sm:$0xff] %v784
                %v786 = vld [vmem:[%s256 + $0x4200] sm:$0xff]
                %787 = vst [vmem:[%s257 + $0x1080] sm:$0xff] %v786
                %v788 = vld [vmem:[%s256 + $0x4240] sm:$0xff]
                %789 = vst [vmem:[%s257 + $0x1090] sm:$0xff] %v788
                %v790 = vld [vmem:[%s256 + $0x4280] sm:$0xff]
                %791 = vst [vmem:[%s257 + $0x10a0] sm:$0xff] %v790
                %v792 = vld [vmem:[%s256 + $0x42c0] sm:$0xff]
                %793 = vst [vmem:[%s257 + $0x10b0] sm:$0xff] %v792
                %v794 = vld [vmem:[%s256 + $0x4300] sm:$0xff]
                %795 = vst [vmem:[%s257 + $0x10c0] sm:$0xff] %v794
                %v796 = vld [vmem:[%s256 + $0x4340] sm:$0xff]
                %797 = vst [vmem:[%s257 + $0x10d0] sm:$0xff] %v796
                %v798 = vld [vmem:[%s256 + $0x4380] sm:$0xff]
                %799 = vst [vmem:[%s257 + $0x10e0] sm:$0xff] %v798
                %v800 = vld [vmem:[%s256 + $0x43c0] sm:$0xff]
                %801 = vst [vmem:[%s257 + $0x10f0] sm:$0xff] %v800
                %v802 = vld [vmem:[%s256 + $0x4400] sm:$0xff]
                %803 = vst [vmem:[%s257 + $0x1100] sm:$0xff] %v802
                %v804 = vld [vmem:[%s256 + $0x4440] sm:$0xff]
                %805 = vst [vmem:[%s257 + $0x1110] sm:$0xff] %v804
                %v806 = vld [vmem:[%s256 + $0x4480] sm:$0xff]
                %807 = vst [vmem:[%s257 + $0x1120] sm:$0xff] %v806
                %v808 = vld [vmem:[%s256 + $0x44c0] sm:$0xff]
                %809 = vst [vmem:[%s257 + $0x1130] sm:$0xff] %v808
                %v810 = vld [vmem:[%s256 + $0x4500] sm:$0xff]
                %811 = vst [vmem:[%s257 + $0x1140] sm:$0xff] %v810
                %v812 = vld [vmem:[%s256 + $0x4540] sm:$0xff]
                %813 = vst [vmem:[%s257 + $0x1150] sm:$0xff] %v812
                %v814 = vld [vmem:[%s256 + $0x4580] sm:$0xff]
                %815 = vst [vmem:[%s257 + $0x1160] sm:$0xff] %v814
                %v816 = vld [vmem:[%s256 + $0x45c0] sm:$0xff]
                %817 = vst [vmem:[%s257 + $0x1170] sm:$0xff] %v816
                %v818 = vld [vmem:[%s256 + $0x4600] sm:$0xff]
                %819 = vst [vmem:[%s257 + $0x1180] sm:$0xff] %v818
                %v820 = vld [vmem:[%s256 + $0x4640] sm:$0xff]
                %821 = vst [vmem:[%s257 + $0x1190] sm:$0xff] %v820
                %v822 = vld [vmem:[%s256 + $0x4680] sm:$0xff]
                %823 = vst [vmem:[%s257 + $0x11a0] sm:$0xff] %v822
                %v824 = vld [vmem:[%s256 + $0x46c0] sm:$0xff]
                %825 = vst [vmem:[%s257 + $0x11b0] sm:$0xff] %v824
                %v826 = vld [vmem:[%s256 + $0x4700] sm:$0xff]
                %827 = vst [vmem:[%s257 + $0x11c0] sm:$0xff] %v826
                %v828 = vld [vmem:[%s256 + $0x4740] sm:$0xff]
                %829 = vst [vmem:[%s257 + $0x11d0] sm:$0xff] %v828
                %v830 = vld [vmem:[%s256 + $0x4780] sm:$0xff]
                %831 = vst [vmem:[%s257 + $0x11e0] sm:$0xff] %v830
                %v832 = vld [vmem:[%s256 + $0x47c0] sm:$0xff]
                %833 = vst [vmem:[%s257 + $0x11f0] sm:$0xff] %v832
                %v834 = vld [vmem:[%s256 + $0x4800] sm:$0xff]
                %835 = vst [vmem:[%s257 + $0x1200] sm:$0xff] %v834
                %v836 = vld [vmem:[%s256 + $0x4840] sm:$0xff]
                %837 = vst [vmem:[%s257 + $0x1210] sm:$0xff] %v836
                %v838 = vld [vmem:[%s256 + $0x4880] sm:$0xff]
                %839 = vst [vmem:[%s257 + $0x1220] sm:$0xff] %v838
                %v840 = vld [vmem:[%s256 + $0x48c0] sm:$0xff]
                %841 = vst [vmem:[%s257 + $0x1230] sm:$0xff] %v840
                %v842 = vld [vmem:[%s256 + $0x4900] sm:$0xff]
                %843 = vst [vmem:[%s257 + $0x1240] sm:$0xff] %v842
                %v844 = vld [vmem:[%s256 + $0x4940] sm:$0xff]
                %845 = vst [vmem:[%s257 + $0x1250] sm:$0xff] %v844
                %v846 = vld [vmem:[%s256 + $0x4980] sm:$0xff]
                %847 = vst [vmem:[%s257 + $0x1260] sm:$0xff] %v846
                %v848 = vld [vmem:[%s256 + $0x49c0] sm:$0xff]
                %849 = vst [vmem:[%s257 + $0x1270] sm:$0xff] %v848
                %v850 = vld [vmem:[%s256 + $0x4a00] sm:$0xff]
                %851 = vst [vmem:[%s257 + $0x1280] sm:$0xff] %v850
                %v852 = vld [vmem:[%s256 + $0x4a40] sm:$0xff]
                %853 = vst [vmem:[%s257 + $0x1290] sm:$0xff] %v852
                %v854 = vld [vmem:[%s256 + $0x4a80] sm:$0xff]
                %855 = vst [vmem:[%s257 + $0x12a0] sm:$0xff] %v854
                %v856 = vld [vmem:[%s256 + $0x4ac0] sm:$0xff]
                %857 = vst [vmem:[%s257 + $0x12b0] sm:$0xff] %v856
                %v858 = vld [vmem:[%s256 + $0x4b00] sm:$0xff]
                %859 = vst [vmem:[%s257 + $0x12c0] sm:$0xff] %v858
                %v860 = vld [vmem:[%s256 + $0x4b40] sm:$0xff]
                %861 = vst [vmem:[%s257 + $0x12d0] sm:$0xff] %v860
                %v862 = vld [vmem:[%s256 + $0x4b80] sm:$0xff]
                %863 = vst [vmem:[%s257 + $0x12e0] sm:$0xff] %v862
                %v864 = vld [vmem:[%s256 + $0x4bc0] sm:$0xff]
                %865 = vst [vmem:[%s257 + $0x12f0] sm:$0xff] %v864
                %v866 = vld [vmem:[%s256 + $0x4c00] sm:$0xff]
                %867 = vst [vmem:[%s257 + $0x1300] sm:$0xff] %v866
                %v868 = vld [vmem:[%s256 + $0x4c40] sm:$0xff]
                %869 = vst [vmem:[%s257 + $0x1310] sm:$0xff] %v868
                %v870 = vld [vmem:[%s256 + $0x4c80] sm:$0xff]
                %871 = vst [vmem:[%s257 + $0x1320] sm:$0xff] %v870
                %v872 = vld [vmem:[%s256 + $0x4cc0] sm:$0xff]
                %873 = vst [vmem:[%s257 + $0x1330] sm:$0xff] %v872
                %v874 = vld [vmem:[%s256 + $0x4d00] sm:$0xff]
                %875 = vst [vmem:[%s257 + $0x1340] sm:$0xff] %v874
                %v876 = vld [vmem:[%s256 + $0x4d40] sm:$0xff]
                %877 = vst [vmem:[%s257 + $0x1350] sm:$0xff] %v876
                %v878 = vld [vmem:[%s256 + $0x4d80] sm:$0xff]
                %879 = vst [vmem:[%s257 + $0x1360] sm:$0xff] %v878
                %v880 = vld [vmem:[%s256 + $0x4dc0] sm:$0xff]
                %881 = vst [vmem:[%s257 + $0x1370] sm:$0xff] %v880
                %v882 = vld [vmem:[%s256 + $0x4e00] sm:$0xff]
                %883 = vst [vmem:[%s257 + $0x1380] sm:$0xff] %v882
                %v884 = vld [vmem:[%s256 + $0x4e40] sm:$0xff]
                %885 = vst [vmem:[%s257 + $0x1390] sm:$0xff] %v884
                %v886 = vld [vmem:[%s256 + $0x4e80] sm:$0xff]
                %887 = vst [vmem:[%s257 + $0x13a0] sm:$0xff] %v886
                %v888 = vld [vmem:[%s256 + $0x4ec0] sm:$0xff]
                %889 = vst [vmem:[%s257 + $0x13b0] sm:$0xff] %v888
                %v890 = vld [vmem:[%s256 + $0x4f00] sm:$0xff]
                %891 = vst [vmem:[%s257 + $0x13c0] sm:$0xff] %v890
                %v892 = vld [vmem:[%s256 + $0x4f40] sm:$0xff]
                %893 = vst [vmem:[%s257 + $0x13d0] sm:$0xff] %v892
                %v894 = vld [vmem:[%s256 + $0x4f80] sm:$0xff]
                %895 = vst [vmem:[%s257 + $0x13e0] sm:$0xff] %v894
                %v896 = vld [vmem:[%s256 + $0x4fc0] sm:$0xff]
                %897 = vst [vmem:[%s257 + $0x13f0] sm:$0xff] %v896
                %v898 = vld [vmem:[%s256 + $0x5000] sm:$0xff]
                %899 = vst [vmem:[%s257 + $0x1400] sm:$0xff] %v898
                %v900 = vld [vmem:[%s256 + $0x5040] sm:$0xff]
                %901 = vst [vmem:[%s257 + $0x1410] sm:$0xff] %v900
                %v902 = vld [vmem:[%s256 + $0x5080] sm:$0xff]
                %903 = vst [vmem:[%s257 + $0x1420] sm:$0xff] %v902
                %v904 = vld [vmem:[%s256 + $0x50c0] sm:$0xff]
                %905 = vst [vmem:[%s257 + $0x1430] sm:$0xff] %v904
                %v906 = vld [vmem:[%s256 + $0x5100] sm:$0xff]
                %907 = vst [vmem:[%s257 + $0x1440] sm:$0xff] %v906
                %v908 = vld [vmem:[%s256 + $0x5140] sm:$0xff]
                %909 = vst [vmem:[%s257 + $0x1450] sm:$0xff] %v908
                %v910 = vld [vmem:[%s256 + $0x5180] sm:$0xff]
                %911 = vst [vmem:[%s257 + $0x1460] sm:$0xff] %v910
                %v912 = vld [vmem:[%s256 + $0x51c0] sm:$0xff]
                %913 = vst [vmem:[%s257 + $0x1470] sm:$0xff] %v912
                %v914 = vld [vmem:[%s256 + $0x5200] sm:$0xff]
                %915 = vst [vmem:[%s257 + $0x1480] sm:$0xff] %v914
                %v916 = vld [vmem:[%s256 + $0x5240] sm:$0xff]
                %917 = vst [vmem:[%s257 + $0x1490] sm:$0xff] %v916
                %v918 = vld [vmem:[%s256 + $0x5280] sm:$0xff]
                %919 = vst [vmem:[%s257 + $0x14a0] sm:$0xff] %v918
                %v920 = vld [vmem:[%s256 + $0x52c0] sm:$0xff]
                %921 = vst [vmem:[%s257 + $0x14b0] sm:$0xff] %v920
                %v922 = vld [vmem:[%s256 + $0x5300] sm:$0xff]
                %923 = vst [vmem:[%s257 + $0x14c0] sm:$0xff] %v922
                %v924 = vld [vmem:[%s256 + $0x5340] sm:$0xff]
                %925 = vst [vmem:[%s257 + $0x14d0] sm:$0xff] %v924
                %v926 = vld [vmem:[%s256 + $0x5380] sm:$0xff]
                %927 = vst [vmem:[%s257 + $0x14e0] sm:$0xff] %v926
                %v928 = vld [vmem:[%s256 + $0x53c0] sm:$0xff]
                %929 = vst [vmem:[%s257 + $0x14f0] sm:$0xff] %v928
                %v930 = vld [vmem:[%s256 + $0x5400] sm:$0xff]
                %931 = vst [vmem:[%s257 + $0x1500] sm:$0xff] %v930
                %v932 = vld [vmem:[%s256 + $0x5440] sm:$0xff]
                %933 = vst [vmem:[%s257 + $0x1510] sm:$0xff] %v932
                %v934 = vld [vmem:[%s256 + $0x5480] sm:$0xff]
                %935 = vst [vmem:[%s257 + $0x1520] sm:$0xff] %v934
                %v936 = vld [vmem:[%s256 + $0x54c0] sm:$0xff]
                %937 = vst [vmem:[%s257 + $0x1530] sm:$0xff] %v936
                %v938 = vld [vmem:[%s256 + $0x5500] sm:$0xff]
                %939 = vst [vmem:[%s257 + $0x1540] sm:$0xff] %v938
                %v940 = vld [vmem:[%s256 + $0x5540] sm:$0xff]
                %941 = vst [vmem:[%s257 + $0x1550] sm:$0xff] %v940
                %v942 = vld [vmem:[%s256 + $0x5580] sm:$0xff]
                %943 = vst [vmem:[%s257 + $0x1560] sm:$0xff] %v942
                %v944 = vld [vmem:[%s256 + $0x55c0] sm:$0xff]
                %945 = vst [vmem:[%s257 + $0x1570] sm:$0xff] %v944
                %v946 = vld [vmem:[%s256 + $0x5600] sm:$0xff]
                %947 = vst [vmem:[%s257 + $0x1580] sm:$0xff] %v946
                %v948 = vld [vmem:[%s256 + $0x5640] sm:$0xff]
                %949 = vst [vmem:[%s257 + $0x1590] sm:$0xff] %v948
                %v950 = vld [vmem:[%s256 + $0x5680] sm:$0xff]
                %951 = vst [vmem:[%s257 + $0x15a0] sm:$0xff] %v950
                %v952 = vld [vmem:[%s256 + $0x56c0] sm:$0xff]
                %953 = vst [vmem:[%s257 + $0x15b0] sm:$0xff] %v952
                %v954 = vld [vmem:[%s256 + $0x5700] sm:$0xff]
                %955 = vst [vmem:[%s257 + $0x15c0] sm:$0xff] %v954
                %v956 = vld [vmem:[%s256 + $0x5740] sm:$0xff]
                %957 = vst [vmem:[%s257 + $0x15d0] sm:$0xff] %v956
                %v958 = vld [vmem:[%s256 + $0x5780] sm:$0xff]
                %959 = vst [vmem:[%s257 + $0x15e0] sm:$0xff] %v958
                %v960 = vld [vmem:[%s256 + $0x57c0] sm:$0xff]
                %961 = vst [vmem:[%s257 + $0x15f0] sm:$0xff] %v960
                %v962 = vld [vmem:[%s256 + $0x5800] sm:$0xff]
                %963 = vst [vmem:[%s257 + $0x1600] sm:$0xff] %v962
                %v964 = vld [vmem:[%s256 + $0x5840] sm:$0xff]
                %965 = vst [vmem:[%s257 + $0x1610] sm:$0xff] %v964
                %v966 = vld [vmem:[%s256 + $0x5880] sm:$0xff]
                %967 = vst [vmem:[%s257 + $0x1620] sm:$0xff] %v966
                %v968 = vld [vmem:[%s256 + $0x58c0] sm:$0xff]
                %969 = vst [vmem:[%s257 + $0x1630] sm:$0xff] %v968
                %v970 = vld [vmem:[%s256 + $0x5900] sm:$0xff]
                %971 = vst [vmem:[%s257 + $0x1640] sm:$0xff] %v970
                %v972 = vld [vmem:[%s256 + $0x5940] sm:$0xff]
                %973 = vst [vmem:[%s257 + $0x1650] sm:$0xff] %v972
                %v974 = vld [vmem:[%s256 + $0x5980] sm:$0xff]
                %975 = vst [vmem:[%s257 + $0x1660] sm:$0xff] %v974
                %v976 = vld [vmem:[%s256 + $0x59c0] sm:$0xff]
                %977 = vst [vmem:[%s257 + $0x1670] sm:$0xff] %v976
                %v978 = vld [vmem:[%s256 + $0x5a00] sm:$0xff]
                %979 = vst [vmem:[%s257 + $0x1680] sm:$0xff] %v978
                %v980 = vld [vmem:[%s256 + $0x5a40] sm:$0xff]
                %981 = vst [vmem:[%s257 + $0x1690] sm:$0xff] %v980
                %v982 = vld [vmem:[%s256 + $0x5a80] sm:$0xff]
                %983 = vst [vmem:[%s257 + $0x16a0] sm:$0xff] %v982
                %v984 = vld [vmem:[%s256 + $0x5ac0] sm:$0xff]
                %985 = vst [vmem:[%s257 + $0x16b0] sm:$0xff] %v984
                %v986 = vld [vmem:[%s256 + $0x5b00] sm:$0xff]
                %987 = vst [vmem:[%s257 + $0x16c0] sm:$0xff] %v986
                %v988 = vld [vmem:[%s256 + $0x5b40] sm:$0xff]
                %989 = vst [vmem:[%s257 + $0x16d0] sm:$0xff] %v988
                %v990 = vld [vmem:[%s256 + $0x5b80] sm:$0xff]
                %991 = vst [vmem:[%s257 + $0x16e0] sm:$0xff] %v990
                %v992 = vld [vmem:[%s256 + $0x5bc0] sm:$0xff]
                %993 = vst [vmem:[%s257 + $0x16f0] sm:$0xff] %v992
                %v994 = vld [vmem:[%s256 + $0x5c00] sm:$0xff]
                %995 = vst [vmem:[%s257 + $0x1700] sm:$0xff] %v994
                %v996 = vld [vmem:[%s256 + $0x5c40] sm:$0xff]
                %997 = vst [vmem:[%s257 + $0x1710] sm:$0xff] %v996
                %v998 = vld [vmem:[%s256 + $0x5c80] sm:$0xff]
                %999 = vst [vmem:[%s257 + $0x1720] sm:$0xff] %v998
                %v1000 = vld [vmem:[%s256 + $0x5cc0] sm:$0xff]
                %1001 = vst [vmem:[%s257 + $0x1730] sm:$0xff] %v1000
                %v1002 = vld [vmem:[%s256 + $0x5d00] sm:$0xff]
                %1003 = vst [vmem:[%s257 + $0x1740] sm:$0xff] %v1002
                %v1004 = vld [vmem:[%s256 + $0x5d40] sm:$0xff]
                %1005 = vst [vmem:[%s257 + $0x1750] sm:$0xff] %v1004
                %v1006 = vld [vmem:[%s256 + $0x5d80] sm:$0xff]
                %1007 = vst [vmem:[%s257 + $0x1760] sm:$0xff] %v1006
                %v1008 = vld [vmem:[%s256 + $0x5dc0] sm:$0xff]
                %1009 = vst [vmem:[%s257 + $0x1770] sm:$0xff] %v1008
                %v1010 = vld [vmem:[%s256 + $0x5e00] sm:$0xff]
                %1011 = vst [vmem:[%s257 + $0x1780] sm:$0xff] %v1010
                %v1012 = vld [vmem:[%s256 + $0x5e40] sm:$0xff]
                %1013 = vst [vmem:[%s257 + $0x1790] sm:$0xff] %v1012
                %v1014 = vld [vmem:[%s256 + $0x5e80] sm:$0xff]
                %1015 = vst [vmem:[%s257 + $0x17a0] sm:$0xff] %v1014
                %v1016 = vld [vmem:[%s256 + $0x5ec0] sm:$0xff]
                %1017 = vst [vmem:[%s257 + $0x17b0] sm:$0xff] %v1016
                %v1018 = vld [vmem:[%s256 + $0x5f00] sm:$0xff]
                %1019 = vst [vmem:[%s257 + $0x17c0] sm:$0xff] %v1018
                %v1020 = vld [vmem:[%s256 + $0x5f40] sm:$0xff]
                %1021 = vst [vmem:[%s257 + $0x17d0] sm:$0xff] %v1020
                %v1022 = vld [vmem:[%s256 + $0x5f80] sm:$0xff]
                %1023 = vst [vmem:[%s257 + $0x17e0] sm:$0xff] %v1022
                %v1024 = vld [vmem:[%s256 + $0x5fc0] sm:$0xff]
                %1025 = vst [vmem:[%s257 + $0x17f0] sm:$0xff] %v1024
                %v1026 = vld [vmem:[%s256 + $0x6000] sm:$0xff]
                %1027 = vst [vmem:[%s257 + $0x1800] sm:$0xff] %v1026
                %v1028 = vld [vmem:[%s256 + $0x6040] sm:$0xff]
                %1029 = vst [vmem:[%s257 + $0x1810] sm:$0xff] %v1028
                %v1030 = vld [vmem:[%s256 + $0x6080] sm:$0xff]
                %1031 = vst [vmem:[%s257 + $0x1820] sm:$0xff] %v1030
                %v1032 = vld [vmem:[%s256 + $0x60c0] sm:$0xff]
                %1033 = vst [vmem:[%s257 + $0x1830] sm:$0xff] %v1032
                %v1034 = vld [vmem:[%s256 + $0x6100] sm:$0xff]
                %1035 = vst [vmem:[%s257 + $0x1840] sm:$0xff] %v1034
                %v1036 = vld [vmem:[%s256 + $0x6140] sm:$0xff]
                %1037 = vst [vmem:[%s257 + $0x1850] sm:$0xff] %v1036
                %v1038 = vld [vmem:[%s256 + $0x6180] sm:$0xff]
                %1039 = vst [vmem:[%s257 + $0x1860] sm:$0xff] %v1038
                %v1040 = vld [vmem:[%s256 + $0x61c0] sm:$0xff]
                %1041 = vst [vmem:[%s257 + $0x1870] sm:$0xff] %v1040
                %v1042 = vld [vmem:[%s256 + $0x6200] sm:$0xff]
                %1043 = vst [vmem:[%s257 + $0x1880] sm:$0xff] %v1042
                %v1044 = vld [vmem:[%s256 + $0x6240] sm:$0xff]
                %1045 = vst [vmem:[%s257 + $0x1890] sm:$0xff] %v1044
                %v1046 = vld [vmem:[%s256 + $0x6280] sm:$0xff]
                %1047 = vst [vmem:[%s257 + $0x18a0] sm:$0xff] %v1046
                %v1048 = vld [vmem:[%s256 + $0x62c0] sm:$0xff]
                %1049 = vst [vmem:[%s257 + $0x18b0] sm:$0xff] %v1048
                %v1050 = vld [vmem:[%s256 + $0x6300] sm:$0xff]
                %1051 = vst [vmem:[%s257 + $0x18c0] sm:$0xff] %v1050
                %v1052 = vld [vmem:[%s256 + $0x6340] sm:$0xff]
                %1053 = vst [vmem:[%s257 + $0x18d0] sm:$0xff] %v1052
                %v1054 = vld [vmem:[%s256 + $0x6380] sm:$0xff]
                %1055 = vst [vmem:[%s257 + $0x18e0] sm:$0xff] %v1054
                %v1056 = vld [vmem:[%s256 + $0x63c0] sm:$0xff]
                %1057 = vst [vmem:[%s257 + $0x18f0] sm:$0xff] %v1056
                %v1058 = vld [vmem:[%s256 + $0x6400] sm:$0xff]
                %1059 = vst [vmem:[%s257 + $0x1900] sm:$0xff] %v1058
                %v1060 = vld [vmem:[%s256 + $0x6440] sm:$0xff]
                %1061 = vst [vmem:[%s257 + $0x1910] sm:$0xff] %v1060
                %v1062 = vld [vmem:[%s256 + $0x6480] sm:$0xff]
                %1063 = vst [vmem:[%s257 + $0x1920] sm:$0xff] %v1062
                %v1064 = vld [vmem:[%s256 + $0x64c0] sm:$0xff]
                %1065 = vst [vmem:[%s257 + $0x1930] sm:$0xff] %v1064
                %v1066 = vld [vmem:[%s256 + $0x6500] sm:$0xff]
                %1067 = vst [vmem:[%s257 + $0x1940] sm:$0xff] %v1066
                %v1068 = vld [vmem:[%s256 + $0x6540] sm:$0xff]
                %1069 = vst [vmem:[%s257 + $0x1950] sm:$0xff] %v1068
                %v1070 = vld [vmem:[%s256 + $0x6580] sm:$0xff]
                %1071 = vst [vmem:[%s257 + $0x1960] sm:$0xff] %v1070
                %v1072 = vld [vmem:[%s256 + $0x65c0] sm:$0xff]
                %1073 = vst [vmem:[%s257 + $0x1970] sm:$0xff] %v1072
                %v1074 = vld [vmem:[%s256 + $0x6600] sm:$0xff]
                %1075 = vst [vmem:[%s257 + $0x1980] sm:$0xff] %v1074
                %v1076 = vld [vmem:[%s256 + $0x6640] sm:$0xff]
                %1077 = vst [vmem:[%s257 + $0x1990] sm:$0xff] %v1076
                %v1078 = vld [vmem:[%s256 + $0x6680] sm:$0xff]
                %1079 = vst [vmem:[%s257 + $0x19a0] sm:$0xff] %v1078
                %v1080 = vld [vmem:[%s256 + $0x66c0] sm:$0xff]
                %1081 = vst [vmem:[%s257 + $0x19b0] sm:$0xff] %v1080
                %v1082 = vld [vmem:[%s256 + $0x6700] sm:$0xff]
                %1083 = vst [vmem:[%s257 + $0x19c0] sm:$0xff] %v1082
                %v1084 = vld [vmem:[%s256 + $0x6740] sm:$0xff]
                %1085 = vst [vmem:[%s257 + $0x19d0] sm:$0xff] %v1084
                %v1086 = vld [vmem:[%s256 + $0x6780] sm:$0xff]
                %1087 = vst [vmem:[%s257 + $0x19e0] sm:$0xff] %v1086
                %v1088 = vld [vmem:[%s256 + $0x67c0] sm:$0xff]
                %1089 = vst [vmem:[%s257 + $0x19f0] sm:$0xff] %v1088
                %v1090 = vld [vmem:[%s256 + $0x6800] sm:$0xff]
                %1091 = vst [vmem:[%s257 + $0x1a00] sm:$0xff] %v1090
                %v1092 = vld [vmem:[%s256 + $0x6840] sm:$0xff]
                %1093 = vst [vmem:[%s257 + $0x1a10] sm:$0xff] %v1092
                %v1094 = vld [vmem:[%s256 + $0x6880] sm:$0xff]
                %1095 = vst [vmem:[%s257 + $0x1a20] sm:$0xff] %v1094
                %v1096 = vld [vmem:[%s256 + $0x68c0] sm:$0xff]
                %1097 = vst [vmem:[%s257 + $0x1a30] sm:$0xff] %v1096
                %v1098 = vld [vmem:[%s256 + $0x6900] sm:$0xff]
                %1099 = vst [vmem:[%s257 + $0x1a40] sm:$0xff] %v1098
                %v1100 = vld [vmem:[%s256 + $0x6940] sm:$0xff]
                %1101 = vst [vmem:[%s257 + $0x1a50] sm:$0xff] %v1100
                %v1102 = vld [vmem:[%s256 + $0x6980] sm:$0xff]
                %1103 = vst [vmem:[%s257 + $0x1a60] sm:$0xff] %v1102
                %v1104 = vld [vmem:[%s256 + $0x69c0] sm:$0xff]
                %1105 = vst [vmem:[%s257 + $0x1a70] sm:$0xff] %v1104
                %v1106 = vld [vmem:[%s256 + $0x6a00] sm:$0xff]
                %1107 = vst [vmem:[%s257 + $0x1a80] sm:$0xff] %v1106
                %v1108 = vld [vmem:[%s256 + $0x6a40] sm:$0xff]
                %1109 = vst [vmem:[%s257 + $0x1a90] sm:$0xff] %v1108
                %v1110 = vld [vmem:[%s256 + $0x6a80] sm:$0xff]
                %1111 = vst [vmem:[%s257 + $0x1aa0] sm:$0xff] %v1110
                %v1112 = vld [vmem:[%s256 + $0x6ac0] sm:$0xff]
                %1113 = vst [vmem:[%s257 + $0x1ab0] sm:$0xff] %v1112
                %v1114 = vld [vmem:[%s256 + $0x6b00] sm:$0xff]
                %1115 = vst [vmem:[%s257 + $0x1ac0] sm:$0xff] %v1114
                %v1116 = vld [vmem:[%s256 + $0x6b40] sm:$0xff]
                %1117 = vst [vmem:[%s257 + $0x1ad0] sm:$0xff] %v1116
                %v1118 = vld [vmem:[%s256 + $0x6b80] sm:$0xff]
                %1119 = vst [vmem:[%s257 + $0x1ae0] sm:$0xff] %v1118
                %v1120 = vld [vmem:[%s256 + $0x6bc0] sm:$0xff]
                %1121 = vst [vmem:[%s257 + $0x1af0] sm:$0xff] %v1120
                %v1122 = vld [vmem:[%s256 + $0x6c00] sm:$0xff]
                %1123 = vst [vmem:[%s257 + $0x1b00] sm:$0xff] %v1122
                %v1124 = vld [vmem:[%s256 + $0x6c40] sm:$0xff]
                %1125 = vst [vmem:[%s257 + $0x1b10] sm:$0xff] %v1124
                %v1126 = vld [vmem:[%s256 + $0x6c80] sm:$0xff]
                %1127 = vst [vmem:[%s257 + $0x1b20] sm:$0xff] %v1126
                %v1128 = vld [vmem:[%s256 + $0x6cc0] sm:$0xff]
                %1129 = vst [vmem:[%s257 + $0x1b30] sm:$0xff] %v1128
                %v1130 = vld [vmem:[%s256 + $0x6d00] sm:$0xff]
                %1131 = vst [vmem:[%s257 + $0x1b40] sm:$0xff] %v1130
                %v1132 = vld [vmem:[%s256 + $0x6d40] sm:$0xff]
                %1133 = vst [vmem:[%s257 + $0x1b50] sm:$0xff] %v1132
                %v1134 = vld [vmem:[%s256 + $0x6d80] sm:$0xff]
                %1135 = vst [vmem:[%s257 + $0x1b60] sm:$0xff] %v1134
                %v1136 = vld [vmem:[%s256 + $0x6dc0] sm:$0xff]
                %1137 = vst [vmem:[%s257 + $0x1b70] sm:$0xff] %v1136
                %v1138 = vld [vmem:[%s256 + $0x6e00] sm:$0xff]
                %1139 = vst [vmem:[%s257 + $0x1b80] sm:$0xff] %v1138
                %v1140 = vld [vmem:[%s256 + $0x6e40] sm:$0xff]
                %1141 = vst [vmem:[%s257 + $0x1b90] sm:$0xff] %v1140
                %v1142 = vld [vmem:[%s256 + $0x6e80] sm:$0xff]
                %1143 = vst [vmem:[%s257 + $0x1ba0] sm:$0xff] %v1142
                %v1144 = vld [vmem:[%s256 + $0x6ec0] sm:$0xff]
                %1145 = vst [vmem:[%s257 + $0x1bb0] sm:$0xff] %v1144
                %v1146 = vld [vmem:[%s256 + $0x6f00] sm:$0xff]
                %1147 = vst [vmem:[%s257 + $0x1bc0] sm:$0xff] %v1146
                %v1148 = vld [vmem:[%s256 + $0x6f40] sm:$0xff]
                %1149 = vst [vmem:[%s257 + $0x1bd0] sm:$0xff] %v1148
                %v1150 = vld [vmem:[%s256 + $0x6f80] sm:$0xff]
                %1151 = vst [vmem:[%s257 + $0x1be0] sm:$0xff] %v1150
                %v1152 = vld [vmem:[%s256 + $0x6fc0] sm:$0xff]
                %1153 = vst [vmem:[%s257 + $0x1bf0] sm:$0xff] %v1152
                %v1154 = vld [vmem:[%s256 + $0x7000] sm:$0xff]
                %1155 = vst [vmem:[%s257 + $0x1c00] sm:$0xff] %v1154
                %v1156 = vld [vmem:[%s256 + $0x7040] sm:$0xff]
                %1157 = vst [vmem:[%s257 + $0x1c10] sm:$0xff] %v1156
                %v1158 = vld [vmem:[%s256 + $0x7080] sm:$0xff]
                %1159 = vst [vmem:[%s257 + $0x1c20] sm:$0xff] %v1158
                %v1160 = vld [vmem:[%s256 + $0x70c0] sm:$0xff]
                %1161 = vst [vmem:[%s257 + $0x1c30] sm:$0xff] %v1160
                %v1162 = vld [vmem:[%s256 + $0x7100] sm:$0xff]
                %1163 = vst [vmem:[%s257 + $0x1c40] sm:$0xff] %v1162
                %v1164 = vld [vmem:[%s256 + $0x7140] sm:$0xff]
                %1165 = vst [vmem:[%s257 + $0x1c50] sm:$0xff] %v1164
                %v1166 = vld [vmem:[%s256 + $0x7180] sm:$0xff]
                %1167 = vst [vmem:[%s257 + $0x1c60] sm:$0xff] %v1166
                %v1168 = vld [vmem:[%s256 + $0x71c0] sm:$0xff]
                %1169 = vst [vmem:[%s257 + $0x1c70] sm:$0xff] %v1168
                %v1170 = vld [vmem:[%s256 + $0x7200] sm:$0xff]
                %1171 = vst [vmem:[%s257 + $0x1c80] sm:$0xff] %v1170
                %v1172 = vld [vmem:[%s256 + $0x7240] sm:$0xff]
                %1173 = vst [vmem:[%s257 + $0x1c90] sm:$0xff] %v1172
                %v1174 = vld [vmem:[%s256 + $0x7280] sm:$0xff]
                %1175 = vst [vmem:[%s257 + $0x1ca0] sm:$0xff] %v1174
                %v1176 = vld [vmem:[%s256 + $0x72c0] sm:$0xff]
                %1177 = vst [vmem:[%s257 + $0x1cb0] sm:$0xff] %v1176
                %v1178 = vld [vmem:[%s256 + $0x7300] sm:$0xff]
                %1179 = vst [vmem:[%s257 + $0x1cc0] sm:$0xff] %v1178
                %v1180 = vld [vmem:[%s256 + $0x7340] sm:$0xff]
                %1181 = vst [vmem:[%s257 + $0x1cd0] sm:$0xff] %v1180
                %v1182 = vld [vmem:[%s256 + $0x7380] sm:$0xff]
                %1183 = vst [vmem:[%s257 + $0x1ce0] sm:$0xff] %v1182
                %v1184 = vld [vmem:[%s256 + $0x73c0] sm:$0xff]
                %1185 = vst [vmem:[%s257 + $0x1cf0] sm:$0xff] %v1184
                %v1186 = vld [vmem:[%s256 + $0x7400] sm:$0xff]
                %1187 = vst [vmem:[%s257 + $0x1d00] sm:$0xff] %v1186
                %v1188 = vld [vmem:[%s256 + $0x7440] sm:$0xff]
                %1189 = vst [vmem:[%s257 + $0x1d10] sm:$0xff] %v1188
                %v1190 = vld [vmem:[%s256 + $0x7480] sm:$0xff]
                %1191 = vst [vmem:[%s257 + $0x1d20] sm:$0xff] %v1190
                %v1192 = vld [vmem:[%s256 + $0x74c0] sm:$0xff]
                %1193 = vst [vmem:[%s257 + $0x1d30] sm:$0xff] %v1192
                %v1194 = vld [vmem:[%s256 + $0x7500] sm:$0xff]
                %1195 = vst [vmem:[%s257 + $0x1d40] sm:$0xff] %v1194
                %v1196 = vld [vmem:[%s256 + $0x7540] sm:$0xff]
                %1197 = vst [vmem:[%s257 + $0x1d50] sm:$0xff] %v1196
                %v1198 = vld [vmem:[%s256 + $0x7580] sm:$0xff]
                %1199 = vst [vmem:[%s257 + $0x1d60] sm:$0xff] %v1198
                %v1200 = vld [vmem:[%s256 + $0x75c0] sm:$0xff]
                %1201 = vst [vmem:[%s257 + $0x1d70] sm:$0xff] %v1200
                %v1202 = vld [vmem:[%s256 + $0x7600] sm:$0xff]
                %1203 = vst [vmem:[%s257 + $0x1d80] sm:$0xff] %v1202
                %v1204 = vld [vmem:[%s256 + $0x7640] sm:$0xff]
                %1205 = vst [vmem:[%s257 + $0x1d90] sm:$0xff] %v1204
                %v1206 = vld [vmem:[%s256 + $0x7680] sm:$0xff]
                %1207 = vst [vmem:[%s257 + $0x1da0] sm:$0xff] %v1206
                %v1208 = vld [vmem:[%s256 + $0x76c0] sm:$0xff]
                %1209 = vst [vmem:[%s257 + $0x1db0] sm:$0xff] %v1208
                %v1210 = vld [vmem:[%s256 + $0x7700] sm:$0xff]
                %1211 = vst [vmem:[%s257 + $0x1dc0] sm:$0xff] %v1210
                %v1212 = vld [vmem:[%s256 + $0x7740] sm:$0xff]
                %1213 = vst [vmem:[%s257 + $0x1dd0] sm:$0xff] %v1212
                %v1214 = vld [vmem:[%s256 + $0x7780] sm:$0xff]
                %1215 = vst [vmem:[%s257 + $0x1de0] sm:$0xff] %v1214
                %v1216 = vld [vmem:[%s256 + $0x77c0] sm:$0xff]
                %1217 = vst [vmem:[%s257 + $0x1df0] sm:$0xff] %v1216
                %v1218 = vld [vmem:[%s256 + $0x7800] sm:$0xff]
                %1219 = vst [vmem:[%s257 + $0x1e00] sm:$0xff] %v1218
                %v1220 = vld [vmem:[%s256 + $0x7840] sm:$0xff]
                %1221 = vst [vmem:[%s257 + $0x1e10] sm:$0xff] %v1220
                %v1222 = vld [vmem:[%s256 + $0x7880] sm:$0xff]
                %1223 = vst [vmem:[%s257 + $0x1e20] sm:$0xff] %v1222
                %v1224 = vld [vmem:[%s256 + $0x78c0] sm:$0xff]
                %1225 = vst [vmem:[%s257 + $0x1e30] sm:$0xff] %v1224
                %v1226 = vld [vmem:[%s256 + $0x7900] sm:$0xff]
                %1227 = vst [vmem:[%s257 + $0x1e40] sm:$0xff] %v1226
                %v1228 = vld [vmem:[%s256 + $0x7940] sm:$0xff]
                %1229 = vst [vmem:[%s257 + $0x1e50] sm:$0xff] %v1228
                %v1230 = vld [vmem:[%s256 + $0x7980] sm:$0xff]
                %1231 = vst [vmem:[%s257 + $0x1e60] sm:$0xff] %v1230
                %v1232 = vld [vmem:[%s256 + $0x79c0] sm:$0xff]
                %1233 = vst [vmem:[%s257 + $0x1e70] sm:$0xff] %v1232
                %v1234 = vld [vmem:[%s256 + $0x7a00] sm:$0xff]
                %1235 = vst [vmem:[%s257 + $0x1e80] sm:$0xff] %v1234
                %v1236 = vld [vmem:[%s256 + $0x7a40] sm:$0xff]
                %1237 = vst [vmem:[%s257 + $0x1e90] sm:$0xff] %v1236
                %v1238 = vld [vmem:[%s256 + $0x7a80] sm:$0xff]
                %1239 = vst [vmem:[%s257 + $0x1ea0] sm:$0xff] %v1238
                %v1240 = vld [vmem:[%s256 + $0x7ac0] sm:$0xff]
                %1241 = vst [vmem:[%s257 + $0x1eb0] sm:$0xff] %v1240
                %v1242 = vld [vmem:[%s256 + $0x7b00] sm:$0xff]
                %1243 = vst [vmem:[%s257 + $0x1ec0] sm:$0xff] %v1242
                %v1244 = vld [vmem:[%s256 + $0x7b40] sm:$0xff]
                %1245 = vst [vmem:[%s257 + $0x1ed0] sm:$0xff] %v1244
                %v1246 = vld [vmem:[%s256 + $0x7b80] sm:$0xff]
                %1247 = vst [vmem:[%s257 + $0x1ee0] sm:$0xff] %v1246
                %v1248 = vld [vmem:[%s256 + $0x7bc0] sm:$0xff]
                %1249 = vst [vmem:[%s257 + $0x1ef0] sm:$0xff] %v1248
                %v1250 = vld [vmem:[%s256 + $0x7c00] sm:$0xff]
                %1251 = vst [vmem:[%s257 + $0x1f00] sm:$0xff] %v1250
                %v1252 = vld [vmem:[%s256 + $0x7c40] sm:$0xff]
                %1253 = vst [vmem:[%s257 + $0x1f10] sm:$0xff] %v1252
                %v1254 = vld [vmem:[%s256 + $0x7c80] sm:$0xff]
                %1255 = vst [vmem:[%s257 + $0x1f20] sm:$0xff] %v1254
                %v1256 = vld [vmem:[%s256 + $0x7cc0] sm:$0xff]
                %1257 = vst [vmem:[%s257 + $0x1f30] sm:$0xff] %v1256
                %v1258 = vld [vmem:[%s256 + $0x7d00] sm:$0xff]
                %1259 = vst [vmem:[%s257 + $0x1f40] sm:$0xff] %v1258
                %v1260 = vld [vmem:[%s256 + $0x7d40] sm:$0xff]
                %1261 = vst [vmem:[%s257 + $0x1f50] sm:$0xff] %v1260
                %v1262 = vld [vmem:[%s256 + $0x7d80] sm:$0xff]
                %1263 = vst [vmem:[%s257 + $0x1f60] sm:$0xff] %v1262
                %v1264 = vld [vmem:[%s256 + $0x7dc0] sm:$0xff]
                %1265 = vst [vmem:[%s257 + $0x1f70] sm:$0xff] %v1264
                %v1266 = vld [vmem:[%s256 + $0x7e00] sm:$0xff]
                %1267 = vst [vmem:[%s257 + $0x1f80] sm:$0xff] %v1266
                %v1268 = vld [vmem:[%s256 + $0x7e40] sm:$0xff]
                %1269 = vst [vmem:[%s257 + $0x1f90] sm:$0xff] %v1268
                %v1270 = vld [vmem:[%s256 + $0x7e80] sm:$0xff]
                %1271 = vst [vmem:[%s257 + $0x1fa0] sm:$0xff] %v1270
                %v1272 = vld [vmem:[%s256 + $0x7ec0] sm:$0xff]
                %1273 = vst [vmem:[%s257 + $0x1fb0] sm:$0xff] %v1272
                %v1274 = vld [vmem:[%s256 + $0x7f00] sm:$0xff]
                %1275 = vst [vmem:[%s257 + $0x1fc0] sm:$0xff] %v1274
                %v1276 = vld [vmem:[%s256 + $0x7f40] sm:$0xff]
                %1277 = vst [vmem:[%s257 + $0x1fd0] sm:$0xff] %v1276
                %v1278 = vld [vmem:[%s256 + $0x7f80] sm:$0xff]
                %1279 = vst [vmem:[%s257 + $0x1fe0] sm:$0xff] %v1278
                %v1280 = vld [vmem:[%s256 + $0x7fc0] sm:$0xff]
                %1281 = vst [vmem:[%s257 + $0x1ff0] sm:$0xff] %v1280
                %s1282 = sadd.s32 1, %s255
                %p1283 = scmp.ge.s32.totalorder %s1282, 2
                %s1284 = scalar_select %p1283, 0, %s1282
                %s1285 = smul.u32 %s1284, 8
                %s1286 = smul.u32 %s1284, 8
                %s1287 = scalar_lea.vmem %s241, %s1285
                %s1288 = scalar_lea.vmem %s236, %s1286 [#allocation2]
              $region45: #{tpu_custom_call.1} parent=39 // loop_footer
                %s254 = sadd.s32 1, %s250
              $region46: #{tpu_custom_call.1} parent=39 // loop_footer_branch
                %249 = sbr.rel target = $region42
              $region47: #{tpu_custom_call.1} parent=39 // loop_exit
                _
            $region40: #{tpu_custom_call.1} parent=31 // pred_fallthru
              _
          $region32: #{tpu_custom_call.1} parent=27 // pred_fallthru
            _
          %4438 = vnop
        $region28: #{tpu_custom_call.1} parent=23 // pred_fallthru
          _
        // Predicated region
        $region77: #{tpu_custom_call.1} parent=23 // pred_check
          %p4439 = pneg %p83
        $region78: #{tpu_custom_call.1} parent=23 // pred_check_branch
          %4441 = sbr.rel (%p4439) target = $region80
        $region79: #{tpu_custom_call.1} parent=23 // pred_region
          #allocation13 [shape = 'u32[6]{0}', space=smem, size = 0x18, scoped, tag = 'DMA stride descriptor']
          %s4442 = sand.u32 %s73, 1
          %s4443 = scalar_lea.sflag [#allocation4], %s4442
          %s4444 = sand.u32 %s73, 1
          %s4445 = smul.addr %s4444, 1024
          %s4446 = scalar_lea.vmem [#allocation3], %s4445
          %s4447 = smul.u32 2, %s29
          %s4449 = ssub.s32 16384, 16384
          %4450 = vsyncadd %s4443, %s4449
          %s4451 = smul.addr %s28, 512
          %s4452 = sadd.s32 %s4447, %s4451
          %s4453 = smul.addr %s4452, 128
          %s4454 = scalar_lea.hbm %s1, %s4453
          %s4456 = sshll.u32 1, 14
          %s4457 = sxor.u32 4294967295, %s4456
          %s4459 = sld [smem:[#allocation0]]
          %s4460 = sadd.s32 2, %s4459
          %s4462 = sshll.u32 7, 26
          %s4463 = sxor.u32 4294967295, %s4462
          %s4464 = sand.u32 0, %s4463
          %s4465 = sshll.u32 %s4460, 26
          %s4466 = sor.u32 %s4464, %s4465
          %s4467 = sshll.u32 %s4446, 4
          %s4468 = int_to_ptr.vmem [resolvable:$true] %s4467
          %4474 = sst [smem:[#allocation13]] 1024
          %s4475 = scalar_lea.smem [#allocation13], 1
          %4476 = sst [smem:[%s4475]] 256
          %s4477 = scalar_lea.smem [#allocation13], 2
          %4478 = sst [smem:[%s4477]] 2
          %s4479 = scalar_lea.smem [#allocation13], 3
          %4480 = sst [smem:[%s4479]] 128
          %s4481 = scalar_lea.smem [#allocation13], 4
          %4482 = sst [smem:[%s4481]] 128
          %s4483 = scalar_lea.smem [#allocation13], 5
          %4484 = sst [smem:[%s4483]] 8
          %4486 = dma.general %s4454, 16384, %s4468, %s4443, [#allocation12], [#allocation13], %s4466, 0
        $region80: #{tpu_custom_call.1} parent=23 // pred_fallthru
          _
        // Predicated region
        $region81: #{tpu_custom_call.1} parent=23 // pred_check
          %p4487 = pneg %p111
        $region82: #{tpu_custom_call.1} parent=23 // pred_check_branch
          %4489 = sbr.rel (%p4487) target = $region84
        $region83: #{tpu_custom_call.1} parent=23 // pred_region
          #allocation15 [shape = 'u32[6]{0}', space=smem, size = 0x18, scoped, tag = 'DMA stride descriptor']
          %s4490 = sand.u32 %s21, 1
          %s4491 = scalar_lea.sflag [#allocation7], %s4490
          %s4492 = sand.u32 %s101, 1
          %s4493 = smul.addr %s4492, 128
          %s4494 = scalar_lea.vmem [#allocation6], %s4493
          %s4495 = smul.u32 2, %s29
          %s4497 = ssub.s32 2048, 2048
          %4498 = vsyncadd %s4491, %s4497
          %s4499 = smul.addr %s28, 64
          %s4500 = sadd.s32 %s4495, %s4499
          %s4501 = smul.addr %s4500, 128
          %s4502 = scalar_lea.hbm %s2, %s4501
          %s4504 = sshll.u32 1, 14
          %s4505 = sxor.u32 4294967295, %s4504
          %s4507 = sld [smem:[#allocation0]]
          %s4508 = sadd.s32 2, %s4507
          %s4510 = sshll.u32 7, 26
          %s4511 = sxor.u32 4294967295, %s4510
          %s4512 = sand.u32 0, %s4511
          %s4513 = sshll.u32 %s4508, 26
          %s4514 = sor.u32 %s4512, %s4513
          %s4515 = sshll.u32 %s4494, 4
          %s4516 = int_to_ptr.vmem [resolvable:$true] %s4515
          %4522 = sst [smem:[#allocation15]] 1024
          %s4523 = scalar_lea.smem [#allocation15], 1
          %4524 = sst [smem:[%s4523]] 256
          %s4525 = scalar_lea.smem [#allocation15], 2
          %4526 = sst [smem:[%s4525]] 2
          %s4527 = scalar_lea.smem [#allocation15], 3
          %4528 = sst [smem:[%s4527]] 128
          %s4529 = scalar_lea.smem [#allocation15], 4
          %4530 = sst [smem:[%s4529]] 128
          %s4531 = scalar_lea.smem [#allocation15], 5
          %4532 = sst [smem:[%s4531]] 8
          %4534 = dma.general %s4502, 2048, %s4516, %s4491, [#allocation14], [#allocation15], %s4514, 0
        $region84: #{tpu_custom_call.1} parent=23 // pred_fallthru
          _
      $region24: #{tpu_custom_call.1} parent=5 // pred_fallthru
        _
      %p4535 = scmp.le.s32.totalorder 1, %s21
      %p4536 = scmp.lt.s32.totalorder %s21, 9
      %p4537 = pnand %p4535, %p4536
      %p4538 = pneg %p4537
      // Predicated region
      $region85: #{tpu_custom_call.1} parent=5 // pred_check
        _
      $region86: #{tpu_custom_call.1} parent=5 // pred_check_branch
        %4540 = sbr.rel (%p4537) target = $region88
      $region87: #{tpu_custom_call.1} parent=5 // pred_region
        %s4541 = ssub.s32 %s21, 1
        %s4542 = sand.u32 %s48, 1
        %s4543 = sand.u32 %s48, 1
        %s4544 = smul.addr %s4543, 8192
        %s4545 = scalar_lea.vmem [#allocation2], %s4544
        // Predicated region
        $region89: #{tpu_custom_call.1} parent=87 // pred_check
          %p4546 = pneg %p61
        $region90: #{tpu_custom_call.1} parent=87 // pred_check_branch
          %4548 = sbr.rel (%p4546) target = $region92
        $region91: #{tpu_custom_call.1} parent=87 // pred_region
          _
        $region92: #{tpu_custom_call.1} parent=87 // pred_fallthru
          _
        %s4549 = sand.u32 %s76, 1
        %s4550 = scalar_lea.sflag [#allocation4], %s4549
        %s4551 = sand.u32 %s76, 1
        %s4552 = smul.addr %s4551, 1024
        %s4553 = scalar_lea.vmem [#allocation3], %s4552
        // Predicated region
        $region93: #{tpu_custom_call.1} parent=87 // pred_check
          %p4554 = pneg %p89
        $region94: #{tpu_custom_call.1} parent=87 // pred_check_branch
          %4556 = sbr.rel (%p4554) target = $region96
        $region95: #{tpu_custom_call.1} parent=87 // pred_region
          %4557 = dma.done %s4550, 16384
        $region96: #{tpu_custom_call.1} parent=87 // pred_fallthru
          _
        %s4558 = sand.u32 %s26, 1
        %s4559 = scalar_lea.sflag [#allocation7], %s4558
        %s4560 = sand.u32 %s104, 1
        %s4561 = smul.addr %s4560, 128
        %s4562 = scalar_lea.vmem [#allocation6], %s4561
        // Predicated region
        $region97: #{tpu_custom_call.1} parent=87 // pred_check
          %p4563 = pneg %p117
        $region98: #{tpu_custom_call.1} parent=87 // pred_check_branch
          %4565 = sbr.rel (%p4563) target = $region100
        $region99: #{tpu_custom_call.1} parent=87 // pred_region
          %4566 = dma.done %s4559, 2048
        $region100: #{tpu_custom_call.1} parent=87 // pred_fallthru
          _
        // Predicated region
        $region101: #{tpu_custom_call.1} parent=87 // pred_check
          %p4567 = pneg %p138
        $region102: #{tpu_custom_call.1} parent=87 // pred_check_branch
          %4569 = sbr.rel (%p4567) target = $region104
        $region103: #{tpu_custom_call.1} parent=87 // pred_region
          %4570 = dma.done [#allocation7], 768
        $region104: #{tpu_custom_call.1} parent=87 // pred_fallthru
          _
        // Predicated region
        $region105: #{tpu_custom_call.1} parent=87 // pred_check
          %p4571 = pneg %p159
        $region106: #{tpu_custom_call.1} parent=87 // pred_check_branch
          %4573 = sbr.rel (%p4571) target = $region108
        $region107: #{tpu_custom_call.1} parent=87 // pred_region
          %4574 = dma.done [#allocation10], 16
        $region108: #{tpu_custom_call.1} parent=87 // pred_fallthru
          _
        %s4575 = sand.u32 %s48, 1
        %s4576 = sand.u32 %s48, 1
        %s4577 = smul.addr %s4576, 8192
        %s4578 = scalar_lea.vmem [#allocation2], %s4577
        %p4579 = pneg %p61
        %p4580 = pneg %p58
        %s4581 = sand.u32 %s76, 1
        %s4582 = scalar_lea.sflag [#allocation4], %s4581
        %s4583 = sand.u32 %s76, 1
        %s4584 = smul.addr %s4583, 1024
        %s4585 = scalar_lea.vmem [#allocation3], %s4584
        %p4586 = pneg %p89
        %p4587 = pneg %p86
        %s4588 = sand.u32 %s26, 1
        %s4589 = scalar_lea.sflag [#allocation7], %s4588
        %s4590 = sand.u32 %s104, 1
        %s4591 = smul.addr %s4590, 128
        %s4592 = scalar_lea.vmem [#allocation6], %s4591
        %p4593 = pneg %p117
        %p4594 = pneg %p114
        %p4595 = pneg %p138
        %p4596 = pneg %p135
        %p4597 = pneg %p159
        %p4598 = pneg %p156
        %p4599 = pneg %p187
        %p4600 = pneg %p184
        %s4601 = sand.u32 %s174, 1
        %s4602 = scalar_lea.sflag [#allocation5], %s4601
        %s4603 = sand.u32 %s174, 1
        %s4604 = smul.addr %s4603, 16
        %s4605 = scalar_lea.vmem [#allocation11], %s4604
        %s4606 = smul.u32 2, %s31
        %s4607 = smul.u32 2, %s31
        %s4608 = smul.u32 2, %s31
        %s4609 = smul.u32 2, %s31
        %v4610 = vld [vmem:[%s4545] sm:$0xff]
        %v4611 = vld [vmem:[%s4545 + $0x8] sm:$0xff]
        %v4612 = vld [vmem:[%s4545 + $0x10] sm:$0xff]
        %v4613 = vld [vmem:[%s4545 + $0x18] sm:$0xff]
        %v4614 = vld [vmem:[%s4545 + $0x20] sm:$0xff]
        %v4615 = vld [vmem:[%s4545 + $0x28] sm:$0xff]
        %v4616 = vld [vmem:[%s4545 + $0x30] sm:$0xff]
        %v4617 = vld [vmem:[%s4545 + $0x38] sm:$0xff]
        %v4618 = vld [vmem:[%s4545 + $0x40] sm:$0xff]
        %v4619 = vld [vmem:[%s4545 + $0x48] sm:$0xff]
        %v4620 = vld [vmem:[%s4545 + $0x50] sm:$0xff]
        %v4621 = vld [vmem:[%s4545 + $0x58] sm:$0xff]
        %v4622 = vld [vmem:[%s4545 + $0x60] sm:$0xff]
        %v4623 = vld [vmem:[%s4545 + $0x68] sm:$0xff]
        %v4624 = vld [vmem:[%s4545 + $0x70] sm:$0xff]
        %v4625 = vld [vmem:[%s4545 + $0x78] sm:$0xff]
        %v4626 = vmax.f32 %v4610, %v4612
        %v4627 = vmax.f32 %v4611, %v4613
        %v4628 = vmax.f32 %v4626, %v4614
        %v4629 = vmax.f32 %v4627, %v4615
        %v4630 = vmax.f32 %v4628, %v4616
        %v4631 = vmax.f32 %v4629, %v4617
        %v4632 = vmax.f32 %v4630, %v4618
        %v4633 = vmax.f32 %v4631, %v4619
        %v4634 = vmax.f32 %v4632, %v4620
        %v4635 = vmax.f32 %v4633, %v4621
        %v4636 = vmax.f32 %v4634, %v4622
        %v4637 = vmax.f32 %v4635, %v4623
        %v4638 = vmax.f32 %v4636, %v4624
        %v4639 = vmax.f32 %v4637, %v4625
        loop: start=1, step=1, limit=64
        $region109: #{tpu_custom_call.1} parent=87 // loop_pre_header
          _
        $region110: #{tpu_custom_call.1} parent=87 // loop_header
          %s4641 = sphi 1, %s4645
          %p4642 = scmp.ge.s32.totalorder %s4641, 64
          %v4646 = vphi %v4638, %v4681
          %v4647 = vphi %v4639, %v4682
        $region111: #{tpu_custom_call.1} parent=87 // loop_header_branch
          %4644 = sbr.rel (%p4642) target = $region115
        $region112: #{tpu_custom_call.1} parent=87 // loop_body
          %s4648 = smul.u32 %s4641, 8
          %s4649 = smul.u32 %s4648, 16
          %s4650 = scalar_lea.vmem %s4545, %s4649 [#allocation2]
          %v4651 = vld [vmem:[%s4650] sm:$0xff]
          %v4652 = vld [vmem:[%s4650 + $0x8] sm:$0xff]
          %v4653 = vld [vmem:[%s4650 + $0x10] sm:$0xff]
          %v4654 = vld [vmem:[%s4650 + $0x18] sm:$0xff]
          %v4655 = vld [vmem:[%s4650 + $0x20] sm:$0xff]
          %v4656 = vld [vmem:[%s4650 + $0x28] sm:$0xff]
          %v4657 = vld [vmem:[%s4650 + $0x30] sm:$0xff]
          %v4658 = vld [vmem:[%s4650 + $0x38] sm:$0xff]
          %v4659 = vld [vmem:[%s4650 + $0x40] sm:$0xff]
          %v4660 = vld [vmem:[%s4650 + $0x48] sm:$0xff]
          %v4661 = vld [vmem:[%s4650 + $0x50] sm:$0xff]
          %v4662 = vld [vmem:[%s4650 + $0x58] sm:$0xff]
          %v4663 = vld [vmem:[%s4650 + $0x60] sm:$0xff]
          %v4664 = vld [vmem:[%s4650 + $0x68] sm:$0xff]
          %v4665 = vld [vmem:[%s4650 + $0x70] sm:$0xff]
          %v4666 = vld [vmem:[%s4650 + $0x78] sm:$0xff]
          %v4667 = vmax.f32 %v4651, %v4653
          %v4668 = vmax.f32 %v4652, %v4654
          %v4669 = vmax.f32 %v4667, %v4655
          %v4670 = vmax.f32 %v4668, %v4656
          %v4671 = vmax.f32 %v4669, %v4657
          %v4672 = vmax.f32 %v4670, %v4658
          %v4673 = vmax.f32 %v4671, %v4659
          %v4674 = vmax.f32 %v4672, %v4660
          %v4675 = vmax.f32 %v4673, %v4661
          %v4676 = vmax.f32 %v4674, %v4662
          %v4677 = vmax.f32 %v4675, %v4663
          %v4678 = vmax.f32 %v4676, %v4664
          %v4679 = vmax.f32 %v4677, %v4665
          %v4680 = vmax.f32 %v4678, %v4666
          %v4681 = vmax.f32 %v4646, %v4679
          %v4682 = vmax.f32 %v4647, %v4680
        $region113: #{tpu_custom_call.1} parent=87 // loop_footer
          %s4645 = sadd.s32 1, %s4641
        $region114: #{tpu_custom_call.1} parent=87 // loop_footer_branch
          %4640 = sbr.rel target = $region110
        $region115: #{tpu_custom_call.1} parent=87 // loop_exit
          _
        %v4683 = vld [vmem:[%s4553] sm:$0xff]
        %v4684 = vld [vmem:[%s4553 + $0x8] sm:$0xff]
        %v4685 = vld [vmem:[%s4553 + $0x10] sm:$0xff]
        %v4686 = vld [vmem:[%s4553 + $0x18] sm:$0xff]
        %v4687 = vld [vmem:[%s4553 + $0x20] sm:$0xff]
        %v4688 = vld [vmem:[%s4553 + $0x28] sm:$0xff]
        %v4689 = vld [vmem:[%s4553 + $0x30] sm:$0xff]
        %v4690 = vld [vmem:[%s4553 + $0x38] sm:$0xff]
        %v4691 = vld [vmem:[%s4553 + $0x40] sm:$0xff]
        %v4692 = vld [vmem:[%s4553 + $0x48] sm:$0xff]
        %v4693 = vld [vmem:[%s4553 + $0x50] sm:$0xff]
        %v4694 = vld [vmem:[%s4553 + $0x58] sm:$0xff]
        %v4695 = vld [vmem:[%s4553 + $0x60] sm:$0xff]
        %v4696 = vld [vmem:[%s4553 + $0x68] sm:$0xff]
        %v4697 = vld [vmem:[%s4553 + $0x70] sm:$0xff]
        %v4698 = vld [vmem:[%s4553 + $0x78] sm:$0xff]
        %v4699 = vmax.f32 %v4683, %v4685
        %v4700 = vmax.f32 %v4684, %v4686
        %v4701 = vmax.f32 %v4699, %v4687
        %v4702 = vmax.f32 %v4700, %v4688
        %v4703 = vmax.f32 %v4701, %v4689
        %v4704 = vmax.f32 %v4702, %v4690
        %v4705 = vmax.f32 %v4703, %v4691
        %v4706 = vmax.f32 %v4704, %v4692
        %v4707 = vmax.f32 %v4705, %v4693
        %v4708 = vmax.f32 %v4706, %v4694
        %v4709 = vmax.f32 %v4707, %v4695
        %v4710 = vmax.f32 %v4708, %v4696
        %v4711 = vmax.f32 %v4709, %v4697
        %v4712 = vmax.f32 %v4710, %v4698
        loop: start=1, step=1, limit=8
        $region116: #{tpu_custom_call.1} parent=87 // loop_pre_header
          _
        $region117: #{tpu_custom_call.1} parent=87 // loop_header
          %s4714 = sphi 1, %s4718
          %p4715 = scmp.ge.s32.totalorder %s4714, 8
          %v4719 = vphi %v4711, %v4754
          %v4720 = vphi %v4712, %v4755
        $region118: #{tpu_custom_call.1} parent=87 // loop_header_branch
          %4717 = sbr.rel (%p4715) target = $region122
        $region119: #{tpu_custom_call.1} parent=87 // loop_body
          %s4721 = smul.u32 %s4714, 8
          %s4722 = smul.u32 %s4721, 16
          %s4723 = scalar_lea.vmem %s4553, %s4722 [#allocation3]
          %v4724 = vld [vmem:[%s4723] sm:$0xff]
          %v4725 = vld [vmem:[%s4723 + $0x8] sm:$0xff]
          %v4726 = vld [vmem:[%s4723 + $0x10] sm:$0xff]
          %v4727 = vld [vmem:[%s4723 + $0x18] sm:$0xff]
          %v4728 = vld [vmem:[%s4723 + $0x20] sm:$0xff]
          %v4729 = vld [vmem:[%s4723 + $0x28] sm:$0xff]
          %v4730 = vld [vmem:[%s4723 + $0x30] sm:$0xff]
          %v4731 = vld [vmem:[%s4723 + $0x38] sm:$0xff]
          %v4732 = vld [vmem:[%s4723 + $0x40] sm:$0xff]
          %v4733 = vld [vmem:[%s4723 + $0x48] sm:$0xff]
          %v4734 = vld [vmem:[%s4723 + $0x50] sm:$0xff]
          %v4735 = vld [vmem:[%s4723 + $0x58] sm:$0xff]
          %v4736 = vld [vmem:[%s4723 + $0x60] sm:$0xff]
          %v4737 = vld [vmem:[%s4723 + $0x68] sm:$0xff]
          %v4738 = vld [vmem:[%s4723 + $0x70] sm:$0xff]
          %v4739 = vld [vmem:[%s4723 + $0x78] sm:$0xff]
          %v4740 = vmax.f32 %v4724, %v4726
          %v4741 = vmax.f32 %v4725, %v4727
          %v4742 = vmax.f32 %v4740, %v4728
          %v4743 = vmax.f32 %v4741, %v4729
          %v4744 = vmax.f32 %v4742, %v4730
          %v4745 = vmax.f32 %v4743, %v4731
          %v4746 = vmax.f32 %v4744, %v4732
          %v4747 = vmax.f32 %v4745, %v4733
          %v4748 = vmax.f32 %v4746, %v4734
          %v4749 = vmax.f32 %v4747, %v4735
          %v4750 = vmax.f32 %v4748, %v4736
          %v4751 = vmax.f32 %v4749, %v4737
          %v4752 = vmax.f32 %v4750, %v4738
          %v4753 = vmax.f32 %v4751, %v4739
          %v4754 = vmax.f32 %v4719, %v4752
          %v4755 = vmax.f32 %v4720, %v4753
        $region120: #{tpu_custom_call.1} parent=87 // loop_footer
          %s4718 = sadd.s32 1, %s4714
        $region121: #{tpu_custom_call.1} parent=87 // loop_footer_branch
          %4713 = sbr.rel target = $region117
        $region122: #{tpu_custom_call.1} parent=87 // loop_exit
          _
        %v4756 = vld [vmem:[%s4562] sm:$0xff]
        %v4757 = vld [vmem:[%s4562 + $0x8] sm:$0xff]
        %v4758 = vld [vmem:[%s4562 + $0x10] sm:$0xff]
        %v4759 = vld [vmem:[%s4562 + $0x18] sm:$0xff]
        %v4760 = vld [vmem:[%s4562 + $0x20] sm:$0xff]
        %v4761 = vld [vmem:[%s4562 + $0x28] sm:$0xff]
        %v4762 = vld [vmem:[%s4562 + $0x30] sm:$0xff]
        %v4763 = vld [vmem:[%s4562 + $0x38] sm:$0xff]
        %v4764 = vld [vmem:[%s4562 + $0x40] sm:$0xff]
        %v4765 = vld [vmem:[%s4562 + $0x48] sm:$0xff]
        %v4766 = vld [vmem:[%s4562 + $0x50] sm:$0xff]
        %v4767 = vld [vmem:[%s4562 + $0x58] sm:$0xff]
        %v4768 = vld [vmem:[%s4562 + $0x60] sm:$0xff]
        %v4769 = vld [vmem:[%s4562 + $0x68] sm:$0xff]
        %v4770 = vld [vmem:[%s4562 + $0x70] sm:$0xff]
        %v4771 = vld [vmem:[%s4562 + $0x78] sm:$0xff]
        %v4772 = vmax.f32 %v4756, %v4758
        %v4773 = vmax.f32 %v4757, %v4759
        %v4774 = vmax.f32 %v4772, %v4760
        %v4775 = vmax.f32 %v4773, %v4761
        %v4776 = vmax.f32 %v4774, %v4762
        %v4777 = vmax.f32 %v4775, %v4763
        %v4778 = vmax.f32 %v4776, %v4764
        %v4779 = vmax.f32 %v4777, %v4765
        %v4780 = vmax.f32 %v4778, %v4766
        %v4781 = vmax.f32 %v4779, %v4767
        %v4782 = vmax.f32 %v4780, %v4768
        %v4783 = vmax.f32 %v4781, %v4769
        %v4784 = vmax.f32 %v4782, %v4770
        %v4785 = vmax.f32 %v4783, %v4771
        %4788 = vrot.lane.b32.xlu0 %v4719, 16
        %v4789 = vpop.permute.xlu0 %4788
        %4790 = vrot.lane.b32.xlu0 %v4720, 16
        %v4791 = vpop.permute.xlu0 %4790
        %4796 = vrot.lane.b32.xlu0 %v4784, 32
        %v4797 = vpop.permute.xlu0 %4796
        %4798 = vrot.lane.b32.xlu0 %v4785, 32
        %v4799 = vpop.permute.xlu0 %4798
        %vm4802 = vcmask 130048
        %v4803 = vsel %vm4802, %v4646, %v4789
        %v4804 = vsel %vm4802, %v4647, %v4791
        %vm4805 = vcmask 261120
        %v4806 = vsel %vm4805, %v4803, %v4797
        %v4807 = vsel %vm4805, %v4804, %v4799
        %v4808 = vld [vmem:[#allocation8] sm:$0xff]
        %v4809 = vld [vmem:[#allocation8 + $0x8] sm:$0xff]
        %v4810 = vld [vmem:[#allocation8 + $0x10] sm:$0xff]
        %v4811 = vld [vmem:[#allocation8 + $0x18] sm:$0xff]
        %v4812 = vld [vmem:[#allocation8 + $0x20] sm:$0xff]
        %v4813 = vld [vmem:[#allocation8 + $0x28] sm:$0xff]
        %v4814 = vld [vmem:[#allocation9] sm:$0x1]
        %v4816 = vlaneseq
        %v4817 = vshrl.u32 %v4816, 7
        %v4818 = vsub.s32 0, %v4817
        %v4819 = vrot.slane %v4814, %v4818
        %vm4821 = vcmask 392192
        %v4823 = vsel %vm4821, %v4806, 0
        %v4826 = vsel %vm4821, %v4807, 0
        %4828 = vmatprep.subr.mxu0 0.0
        %4829 = vmatpush1.msra.mxu0 %v4808
        %4830 = vmatprep.subr.mxu0 0.0
        %4831 = vmatpush1.msra.mxu0 %v4809
        %4832 = vmatprep.subr.mxu0 0.0
        %4833 = vmatpush1.msra.mxu0 %v4810
        %4834 = vmatprep.subr.mxu0 0.0
        %4835 = vmatpush1.msra.mxu0 %v4811
        %4836 = vmatprep.subr.mxu0 0.0
        %4837 = vmatpush1.msra.mxu0 %v4812
        %4838 = vmatprep.subr.mxu0 0.0
        %4839 = vmatpush1.msra.mxu0 %v4813
        %4840 = vmatprep.subr.mxu0 0.0
        %4841 = vmatpush1.msra.mxu0 0.0
        %4842 = vmatprep.subr.mxu0 0.0
        %4843 = vmatpush1.msra.mxu0 0.0
        %4844 = vmatprep.subr.mxu0 0.0
        %4845 = vmatpush1.msra.mxu0 0.0
        %4846 = vmatprep.subr.mxu0 0.0
        %4847 = vmatpush1.msra.mxu0 0.0
        %4848 = vmatprep.subr.mxu0 0.0
        %4849 = vmatpush1.msra.mxu0 0.0
        %4850 = vmatprep.subr.mxu0 0.0
        %4851 = vmatpush1.msra.mxu0 0.0
        %4852 = vmatprep.subr.mxu0 0.0
        %4853 = vmatpush1.msra.mxu0 0.0
        %4854 = vmatprep.subr.mxu0 0.0
        %4855 = vmatpush1.msra.mxu0 0.0
        %4856 = vmatprep.subr.mxu0 0.0
        %4857 = vmatpush1.msra.mxu0 0.0
        %4858 = vmatprep.subr.mxu0 0.0
        %4859 = vmatpush1.msra.mxu0 0.0
        %4860 = vmatprep.subr.mxu0 0.0
        %4861 = vmatpush1.msra.mxu0 0.0
        %4862 = vmatprep.subr.mxu0 0.0
        %4863 = vmatpush1.msra.mxu0 0.0
        %4864 = vmatprep.subr.mxu0 0.0
        %4865 = vmatpush1.msra.mxu0 0.0
        %4866 = vmatprep.subr.mxu0 0.0
        %4867 = vmatpush1.msra.mxu0 0.0
        %4868 = vmatprep.subr.mxu0 0.0
        %4869 = vmatpush1.msra.mxu0 0.0
        %4870 = vmatprep.subr.mxu0 0.0
        %4871 = vmatpush1.msra.mxu0 0.0
        %4872 = vmatprep.subr.mxu0 0.0
        %4873 = vmatpush1.msra.mxu0 0.0
        %4874 = vmatprep.subr.mxu0 0.0
        %4875 = vmatpush1.msra.mxu0 0.0
        %4876 = vmatprep.subr.mxu0 0.0
        %4877 = vmatpush1.msra.mxu0 0.0
        %4878 = vmatprep.subr.mxu0 0.0
        %4879 = vmatpush1.msra.mxu0 0.0
        %4880 = vmatprep.subr.mxu0 0.0
        %4881 = vmatpush1.msra.mxu0 0.0
        %4882 = vmatprep.subr.mxu0 0.0
        %4883 = vmatpush1.msra.mxu0 0.0
        %4884 = vmatprep.subr.mxu0 0.0
        %4885 = vmatpush1.msra.mxu0 0.0
        %4886 = vmatprep.subr.mxu0 0.0
        %4887 = vmatpush1.msra.mxu0 0.0
        %4888 = vmatprep.subr.mxu0 0.0
        %4889 = vmatpush1.msra.mxu0 0.0
        %4890 = vmatprep.subr.mxu0 0.0
        %4891 = vmatpush1.msra.mxu0 0.0
        %4892 = vmatprep.mubr.f32.mxu0 0.0
        %4893 = vmatmul.mubr.f32.gmra.mrb[0].mxu0 %v4823
        %v4894 = vpop.f32.mrb[0].mxu0
        %v4895 = vadd.f32 %v4819, %v4894
        %v4896 = vpop.f32.mrb[0].mxu0
        %4897 = vmatprep.mubr.f32.mxu0 0.0
        %4898 = vmatmul.mubr.f32.gmra.mrb[0].mxu0 %v4826
        %v4899 = vpop.f32.mrb[0].mxu0
        %v4900 = vadd.f32 %v4819, %v4899
        %v4901 = vpop.f32.mrb[0].mxu0
        %4902 = vdwg.mxu0
        %4903 = vst [vmem:[%s4605] sm:$0xff] %v4895
        %4904 = vst [vmem:[%s4605 + $0x8] sm:$0xff] %v4900
        %s4905 = sand.u32 %s174, 1
        %s4906 = scalar_lea.sflag [#allocation5], %s4905
        %s4907 = sand.u32 %s174, 1
        %s4908 = smul.addr %s4907, 16
        %s4909 = scalar_lea.vmem [#allocation11], %s4908
        // Predicated region
        $region123: #{tpu_custom_call.1} parent=87 // pred_check
          %p4910 = pneg %p184
        $region124: #{tpu_custom_call.1} parent=87 // pred_check_branch
          %4912 = sbr.rel (%p4910) target = $region126
        $region125: #{tpu_custom_call.1} parent=87 // pred_region
          %s4913 = smul.u32 2, %s31
          %s4915 = ssub.s32 256, 256
          %4916 = vsyncadd %s4906, %s4915
          %s4917 = smul.addr %s30, 8
          %s4918 = sadd.s32 %s4913, %s4917
          %s4919 = smul.addr %s4918, 128
          %s4920 = scalar_lea.hbm %s5, %s4919
          %s4921 = sshll.u32 %s4909, 4
          %s4922 = int_to_ptr.vmem [resolvable:$true] %s4921
          %4927 = dma.vmem_to_hbm [thread:$0]  %s4922, 256, %s4920, %s4906, 128, 128, 8
        $region126: #{tpu_custom_call.1} parent=87 // pred_fallthru
          _
      $region88: #{tpu_custom_call.1} parent=5 // pred_fallthru
        _
      %p4928 = scmp.le.s32.totalorder 2, %s21
      // Predicated region
      $region127: #{tpu_custom_call.1} parent=5 // pred_check
        %p4929 = pneg %p4928
      $region128: #{tpu_custom_call.1} parent=5 // pred_check_branch
        %4931 = sbr.rel (%p4929) target = $region130
      $region129: #{tpu_custom_call.1} parent=5 // pred_region
        %s4932 = ssub.s32 %s21, 2
        // Predicated region
        $region131: #{tpu_custom_call.1} parent=129 // pred_check
          %p4933 = pneg %p190
        $region132: #{tpu_custom_call.1} parent=129 // pred_check_branch
          %4935 = sbr.rel (%p4933) target = $region134
        $region133: #{tpu_custom_call.1} parent=129 // pred_region
          %s4936 = sand.u32 %s175, 1
          %s4937 = scalar_lea.sflag [#allocation5], %s4936
          %s4938 = sand.u32 %s175, 1
          %s4939 = smul.addr %s4938, 16
          %s4940 = scalar_lea.vmem [#allocation11], %s4939
          %4941 = dma.done %s4937, 256
        $region134: #{tpu_custom_call.1} parent=129 // pred_fallthru
          _
      $region130: #{tpu_custom_call.1} parent=5 // pred_fallthru
        _
    $region6: #{tpu_custom_call.1} parent=1 // loop_footer
      %s25 = sadd.s32 1, %s21
    $region7: #{tpu_custom_call.1} parent=1 // loop_footer_branch
      %20 = sbr.rel target = $region3
    $region8: #{tpu_custom_call.1} parent=1 // loop_exit
      _
    %4942 = vsyncpa [#allocation4], 1
    %s4943 = scalar_lea.sflag [#allocation4], 1
    %4944 = vsyncpa %s4943, 1
    %4945 = vsyncpa [#allocation7], 1
    %s4946 = scalar_lea.sflag [#allocation7], 1
    %4947 = vsyncpa %s4946, 1
    %4948 = vsyncpa [#allocation10], 1
    %4949 = vsyncpa [#allocation5], 1
    %s4950 = scalar_lea.sflag [#allocation5], 1
    %4951 = vsyncpa %s4950, 1

</llo_original>
